<compile_context>
chip_gen: v7x
topology: tpu7x:2x2x1
jax: 0.10.0
libtpu: 0.0.40
codegen_flags: <defaults>
</compile_context>

<pallas_src>
import functools
import numpy as np
import jax
import jax.numpy as jnp
from jax import lax
from jax.experimental import pallas as pl
from jax.experimental.pallas import tpu as pltpu

LANES = 128
_EPS = 1e-5


# ----------------------------------------------------------------------------- helpers

def _cparams(*sem):
    return pltpu.CompilerParams(dimension_semantics=sem,
                                vmem_limit_bytes=64 * 1024 * 1024)


def _round_up(n, m):
    return ((n + m - 1) // m) * m


def _row_tile(m, target=512):
    t = min(m, target)
    while m % t:
        t -= 8
    return t


def _pad_axis(x, size, axis):
    pad = [(0, 0)] * x.ndim
    pad[axis] = (0, size - x.shape[axis])
    return jnp.pad(x, pad)


# ----------------------------------------------------------------------------- conv kernel

def _conv_kernel(x_ref, w_ref, b_ref, s_ref, t_ref, y_ref, st_ref, *,
                 k, ho, wo, fuse_in_bn):
    """Direct conv (stride 1) as k*k accumulated GEMMs + bias + BN partial stats.

    x_ref : (1, Hp, Wp, Cin)  spatially pre-padded input (bf16)
    w_ref : (k*k, Cin, tco)   weights (bf16)
    b_ref : (1, tco)          bias (f32)
    s_ref/t_ref : (1, Cin)    optional fused input BN affine (f32)
    y_ref : (1, Ho*Wo, tco)   conv output (bf16)
    st_ref: (1, 2, tco)       per-channel [sum, sum-of-squares] of this block's rows
    """
    cin = x_ref.shape[-1]
    cout = y_ref.shape[-1]
    xf = x_ref[0].astype(jnp.float32)                       # (Hp, Wp, Cin)
    acc = jnp.zeros((ho * wo, cout), jnp.float32)

    if fuse_in_bn:
        scale = s_ref[...]                                  # (1, Cin) f32
        shift = t_ref[...]
        r = lax.broadcasted_iota(jnp.int32, (ho * wo, 1), 0)
        oi = r // wo                                        # output row index
        oj = r % wo                                         # output col index

    for kh in range(k):
        for kw in range(k):
            slab = xf[kh:kh + ho, kw:kw + wo, :].reshape(ho * wo, cin)
            if fuse_in_bn:
                v = jnp.maximum(slab * scale + shift, 0.0)  # BN + ReLU of previous layer
                # keep the spatial zero-padding zero after the affine+relu
                inside = ((oi + kh >= 1) & (oi + kh <= ho) &
                          (oj + kw >= 1) & (oj + kw <= wo))
                slab = jnp.where(inside, v, 0.0)
            acc = acc + jnp.dot(slab.astype(jnp.bfloat16), w_ref[kh * k + kw],
                                preferred_element_type=jnp.float32)

    acc = acc + b_ref[...]                                   # conv bias (f32 epilogue)
    st_ref[0, 0:1, :] = jnp.sum(acc, axis=0, keepdims=True)
    st_ref[0, 1:2, :] = jnp.sum(acc * acc, axis=0, keepdims=True)
    y_ref[0] = acc.astype(y_ref.dtype)


def conv2d_pallas(x4d, wk, bk, *, k, stride, in_affine=None):
    """x4d: (N,H,W,Cin_p) bf16.  wk: (k*k, Cin_p, Cout_p) bf16.  bk: (1, Cout_p) f32.
    Returns (y4d (N,Ho,Wo,Cout_p) bf16, mean, var) with batch statistics of the output."""
    fuse = in_affine is not None
    if k == 1:
        assert not fuse
        if stride != 1:                     # 1x1 stride-s conv == subsample, then 1x1 stride-1
            x4d = x4d[:, ::stride, ::stride, :]
        pad = 0
    else:
        pad = 1

    n, h, w, cin = x4d.shape
    cout = wk.shape[2]
    ho, wo = h, w                           # kernel always computes the stride-1 output
    assert wo % 8 == 0 and ho % 8 == 0, "spatial dims must be multiples of 8"
    xin = jnp.pad(x4d, ((0, 0), (pad, pad), (pad, pad), (0, 0))) if pad else x4d
    hp, wp = h + 2 * pad, w + 2 * pad

    if fuse:
        scale, shift = in_affine
    else:
        scale = jnp.ones((1, cin), jnp.float32)
        shift = jnp.zeros((1, cin), jnp.float32)

    tco = LANES
    flops = 2 * n * ho * wo * k * k * cin * cout
    bytes_accessed = (xin.size * 2 + wk.size * 2 + bk.size * 4 +
                      n * ho * wo * cout * 2 + n * 2 * cout * 4)
    kern = functools.partial(_conv_kernel, k=k, ho=ho, wo=wo, fuse_in_bn=fuse)
    y2d, stats = pl.pallas_call(
        kern,
        grid=(n, cout // tco),
        in_specs=[
            pl.BlockSpec((1, hp, wp, cin), lambda i, j: (i, 0, 0, 0)),
            pl.BlockSpec((k * k, cin, tco), lambda i, j: (0, 0, j)),
            pl.BlockSpec((1, tco), lambda i, j: (0, j)),
            pl.BlockSpec((1, cin), lambda i, j: (0, 0)),
            pl.BlockSpec((1, cin), lambda i, j: (0, 0)),
        ],
        out_specs=[
            pl.BlockSpec((1, ho * wo, tco), lambda i, j: (i, 0, j)),
            pl.BlockSpec((1, 2, tco), lambda i, j: (i, 0, j)),
        ],
        out_shape=[
            jax.ShapeDtypeStruct((n, ho * wo, cout), jnp.bfloat16),
            jax.ShapeDtypeStruct((n, 2, cout), jnp.float32),
        ],
        compiler_params=_cparams("parallel", "parallel"),
        cost_estimate=pl.CostEstimate(flops=flops, transcendentals=0,
                                      bytes_accessed=bytes_accessed),
    )(xin, wk, bk, scale, shift)

    y4d = y2d.reshape(n, ho, wo, cout)
    if k == 3 and stride != 1:
        # TODO(synk): fold the stride into the kernel via sublane-strided pl.ds reads
        # instead of computing the stride-1 conv and subsampling in the wrapper.
        y4d = y4d[:, ::stride, ::stride, :]
        yf = y4d.astype(jnp.float32)
        mean = jnp.mean(yf, axis=(0, 1, 2))
        var = jnp.mean(yf * yf, axis=(0, 1, 2)) - mean * mean
    else:
        count = float(n * ho * wo)
        mean = jnp.sum(stats[:, 0, :], axis=0) / count
        var = jnp.sum(stats[:, 1, :], axis=0) / count - mean * mean
    return y4d, mean, jnp.maximum(var, 0.0)


# ----------------------------------------------------------------------------- fused elementwise kernels

def _bn_relu_kernel(y_ref, s_ref, t_ref, o_ref):
    v = y_ref[...].astype(jnp.float32) * s_ref[...] + t_ref[...]
    o_ref[...] = jnp.maximum(v, 0.0).astype(o_ref.dtype)


def _bn_add_relu_kernel(y_ref, s_ref, t_ref, r_ref, sr_ref, tr_ref, o_ref):
    v = y_ref[...].astype(jnp.float32) * s_ref[...] + t_ref[...]
    u = r_ref[...].astype(jnp.float32) * sr_ref[...] + tr_ref[...]
    o_ref[...] = jnp.maximum(v + u, 0.0).astype(o_ref.dtype)


def fused_bn_relu(y2d, scale, shift):
    m, c = y2d.shape
    tm = _row_tile(m)
    row = pl.BlockSpec((tm, c), lambda i: (i, 0))
    vec = pl.BlockSpec((1, c), lambda i: (0, 0))
    return pl.pallas_call(
        _bn_relu_kernel,
        grid=(m // tm,),
        in_specs=[row, vec, vec],
        out_specs=row,
        out_shape=jax.ShapeDtypeStruct((m, c), jnp.bfloat16),
        compiler_params=_cparams("parallel"),
    )(y2d, scale, shift)


def fused_bn_add_relu(y2d, scale, shift, res2d, rscale, rshift):
    m, c = y2d.shape
    tm = _row_tile(m)
    row = pl.BlockSpec((tm, c), lambda i: (i, 0))
    vec = pl.BlockSpec((1, c), lambda i: (0, 0))
    return pl.pallas_call(
        _bn_add_relu_kernel,
        grid=(m // tm,),
        in_specs=[row, vec, vec, row, vec, vec],
        out_specs=row,
        out_shape=jax.ShapeDtypeStruct((m, c), jnp.bfloat16),
        compiler_params=_cparams("parallel"),
    )(y2d, scale, shift, res2d, rscale, rshift)


# ----------------------------------------------------------------------------- head (avgpool + fc) kernel

def _head_kernel(x_ref, w_ref, b_ref, o_ref):
    x = x_ref[0].astype(jnp.float32)                       # (HW, C)
    pooled = jnp.mean(x, axis=0, keepdims=True)            # AdaptiveAvgPool2d((1,1)) + Flatten
    o_ref[0] = (jnp.dot(pooled, w_ref[...], preferred_element_type=jnp.float32)
                + b_ref[...])


def head_pallas(feat3d, w, b):
    n, hw, c = feat3d.shape
    ncls = w.shape[1]
    out = pl.pallas_call(
        _head_kernel,
        grid=(n,),
        in_specs=[
            pl.BlockSpec((1, hw, c), lambda i: (i, 0, 0)),
            pl.BlockSpec((c, ncls), lambda i: (0, 0)),
            pl.BlockSpec((1, ncls), lambda i: (0, 0)),
        ],
        out_specs=pl.BlockSpec((1, 1, ncls), lambda i: (i, 0, 0)),
        out_shape=jax.ShapeDtypeStruct((n, 1, ncls), jnp.float32),
        compiler_params=_cparams("parallel"),
    )(feat3d, w, b)
    return out.reshape(n, ncls)


# ----------------------------------------------------------------------------- BN affine (tiny wrapper math)

def bn_affine(mean, var, gamma_p, beta_p, eps=_EPS):
    scale = gamma_p * lax.rsqrt(var + eps)
    shift = beta_p - mean * scale
    return scale.reshape(1, -1).astype(jnp.float32), shift.reshape(1, -1).astype(jnp.float32)


# ----------------------------------------------------------------------------- parameters (PyTorch-style init)

def init_conv(key, cin, cout, k):
    kw_, kb_ = jax.random.split(key)
    fan_out = cout * k * k                                   # kaiming_normal_(mode='fan_out')
    w = jax.random.normal(kw_, (cout, cin, k, k), jnp.float32) * np.sqrt(2.0 / fan_out)
    fan_in = cin * k * k                                     # PyTorch default bias init
    bound = 1.0 / np.sqrt(fan_in)
    b = jax.random.uniform(kb_, (cout,), jnp.float32, -bound, bound)
    cin_p, cout_p = _round_up(cin, LANES), _round_up(cout, LANES)
    wk = jnp.transpose(w, (2, 3, 1, 0)).reshape(k * k, cin, cout)   # (kh,kw,cin,cout) order
    wk = _pad_axis(_pad_axis(wk, cin_p, 1), cout_p, 2).astype(jnp.bfloat16)
    bk = _pad_axis(b.reshape(1, cout), cout_p, 1).astype(jnp.float32)
    return {"w": wk, "b": bk}


def init_bn(c):
    cp = _round_up(c, LANES)
    return {"gamma": _pad_axis(jnp.ones((c,), jnp.float32), cp, 0),
            "beta": jnp.zeros((cp,), jnp.float32)}


def init_fc(key, cin, cout):
    kw_, kb_ = jax.random.split(key)
    bound = 1.0 / np.sqrt(cin)
    w = jax.random.uniform(kw_, (cout, cin), jnp.float32, -bound, bound)
    b = jax.random.uniform(kb_, (cout,), jnp.float32, -bound, bound)
    cin_p, cout_p = _round_up(cin, LANES), _round_up(cout, LANES)
    wk = _pad_axis(_pad_axis(w.T, cin_p, 0), cout_p, 1).astype(jnp.float32)
    bk = _pad_axis(b.reshape(1, cout), cout_p, 1).astype(jnp.float32)
    return {"w": wk, "b": bk}


def init_resnet_params(key, layers, base_width=8, widen_factor=1, in_ch=3, num_classes=10):
    keys = iter(jax.random.split(key, 128))
    params = {"num_classes": num_classes}
    inplanes = base_width
    params["conv1"] = init_conv(next(keys), in_ch, inplanes, 3)
    params["bn1"] = init_bn(inplanes)
    stage_planes = [base_width * widen_factor, base_width * 2 * widen_factor,
                    base_width * 4 * widen_factor]
    stage_strides = [1, 2, 2]
    stages = []
    for planes, stride, nblocks in zip(stage_planes, stage_strides, layers):
        blocks = []
        for bi in range(nblocks):
            s = stride if bi == 0 else 1
            blk = {"stride": s,
                   "conv1": init_conv(next(keys), inplanes, planes, 3),
                   "bn1": init_bn(planes),
                   "conv2": init_conv(next(keys), planes, planes, 3),
                   "bn2": init_bn(planes)}
            if s != 1 or inplanes != planes:
                blk["ds_conv"] = init_conv(next(keys), inplanes, planes, 1)
                blk["ds_bn"] = init_bn(planes)
            blocks.append(blk)
            inplanes = planes
        stages.append(blocks)
    params["stages"] = stages
    params["fc"] = init_fc(next(keys), inplanes, num_classes)
    return params


# ----------------------------------------------------------------------------- forward

def basic_block_forward(x4d, blk):
    # conv1 (3x3, stride s) -> raw y1 + BN1 batch stats
    y1, m1, v1 = conv2d_pallas(x4d, blk["conv1"]["w"], blk["conv1"]["b"],
                               k=3, stride=blk["stride"])
    s1, t1 = bn_affine(m1, v1, blk["bn1"]["gamma"], blk["bn1"]["beta"])
    # conv2 (3x3, stride 1) with BN1+ReLU fused into its input stage
    y2, m2, v2 = conv2d_pallas(y1, blk["conv2"]["w"], blk["conv2"]["b"],
                               k=3, stride=1, in_affine=(s1, t1))
    s2, t2 = bn_affine(m2, v2, blk["bn2"]["gamma"], blk["bn2"]["beta"])
    if "ds_conv" in blk:
        yd, md, vd = conv2d_pallas(x4d, blk["ds_conv"]["w"], blk["ds_conv"]["b"],
                                   k=1, stride=blk["stride"])
        sr, tr = bn_affine(md, vd, blk["ds_bn"]["gamma"], blk["ds_bn"]["beta"])
        res = yd
    else:
        res = x4d
        cp = x4d.shape[-1]
        sr = jnp.ones((1, cp), jnp.float32)
        tr = jnp.zeros((1, cp), jnp.float32)
    n, ho, wo, c = y2.shape
    out = fused_bn_add_relu(y2.reshape(n * ho * wo, c), s2, t2,
                            res.reshape(n * ho * wo, c), sr, tr)
    return out.reshape(n, ho, wo, c)


def resnet_forward(params, x_nchw):
    x = jnp.transpose(x_nchw, (0, 2, 3, 1)).astype(jnp.float32)       # NCHW -> NHWC
    n, h, w, c = x.shape
    x = _pad_axis(x, _round_up(c, LANES), 3).astype(jnp.bfloat16)     # lane-dense channels
    # stem: conv3x3 -> BN -> ReLU
    y0, m0, v0 = conv2d_pallas(x, params["conv1"]["w"], params["conv1"]["b"], k=3, stride=1)
    s0, t0 = bn_affine(m0, v0, params["bn1"]["gamma"], params["bn1"]["beta"])
    n, h, w, c = y0.shape
    a = fused_bn_relu(y0.reshape(n * h * w, c), s0, t0).reshape(n, h, w, c)
    # residual stages
    for blocks in params["stages"]:
        for blk in blocks:
            a = basic_block_forward(a, blk)
    # adaptive avg-pool + flatten + fc (fused in one kernel), then un-pad classes
    n, h, w, c = a.shape
    logits = head_pallas(a.reshape(n, h * w, c), params["fc"]["w"], params["fc"]["b"])
    return logits[:, :params["num_classes"]]


if __name__ == "__main__":
    key = jax.random.PRNGKey(0)
    pkey, xkey = jax.random.split(key)
    # small deterministic config: layers=[1,1,1], base_width=8, widen=1, in_ch=3,
    # in_dim=32 (module default spatial size), num_classes=10
    params = init_resnet_params(pkey, layers=[1, 1, 1], base_width=8,
                                widen_factor=1, in_ch=3, num_classes=10)
    x = jax.random.normal(xkey, (2, 3, 32, 32), jnp.float32)          # NCHW like PyTorch
    out = resnet_forward(params, x)
    jax.block_until_ready(out)
    assert out.shape == (2, 10) and out.dtype == jnp.float32
    assert bool(jnp.all(jnp.isfinite(out)))
    print("KERNEL_OK")
</pallas_src>

<mosaic_0001>
module attributes {stable_mosaic.version = 11 : i64} {
  func.func @_conv_kernel(%arg0: i32, %arg1: i32, %arg2: memref<1x34x34x128xbf16, #tpu.memory_space<vmem>>, %arg3: memref<9x128x128xbf16, #tpu.memory_space<vmem>>, %arg4: memref<1x128xf32, #tpu.memory_space<vmem>>, %arg5: memref<1x128xf32, #tpu.memory_space<vmem>>, %arg6: memref<1x128xf32, #tpu.memory_space<vmem>>, %arg7: memref<1x1024x128xbf16, #tpu.memory_space<vmem>>, %arg8: memref<1x2x128xf32, #tpu.memory_space<vmem>>) attributes {dimension_semantics = [#tpu.dimension_semantics<parallel>, #tpu.dimension_semantics<parallel>], iteration_bounds = array<i64: 2, 1>, scalar_prefetch = 0 : i64, scratch_operands = 0 : i64, tpu.core_type = #tpu.core_type<tc>, window_params = [{transform_indices = @transform_0, window_bounds = array<i64: 1, 34, 34, 128>}, {transform_indices = @transform_1, window_bounds = array<i64: 9, 128, 128>}, {transform_indices = @transform_2, window_bounds = array<i64: 1, 128>}, {pipeline_mode = #tpu.pipeline_mode<synchronous>, transform_indices = @transform_3, window_bounds = array<i64: 1, 128>}, {pipeline_mode = #tpu.pipeline_mode<synchronous>, transform_indices = @transform_4, window_bounds = array<i64: 1, 128>}, {transform_indices = @transform_5, window_bounds = array<i64: 1, 1024, 128>}, {transform_indices = @transform_6, window_bounds = array<i64: 1, 2, 128>}]} {
    %c0 = arith.constant 0 : index
    %c0_0 = arith.constant 0 : index
    %c0_1 = arith.constant 0 : index
    %c0_2 = arith.constant 0 : index
    %0 = vector.load %arg2[%c0, %c0_0, %c0_1, %c0_2] : memref<1x34x34x128xbf16, #tpu.memory_space<vmem>>, vector<1x34x34x128xbf16>
    %1 = vector.shape_cast %0 : vector<1x34x34x128xbf16> to vector<34x34x128xbf16>
    %2 = arith.extf %1 : vector<34x34x128xbf16> to vector<34x34x128xf32>
    %cst = arith.constant 0.000000e+00 : f32
    %3 = vector.broadcast %cst : f32 to vector<1024x128xf32>
    %4 = vector.extract_strided_slice %2 {offsets = [0, 0, 0], sizes = [32, 32, 128], strides = [1, 1, 1]} : vector<34x34x128xf32> to vector<32x32x128xf32>
    %5 = vector.shape_cast %4 : vector<32x32x128xf32> to vector<1024x128xf32>
    %6 = arith.truncf %5 : vector<1024x128xf32> to vector<1024x128xbf16>
    %c0_3 = arith.constant 0 : index
    %c0_4 = arith.constant 0 : index
    %c0_5 = arith.constant 0 : index
    %7 = vector.load %arg3[%c0_3, %c0_4, %c0_5] : memref<9x128x128xbf16, #tpu.memory_space<vmem>>, vector<1x128x128xbf16>
    %8 = vector.shape_cast %7 : vector<1x128x128xbf16> to vector<128x128xbf16>
    %cst_6 = arith.constant dense<0.000000e+00> : vector<1024x128xf32>
    %9 = tpu.matmul %6, %8, %cst_6 {dimension_numbers = #tpu.dot_dimension_numbers<[1], [0], [0], [1], [0, 0, 1, 1], [], []>} : vector<1024x128xbf16>, vector<128x128xbf16>, vector<1024x128xf32> -> vector<1024x128xf32>
    %10 = arith.addf %3, %9 : vector<1024x128xf32>
    %11 = vector.extract_strided_slice %2 {offsets = [0, 1, 0], sizes = [32, 32, 128], strides = [1, 1, 1]} : vector<34x34x128xf32> to vector<32x32x128xf32>
    %12 = vector.shape_cast %11 : vector<32x32x128xf32> to vector<1024x128xf32>
    %13 = arith.truncf %12 : vector<1024x128xf32> to vector<1024x128xbf16>
    %c1 = arith.constant 1 : index
    %c0_7 = arith.constant 0 : index
    %c0_8 = arith.constant 0 : index
    %14 = vector.load %arg3[%c1, %c0_7, %c0_8] : memref<9x128x128xbf16, #tpu.memory_space<vmem>>, vector<1x128x128xbf16>
    %15 = vector.shape_cast %14 : vector<1x128x128xbf16> to vector<128x128xbf16>
    %cst_9 = arith.constant dense<0.000000e+00> : vector<1024x128xf32>
    %16 = tpu.matmul %13, %15, %cst_9 {dimension_numbers = #tpu.dot_dimension_numbers<[1], [0], [0], [1], [0, 0, 1, 1], [], []>} : vector<1024x128xbf16>, vector<128x128xbf16>, vector<1024x128xf32> -> vector<1024x128xf32>
    %17 = arith.addf %10, %16 : vector<1024x128xf32>
    %18 = vector.extract_strided_slice %2 {offsets = [0, 2, 0], sizes = [32, 32, 128], strides = [1, 1, 1]} : vector<34x34x128xf32> to vector<32x32x128xf32>
    %19 = vector.shape_cast %18 : vector<32x32x128xf32> to vector<1024x128xf32>
    %20 = arith.truncf %19 : vector<1024x128xf32> to vector<1024x128xbf16>
    %c2 = arith.constant 2 : index
    %c0_10 = arith.constant 0 : index
    %c0_11 = arith.constant 0 : index
    %21 = vector.load %arg3[%c2, %c0_10, %c0_11] : memref<9x128x128xbf16, #tpu.memory_space<vmem>>, vector<1x128x128xbf16>
    %22 = vector.shape_cast %21 : vector<1x128x128xbf16> to vector<128x128xbf16>
    %cst_12 = arith.constant dense<0.000000e+00> : vector<1024x128xf32>
    %23 = tpu.matmul %20, %22, %cst_12 {dimension_numbers = #tpu.dot_dimension_numbers<[1], [0], [0], [1], [0, 0, 1, 1], [], []>} : vector<1024x128xbf16>, vector<128x128xbf16>, vector<1024x128xf32> -> vector<1024x128xf32>
    %24 = arith.addf %17, %23 : vector<1024x128xf32>
    %25 = vector.extract_strided_slice %2 {offsets = [1, 0, 0], sizes = [32, 32, 128], strides = [1, 1, 1]} : vector<34x34x128xf32> to vector<32x32x128xf32>
    %26 = vector.shape_cast %25 : vector<32x32x128xf32> to vector<1024x128xf32>
    %27 = arith.truncf %26 : vector<1024x128xf32> to vector<1024x128xbf16>
    %c3 = arith.constant 3 : index
    %c0_13 = arith.constant 0 : index
    %c0_14 = arith.constant 0 : index
    %28 = vector.load %arg3[%c3, %c0_13, %c0_14] : memref<9x128x128xbf16, #tpu.memory_space<vmem>>, vector<1x128x128xbf16>
    %29 = vector.shape_cast %28 : vector<1x128x128xbf16> to vector<128x128xbf16>
    %cst_15 = arith.constant dense<0.000000e+00> : vector<1024x128xf32>
    %30 = tpu.matmul %27, %29, %cst_15 {dimension_numbers = #tpu.dot_dimension_numbers<[1], [0], [0], [1], [0, 0, 1, 1], [], []>} : vector<1024x128xbf16>, vector<128x128xbf16>, vector<1024x128xf32> -> vector<1024x128xf32>
    %31 = arith.addf %24, %30 : vector<1024x128xf32>
    %32 = vector.extract_strided_slice %2 {offsets = [1, 1, 0], sizes = [32, 32, 128], strides = [1, 1, 1]} : vector<34x34x128xf32> to vector<32x32x128xf32>
    %33 = vector.shape_cast %32 : vector<32x32x128xf32> to vector<1024x128xf32>
    %34 = arith.truncf %33 : vector<1024x128xf32> to vector<1024x128xbf16>
    %c4 = arith.constant 4 : index
    %c0_16 = arith.constant 0 : index
    %c0_17 = arith.constant 0 : index
    %35 = vector.load %arg3[%c4, %c0_16, %c0_17] : memref<9x128x128xbf16, #tpu.memory_space<vmem>>, vector<1x128x128xbf16>
    %36 = vector.shape_cast %35 : vector<1x128x128xbf16> to vector<128x128xbf16>
    %cst_18 = arith.constant dense<0.000000e+00> : vector<1024x128xf32>
    %37 = tpu.matmul %34, %36, %cst_18 {dimension_numbers = #tpu.dot_dimension_numbers<[1], [0], [0], [1], [0, 0, 1, 1], [], []>} : vector<1024x128xbf16>, vector<128x128xbf16>, vector<1024x128xf32> -> vector<1024x128xf32>
    %38 = arith.addf %31, %37 : vector<1024x128xf32>
    %39 = vector.extract_strided_slice %2 {offsets = [1, 2, 0], sizes = [32, 32, 128], strides = [1, 1, 1]} : vector<34x34x128xf32> to vector<32x32x128xf32>
    %40 = vector.shape_cast %39 : vector<32x32x128xf32> to vector<1024x128xf32>
    %41 = arith.truncf %40 : vector<1024x128xf32> to vector<1024x128xbf16>
    %c5 = arith.constant 5 : index
    %c0_19 = arith.constant 0 : index
    %c0_20 = arith.constant 0 : index
    %42 = vector.load %arg3[%c5, %c0_19, %c0_20] : memref<9x128x128xbf16, #tpu.memory_space<vmem>>, vector<1x128x128xbf16>
    %43 = vector.shape_cast %42 : vector<1x128x128xbf16> to vector<128x128xbf16>
    %cst_21 = arith.constant dense<0.000000e+00> : vector<1024x128xf32>
    %44 = tpu.matmul %41, %43, %cst_21 {dimension_numbers = #tpu.dot_dimension_numbers<[1], [0], [0], [1], [0, 0, 1, 1], [], []>} : vector<1024x128xbf16>, vector<128x128xbf16>, vector<1024x128xf32> -> vector<1024x128xf32>
    %45 = arith.addf %38, %44 : vector<1024x128xf32>
    %46 = vector.extract_strided_slice %2 {offsets = [2, 0, 0], sizes = [32, 32, 128], strides = [1, 1, 1]} : vector<34x34x128xf32> to vector<32x32x128xf32>
    %47 = vector.shape_cast %46 : vector<32x32x128xf32> to vector<1024x128xf32>
    %48 = arith.truncf %47 : vector<1024x128xf32> to vector<1024x128xbf16>
    %c6 = arith.constant 6 : index
    %c0_22 = arith.constant 0 : index
    %c0_23 = arith.constant 0 : index
    %49 = vector.load %arg3[%c6, %c0_22, %c0_23] : memref<9x128x128xbf16, #tpu.memory_space<vmem>>, vector<1x128x128xbf16>
    %50 = vector.shape_cast %49 : vector<1x128x128xbf16> to vector<128x128xbf16>
    %cst_24 = arith.constant dense<0.000000e+00> : vector<1024x128xf32>
    %51 = tpu.matmul %48, %50, %cst_24 {dimension_numbers = #tpu.dot_dimension_numbers<[1], [0], [0], [1], [0, 0, 1, 1], [], []>} : vector<1024x128xbf16>, vector<128x128xbf16>, vector<1024x128xf32> -> vector<1024x128xf32>
    %52 = arith.addf %45, %51 : vector<1024x128xf32>
    %53 = vector.extract_strided_slice %2 {offsets = [2, 1, 0], sizes = [32, 32, 128], strides = [1, 1, 1]} : vector<34x34x128xf32> to vector<32x32x128xf32>
    %54 = vector.shape_cast %53 : vector<32x32x128xf32> to vector<1024x128xf32>
    %55 = arith.truncf %54 : vector<1024x128xf32> to vector<1024x128xbf16>
    %c7 = arith.constant 7 : index
    %c0_25 = arith.constant 0 : index
    %c0_26 = arith.constant 0 : index
    %56 = vector.load %arg3[%c7, %c0_25, %c0_26] : memref<9x128x128xbf16, #tpu.memory_space<vmem>>, vector<1x128x128xbf16>
    %57 = vector.shape_cast %56 : vector<1x128x128xbf16> to vector<128x128xbf16>
    %cst_27 = arith.constant dense<0.000000e+00> : vector<1024x128xf32>
    %58 = tpu.matmul %55, %57, %cst_27 {dimension_numbers = #tpu.dot_dimension_numbers<[1], [0], [0], [1], [0, 0, 1, 1], [], []>} : vector<1024x128xbf16>, vector<128x128xbf16>, vector<1024x128xf32> -> vector<1024x128xf32>
    %59 = arith.addf %52, %58 : vector<1024x128xf32>
    %60 = vector.extract_strided_slice %2 {offsets = [2, 2, 0], sizes = [32, 32, 128], strides = [1, 1, 1]} : vector<34x34x128xf32> to vector<32x32x128xf32>
    %61 = vector.shape_cast %60 : vector<32x32x128xf32> to vector<1024x128xf32>
    %62 = arith.truncf %61 : vector<1024x128xf32> to vector<1024x128xbf16>
    %c8 = arith.constant 8 : index
    %c0_28 = arith.constant 0 : index
    %c0_29 = arith.constant 0 : index
    %63 = vector.load %arg3[%c8, %c0_28, %c0_29] : memref<9x128x128xbf16, #tpu.memory_space<vmem>>, vector<1x128x128xbf16>
    %64 = vector.shape_cast %63 : vector<1x128x128xbf16> to vector<128x128xbf16>
    %cst_30 = arith.constant dense<0.000000e+00> : vector<1024x128xf32>
    %65 = tpu.matmul %62, %64, %cst_30 {dimension_numbers = #tpu.dot_dimension_numbers<[1], [0], [0], [1], [0, 0, 1, 1], [], []>} : vector<1024x128xbf16>, vector<128x128xbf16>, vector<1024x128xf32> -> vector<1024x128xf32>
    %66 = arith.addf %59, %65 : vector<1024x128xf32>
    %c0_31 = arith.constant 0 : index
    %c0_32 = arith.constant 0 : index
    %67 = vector.load %arg4[%c0_31, %c0_32] : memref<1x128xf32, #tpu.memory_space<vmem>>, vector<1x128xf32>
    %68 = vector.broadcast %67 : vector<1x128xf32> to vector<1024x128xf32>
    %69 = arith.addf %66, %68 : vector<1024x128xf32>
    %cst_33 = arith.constant dense<0.000000e+00> : vector<128xf32>
    %70 = vector.multi_reduction <add>, %69, %cst_33 [0] : vector<1024x128xf32> to vector<128xf32>
    %71 = vector.shape_cast %70 : vector<128xf32> to vector<1x128xf32>
    %c0_34 = arith.constant 0 : index
    %c0_35 = arith.constant 0 : index
    %c0_36 = arith.constant 0 : index
    %72 = vector.load %arg8[%c0_34, %c0_35, %c0_36] : memref<1x2x128xf32, #tpu.memory_space<vmem>>, vector<1x1x128xf32>
    %73 = vector.shape_cast %72 : vector<1x1x128xf32> to vector<1x128xf32>
    %74 = vector.shape_cast %71 : vector<1x128xf32> to vector<1x1x128xf32>
    tpu.vector_store %arg8[%c0_34, %c0_35, %c0_36], %74 {strides = array<i32>} : memref<1x2x128xf32, #tpu.memory_space<vmem>>, vector<1x1x128xf32>,
    %75 = arith.mulf %69, %69 : vector<1024x128xf32>
    %cst_37 = arith.constant dense<0.000000e+00> : vector<128xf32>
    %76 = vector.multi_reduction <add>, %75, %cst_37 [0] : vector<1024x128xf32> to vector<128xf32>
    %77 = vector.shape_cast %76 : vector<128xf32> to vector<1x128xf32>
    %c0_38 = arith.constant 0 : index
    %c1_39 = arith.constant 1 : index
    %c0_40 = arith.constant 0 : index
    %78 = vector.load %arg8[%c0_38, %c1_39, %c0_40] : memref<1x2x128xf32, #tpu.memory_space<vmem>>, vector<1x1x128xf32>
    %79 = vector.shape_cast %78 : vector<1x1x128xf32> to vector<1x128xf32>
    %80 = vector.shape_cast %77 : vector<1x128xf32> to vector<1x1x128xf32>
    tpu.vector_store %arg8[%c0_38, %c1_39, %c0_40], %80 {strides = array<i32>} : memref<1x2x128xf32, #tpu.memory_space<vmem>>, vector<1x1x128xf32>,
    %81 = arith.truncf %69 : vector<1024x128xf32> to vector<1024x128xbf16>
    %c0_41 = arith.constant 0 : index
    %c0_42 = arith.constant 0 : index
    %c0_43 = arith.constant 0 : index
    %82 = vector.load %arg7[%c0_41, %c0_42, %c0_43] : memref<1x1024x128xbf16, #tpu.memory_space<vmem>>, vector<1x1024x128xbf16>
    %83 = vector.shape_cast %82 : vector<1x1024x128xbf16> to vector<1024x128xbf16>
    %84 = vector.shape_cast %81 : vector<1024x128xbf16> to vector<1x1024x128xbf16>
    tpu.vector_store %arg7[%c0_41, %c0_42, %c0_43], %84 {strides = array<i32>} : memref<1x1024x128xbf16, #tpu.memory_space<vmem>>, vector<1x1024x128xbf16>,
    return
  }
  func.func @transform_0(%arg0: i32, %arg1: i32) -> (i32, i32, i32, i32) {
    %c0_i32 = arith.constant 0 : i32
    %c0_i32_0 = arith.constant 0 : i32
    %c0_i32_1 = arith.constant 0 : i32
    %c0_i32_2 = arith.constant 0 : i32
    return %arg0, %c0_i32, %c0_i32_0, %c0_i32_1 : i32, i32, i32, i32
  }
  func.func @transform_1(%arg0: i32, %arg1: i32) -> (i32, i32, i32) {
    %c0_i32 = arith.constant 0 : i32
    %c0_i32_0 = arith.constant 0 : i32
    %c0_i32_1 = arith.constant 0 : i32
    return %c0_i32, %c0_i32_0, %arg1 : i32, i32, i32
  }
  func.func @transform_2(%arg0: i32, %arg1: i32) -> (i32, i32) {
    %c0_i32 = arith.constant 0 : i32
    %c0_i32_0 = arith.constant 0 : i32
    return %c0_i32, %arg1 : i32, i32
  }
  func.func @transform_3(%arg0: i32, %arg1: i32) -> (i32, i32) {
    %c0_i32 = arith.constant 0 : i32
    %c0_i32_0 = arith.constant 0 : i32
    %c0_i32_1 = arith.constant 0 : i32
    return %c0_i32, %c0_i32_0 : i32, i32
  }
  func.func @transform_4(%arg0: i32, %arg1: i32) -> (i32, i32) {
    %c0_i32 = arith.constant 0 : i32
    %c0_i32_0 = arith.constant 0 : i32
    %c0_i32_1 = arith.constant 0 : i32
    return %c0_i32, %c0_i32_0 : i32, i32
  }
  func.func @transform_5(%arg0: i32, %arg1: i32) -> (i32, i32, i32) {
    %c0_i32 = arith.constant 0 : i32
    %c0_i32_0 = arith.constant 0 : i32
    return %arg0, %c0_i32, %arg1 : i32, i32, i32
  }
  func.func @transform_6(%arg0: i32, %arg1: i32) -> (i32, i32, i32) {
    %c0_i32 = arith.constant 0 : i32
    %c0_i32_0 = arith.constant 0 : i32
    return %arg0, %c0_i32, %arg1 : i32, i32, i32
  }
}

</mosaic_0001>

<llo_original>
// kernel: tpu_custom_call.1
$region0: #{tpu_custom_call.1}
  #allocation0 [shape = 'u32[]', space=smem, size = 0x4, offset = 0x4, fixed_abs, tag = 'smem constant byte address 0x4 - core index']
  #allocation1 [shape = 'u32[144,128]{1,0:T(1,128)}', space=vmem, size = 0x12000, scoped, tag = 'internal scratch']
  %s0 = inlined_call_operand.hbm [shape: bf16[2,34,34,128], index: 0, kind: input, shape index: {}]
  %s1 = inlined_call_operand.hbm [shape: bf16[9,128,128], index: 1, kind: input, shape index: {}]
  %s2 = inlined_call_operand.hbm [shape: f32[1,128], index: 2, kind: input, shape index: {}]
  %s3 = inlined_call_operand.hbm [shape: f32[1,128], index: 3, kind: input, shape index: {}]
  %s4 = inlined_call_operand.hbm [shape: f32[1,128], index: 4, kind: input, shape index: {}]
  %s5 = inlined_call_operand.hbm [shape: bf16[2,1024,128], index: 5, kind: output, shape index: {0}]
  %s6 = inlined_call_operand.hbm [shape: f32[2,2,128], index: 6, kind: output, shape index: {1}]
  %7 = xla_tuple %s5, %s6
  %s8 = sld [smem:[#allocation0]]
  $region81: #{tpu_custom_call.1} parent=0
    _
  %s10 = ssub.s32 1, %s8
  %s11 = scalar_select 0, %s10, %s8
  $region1: #{tpu_custom_call.1} parent=0
    #allocation2 [shape = 'u8[696320]{0}', space=vmem, size = 0xaa000, scoped, tag = 'input window, operand 0']
    #allocation3 [shape = 's32[2]{0}', space=sflag, size = 0x8, scoped, tag = 'scoped memory for tpu_custom_call.1']
    #allocation4 [shape = 's32[2]{0}', space=sflag, size = 0x8, scoped, tag = 'scoped memory for tpu_custom_call.1']
    #allocation5 [shape = 'u8[294912]{0}', space=vmem, size = 0x48000, scoped, tag = 'input window, operand 1, single buffered']
    #allocation6 [shape = 's32[1]{0}', space=sflag, size = 0x4, scoped, tag = 'scoped memory for tpu_custom_call.1']
    #allocation7 [shape = 'u8[512]{0}', space=vmem, size = 0x400, scoped, tag = 'input window, operand 2, single buffered']
    #allocation8 [shape = 'u8[512]{0}', space=vmem, size = 0x400, scoped, tag = 'input window, operand 3, single buffered']
    #allocation9 [shape = 's32[1]{0}', space=sflag, size = 0x4, scoped, tag = 'scoped memory for tpu_custom_call.1']
    #allocation10 [shape = 'u8[512]{0}', space=vmem, size = 0x400, scoped, tag = 'input window, operand 4, single buffered']
    #allocation11 [shape = 'u8[524288]{0}', space=vmem, size = 0x80000, scoped, tag = 'output window, operand 0']
    #allocation12 [shape = 'u8[2048]{0}', space=vmem, size = 0x800, scoped, tag = 'output window, operand 1']
    #allocation13 [shape = 's32[2]{0}', space=sflag, size = 0x8, scoped, tag = 'scoped memory for tpu_custom_call.1']
    %12 = vsyncpa [#allocation3], 0
    %s13 = scalar_lea.sflag [#allocation3], 1
    %14 = vsyncpa %s13, 0
    %15 = vsyncpa [#allocation6], 0
    %16 = vsyncpa [#allocation9], 0
    %17 = vsyncpa [#allocation4], 0
    %s18 = scalar_lea.sflag [#allocation4], 1
    %19 = vsyncpa %s18, 0
    %20 = vsyncpa [#allocation13], 0
    %s21 = scalar_lea.sflag [#allocation13], 1
    %22 = vsyncpa %s21, 0
    loop: start=0, step=1, limit=4
    $region2: #{tpu_custom_call.1} parent=1 // loop_pre_header
      _
    $region3: #{tpu_custom_call.1} parent=1 // loop_header
      %s24 = sphi 0, %s28
      %p25 = scmp.ge.s32.totalorder %s24, 4
      %s31 = sphi 0, %s43
      %s32 = sphi 0, %s39
      %s33 = sphi 0, %s31
      %s34 = sphi 0, %s32
      %s35 = sphi 0, %s33
      %s36 = sphi 0, %s34
      %s46 = sphi 0, %s48
      %s49 = sphi 0, %s46
      %s50 = sphi 0, %s49
      %s66 = sphi 0, %s50
      %s72 = sphi 0, %s74
      %s75 = sphi 0, %s72
      %s76 = sphi 0, %s75
      %s92 = sphi 0, %s76
      %s98 = sphi 0, %s100
      %s101 = sphi 0, %s98
      %s102 = sphi 0, %s101
      %s118 = sphi 0, %s102
      %s122 = sphi 0, %s122
      %s124 = sphi 0, %s122
      %s125 = sphi 0, %s124
      %s139 = sphi 0, %s125
      %s143 = sphi 0, %s143
      %s145 = sphi 0, %s143
      %s146 = sphi 0, %s145
      %s160 = sphi 0, %s146
      %s168 = sphi 0, %s170
      %s171 = sphi 0, %s168
      %s172 = sphi 0, %s171
      %s188 = sphi 0, %s172
      %s196 = sphi 0, %s198
      %s199 = sphi 0, %s196
      %s200 = sphi 0, %s199
      %s216 = sphi 0, %s200
    $region4: #{tpu_custom_call.1} parent=1 // loop_header_branch
      %27 = sbr.rel (%p25) target = $region8
    $region5: #{tpu_custom_call.1} parent=1 // loop_body
      %s29 = ssub.s32 %s24, 1
      %s30 = ssub.s32 %s24, 2
      %s37 = sadd.s32 1, %s32
      %p38 = scmp.ge.s32.totalorder %s37, 1
      %s39 = scalar_select %p38, 0, %s37
      %s40 = sadd.s32 1, %s31
      %s41 = scalar_select %p38, %s40, %s31
      %p42 = scmp.ge.s32.totalorder %s41, 2
      %s43 = scalar_select %p42, 0, %s41
      %s44 = ssub.s32 %s31, %s43
      %p45 = scmp.eq.s32.totalorder %s44, 0
      %s47 = sadd.s32 %s46, 1
      %s48 = scalar_select %p45, %s46, %s47
      %p51 = pneg %p45
      %p52 = scmp.eq.s32.totalorder %s24, 1
      %p53 = por %p51, %p52
      %p54 = scmp.ne.s32.totalorder %s46, %s49
      %p55 = scmp.eq.s32.totalorder %s24, 0
      %p56 = por %p54, %p55
      %p57 = scmp.ne.s32.totalorder %s46, %s49
      %p58 = scmp.eq.s32.totalorder %s29, 1
      %p59 = por %p57, %p58
      %p60 = scmp.ne.s32.totalorder %s49, %s50
      %p61 = scmp.eq.s32.totalorder %s29, 0
      %p62 = por %p60, %p61
      %p63 = scmp.ne.s32.totalorder %s49, %s50
      %p64 = scmp.eq.s32.totalorder %s30, 1
      %p65 = por %p63, %p64
      %p67 = scmp.ne.s32.totalorder %s50, %s66
      %p68 = scmp.eq.s32.totalorder %s30, 0
      %p69 = por %p67, %p68
      %s70 = ssub.s32 %s32, %s39
      %p71 = scmp.eq.s32.totalorder %s70, 0
      %s73 = sadd.s32 %s72, 1
      %s74 = scalar_select %p71, %s72, %s73
      %p77 = pneg %p71
      %p78 = scmp.eq.s32.totalorder %s24, 1
      %p79 = por %p77, %p78
      %p80 = scmp.ne.s32.totalorder %s72, %s75
      %p81 = scmp.eq.s32.totalorder %s24, 0
      %p82 = por %p80, %p81
      %p83 = scmp.ne.s32.totalorder %s72, %s75
      %p84 = scmp.eq.s32.totalorder %s29, 1
      %p85 = por %p83, %p84
      %p86 = scmp.ne.s32.totalorder %s75, %s76
      %p87 = scmp.eq.s32.totalorder %s29, 0
      %p88 = por %p86, %p87
      %p89 = scmp.ne.s32.totalorder %s75, %s76
      %p90 = scmp.eq.s32.totalorder %s30, 1
      %p91 = por %p89, %p90
      %p93 = scmp.ne.s32.totalorder %s76, %s92
      %p94 = scmp.eq.s32.totalorder %s30, 0
      %p95 = por %p93, %p94
      %s96 = ssub.s32 %s32, %s39
      %p97 = scmp.eq.s32.totalorder %s96, 0
      %s99 = sadd.s32 %s98, 1
      %s100 = scalar_select %p97, %s98, %s99
      %p103 = pneg %p97
      %p104 = scmp.eq.s32.totalorder %s24, 1
      %p105 = por %p103, %p104
      %p106 = scmp.ne.s32.totalorder %s98, %s101
      %p107 = scmp.eq.s32.totalorder %s24, 0
      %p108 = por %p106, %p107
      %p109 = scmp.ne.s32.totalorder %s98, %s101
      %p110 = scmp.eq.s32.totalorder %s29, 1
      %p111 = por %p109, %p110
      %p112 = scmp.ne.s32.totalorder %s101, %s102
      %p113 = scmp.eq.s32.totalorder %s29, 0
      %p114 = por %p112, %p113
      %p115 = scmp.ne.s32.totalorder %s101, %s102
      %p116 = scmp.eq.s32.totalorder %s30, 1
      %p117 = por %p115, %p116
      %p119 = scmp.ne.s32.totalorder %s102, %s118
      %p120 = scmp.eq.s32.totalorder %s30, 0
      %p121 = por %p119, %p120
      %s123 = sadd.s32 %s122, 1
      %p126 = scmp.eq.s32.totalorder %s24, 1
      %p127 = scmp.ne.s32.totalorder %s122, %s124
      %p128 = scmp.eq.s32.totalorder %s24, 0
      %p129 = por %p127, %p128
      %p130 = scmp.ne.s32.totalorder %s122, %s124
      %p131 = scmp.eq.s32.totalorder %s29, 1
      %p132 = por %p130, %p131
      %p133 = scmp.ne.s32.totalorder %s124, %s125
      %p134 = scmp.eq.s32.totalorder %s29, 0
      %p135 = por %p133, %p134
      %p136 = scmp.ne.s32.totalorder %s124, %s125
      %p137 = scmp.eq.s32.totalorder %s30, 1
      %p138 = por %p136, %p137
      %p140 = scmp.ne.s32.totalorder %s125, %s139
      %p141 = scmp.eq.s32.totalorder %s30, 0
      %p142 = por %p140, %p141
      %s144 = sadd.s32 %s143, 1
      %p147 = scmp.eq.s32.totalorder %s24, 1
      %p148 = scmp.ne.s32.totalorder %s143, %s145
      %p149 = scmp.eq.s32.totalorder %s24, 0
      %p150 = por %p148, %p149
      %p151 = scmp.ne.s32.totalorder %s143, %s145
      %p152 = scmp.eq.s32.totalorder %s29, 1
      %p153 = por %p151, %p152
      %p154 = scmp.ne.s32.totalorder %s145, %s146
      %p155 = scmp.eq.s32.totalorder %s29, 0
      %p156 = por %p154, %p155
      %p157 = scmp.ne.s32.totalorder %s145, %s146
      %p158 = scmp.eq.s32.totalorder %s30, 1
      %p159 = por %p157, %p158
      %p161 = scmp.ne.s32.totalorder %s146, %s160
      %p162 = scmp.eq.s32.totalorder %s30, 0
      %p163 = por %p161, %p162
      %s164 = ssub.s32 %s31, %s43
      %s165 = ssub.s32 %s32, %s39
      %s166 = sor.u32 %s164, %s165
      %p167 = scmp.eq.s32.totalorder %s166, 0
      %s169 = sadd.s32 %s168, 1
      %s170 = scalar_select %p167, %s168, %s169
      %p173 = pneg %p167
      %p174 = scmp.eq.s32.totalorder %s24, 1
      %p175 = por %p173, %p174
      %p176 = scmp.ne.s32.totalorder %s168, %s171
      %p177 = scmp.eq.s32.totalorder %s24, 0
      %p178 = por %p176, %p177
      %p179 = scmp.ne.s32.totalorder %s168, %s171
      %p180 = scmp.eq.s32.totalorder %s29, 1
      %p181 = por %p179, %p180
      %p182 = scmp.ne.s32.totalorder %s171, %s172
      %p183 = scmp.eq.s32.totalorder %s29, 0
      %p184 = por %p182, %p183
      %p185 = scmp.ne.s32.totalorder %s171, %s172
      %p186 = scmp.eq.s32.totalorder %s30, 1
      %p187 = por %p185, %p186
      %p189 = scmp.ne.s32.totalorder %s172, %s188
      %p190 = scmp.eq.s32.totalorder %s30, 0
      %p191 = por %p189, %p190
      %s192 = ssub.s32 %s31, %s43
      %s193 = ssub.s32 %s32, %s39
      %s194 = sor.u32 %s192, %s193
      %p195 = scmp.eq.s32.totalorder %s194, 0
      %s197 = sadd.s32 %s196, 1
      %s198 = scalar_select %p195, %s196, %s197
      %p201 = pneg %p195
      %p202 = scmp.eq.s32.totalorder %s24, 1
      %p203 = por %p201, %p202
      %p204 = scmp.ne.s32.totalorder %s196, %s199
      %p205 = scmp.eq.s32.totalorder %s24, 0
      %p206 = por %p204, %p205
      %p207 = scmp.ne.s32.totalorder %s196, %s199
      %p208 = scmp.eq.s32.totalorder %s29, 1
      %p209 = por %p207, %p208
      %p210 = scmp.ne.s32.totalorder %s199, %s200
      %p211 = scmp.eq.s32.totalorder %s29, 0
      %p212 = por %p210, %p211
      %p213 = scmp.ne.s32.totalorder %s199, %s200
      %p214 = scmp.eq.s32.totalorder %s30, 1
      %p215 = por %p213, %p214
      %p217 = scmp.ne.s32.totalorder %s200, %s216
      %p218 = scmp.eq.s32.totalorder %s30, 0
      %p219 = por %p217, %p218
      %p220 = scmp.le.s32.totalorder 1, %s24
      %p221 = scmp.lt.s32.totalorder %s24, 3
      %p222 = pnand %p220, %p221
      %p223 = pneg %p222
      // Predicated region
      $region9: #{tpu_custom_call.1} parent=5 // pred_check
        _
      $region10: #{tpu_custom_call.1} parent=5 // pred_check_branch
        %225 = sbr.rel (%p222) target = $region12
      $region11: #{tpu_custom_call.1} parent=5 // pred_region
        %s226 = ssub.s32 %s24, 1
        // Predicated region
        $region13: #{tpu_custom_call.1} parent=11 // pred_check
          %p227 = pneg %p88
        $region14: #{tpu_custom_call.1} parent=11 // pred_check_branch
          %229 = sbr.rel (%p227) target = $region16
        $region15: #{tpu_custom_call.1} parent=11 // pred_region
          %s231 = ssub.s32 9216, 9216
          %232 = vsyncadd [#allocation6], %s231
          %s233 = smul.addr %s34, 64
          %s234 = scalar_lea.hbm %s1, %s233
          %s235 = sshll.u32 [#allocation5], 4
          %s236 = int_to_ptr.vmem [resolvable:$true] %s235
          %241 = dma.hbm_to_vmem [thread:$0]  %s234, 9216, %s236, [#allocation6], 64, 64, 4
        $region16: #{tpu_custom_call.1} parent=11 // pred_fallthru
          _
        // Predicated region
        $region17: #{tpu_custom_call.1} parent=11 // pred_check
          %p242 = pneg %p114
        $region18: #{tpu_custom_call.1} parent=11 // pred_check_branch
          %244 = sbr.rel (%p242) target = $region20
        $region19: #{tpu_custom_call.1} parent=11 // pred_region
          %s246 = ssub.s32 16, 16
          %247 = vsyncadd [#allocation6], %s246
          %s248 = smul.addr %s34, 16
          %s249 = scalar_lea.hbm %s2, %s248
          %s251 = sshll.u32 [#allocation7], 4
          %s252 = int_to_ptr.vmem [resolvable:$true] %s251
          %254 = dma.hbm_to_vmem [thread:$0]  %s249, 16, %s252, [#allocation6]
        $region20: #{tpu_custom_call.1} parent=11 // pred_fallthru
          _
        // Predicated region
        $region21: #{tpu_custom_call.1} parent=11 // pred_check
          %p255 = pneg %p135
        $region22: #{tpu_custom_call.1} parent=11 // pred_check_branch
          %257 = sbr.rel (%p255) target = $region24
        $region23: #{tpu_custom_call.1} parent=11 // pred_region
          %s259 = ssub.s32 16, 16
          %260 = vsyncadd [#allocation9], %s259
          %s262 = sshll.u32 [#allocation8], 4
          %s263 = int_to_ptr.vmem [resolvable:$true] %s262
          %265 = dma.hbm_to_vmem [thread:$0]  %s3, 16, %s263, [#allocation9]
        $region24: #{tpu_custom_call.1} parent=11 // pred_fallthru
          _
        // Predicated region
        $region25: #{tpu_custom_call.1} parent=11 // pred_check
          %p266 = pneg %p156
        $region26: #{tpu_custom_call.1} parent=11 // pred_check_branch
          %268 = sbr.rel (%p266) target = $region28
        $region27: #{tpu_custom_call.1} parent=11 // pred_region
          %s270 = ssub.s32 16, 16
          %271 = vsyncadd [#allocation9], %s270
          %s273 = sshll.u32 [#allocation10], 4
          %s274 = int_to_ptr.vmem [resolvable:$true] %s273
          %276 = dma.hbm_to_vmem [thread:$0]  %s4, 16, %s274, [#allocation9]
        $region28: #{tpu_custom_call.1} parent=11 // pred_fallthru
          _
      $region12: #{tpu_custom_call.1} parent=5 // pred_fallthru
        _
      %p277 = scmp.lt.s32.totalorder %s24, 2
      // Predicated region
      $region29: #{tpu_custom_call.1} parent=5 // pred_check
        %p278 = pneg %p277
      $region30: #{tpu_custom_call.1} parent=5 // pred_check_branch
        %280 = sbr.rel (%p278) target = $region32
      $region31: #{tpu_custom_call.1} parent=5 // pred_region
        // Predicated region
        $region33: #{tpu_custom_call.1} parent=31 // pred_check
          %p281 = pneg %p56
        $region34: #{tpu_custom_call.1} parent=31 // pred_check_branch
          %283 = sbr.rel (%p281) target = $region36
        $region35: #{tpu_custom_call.1} parent=31 // pred_region
          %s284 = sand.u32 %s46, 1
          %s285 = scalar_lea.sflag [#allocation3], %s284
          %s286 = sand.u32 %s46, 1
          %s287 = smul.addr %s286, 680
          %s288 = scalar_lea.vmem [#allocation2], %s287
          %s290 = ssub.s32 10880, 10880
          %291 = vsyncadd %s285, %s290
          %s292 = smul.addr %s31, 170
          %s293 = smul.addr %s292, 64
          %s294 = scalar_lea.hbm %s0, %s293
          %s295 = sshll.u32 %s288, 4
          %s296 = int_to_ptr.vmem [resolvable:$true] %s295
          %301 = dma.hbm_to_vmem [thread:$0]  %s294, 10880, %s296, %s285, 64, 64, 4
        $region36: #{tpu_custom_call.1} parent=31 // pred_fallthru
          _
      $region32: #{tpu_custom_call.1} parent=5 // pred_fallthru
        _
      %p302 = scmp.le.s32.totalorder 1, %s24
      %p303 = scmp.lt.s32.totalorder %s24, 3
      %p304 = pnand %p302, %p303
      %p305 = pneg %p304
      // Predicated region
      $region37: #{tpu_custom_call.1} parent=5 // pred_check
        _
      $region38: #{tpu_custom_call.1} parent=5 // pred_check_branch
        %307 = sbr.rel (%p304) target = $region40
      $region39: #{tpu_custom_call.1} parent=5 // pred_region
        %s308 = ssub.s32 %s24, 1
        %s309 = sand.u32 %s49, 1
        %s310 = scalar_lea.sflag [#allocation3], %s309
        %s311 = sand.u32 %s49, 1
        %s312 = smul.addr %s311, 680
        %s313 = scalar_lea.vmem [#allocation2], %s312
        // Predicated region
        $region41: #{tpu_custom_call.1} parent=39 // pred_check
          %p314 = pneg %p62
        $region42: #{tpu_custom_call.1} parent=39 // pred_check_branch
          %316 = sbr.rel (%p314) target = $region44
        $region43: #{tpu_custom_call.1} parent=39 // pred_region
          %317 = dma.done %s310, 10880
        $region44: #{tpu_custom_call.1} parent=39 // pred_fallthru
          _
        // Predicated region
        $region45: #{tpu_custom_call.1} parent=39 // pred_check
          %p318 = pneg %p88
        $region46: #{tpu_custom_call.1} parent=39 // pred_check_branch
          %320 = sbr.rel (%p318) target = $region48
        $region47: #{tpu_custom_call.1} parent=39 // pred_region
          %321 = dma.done [#allocation6], 9216
        $region48: #{tpu_custom_call.1} parent=39 // pred_fallthru
          _
        // Predicated region
        $region49: #{tpu_custom_call.1} parent=39 // pred_check
          %p322 = pneg %p114
        $region50: #{tpu_custom_call.1} parent=39 // pred_check_branch
          %324 = sbr.rel (%p322) target = $region52
        $region51: #{tpu_custom_call.1} parent=39 // pred_region
          %325 = dma.done [#allocation6], 16
        $region52: #{tpu_custom_call.1} parent=39 // pred_fallthru
          _
        // Predicated region
        $region53: #{tpu_custom_call.1} parent=39 // pred_check
          %p326 = pneg %p135
        $region54: #{tpu_custom_call.1} parent=39 // pred_check_branch
          %328 = sbr.rel (%p326) target = $region56
        $region55: #{tpu_custom_call.1} parent=39 // pred_region
          %329 = dma.done [#allocation9], 16
        $region56: #{tpu_custom_call.1} parent=39 // pred_fallthru
          _
        // Predicated region
        $region57: #{tpu_custom_call.1} parent=39 // pred_check
          %p330 = pneg %p156
        $region58: #{tpu_custom_call.1} parent=39 // pred_check_branch
          %332 = sbr.rel (%p330) target = $region60
        $region59: #{tpu_custom_call.1} parent=39 // pred_region
          %333 = dma.done [#allocation9], 16
        $region60: #{tpu_custom_call.1} parent=39 // pred_fallthru
          _
        %s334 = sand.u32 %s49, 1
        %s335 = scalar_lea.sflag [#allocation3], %s334
        %s336 = sand.u32 %s49, 1
        %s337 = smul.addr %s336, 680
        %s338 = scalar_lea.vmem [#allocation2], %s337
        %p339 = pneg %p62
        %p340 = pneg %p59
        %p341 = pneg %p88
        %p342 = pneg %p85
        %p343 = pneg %p114
        %p344 = pneg %p111
        %p345 = pneg %p135
        %p346 = pneg %p132
        %p347 = pneg %p156
        %p348 = pneg %p153
        %p349 = pneg %p184
        %p350 = pneg %p181
        %s351 = sand.u32 %s171, 1
        %s352 = scalar_lea.sflag [#allocation4], %s351
        %s353 = sand.u32 %s171, 1
        %s354 = smul.addr %s353, 512
        %s355 = scalar_lea.vmem [#allocation11], %s354
        %p356 = pneg %p212
        %p357 = pneg %p209
        %s358 = sand.u32 %s199, 1
        %s359 = scalar_lea.sflag [#allocation13], %s358
        %s360 = sand.u32 %s199, 1
        %s361 = smul.addr %s360, 2
        %s362 = scalar_lea.vmem [#allocation12], %s361
        %v364 = vld [vmem:[%s313] sm:$0xf]
        %v365 = vld [vmem:[%s313 + $0x4] sm:$0xf]
        %v366 = vld [vmem:[%s313 + $0x8] sm:$0xf]
        %v367 = vld [vmem:[%s313 + $0xc] sm:$0xf]
        %v368 = vld [vmem:[%s313 + $0x10] sm:$0x1]
        %v369 = vld [vmem:[%s313 + $0x14] sm:$0xf]
        %v370 = vld [vmem:[%s313 + $0x18] sm:$0xf]
        %v371 = vld [vmem:[%s313 + $0x1c] sm:$0xf]
        %v372 = vld [vmem:[%s313 + $0x20] sm:$0xf]
        %v373 = vld [vmem:[%s313 + $0x24] sm:$0x1]
        %v374 = vld [vmem:[%s313 + $0x28] sm:$0xf]
        %v375 = vld [vmem:[%s313 + $0x2c] sm:$0xf]
        %v376 = vld [vmem:[%s313 + $0x30] sm:$0xf]
        %v377 = vld [vmem:[%s313 + $0x34] sm:$0xf]
        %v378 = vld [vmem:[%s313 + $0x38] sm:$0x1]
        %v379 = vld [vmem:[%s313 + $0x3c] sm:$0xf]
        %v380 = vld [vmem:[%s313 + $0x40] sm:$0xf]
        %v381 = vld [vmem:[%s313 + $0x44] sm:$0xf]
        %v382 = vld [vmem:[%s313 + $0x48] sm:$0xf]
        %v383 = vld [vmem:[%s313 + $0x4c] sm:$0x1]
        %v384 = vld [vmem:[%s313 + $0x50] sm:$0xf]
        %v385 = vld [vmem:[%s313 + $0x54] sm:$0xf]
        %v386 = vld [vmem:[%s313 + $0x58] sm:$0xf]
        %v387 = vld [vmem:[%s313 + $0x5c] sm:$0xf]
        %v388 = vld [vmem:[%s313 + $0x60] sm:$0x1]
        %v389 = vld [vmem:[%s313 + $0x64] sm:$0xf]
        %v390 = vld [vmem:[%s313 + $0x68] sm:$0xf]
        %v391 = vld [vmem:[%s313 + $0x6c] sm:$0xf]
        %v392 = vld [vmem:[%s313 + $0x70] sm:$0xf]
        %v393 = vld [vmem:[%s313 + $0x74] sm:$0x1]
        %v394 = vld [vmem:[%s313 + $0x78] sm:$0xf]
        %v395 = vld [vmem:[%s313 + $0x7c] sm:$0xf]
        %v396 = vld [vmem:[%s313 + $0x80] sm:$0xf]
        %v397 = vld [vmem:[%s313 + $0x84] sm:$0xf]
        %v398 = vld [vmem:[%s313 + $0x88] sm:$0x1]
        %v399 = vld [vmem:[%s313 + $0x8c] sm:$0xf]
        %v400 = vld [vmem:[%s313 + $0x90] sm:$0xf]
        %v401 = vld [vmem:[%s313 + $0x94] sm:$0xf]
        %v402 = vld [vmem:[%s313 + $0x98] sm:$0xf]
        %v403 = vld [vmem:[%s313 + $0x9c] sm:$0x1]
        %v404 = vld [vmem:[%s313 + $0xa0] sm:$0xf]
        %v405 = vld [vmem:[%s313 + $0xa4] sm:$0xf]
        %v406 = vld [vmem:[%s313 + $0xa8] sm:$0xf]
        %v407 = vld [vmem:[%s313 + $0xac] sm:$0xf]
        %v408 = vld [vmem:[%s313 + $0xb0] sm:$0x1]
        %v409 = vld [vmem:[%s313 + $0xb4] sm:$0xf]
        %v410 = vld [vmem:[%s313 + $0xb8] sm:$0xf]
        %v411 = vld [vmem:[%s313 + $0xbc] sm:$0xf]
        %v412 = vld [vmem:[%s313 + $0xc0] sm:$0xf]
        %v413 = vld [vmem:[%s313 + $0xc4] sm:$0x1]
        %v414 = vld [vmem:[%s313 + $0xc8] sm:$0xf]
        %v415 = vld [vmem:[%s313 + $0xcc] sm:$0xf]
        %v416 = vld [vmem:[%s313 + $0xd0] sm:$0xf]
        %v417 = vld [vmem:[%s313 + $0xd4] sm:$0xf]
        %v418 = vld [vmem:[%s313 + $0xd8] sm:$0x1]
        %v419 = vld [vmem:[%s313 + $0xdc] sm:$0xf]
        %v420 = vld [vmem:[%s313 + $0xe0] sm:$0xf]
        %v421 = vld [vmem:[%s313 + $0xe4] sm:$0xf]
        %v422 = vld [vmem:[%s313 + $0xe8] sm:$0xf]
        %v423 = vld [vmem:[%s313 + $0xec] sm:$0x1]
        %v424 = vld [vmem:[%s313 + $0xf0] sm:$0xf]
        %v425 = vld [vmem:[%s313 + $0xf4] sm:$0xf]
        %v426 = vld [vmem:[%s313 + $0xf8] sm:$0xf]
        %v427 = vld [vmem:[%s313 + $0xfc] sm:$0xf]
        %v428 = vld [vmem:[%s313 + $0x100] sm:$0x1]
        %v429 = vld [vmem:[%s313 + $0x104] sm:$0xf]
        %v430 = vld [vmem:[%s313 + $0x108] sm:$0xf]
        %v431 = vld [vmem:[%s313 + $0x10c] sm:$0xf]
        %v432 = vld [vmem:[%s313 + $0x110] sm:$0xf]
        %v433 = vld [vmem:[%s313 + $0x114] sm:$0x1]
        %v434 = vld [vmem:[%s313 + $0x118] sm:$0xf]
        %v435 = vld [vmem:[%s313 + $0x11c] sm:$0xf]
        %v436 = vld [vmem:[%s313 + $0x120] sm:$0xf]
        %v437 = vld [vmem:[%s313 + $0x124] sm:$0xf]
        %v438 = vld [vmem:[%s313 + $0x128] sm:$0x1]
        %v439 = vld [vmem:[%s313 + $0x12c] sm:$0xf]
        %v440 = vld [vmem:[%s313 + $0x130] sm:$0xf]
        %v441 = vld [vmem:[%s313 + $0x134] sm:$0xf]
        %v442 = vld [vmem:[%s313 + $0x138] sm:$0xf]
        %v443 = vld [vmem:[%s313 + $0x13c] sm:$0x1]
        %v444 = vld [vmem:[%s313 + $0x140] sm:$0xf]
        %v445 = vld [vmem:[%s313 + $0x144] sm:$0xf]
        %v446 = vld [vmem:[%s313 + $0x148] sm:$0xf]
        %v447 = vld [vmem:[%s313 + $0x14c] sm:$0xf]
        %v448 = vld [vmem:[%s313 + $0x150] sm:$0x1]
        %v449 = vld [vmem:[%s313 + $0x154] sm:$0xf]
        %v450 = vld [vmem:[%s313 + $0x158] sm:$0xf]
        %v451 = vld [vmem:[%s313 + $0x15c] sm:$0xf]
        %v452 = vld [vmem:[%s313 + $0x160] sm:$0xf]
        %v453 = vld [vmem:[%s313 + $0x164] sm:$0x1]
        %v454 = vld [vmem:[%s313 + $0x168] sm:$0xf]
        %v455 = vld [vmem:[%s313 + $0x16c] sm:$0xf]
        %v456 = vld [vmem:[%s313 + $0x170] sm:$0xf]
        %v457 = vld [vmem:[%s313 + $0x174] sm:$0xf]
        %v458 = vld [vmem:[%s313 + $0x178] sm:$0x1]
        %v459 = vld [vmem:[%s313 + $0x17c] sm:$0xf]
        %v460 = vld [vmem:[%s313 + $0x180] sm:$0xf]
        %v461 = vld [vmem:[%s313 + $0x184] sm:$0xf]
        %v462 = vld [vmem:[%s313 + $0x188] sm:$0xf]
        %v463 = vld [vmem:[%s313 + $0x18c] sm:$0x1]
        %v464 = vld [vmem:[%s313 + $0x190] sm:$0xf]
        %v465 = vld [vmem:[%s313 + $0x194] sm:$0xf]
        %v466 = vld [vmem:[%s313 + $0x198] sm:$0xf]
        %v467 = vld [vmem:[%s313 + $0x19c] sm:$0xf]
        %v468 = vld [vmem:[%s313 + $0x1a0] sm:$0x1]
        %v469 = vld [vmem:[%s313 + $0x1a4] sm:$0xf]
        %v470 = vld [vmem:[%s313 + $0x1a8] sm:$0xf]
        %v471 = vld [vmem:[%s313 + $0x1ac] sm:$0xf]
        %v472 = vld [vmem:[%s313 + $0x1b0] sm:$0xf]
        %v473 = vld [vmem:[%s313 + $0x1b4] sm:$0x1]
        %v474 = vld [vmem:[%s313 + $0x1b8] sm:$0xf]
        %v475 = vld [vmem:[%s313 + $0x1bc] sm:$0xf]
        %v476 = vld [vmem:[%s313 + $0x1c0] sm:$0xf]
        %v477 = vld [vmem:[%s313 + $0x1c4] sm:$0xf]
        %v478 = vld [vmem:[%s313 + $0x1c8] sm:$0x1]
        %v479 = vld [vmem:[%s313 + $0x1cc] sm:$0xf]
        %v480 = vld [vmem:[%s313 + $0x1d0] sm:$0xf]
        %v481 = vld [vmem:[%s313 + $0x1d4] sm:$0xf]
        %v482 = vld [vmem:[%s313 + $0x1d8] sm:$0xf]
        %v483 = vld [vmem:[%s313 + $0x1dc] sm:$0x1]
        %v484 = vld [vmem:[%s313 + $0x1e0] sm:$0xf]
        %v485 = vld [vmem:[%s313 + $0x1e4] sm:$0xf]
        %v486 = vld [vmem:[%s313 + $0x1e8] sm:$0xf]
        %v487 = vld [vmem:[%s313 + $0x1ec] sm:$0xf]
        %v488 = vld [vmem:[%s313 + $0x1f0] sm:$0x1]
        %v489 = vld [vmem:[%s313 + $0x1f4] sm:$0xf]
        %v490 = vld [vmem:[%s313 + $0x1f8] sm:$0xf]
        %v491 = vld [vmem:[%s313 + $0x1fc] sm:$0xf]
        %v492 = vld [vmem:[%s313 + $0x200] sm:$0xf]
        %v493 = vld [vmem:[%s313 + $0x204] sm:$0x1]
        %v494 = vld [vmem:[%s313 + $0x208] sm:$0xf]
        %v495 = vld [vmem:[%s313 + $0x20c] sm:$0xf]
        %v496 = vld [vmem:[%s313 + $0x210] sm:$0xf]
        %v497 = vld [vmem:[%s313 + $0x214] sm:$0xf]
        %v498 = vld [vmem:[%s313 + $0x218] sm:$0x1]
        %v499 = vld [vmem:[%s313 + $0x21c] sm:$0xf]
        %v500 = vld [vmem:[%s313 + $0x220] sm:$0xf]
        %v501 = vld [vmem:[%s313 + $0x224] sm:$0xf]
        %v502 = vld [vmem:[%s313 + $0x228] sm:$0xf]
        %v503 = vld [vmem:[%s313 + $0x22c] sm:$0x1]
        %v504 = vld [vmem:[%s313 + $0x230] sm:$0xf]
        %v505 = vld [vmem:[%s313 + $0x234] sm:$0xf]
        %v506 = vld [vmem:[%s313 + $0x238] sm:$0xf]
        %v507 = vld [vmem:[%s313 + $0x23c] sm:$0xf]
        %v508 = vld [vmem:[%s313 + $0x240] sm:$0x1]
        %v509 = vld [vmem:[%s313 + $0x244] sm:$0xf]
        %v510 = vld [vmem:[%s313 + $0x248] sm:$0xf]
        %v511 = vld [vmem:[%s313 + $0x24c] sm:$0xf]
        %v512 = vld [vmem:[%s313 + $0x250] sm:$0xf]
        %v513 = vld [vmem:[%s313 + $0x254] sm:$0x1]
        %v514 = vld [vmem:[%s313 + $0x258] sm:$0xf]
        %v515 = vld [vmem:[%s313 + $0x25c] sm:$0xf]
        %v516 = vld [vmem:[%s313 + $0x260] sm:$0xf]
        %v517 = vld [vmem:[%s313 + $0x264] sm:$0xf]
        %v518 = vld [vmem:[%s313 + $0x268] sm:$0x1]
        %v519 = vld [vmem:[%s313 + $0x26c] sm:$0xf]
        %v520 = vld [vmem:[%s313 + $0x270] sm:$0xf]
        %v521 = vld [vmem:[%s313 + $0x274] sm:$0xf]
        %v522 = vld [vmem:[%s313 + $0x278] sm:$0xf]
        %v523 = vld [vmem:[%s313 + $0x27c] sm:$0x1]
        %v524 = vld [vmem:[%s313 + $0x280] sm:$0xf]
        %v525 = vld [vmem:[%s313 + $0x284] sm:$0xf]
        %v526 = vld [vmem:[%s313 + $0x288] sm:$0xf]
        %v527 = vld [vmem:[%s313 + $0x28c] sm:$0xf]
        %v528 = vld [vmem:[%s313 + $0x290] sm:$0x1]
        %v529 = vld [vmem:[%s313 + $0x294] sm:$0xf]
        %v530 = vld [vmem:[%s313 + $0x298] sm:$0xf]
        %v531 = vld [vmem:[%s313 + $0x29c] sm:$0xf]
        %v532 = vld [vmem:[%s313 + $0x2a0] sm:$0xf]
        %v533 = vld [vmem:[%s313 + $0x2a4] sm:$0x1]
        %v534 = vunpack.c.l.bf16 %v364
        %v535 = vunpack.c.l.bf16 %v365
        %v536 = vunpack.c.l.bf16 %v366
        %v537 = vunpack.c.l.bf16 %v367
        %v538 = vunpack.c.l.bf16 %v368
        %v539 = vunpack.c.l.bf16 %v369
        %v540 = vunpack.c.l.bf16 %v370
        %v541 = vunpack.c.l.bf16 %v371
        %v542 = vunpack.c.l.bf16 %v372
        %v543 = vunpack.c.l.bf16 %v373
        %v544 = vunpack.c.l.bf16 %v374
        %v545 = vunpack.c.l.bf16 %v375
        %v546 = vunpack.c.l.bf16 %v376
        %v547 = vunpack.c.l.bf16 %v377
        %v548 = vunpack.c.l.bf16 %v378
        %v549 = vunpack.c.l.bf16 %v379
        %v550 = vunpack.c.l.bf16 %v380
        %v551 = vunpack.c.l.bf16 %v381
        %v552 = vunpack.c.l.bf16 %v382
        %v553 = vunpack.c.l.bf16 %v383
        %v554 = vunpack.c.l.bf16 %v384
        %v555 = vunpack.c.l.bf16 %v385
        %v556 = vunpack.c.l.bf16 %v386
        %v557 = vunpack.c.l.bf16 %v387
        %v558 = vunpack.c.l.bf16 %v388
        %v559 = vunpack.c.l.bf16 %v389
        %v560 = vunpack.c.l.bf16 %v390
        %v561 = vunpack.c.l.bf16 %v391
        %v562 = vunpack.c.l.bf16 %v392
        %v563 = vunpack.c.l.bf16 %v393
        %v564 = vunpack.c.l.bf16 %v394
        %v565 = vunpack.c.l.bf16 %v395
        %v566 = vunpack.c.l.bf16 %v396
        %v567 = vunpack.c.l.bf16 %v397
        %v568 = vunpack.c.l.bf16 %v398
        %v569 = vunpack.c.l.bf16 %v399
        %v570 = vunpack.c.l.bf16 %v400
        %v571 = vunpack.c.l.bf16 %v401
        %v572 = vunpack.c.l.bf16 %v402
        %v573 = vunpack.c.l.bf16 %v403
        %v574 = vunpack.c.l.bf16 %v404
        %v575 = vunpack.c.l.bf16 %v405
        %v576 = vunpack.c.l.bf16 %v406
        %v577 = vunpack.c.l.bf16 %v407
        %v578 = vunpack.c.l.bf16 %v408
        %v579 = vunpack.c.l.bf16 %v409
        %v580 = vunpack.c.l.bf16 %v410
        %v581 = vunpack.c.l.bf16 %v411
        %v582 = vunpack.c.l.bf16 %v412
        %v583 = vunpack.c.l.bf16 %v413
        %v584 = vunpack.c.l.bf16 %v414
        %v585 = vunpack.c.l.bf16 %v415
        %v586 = vunpack.c.l.bf16 %v416
        %v587 = vunpack.c.l.bf16 %v417
        %v588 = vunpack.c.l.bf16 %v418
        %v589 = vunpack.c.l.bf16 %v419
        %v590 = vunpack.c.l.bf16 %v420
        %v591 = vunpack.c.l.bf16 %v421
        %v592 = vunpack.c.l.bf16 %v422
        %v593 = vunpack.c.l.bf16 %v423
        %v594 = vunpack.c.l.bf16 %v424
        %v595 = vunpack.c.l.bf16 %v425
        %v596 = vunpack.c.l.bf16 %v426
        %v597 = vunpack.c.l.bf16 %v427
        %v598 = vunpack.c.l.bf16 %v428
        %v599 = vunpack.c.l.bf16 %v429
        %v600 = vunpack.c.l.bf16 %v430
        %v601 = vunpack.c.l.bf16 %v431
        %v602 = vunpack.c.l.bf16 %v432
        %v603 = vunpack.c.l.bf16 %v433
        %v604 = vunpack.c.l.bf16 %v434
        %v605 = vunpack.c.l.bf16 %v435
        %v606 = vunpack.c.l.bf16 %v436
        %v607 = vunpack.c.l.bf16 %v437
        %v608 = vunpack.c.l.bf16 %v438
        %v609 = vunpack.c.l.bf16 %v439
        %v610 = vunpack.c.l.bf16 %v440
        %v611 = vunpack.c.l.bf16 %v441
        %v612 = vunpack.c.l.bf16 %v442
        %v613 = vunpack.c.l.bf16 %v443
        %v614 = vunpack.c.l.bf16 %v444
        %v615 = vunpack.c.l.bf16 %v445
        %v616 = vunpack.c.l.bf16 %v446
        %v617 = vunpack.c.l.bf16 %v447
        %v618 = vunpack.c.l.bf16 %v448
        %v619 = vunpack.c.l.bf16 %v449
        %v620 = vunpack.c.l.bf16 %v450
        %v621 = vunpack.c.l.bf16 %v451
        %v622 = vunpack.c.l.bf16 %v452
        %v623 = vunpack.c.l.bf16 %v453
        %v624 = vunpack.c.l.bf16 %v454
        %v625 = vunpack.c.l.bf16 %v455
        %v626 = vunpack.c.l.bf16 %v456
        %v627 = vunpack.c.l.bf16 %v457
        %v628 = vunpack.c.l.bf16 %v458
        %v629 = vunpack.c.l.bf16 %v459
        %v630 = vunpack.c.l.bf16 %v460
        %v631 = vunpack.c.l.bf16 %v461
        %v632 = vunpack.c.l.bf16 %v462
        %v633 = vunpack.c.l.bf16 %v463
        %v634 = vunpack.c.l.bf16 %v464
        %v635 = vunpack.c.l.bf16 %v465
        %v636 = vunpack.c.l.bf16 %v466
        %v637 = vunpack.c.l.bf16 %v467
        %v638 = vunpack.c.l.bf16 %v468
        %v639 = vunpack.c.l.bf16 %v469
        %v640 = vunpack.c.l.bf16 %v470
        %v641 = vunpack.c.l.bf16 %v471
        %v642 = vunpack.c.l.bf16 %v472
        %v643 = vunpack.c.l.bf16 %v473
        %v644 = vunpack.c.l.bf16 %v474
        %v645 = vunpack.c.l.bf16 %v475
        %v646 = vunpack.c.l.bf16 %v476
        %v647 = vunpack.c.l.bf16 %v477
        %v648 = vunpack.c.l.bf16 %v478
        %v649 = vunpack.c.l.bf16 %v479
        %v650 = vunpack.c.l.bf16 %v480
        %v651 = vunpack.c.l.bf16 %v481
        %v652 = vunpack.c.l.bf16 %v482
        %v653 = vunpack.c.l.bf16 %v483
        %v654 = vunpack.c.l.bf16 %v484
        %v655 = vunpack.c.l.bf16 %v485
        %v656 = vunpack.c.l.bf16 %v486
        %v657 = vunpack.c.l.bf16 %v487
        %v658 = vunpack.c.l.bf16 %v488
        %v659 = vunpack.c.l.bf16 %v489
        %v660 = vunpack.c.l.bf16 %v490
        %v661 = vunpack.c.l.bf16 %v491
        %v662 = vunpack.c.l.bf16 %v492
        %v663 = vunpack.c.l.bf16 %v493
        %v664 = vunpack.c.l.bf16 %v494
        %v665 = vunpack.c.l.bf16 %v495
        %v666 = vunpack.c.l.bf16 %v496
        %v667 = vunpack.c.l.bf16 %v497
        %v668 = vunpack.c.l.bf16 %v498
        %v669 = vunpack.c.l.bf16 %v499
        %v670 = vunpack.c.l.bf16 %v500
        %v671 = vunpack.c.l.bf16 %v501
        %v672 = vunpack.c.l.bf16 %v502
        %v673 = vunpack.c.l.bf16 %v503
        %v674 = vunpack.c.l.bf16 %v504
        %v675 = vunpack.c.l.bf16 %v505
        %v676 = vunpack.c.l.bf16 %v506
        %v677 = vunpack.c.l.bf16 %v507
        %v678 = vunpack.c.l.bf16 %v508
        %v679 = vunpack.c.l.bf16 %v509
        %v680 = vunpack.c.l.bf16 %v510
        %v681 = vunpack.c.l.bf16 %v511
        %v682 = vunpack.c.l.bf16 %v512
        %v683 = vunpack.c.l.bf16 %v513
        %v684 = vunpack.c.l.bf16 %v514
        %v685 = vunpack.c.l.bf16 %v515
        %v686 = vunpack.c.l.bf16 %v516
        %v687 = vunpack.c.l.bf16 %v517
        %v688 = vunpack.c.l.bf16 %v518
        %v689 = vunpack.c.l.bf16 %v519
        %v690 = vunpack.c.l.bf16 %v520
        %v691 = vunpack.c.l.bf16 %v521
        %v692 = vunpack.c.l.bf16 %v522
        %v693 = vunpack.c.l.bf16 %v523
        %v694 = vunpack.c.l.bf16 %v524
        %v695 = vunpack.c.l.bf16 %v525
        %v696 = vunpack.c.l.bf16 %v526
        %v697 = vunpack.c.l.bf16 %v527
        %v698 = vunpack.c.l.bf16 %v528
        %v699 = vunpack.c.l.bf16 %v529
        %v700 = vunpack.c.l.bf16 %v530
        %v701 = vunpack.c.l.bf16 %v531
        %v702 = vunpack.c.l.bf16 %v532
        %v703 = vunpack.c.l.bf16 %v533
        %v704 = vpack.c.bf16 %v535, %v534
        %v705 = vpack.c.bf16 %v537, %v536
        %v706 = vpack.c.bf16 %v540, %v539
        %v707 = vpack.c.bf16 %v542, %v541
        %v708 = vpack.c.bf16 %v545, %v544
        %v709 = vpack.c.bf16 %v547, %v546
        %v710 = vpack.c.bf16 %v550, %v549
        %v711 = vpack.c.bf16 %v552, %v551
        %v712 = vpack.c.bf16 %v555, %v554
        %v713 = vpack.c.bf16 %v557, %v556
        %v714 = vpack.c.bf16 %v560, %v559
        %v715 = vpack.c.bf16 %v562, %v561
        %v716 = vpack.c.bf16 %v565, %v564
        %v717 = vpack.c.bf16 %v567, %v566
        %v718 = vpack.c.bf16 %v570, %v569
        %v719 = vpack.c.bf16 %v572, %v571
        %v720 = vpack.c.bf16 %v575, %v574
        %v721 = vpack.c.bf16 %v577, %v576
        %v722 = vpack.c.bf16 %v580, %v579
        %v723 = vpack.c.bf16 %v582, %v581
        %v724 = vpack.c.bf16 %v585, %v584
        %v725 = vpack.c.bf16 %v587, %v586
        %v726 = vpack.c.bf16 %v590, %v589
        %v727 = vpack.c.bf16 %v592, %v591
        %v728 = vpack.c.bf16 %v595, %v594
        %v729 = vpack.c.bf16 %v597, %v596
        %v730 = vpack.c.bf16 %v600, %v599
        %v731 = vpack.c.bf16 %v602, %v601
        %v732 = vpack.c.bf16 %v605, %v604
        %v733 = vpack.c.bf16 %v607, %v606
        %v734 = vpack.c.bf16 %v610, %v609
        %v735 = vpack.c.bf16 %v612, %v611
        %v736 = vpack.c.bf16 %v615, %v614
        %v737 = vpack.c.bf16 %v617, %v616
        %v738 = vpack.c.bf16 %v620, %v619
        %v739 = vpack.c.bf16 %v622, %v621
        %v740 = vpack.c.bf16 %v625, %v624
        %v741 = vpack.c.bf16 %v627, %v626
        %v742 = vpack.c.bf16 %v630, %v629
        %v743 = vpack.c.bf16 %v632, %v631
        %v744 = vpack.c.bf16 %v635, %v634
        %v745 = vpack.c.bf16 %v637, %v636
        %v746 = vpack.c.bf16 %v640, %v639
        %v747 = vpack.c.bf16 %v642, %v641
        %v748 = vpack.c.bf16 %v645, %v644
        %v749 = vpack.c.bf16 %v647, %v646
        %v750 = vpack.c.bf16 %v650, %v649
        %v751 = vpack.c.bf16 %v652, %v651
        %v752 = vpack.c.bf16 %v655, %v654
        %v753 = vpack.c.bf16 %v657, %v656
        %v754 = vpack.c.bf16 %v660, %v659
        %v755 = vpack.c.bf16 %v662, %v661
        %v756 = vpack.c.bf16 %v665, %v664
        %v757 = vpack.c.bf16 %v667, %v666
        %v758 = vpack.c.bf16 %v670, %v669
        %v759 = vpack.c.bf16 %v672, %v671
        %v760 = vpack.c.bf16 %v675, %v674
        %v761 = vpack.c.bf16 %v677, %v676
        %v762 = vpack.c.bf16 %v680, %v679
        %v763 = vpack.c.bf16 %v682, %v681
        %v764 = vpack.c.bf16 %v685, %v684
        %v765 = vpack.c.bf16 %v687, %v686
        %v766 = vpack.c.bf16 %v690, %v689
        %v767 = vpack.c.bf16 %v692, %v691
        %v768 = vld [vmem:[#allocation5] sm:$0xf]
        %v769 = vld [vmem:[#allocation5 + $0x4] sm:$0xf]
        %v770 = vld [vmem:[#allocation5 + $0x8] sm:$0xf]
        %v771 = vld [vmem:[#allocation5 + $0xc] sm:$0xf]
        %v772 = vld [vmem:[#allocation5 + $0x10] sm:$0xf]
        %v773 = vld [vmem:[#allocation5 + $0x14] sm:$0xf]
        %v774 = vld [vmem:[#allocation5 + $0x18] sm:$0xf]
        %v775 = vld [vmem:[#allocation5 + $0x1c] sm:$0xf]
        %v776 = vld [vmem:[#allocation5 + $0x20] sm:$0xf]
        %v777 = vld [vmem:[#allocation5 + $0x24] sm:$0xf]
        %v778 = vld [vmem:[#allocation5 + $0x28] sm:$0xf]
        %v779 = vld [vmem:[#allocation5 + $0x2c] sm:$0xf]
        %v780 = vld [vmem:[#allocation5 + $0x30] sm:$0xf]
        %v781 = vld [vmem:[#allocation5 + $0x34] sm:$0xf]
        %v782 = vld [vmem:[#allocation5 + $0x38] sm:$0xf]
        %v783 = vld [vmem:[#allocation5 + $0x3c] sm:$0xf]
        %vm944 = vcmask 1046528
        %v945 = vrot.slane %v534, 1
        %v946 = vrot.slane %v535, 1
        %v947 = vsel %vm944, %v945, %v946
        %v948 = vrot.slane %v536, 1
        %v949 = vsel %vm944, %v946, %v948
        %v950 = vrot.slane %v537, 1
        %v951 = vsel %vm944, %v948, %v950
        %v952 = vrot.slane %v538, 1
        %v953 = vsel %vm944, %v950, %v952
        %v954 = vrot.slane %v539, 1
        %v955 = vrot.slane %v540, 1
        %v956 = vsel %vm944, %v954, %v955
        %v957 = vrot.slane %v541, 1
        %v958 = vsel %vm944, %v955, %v957
        %v959 = vrot.slane %v542, 1
        %v960 = vsel %vm944, %v957, %v959
        %v961 = vrot.slane %v543, 1
        %v962 = vsel %vm944, %v959, %v961
        %v963 = vrot.slane %v544, 1
        %v964 = vrot.slane %v545, 1
        %v965 = vsel %vm944, %v963, %v964
        %v966 = vrot.slane %v546, 1
        %v967 = vsel %vm944, %v964, %v966
        %v968 = vrot.slane %v547, 1
        %v969 = vsel %vm944, %v966, %v968
        %v970 = vrot.slane %v548, 1
        %v971 = vsel %vm944, %v968, %v970
        %v972 = vrot.slane %v549, 1
        %v973 = vrot.slane %v550, 1
        %v974 = vsel %vm944, %v972, %v973
        %v975 = vrot.slane %v551, 1
        %v976 = vsel %vm944, %v973, %v975
        %v977 = vrot.slane %v552, 1
        %v978 = vsel %vm944, %v975, %v977
        %v979 = vrot.slane %v553, 1
        %v980 = vsel %vm944, %v977, %v979
        %v981 = vrot.slane %v554, 1
        %v982 = vrot.slane %v555, 1
        %v983 = vsel %vm944, %v981, %v982
        %v984 = vrot.slane %v556, 1
        %v985 = vsel %vm944, %v982, %v984
        %v986 = vrot.slane %v557, 1
        %v987 = vsel %vm944, %v984, %v986
        %v988 = vrot.slane %v558, 1
        %v989 = vsel %vm944, %v986, %v988
        %v990 = vrot.slane %v559, 1
        %v991 = vrot.slane %v560, 1
        %v992 = vsel %vm944, %v990, %v991
        %v993 = vrot.slane %v561, 1
        %v994 = vsel %vm944, %v991, %v993
        %v995 = vrot.slane %v562, 1
        %v996 = vsel %vm944, %v993, %v995
        %v997 = vrot.slane %v563, 1
        %v998 = vsel %vm944, %v995, %v997
        %v999 = vrot.slane %v564, 1
        %v1000 = vrot.slane %v565, 1
        %v1001 = vsel %vm944, %v999, %v1000
        %v1002 = vrot.slane %v566, 1
        %v1003 = vsel %vm944, %v1000, %v1002
        %v1004 = vrot.slane %v567, 1
        %v1005 = vsel %vm944, %v1002, %v1004
        %v1006 = vrot.slane %v568, 1
        %v1007 = vsel %vm944, %v1004, %v1006
        %v1008 = vrot.slane %v569, 1
        %v1009 = vrot.slane %v570, 1
        %v1010 = vsel %vm944, %v1008, %v1009
        %v1011 = vrot.slane %v571, 1
        %v1012 = vsel %vm944, %v1009, %v1011
        %v1013 = vrot.slane %v572, 1
        %v1014 = vsel %vm944, %v1011, %v1013
        %v1015 = vrot.slane %v573, 1
        %v1016 = vsel %vm944, %v1013, %v1015
        %v1017 = vrot.slane %v574, 1
        %v1018 = vrot.slane %v575, 1
        %v1019 = vsel %vm944, %v1017, %v1018
        %v1020 = vrot.slane %v576, 1
        %v1021 = vsel %vm944, %v1018, %v1020
        %v1022 = vrot.slane %v577, 1
        %v1023 = vsel %vm944, %v1020, %v1022
        %v1024 = vrot.slane %v578, 1
        %v1025 = vsel %vm944, %v1022, %v1024
        %v1026 = vrot.slane %v579, 1
        %v1027 = vrot.slane %v580, 1
        %v1028 = vsel %vm944, %v1026, %v1027
        %v1029 = vrot.slane %v581, 1
        %v1030 = vsel %vm944, %v1027, %v1029
        %v1031 = vrot.slane %v582, 1
        %v1032 = vsel %vm944, %v1029, %v1031
        %v1033 = vrot.slane %v583, 1
        %v1034 = vsel %vm944, %v1031, %v1033
        %v1035 = vrot.slane %v584, 1
        %v1036 = vrot.slane %v585, 1
        %v1037 = vsel %vm944, %v1035, %v1036
        %v1038 = vrot.slane %v586, 1
        %v1039 = vsel %vm944, %v1036, %v1038
        %v1040 = vrot.slane %v587, 1
        %v1041 = vsel %vm944, %v1038, %v1040
        %v1042 = vrot.slane %v588, 1
        %v1043 = vsel %vm944, %v1040, %v1042
        %v1044 = vrot.slane %v589, 1
        %v1045 = vrot.slane %v590, 1
        %v1046 = vsel %vm944, %v1044, %v1045
        %v1047 = vrot.slane %v591, 1
        %v1048 = vsel %vm944, %v1045, %v1047
        %v1049 = vrot.slane %v592, 1
        %v1050 = vsel %vm944, %v1047, %v1049
        %v1051 = vrot.slane %v593, 1
        %v1052 = vsel %vm944, %v1049, %v1051
        %v1053 = vrot.slane %v594, 1
        %v1054 = vrot.slane %v595, 1
        %v1055 = vsel %vm944, %v1053, %v1054
        %v1056 = vrot.slane %v596, 1
        %v1057 = vsel %vm944, %v1054, %v1056
        %v1058 = vrot.slane %v597, 1
        %v1059 = vsel %vm944, %v1056, %v1058
        %v1060 = vrot.slane %v598, 1
        %v1061 = vsel %vm944, %v1058, %v1060
        %v1062 = vrot.slane %v599, 1
        %v1063 = vrot.slane %v600, 1
        %v1064 = vsel %vm944, %v1062, %v1063
        %v1065 = vrot.slane %v601, 1
        %v1066 = vsel %vm944, %v1063, %v1065
        %v1067 = vrot.slane %v602, 1
        %v1068 = vsel %vm944, %v1065, %v1067
        %v1069 = vrot.slane %v603, 1
        %v1070 = vsel %vm944, %v1067, %v1069
        %v1071 = vrot.slane %v604, 1
        %v1072 = vrot.slane %v605, 1
        %v1073 = vsel %vm944, %v1071, %v1072
        %v1074 = vrot.slane %v606, 1
        %v1075 = vsel %vm944, %v1072, %v1074
        %v1076 = vrot.slane %v607, 1
        %v1077 = vsel %vm944, %v1074, %v1076
        %v1078 = vrot.slane %v608, 1
        %v1079 = vsel %vm944, %v1076, %v1078
        %v1080 = vrot.slane %v609, 1
        %v1081 = vrot.slane %v610, 1
        %v1082 = vsel %vm944, %v1080, %v1081
        %v1083 = vrot.slane %v611, 1
        %v1084 = vsel %vm944, %v1081, %v1083
        %v1085 = vrot.slane %v612, 1
        %v1086 = vsel %vm944, %v1083, %v1085
        %v1087 = vrot.slane %v613, 1
        %v1088 = vsel %vm944, %v1085, %v1087
        %v1089 = vrot.slane %v614, 1
        %v1090 = vrot.slane %v615, 1
        %v1091 = vsel %vm944, %v1089, %v1090
        %v1092 = vrot.slane %v616, 1
        %v1093 = vsel %vm944, %v1090, %v1092
        %v1094 = vrot.slane %v617, 1
        %v1095 = vsel %vm944, %v1092, %v1094
        %v1096 = vrot.slane %v618, 1
        %v1097 = vsel %vm944, %v1094, %v1096
        %v1098 = vrot.slane %v619, 1
        %v1099 = vrot.slane %v620, 1
        %v1100 = vsel %vm944, %v1098, %v1099
        %v1101 = vrot.slane %v621, 1
        %v1102 = vsel %vm944, %v1099, %v1101
        %v1103 = vrot.slane %v622, 1
        %v1104 = vsel %vm944, %v1101, %v1103
        %v1105 = vrot.slane %v623, 1
        %v1106 = vsel %vm944, %v1103, %v1105
        %v1107 = vrot.slane %v624, 1
        %v1108 = vrot.slane %v625, 1
        %v1109 = vsel %vm944, %v1107, %v1108
        %v1110 = vrot.slane %v626, 1
        %v1111 = vsel %vm944, %v1108, %v1110
        %v1112 = vrot.slane %v627, 1
        %v1113 = vsel %vm944, %v1110, %v1112
        %v1114 = vrot.slane %v628, 1
        %v1115 = vsel %vm944, %v1112, %v1114
        %v1116 = vrot.slane %v629, 1
        %v1117 = vrot.slane %v630, 1
        %v1118 = vsel %vm944, %v1116, %v1117
        %v1119 = vrot.slane %v631, 1
        %v1120 = vsel %vm944, %v1117, %v1119
        %v1121 = vrot.slane %v632, 1
        %v1122 = vsel %vm944, %v1119, %v1121
        %v1123 = vrot.slane %v633, 1
        %v1124 = vsel %vm944, %v1121, %v1123
        %v1125 = vrot.slane %v634, 1
        %v1126 = vrot.slane %v635, 1
        %v1127 = vsel %vm944, %v1125, %v1126
        %v1128 = vrot.slane %v636, 1
        %v1129 = vsel %vm944, %v1126, %v1128
        %v1130 = vrot.slane %v637, 1
        %v1131 = vsel %vm944, %v1128, %v1130
        %v1132 = vrot.slane %v638, 1
        %v1133 = vsel %vm944, %v1130, %v1132
        %v1134 = vrot.slane %v639, 1
        %v1135 = vrot.slane %v640, 1
        %v1136 = vsel %vm944, %v1134, %v1135
        %v1137 = vrot.slane %v641, 1
        %v1138 = vsel %vm944, %v1135, %v1137
        %v1139 = vrot.slane %v642, 1
        %v1140 = vsel %vm944, %v1137, %v1139
        %v1141 = vrot.slane %v643, 1
        %v1142 = vsel %vm944, %v1139, %v1141
        %v1143 = vrot.slane %v644, 1
        %v1144 = vrot.slane %v645, 1
        %v1145 = vsel %vm944, %v1143, %v1144
        %v1146 = vrot.slane %v646, 1
        %v1147 = vsel %vm944, %v1144, %v1146
        %v1148 = vrot.slane %v647, 1
        %v1149 = vsel %vm944, %v1146, %v1148
        %v1150 = vrot.slane %v648, 1
        %v1151 = vsel %vm944, %v1148, %v1150
        %v1152 = vrot.slane %v649, 1
        %v1153 = vrot.slane %v650, 1
        %v1154 = vsel %vm944, %v1152, %v1153
        %v1155 = vrot.slane %v651, 1
        %v1156 = vsel %vm944, %v1153, %v1155
        %v1157 = vrot.slane %v652, 1
        %v1158 = vsel %vm944, %v1155, %v1157
        %v1159 = vrot.slane %v653, 1
        %v1160 = vsel %vm944, %v1157, %v1159
        %v1161 = vrot.slane %v654, 1
        %v1162 = vrot.slane %v655, 1
        %v1163 = vsel %vm944, %v1161, %v1162
        %v1164 = vrot.slane %v656, 1
        %v1165 = vsel %vm944, %v1162, %v1164
        %v1166 = vrot.slane %v657, 1
        %v1167 = vsel %vm944, %v1164, %v1166
        %v1168 = vrot.slane %v658, 1
        %v1169 = vsel %vm944, %v1166, %v1168
        %v1170 = vrot.slane %v659, 1
        %v1171 = vrot.slane %v660, 1
        %v1172 = vsel %vm944, %v1170, %v1171
        %v1173 = vrot.slane %v661, 1
        %v1174 = vsel %vm944, %v1171, %v1173
        %v1175 = vrot.slane %v662, 1
        %v1176 = vsel %vm944, %v1173, %v1175
        %v1177 = vrot.slane %v663, 1
        %v1178 = vsel %vm944, %v1175, %v1177
        %v1179 = vrot.slane %v664, 1
        %v1180 = vrot.slane %v665, 1
        %v1181 = vsel %vm944, %v1179, %v1180
        %v1182 = vrot.slane %v666, 1
        %v1183 = vsel %vm944, %v1180, %v1182
        %v1184 = vrot.slane %v667, 1
        %v1185 = vsel %vm944, %v1182, %v1184
        %v1186 = vrot.slane %v668, 1
        %v1187 = vsel %vm944, %v1184, %v1186
        %v1188 = vrot.slane %v669, 1
        %v1189 = vrot.slane %v670, 1
        %v1190 = vsel %vm944, %v1188, %v1189
        %v1191 = vrot.slane %v671, 1
        %v1192 = vsel %vm944, %v1189, %v1191
        %v1193 = vrot.slane %v672, 1
        %v1194 = vsel %vm944, %v1191, %v1193
        %v1195 = vrot.slane %v673, 1
        %v1196 = vsel %vm944, %v1193, %v1195
        %v1197 = vrot.slane %v674, 1
        %v1198 = vrot.slane %v675, 1
        %v1199 = vsel %vm944, %v1197, %v1198
        %v1200 = vrot.slane %v676, 1
        %v1201 = vsel %vm944, %v1198, %v1200
        %v1202 = vrot.slane %v677, 1
        %v1203 = vsel %vm944, %v1200, %v1202
        %v1204 = vrot.slane %v678, 1
        %v1205 = vsel %vm944, %v1202, %v1204
        %v1206 = vrot.slane %v679, 1
        %v1207 = vrot.slane %v680, 1
        %v1208 = vsel %vm944, %v1206, %v1207
        %v1209 = vrot.slane %v681, 1
        %v1210 = vsel %vm944, %v1207, %v1209
        %v1211 = vrot.slane %v682, 1
        %v1212 = vsel %vm944, %v1209, %v1211
        %v1213 = vrot.slane %v683, 1
        %v1214 = vsel %vm944, %v1211, %v1213
        %v1215 = vrot.slane %v684, 1
        %v1216 = vrot.slane %v685, 1
        %v1217 = vsel %vm944, %v1215, %v1216
        %v1218 = vrot.slane %v686, 1
        %v1219 = vsel %vm944, %v1216, %v1218
        %v1220 = vrot.slane %v687, 1
        %v1221 = vsel %vm944, %v1218, %v1220
        %v1222 = vrot.slane %v688, 1
        %v1223 = vsel %vm944, %v1220, %v1222
        %v1224 = vrot.slane %v689, 1
        %v1225 = vrot.slane %v690, 1
        %v1226 = vsel %vm944, %v1224, %v1225
        %v1227 = vrot.slane %v691, 1
        %v1228 = vsel %vm944, %v1225, %v1227
        %v1229 = vrot.slane %v692, 1
        %v1230 = vsel %vm944, %v1227, %v1229
        %v1231 = vrot.slane %v693, 1
        %v1232 = vsel %vm944, %v1229, %v1231
        %v1361 = vpack.c.bf16 %v949, %v947
        %v1362 = vpack.c.bf16 %v953, %v951
        %v1363 = vpack.c.bf16 %v958, %v956
        %v1364 = vpack.c.bf16 %v962, %v960
        %v1365 = vpack.c.bf16 %v967, %v965
        %v1366 = vpack.c.bf16 %v971, %v969
        %v1367 = vpack.c.bf16 %v976, %v974
        %v1368 = vpack.c.bf16 %v980, %v978
        %v1369 = vpack.c.bf16 %v985, %v983
        %v1370 = vpack.c.bf16 %v989, %v987
        %v1371 = vpack.c.bf16 %v994, %v992
        %v1372 = vpack.c.bf16 %v998, %v996
        %v1373 = vpack.c.bf16 %v1003, %v1001
        %v1374 = vpack.c.bf16 %v1007, %v1005
        %v1375 = vpack.c.bf16 %v1012, %v1010
        %v1376 = vpack.c.bf16 %v1016, %v1014
        %v1377 = vpack.c.bf16 %v1021, %v1019
        %v1378 = vpack.c.bf16 %v1025, %v1023
        %v1379 = vpack.c.bf16 %v1030, %v1028
        %v1380 = vpack.c.bf16 %v1034, %v1032
        %v1381 = vpack.c.bf16 %v1039, %v1037
        %v1382 = vpack.c.bf16 %v1043, %v1041
        %v1383 = vpack.c.bf16 %v1048, %v1046
        %v1384 = vpack.c.bf16 %v1052, %v1050
        %v1385 = vpack.c.bf16 %v1057, %v1055
        %v1386 = vpack.c.bf16 %v1061, %v1059
        %v1387 = vpack.c.bf16 %v1066, %v1064
        %v1388 = vpack.c.bf16 %v1070, %v1068
        %v1389 = vpack.c.bf16 %v1075, %v1073
        %v1390 = vpack.c.bf16 %v1079, %v1077
        %v1391 = vpack.c.bf16 %v1084, %v1082
        %v1392 = vpack.c.bf16 %v1088, %v1086
        %v1393 = vpack.c.bf16 %v1093, %v1091
        %v1394 = vpack.c.bf16 %v1097, %v1095
        %v1395 = vpack.c.bf16 %v1102, %v1100
        %v1396 = vpack.c.bf16 %v1106, %v1104
        %v1397 = vpack.c.bf16 %v1111, %v1109
        %v1398 = vpack.c.bf16 %v1115, %v1113
        %v1399 = vpack.c.bf16 %v1120, %v1118
        %v1400 = vpack.c.bf16 %v1124, %v1122
        %v1401 = vpack.c.bf16 %v1129, %v1127
        %v1402 = vpack.c.bf16 %v1133, %v1131
        %v1403 = vpack.c.bf16 %v1138, %v1136
        %v1404 = vpack.c.bf16 %v1142, %v1140
        %v1405 = vpack.c.bf16 %v1147, %v1145
        %v1406 = vpack.c.bf16 %v1151, %v1149
        %v1407 = vpack.c.bf16 %v1156, %v1154
        %v1408 = vpack.c.bf16 %v1160, %v1158
        %v1409 = vpack.c.bf16 %v1165, %v1163
        %v1410 = vpack.c.bf16 %v1169, %v1167
        %v1411 = vpack.c.bf16 %v1174, %v1172
        %v1412 = vpack.c.bf16 %v1178, %v1176
        %v1413 = vpack.c.bf16 %v1183, %v1181
        %v1414 = vpack.c.bf16 %v1187, %v1185
        %v1415 = vpack.c.bf16 %v1192, %v1190
        %v1416 = vpack.c.bf16 %v1196, %v1194
        %v1417 = vpack.c.bf16 %v1201, %v1199
        %v1418 = vpack.c.bf16 %v1205, %v1203
        %v1419 = vpack.c.bf16 %v1210, %v1208
        %v1420 = vpack.c.bf16 %v1214, %v1212
        %v1421 = vpack.c.bf16 %v1219, %v1217
        %v1422 = vpack.c.bf16 %v1223, %v1221
        %v1423 = vpack.c.bf16 %v1228, %v1226
        %v1424 = vpack.c.bf16 %v1232, %v1230
        %s1425 = scalar_lea.vmem [#allocation5], 64
        %v1426 = vld [vmem:[%s1425] sm:$0xf]
        %v1427 = vld [vmem:[%s1425 + $0x4] sm:$0xf]
        %v1428 = vld [vmem:[%s1425 + $0x8] sm:$0xf]
        %v1429 = vld [vmem:[%s1425 + $0xc] sm:$0xf]
        %v1430 = vld [vmem:[%s1425 + $0x10] sm:$0xf]
        %v1431 = vld [vmem:[%s1425 + $0x14] sm:$0xf]
        %v1432 = vld [vmem:[%s1425 + $0x18] sm:$0xf]
        %v1433 = vld [vmem:[%s1425 + $0x1c] sm:$0xf]
        %v1434 = vld [vmem:[%s1425 + $0x20] sm:$0xf]
        %v1435 = vld [vmem:[%s1425 + $0x24] sm:$0xf]
        %v1436 = vld [vmem:[%s1425 + $0x28] sm:$0xf]
        %v1437 = vld [vmem:[%s1425 + $0x2c] sm:$0xf]
        %v1438 = vld [vmem:[%s1425 + $0x30] sm:$0xf]
        %v1439 = vld [vmem:[%s1425 + $0x34] sm:$0xf]
        %v1440 = vld [vmem:[%s1425 + $0x38] sm:$0xf]
        %v1441 = vld [vmem:[%s1425 + $0x3c] sm:$0xf]
        %v1458 = vunpack.c.l.b16 %v1426
        %v1459 = vunpack.c.l.b16 %v1427
        %v1460 = vunpack.c.l.b16 %v1428
        %v1461 = vunpack.c.l.b16 %v1429
        %v1462 = vunpack.c.l.b16 %v1430
        %v1463 = vunpack.c.l.b16 %v1431
        %v1464 = vunpack.c.l.b16 %v1432
        %v1465 = vunpack.c.l.b16 %v1433
        %v1466 = vunpack.c.l.b16 %v1434
        %v1467 = vunpack.c.l.b16 %v1435
        %v1468 = vunpack.c.l.b16 %v1436
        %v1469 = vunpack.c.l.b16 %v1437
        %v1470 = vunpack.c.l.b16 %v1438
        %v1471 = vunpack.c.l.b16 %v1439
        %v1472 = vunpack.c.l.b16 %v1440
        %v1473 = vunpack.c.l.b16 %v1441
        %v1474 = vpack.c.b16 %v1459, %v1458
        %v1475 = vpack.c.b16 %v1461, %v1460
        %v1476 = vpack.c.b16 %v1463, %v1462
        %v1477 = vpack.c.b16 %v1465, %v1464
        %v1478 = vpack.c.b16 %v1467, %v1466
        %v1479 = vpack.c.b16 %v1469, %v1468
        %v1480 = vpack.c.b16 %v1471, %v1470
        %v1481 = vpack.c.b16 %v1473, %v1472
        %1490 = vmatprep.subr.bf16.mxu0 0
        %1491 = vmatpush1.bf16.msra.mxu0 %v1474
        %1492 = vmatprep.subr.bf16.mxu0 0
        %1493 = vmatpush1.bf16.msra.mxu0 %v1475
        %1494 = vmatprep.subr.bf16.mxu0 0
        %1495 = vmatpush1.bf16.msra.mxu0 %v1476
        %1496 = vmatprep.subr.bf16.mxu0 0
        %1497 = vmatpush1.bf16.msra.mxu0 %v1477
        %1498 = vmatprep.subr.bf16.mxu0 0
        %1499 = vmatpush1.bf16.msra.mxu0 %v1478
        %1500 = vmatprep.subr.bf16.mxu0 0
        %1501 = vmatpush1.bf16.msra.mxu0 %v1479
        %1502 = vmatprep.subr.bf16.mxu0 0
        %1503 = vmatpush1.bf16.msra.mxu0 %v1480
        %1504 = vmatprep.subr.bf16.mxu0 0
        %1505 = vmatpush1.bf16.msra.mxu0 %v1481
        %1506 = vmatprep.subr.bf16.mxu0 0
        %1507 = vmatpush1.bf16.msra.mxu0 0
        %1508 = vmatprep.subr.bf16.mxu0 0
        %1509 = vmatpush1.bf16.msra.mxu0 0
        %1510 = vmatprep.subr.bf16.mxu0 0
        %1511 = vmatpush1.bf16.msra.mxu0 0
        %1512 = vmatprep.subr.bf16.mxu0 0
        %1513 = vmatpush1.bf16.msra.mxu0 0
        %1514 = vmatprep.subr.bf16.mxu0 0
        %1515 = vmatpush1.bf16.msra.mxu0 0
        %1516 = vmatprep.subr.bf16.mxu0 0
        %1517 = vmatpush1.bf16.msra.mxu0 0
        %1518 = vmatprep.subr.bf16.mxu0 0
        %1519 = vmatpush1.bf16.msra.mxu0 0
        %1520 = vmatprep.subr.bf16.mxu0 0
        %1521 = vmatpush1.bf16.msra.mxu0 0
        %1522 = vmatprep.mubr.bf16.mxu0 0
        %1523 = vmatmul.mubr.bf16.gmra.mrb[0].mxu0 %v1361
        %v1524 = vpop.f32.mrb[0].mxu0
        %v1525 = vadd.f32 0.0, %v1524
        %v1526 = vpop.f32.mrb[0].mxu0
        %v1527 = vpop.f32.mrb[0].mxu0
        %v1528 = vadd.f32 0.0, %v1527
        %v1529 = vpop.f32.mrb[0].mxu0
        %1530 = vmatprep.mubr.bf16.mxu0 0
        %1531 = vmatmul.mubr.bf16.gmra.mrb[0].mxu0 %v1362
        %v1532 = vpop.f32.mrb[0].mxu0
        %v1533 = vadd.f32 0.0, %v1532
        %v1534 = vpop.f32.mrb[0].mxu0
        %v1535 = vpop.f32.mrb[0].mxu0
        %v1536 = vadd.f32 0.0, %v1535
        %v1537 = vpop.f32.mrb[0].mxu0
        %1538 = vmatprep.mubr.bf16.mxu0 0
        %1539 = vmatmul.mubr.bf16.gmra.mrb[0].mxu0 %v1363
        %v1540 = vpop.f32.mrb[0].mxu0
        %v1541 = vadd.f32 0.0, %v1540
        %v1542 = vpop.f32.mrb[0].mxu0
        %v1543 = vpop.f32.mrb[0].mxu0
        %v1544 = vadd.f32 0.0, %v1543
        %v1545 = vpop.f32.mrb[0].mxu0
        %1546 = vmatprep.mubr.bf16.mxu0 0
        %1547 = vmatmul.mubr.bf16.gmra.mrb[0].mxu0 %v1364
        %v1548 = vpop.f32.mrb[0].mxu0
        %v1549 = vadd.f32 0.0, %v1548
        %v1550 = vpop.f32.mrb[0].mxu0
        %v1551 = vpop.f32.mrb[0].mxu0
        %v1552 = vadd.f32 0.0, %v1551
        %v1553 = vpop.f32.mrb[0].mxu0
        %1554 = vmatprep.mubr.bf16.mxu0 0
        %1555 = vmatmul.mubr.bf16.gmra.mrb[0].mxu0 %v1365
        %v1556 = vpop.f32.mrb[0].mxu0
        %v1557 = vadd.f32 0.0, %v1556
        %v1558 = vpop.f32.mrb[0].mxu0
        %v1559 = vpop.f32.mrb[0].mxu0
        %v1560 = vadd.f32 0.0, %v1559
        %v1561 = vpop.f32.mrb[0].mxu0
        %1562 = vmatprep.mubr.bf16.mxu0 0
        %1563 = vmatmul.mubr.bf16.gmra.mrb[0].mxu0 %v1366
        %v1564 = vpop.f32.mrb[0].mxu0
        %v1565 = vadd.f32 0.0, %v1564
        %v1566 = vpop.f32.mrb[0].mxu0
        %v1567 = vpop.f32.mrb[0].mxu0
        %v1568 = vadd.f32 0.0, %v1567
        %v1569 = vpop.f32.mrb[0].mxu0
        %1570 = vmatprep.mubr.bf16.mxu0 0
        %1571 = vmatmul.mubr.bf16.gmra.mrb[0].mxu0 %v1367
        %v1572 = vpop.f32.mrb[0].mxu0
        %v1573 = vadd.f32 0.0, %v1572
        %v1574 = vpop.f32.mrb[0].mxu0
        %v1575 = vpop.f32.mrb[0].mxu0
        %v1576 = vadd.f32 0.0, %v1575
        %v1577 = vpop.f32.mrb[0].mxu0
        %1578 = vmatprep.mubr.bf16.mxu0 0
        %1579 = vmatmul.mubr.bf16.gmra.mrb[0].mxu0 %v1368
        %v1580 = vpop.f32.mrb[0].mxu0
        %v1581 = vadd.f32 0.0, %v1580
        %v1582 = vpop.f32.mrb[0].mxu0
        %v1583 = vpop.f32.mrb[0].mxu0
        %v1584 = vadd.f32 0.0, %v1583
        %v1585 = vpop.f32.mrb[0].mxu0
        %1586 = vmatprep.mubr.bf16.mxu0 0
        %1587 = vmatmul.mubr.bf16.gmra.mrb[0].mxu0 %v1369
        %v1588 = vpop.f32.mrb[0].mxu0
        %v1589 = vadd.f32 0.0, %v1588
        %v1590 = vpop.f32.mrb[0].mxu0
        %v1591 = vpop.f32.mrb[0].mxu0
        %v1592 = vadd.f32 0.0, %v1591
        %v1593 = vpop.f32.mrb[0].mxu0
        %1594 = vmatprep.mubr.bf16.mxu0 0
        %1595 = vmatmul.mubr.bf16.gmra.mrb[0].mxu0 %v1370
        %v1596 = vpop.f32.mrb[0].mxu0
        %v1597 = vadd.f32 0.0, %v1596
        %v1598 = vpop.f32.mrb[0].mxu0
        %v1599 = vpop.f32.mrb[0].mxu0
        %v1600 = vadd.f32 0.0, %v1599
        %v1601 = vpop.f32.mrb[0].mxu0
        %1602 = vmatprep.mubr.bf16.mxu0 0
        %1603 = vmatmul.mubr.bf16.gmra.mrb[0].mxu0 %v1371
        %v1604 = vpop.f32.mrb[0].mxu0
        %v1605 = vadd.f32 0.0, %v1604
        %v1606 = vpop.f32.mrb[0].mxu0
        %v1607 = vpop.f32.mrb[0].mxu0
        %v1608 = vadd.f32 0.0, %v1607
        %v1609 = vpop.f32.mrb[0].mxu0
        %1610 = vmatprep.mubr.bf16.mxu0 0
        %1611 = vmatmul.mubr.bf16.gmra.mrb[0].mxu0 %v1372
        %v1612 = vpop.f32.mrb[0].mxu0
        %v1613 = vadd.f32 0.0, %v1612
        %v1614 = vpop.f32.mrb[0].mxu0
        %v1615 = vpop.f32.mrb[0].mxu0
        %v1616 = vadd.f32 0.0, %v1615
        %v1617 = vpop.f32.mrb[0].mxu0
        %1618 = vmatprep.mubr.bf16.mxu0 0
        %1619 = vmatmul.mubr.bf16.gmra.mrb[0].mxu0 %v1373
        %v1620 = vpop.f32.mrb[0].mxu0
        %v1621 = vadd.f32 0.0, %v1620
        %v1622 = vpop.f32.mrb[0].mxu0
        %v1623 = vpop.f32.mrb[0].mxu0
        %v1624 = vadd.f32 0.0, %v1623
        %v1625 = vpop.f32.mrb[0].mxu0
        %1626 = vmatprep.mubr.bf16.mxu0 0
        %1627 = vmatmul.mubr.bf16.gmra.mrb[0].mxu0 %v1374
        %v1628 = vpop.f32.mrb[0].mxu0
        %v1629 = vadd.f32 0.0, %v1628
        %v1630 = vpop.f32.mrb[0].mxu0
        %v1631 = vpop.f32.mrb[0].mxu0
        %v1632 = vadd.f32 0.0, %v1631
        %v1633 = vpop.f32.mrb[0].mxu0
        %1634 = vmatprep.mubr.bf16.mxu0 0
        %1635 = vmatmul.mubr.bf16.gmra.mrb[0].mxu0 %v1375
        %v1636 = vpop.f32.mrb[0].mxu0
        %v1637 = vadd.f32 0.0, %v1636
        %v1638 = vpop.f32.mrb[0].mxu0
        %v1639 = vpop.f32.mrb[0].mxu0
        %v1640 = vadd.f32 0.0, %v1639
        %v1641 = vpop.f32.mrb[0].mxu0
        %1642 = vmatprep.mubr.bf16.mxu0 0
        %1643 = vmatmul.mubr.bf16.gmra.mrb[0].mxu0 %v1376
        %v1644 = vpop.f32.mrb[0].mxu0
        %v1645 = vadd.f32 0.0, %v1644
        %v1646 = vpop.f32.mrb[0].mxu0
        %v1647 = vpop.f32.mrb[0].mxu0
        %v1648 = vadd.f32 0.0, %v1647
        %v1649 = vpop.f32.mrb[0].mxu0
        %1650 = vmatprep.mubr.bf16.mxu0 0
        %1651 = vmatmul.mubr.bf16.gmra.mrb[0].mxu0 %v1377
        %v1652 = vpop.f32.mrb[0].mxu0
        %v1653 = vadd.f32 0.0, %v1652
        %v1654 = vpop.f32.mrb[0].mxu0
        %v1655 = vpop.f32.mrb[0].mxu0
        %v1656 = vadd.f32 0.0, %v1655
        %v1657 = vpop.f32.mrb[0].mxu0
        %1658 = vmatprep.mubr.bf16.mxu0 0
        %1659 = vmatmul.mubr.bf16.gmra.mrb[0].mxu0 %v1378
        %v1660 = vpop.f32.mrb[0].mxu0
        %v1661 = vadd.f32 0.0, %v1660
        %v1662 = vpop.f32.mrb[0].mxu0
        %v1663 = vpop.f32.mrb[0].mxu0
        %v1664 = vadd.f32 0.0, %v1663
        %v1665 = vpop.f32.mrb[0].mxu0
        %1666 = vmatprep.mubr.bf16.mxu0 0
        %1667 = vmatmul.mubr.bf16.gmra.mrb[0].mxu0 %v1379
        %v1668 = vpop.f32.mrb[0].mxu0
        %v1669 = vadd.f32 0.0, %v1668
        %v1670 = vpop.f32.mrb[0].mxu0
        %v1671 = vpop.f32.mrb[0].mxu0
        %v1672 = vadd.f32 0.0, %v1671
        %v1673 = vpop.f32.mrb[0].mxu0
        %1674 = vmatprep.mubr.bf16.mxu0 0
        %1675 = vmatmul.mubr.bf16.gmra.mrb[0].mxu0 %v1380
        %v1676 = vpop.f32.mrb[0].mxu0
        %v1677 = vadd.f32 0.0, %v1676
        %v1678 = vpop.f32.mrb[0].mxu0
        %v1679 = vpop.f32.mrb[0].mxu0
        %v1680 = vadd.f32 0.0, %v1679
        %v1681 = vpop.f32.mrb[0].mxu0
        %1682 = vmatprep.mubr.bf16.mxu0 0
        %1683 = vmatmul.mubr.bf16.gmra.mrb[0].mxu0 %v1381
        %v1684 = vpop.f32.mrb[0].mxu0
        %v1685 = vadd.f32 0.0, %v1684
        %v1686 = vpop.f32.mrb[0].mxu0
        %v1687 = vpop.f32.mrb[0].mxu0
        %v1688 = vadd.f32 0.0, %v1687
        %v1689 = vpop.f32.mrb[0].mxu0
        %1690 = vmatprep.mubr.bf16.mxu0 0
        %1691 = vmatmul.mubr.bf16.gmra.mrb[0].mxu0 %v1382
        %v1692 = vpop.f32.mrb[0].mxu0
        %v1693 = vadd.f32 0.0, %v1692
        %v1694 = vpop.f32.mrb[0].mxu0
        %v1695 = vpop.f32.mrb[0].mxu0
        %v1696 = vadd.f32 0.0, %v1695
        %v1697 = vpop.f32.mrb[0].mxu0
        %1698 = vmatprep.mubr.bf16.mxu0 0
        %1699 = vmatmul.mubr.bf16.gmra.mrb[0].mxu0 %v1383
        %v1700 = vpop.f32.mrb[0].mxu0
        %v1701 = vadd.f32 0.0, %v1700
        %v1702 = vpop.f32.mrb[0].mxu0
        %v1703 = vpop.f32.mrb[0].mxu0
        %v1704 = vadd.f32 0.0, %v1703
        %v1705 = vpop.f32.mrb[0].mxu0
        %1706 = vmatprep.mubr.bf16.mxu0 0
        %1707 = vmatmul.mubr.bf16.gmra.mrb[0].mxu0 %v1384
        %v1708 = vpop.f32.mrb[0].mxu0
        %v1709 = vadd.f32 0.0, %v1708
        %v1710 = vpop.f32.mrb[0].mxu0
        %v1711 = vpop.f32.mrb[0].mxu0
        %v1712 = vadd.f32 0.0, %v1711
        %v1713 = vpop.f32.mrb[0].mxu0
        %1714 = vmatprep.mubr.bf16.mxu0 0
        %1715 = vmatmul.mubr.bf16.gmra.mrb[0].mxu0 %v1385
        %v1716 = vpop.f32.mrb[0].mxu0
        %v1717 = vadd.f32 0.0, %v1716
        %v1718 = vpop.f32.mrb[0].mxu0
        %v1719 = vpop.f32.mrb[0].mxu0
        %v1720 = vadd.f32 0.0, %v1719
        %v1721 = vpop.f32.mrb[0].mxu0
        %1722 = vmatprep.mubr.bf16.mxu0 0
        %1723 = vmatmul.mubr.bf16.gmra.mrb[0].mxu0 %v1386
        %v1724 = vpop.f32.mrb[0].mxu0
        %v1725 = vadd.f32 0.0, %v1724
        %v1726 = vpop.f32.mrb[0].mxu0
        %v1727 = vpop.f32.mrb[0].mxu0
        %v1728 = vadd.f32 0.0, %v1727
        %v1729 = vpop.f32.mrb[0].mxu0
        %1730 = vmatprep.mubr.bf16.mxu0 0
        %1731 = vmatmul.mubr.bf16.gmra.mrb[0].mxu0 %v1387
        %v1732 = vpop.f32.mrb[0].mxu0
        %v1733 = vadd.f32 0.0, %v1732
        %v1734 = vpop.f32.mrb[0].mxu0
        %v1735 = vpop.f32.mrb[0].mxu0
        %v1736 = vadd.f32 0.0, %v1735
        %v1737 = vpop.f32.mrb[0].mxu0
        %1738 = vmatprep.mubr.bf16.mxu0 0
        %1739 = vmatmul.mubr.bf16.gmra.mrb[0].mxu0 %v1388
        %v1740 = vpop.f32.mrb[0].mxu0
        %v1741 = vadd.f32 0.0, %v1740
        %v1742 = vpop.f32.mrb[0].mxu0
        %v1743 = vpop.f32.mrb[0].mxu0
        %v1744 = vadd.f32 0.0, %v1743
        %v1745 = vpop.f32.mrb[0].mxu0
        %1746 = vmatprep.mubr.bf16.mxu0 0
        %1747 = vmatmul.mubr.bf16.gmra.mrb[0].mxu0 %v1389
        %v1748 = vpop.f32.mrb[0].mxu0
        %v1749 = vadd.f32 0.0, %v1748
        %v1750 = vpop.f32.mrb[0].mxu0
        %v1751 = vpop.f32.mrb[0].mxu0
        %v1752 = vadd.f32 0.0, %v1751
        %v1753 = vpop.f32.mrb[0].mxu0
        %1754 = vmatprep.mubr.bf16.mxu0 0
        %1755 = vmatmul.mubr.bf16.gmra.mrb[0].mxu0 %v1390
        %v1756 = vpop.f32.mrb[0].mxu0
        %v1757 = vadd.f32 0.0, %v1756
        %v1758 = vpop.f32.mrb[0].mxu0
        %v1759 = vpop.f32.mrb[0].mxu0
        %v1760 = vadd.f32 0.0, %v1759
        %v1761 = vpop.f32.mrb[0].mxu0
        %1762 = vmatprep.mubr.bf16.mxu0 0
        %1763 = vmatmul.mubr.bf16.gmra.mrb[0].mxu0 %v1391
        %v1764 = vpop.f32.mrb[0].mxu0
        %v1765 = vadd.f32 0.0, %v1764
        %v1766 = vpop.f32.mrb[0].mxu0
        %v1767 = vpop.f32.mrb[0].mxu0
        %v1768 = vadd.f32 0.0, %v1767
        %v1769 = vpop.f32.mrb[0].mxu0
        %1770 = vmatprep.mubr.bf16.mxu0 0
        %1771 = vmatmul.mubr.bf16.gmra.mrb[0].mxu0 %v1392
        %v1772 = vpop.f32.mrb[0].mxu0
        %v1773 = vadd.f32 0.0, %v1772
        %v1774 = vpop.f32.mrb[0].mxu0
        %v1775 = vpop.f32.mrb[0].mxu0
        %v1776 = vadd.f32 0.0, %v1775
        %v1777 = vpop.f32.mrb[0].mxu0
        %1778 = vmatprep.mubr.bf16.mxu0 0
        %1779 = vmatmul.mubr.bf16.gmra.mrb[0].mxu0 %v1393
        %v1780 = vpop.f32.mrb[0].mxu0
        %v1781 = vadd.f32 0.0, %v1780
        %v1782 = vpop.f32.mrb[0].mxu0
        %v1783 = vpop.f32.mrb[0].mxu0
        %v1784 = vadd.f32 0.0, %v1783
        %v1785 = vpop.f32.mrb[0].mxu0
        %1786 = vmatprep.mubr.bf16.mxu0 0
        %1787 = vmatmul.mubr.bf16.gmra.mrb[0].mxu0 %v1394
        %v1788 = vpop.f32.mrb[0].mxu0
        %v1789 = vadd.f32 0.0, %v1788
        %v1790 = vpop.f32.mrb[0].mxu0
        %v1791 = vpop.f32.mrb[0].mxu0
        %v1792 = vadd.f32 0.0, %v1791
        %v1793 = vpop.f32.mrb[0].mxu0
        %1794 = vmatprep.mubr.bf16.mxu0 0
        %1795 = vmatmul.mubr.bf16.gmra.mrb[0].mxu0 %v1395
        %v1796 = vpop.f32.mrb[0].mxu0
        %v1797 = vadd.f32 0.0, %v1796
        %v1798 = vpop.f32.mrb[0].mxu0
        %v1799 = vpop.f32.mrb[0].mxu0
        %v1800 = vadd.f32 0.0, %v1799
        %v1801 = vpop.f32.mrb[0].mxu0
        %1802 = vmatprep.mubr.bf16.mxu0 0
        %1803 = vmatmul.mubr.bf16.gmra.mrb[0].mxu0 %v1396
        %v1804 = vpop.f32.mrb[0].mxu0
        %v1805 = vadd.f32 0.0, %v1804
        %v1806 = vpop.f32.mrb[0].mxu0
        %v1807 = vpop.f32.mrb[0].mxu0
        %v1808 = vadd.f32 0.0, %v1807
        %v1809 = vpop.f32.mrb[0].mxu0
        %1810 = vmatprep.mubr.bf16.mxu0 0
        %1811 = vmatmul.mubr.bf16.gmra.mrb[0].mxu0 %v1397
        %v1812 = vpop.f32.mrb[0].mxu0
        %v1813 = vadd.f32 0.0, %v1812
        %v1814 = vpop.f32.mrb[0].mxu0
        %v1815 = vpop.f32.mrb[0].mxu0
        %v1816 = vadd.f32 0.0, %v1815
        %v1817 = vpop.f32.mrb[0].mxu0
        %1818 = vmatprep.mubr.bf16.mxu0 0
        %1819 = vmatmul.mubr.bf16.gmra.mrb[0].mxu0 %v1398
        %v1820 = vpop.f32.mrb[0].mxu0
        %v1821 = vadd.f32 0.0, %v1820
        %v1822 = vpop.f32.mrb[0].mxu0
        %v1823 = vpop.f32.mrb[0].mxu0
        %v1824 = vadd.f32 0.0, %v1823
        %v1825 = vpop.f32.mrb[0].mxu0
        %1826 = vmatprep.mubr.bf16.mxu0 0
        %1827 = vmatmul.mubr.bf16.gmra.mrb[0].mxu0 %v1399
        %v1828 = vpop.f32.mrb[0].mxu0
        %v1829 = vadd.f32 0.0, %v1828
        %v1830 = vpop.f32.mrb[0].mxu0
        %v1831 = vpop.f32.mrb[0].mxu0
        %v1832 = vadd.f32 0.0, %v1831
        %v1833 = vpop.f32.mrb[0].mxu0
        %1834 = vmatprep.mubr.bf16.mxu0 0
        %1835 = vmatmul.mubr.bf16.gmra.mrb[0].mxu0 %v1400
        %v1836 = vpop.f32.mrb[0].mxu0
        %v1837 = vadd.f32 0.0, %v1836
        %v1838 = vpop.f32.mrb[0].mxu0
        %v1839 = vpop.f32.mrb[0].mxu0
        %v1840 = vadd.f32 0.0, %v1839
        %v1841 = vpop.f32.mrb[0].mxu0
        %1842 = vmatprep.mubr.bf16.mxu0 0
        %1843 = vmatmul.mubr.bf16.gmra.mrb[0].mxu0 %v1401
        %v1844 = vpop.f32.mrb[0].mxu0
        %v1845 = vadd.f32 0.0, %v1844
        %v1846 = vpop.f32.mrb[0].mxu0
        %v1847 = vpop.f32.mrb[0].mxu0
        %v1848 = vadd.f32 0.0, %v1847
        %v1849 = vpop.f32.mrb[0].mxu0
        %1850 = vmatprep.mubr.bf16.mxu0 0
        %1851 = vmatmul.mubr.bf16.gmra.mrb[0].mxu0 %v1402
        %v1852 = vpop.f32.mrb[0].mxu0
        %v1853 = vadd.f32 0.0, %v1852
        %v1854 = vpop.f32.mrb[0].mxu0
        %v1855 = vpop.f32.mrb[0].mxu0
        %v1856 = vadd.f32 0.0, %v1855
        %v1857 = vpop.f32.mrb[0].mxu0
        %1858 = vmatprep.mubr.bf16.mxu0 0
        %1859 = vmatmul.mubr.bf16.gmra.mrb[0].mxu0 %v1403
        %v1860 = vpop.f32.mrb[0].mxu0
        %v1861 = vadd.f32 0.0, %v1860
        %v1862 = vpop.f32.mrb[0].mxu0
        %v1863 = vpop.f32.mrb[0].mxu0
        %v1864 = vadd.f32 0.0, %v1863
        %v1865 = vpop.f32.mrb[0].mxu0
        %1866 = vmatprep.mubr.bf16.mxu0 0
        %1867 = vmatmul.mubr.bf16.gmra.mrb[0].mxu0 %v1404
        %v1868 = vpop.f32.mrb[0].mxu0
        %v1869 = vadd.f32 0.0, %v1868
        %v1870 = vpop.f32.mrb[0].mxu0
        %v1871 = vpop.f32.mrb[0].mxu0
        %v1872 = vadd.f32 0.0, %v1871
        %v1873 = vpop.f32.mrb[0].mxu0
        %1874 = vmatprep.mubr.bf16.mxu0 0
        %1875 = vmatmul.mubr.bf16.gmra.mrb[0].mxu0 %v1405
        %v1876 = vpop.f32.mrb[0].mxu0
        %v1877 = vadd.f32 0.0, %v1876
        %v1878 = vpop.f32.mrb[0].mxu0
        %v1879 = vpop.f32.mrb[0].mxu0
        %v1880 = vadd.f32 0.0, %v1879
        %v1881 = vpop.f32.mrb[0].mxu0
        %1882 = vmatprep.mubr.bf16.mxu0 0
        %1883 = vmatmul.mubr.bf16.gmra.mrb[0].mxu0 %v1406
        %v1884 = vpop.f32.mrb[0].mxu0
        %v1885 = vadd.f32 0.0, %v1884
        %v1886 = vpop.f32.mrb[0].mxu0
        %v1887 = vpop.f32.mrb[0].mxu0
        %v1888 = vadd.f32 0.0, %v1887
        %v1889 = vpop.f32.mrb[0].mxu0
        %1890 = vmatprep.mubr.bf16.mxu0 0
        %1891 = vmatmul.mubr.bf16.gmra.mrb[0].mxu0 %v1407
        %v1892 = vpop.f32.mrb[0].mxu0
        %v1893 = vadd.f32 0.0, %v1892
        %v1894 = vpop.f32.mrb[0].mxu0
        %v1895 = vpop.f32.mrb[0].mxu0
        %v1896 = vadd.f32 0.0, %v1895
        %v1897 = vpop.f32.mrb[0].mxu0
        %1898 = vmatprep.mubr.bf16.mxu0 0
        %1899 = vmatmul.mubr.bf16.gmra.mrb[0].mxu0 %v1408
        %v1900 = vpop.f32.mrb[0].mxu0
        %v1901 = vadd.f32 0.0, %v1900
        %v1902 = vpop.f32.mrb[0].mxu0
        %v1903 = vpop.f32.mrb[0].mxu0
        %v1904 = vadd.f32 0.0, %v1903
        %v1905 = vpop.f32.mrb[0].mxu0
        %1906 = vmatprep.mubr.bf16.mxu0 0
        %1907 = vmatmul.mubr.bf16.gmra.mrb[0].mxu0 %v1409
        %v1908 = vpop.f32.mrb[0].mxu0
        %v1909 = vadd.f32 0.0, %v1908
        %v1910 = vpop.f32.mrb[0].mxu0
        %v1911 = vpop.f32.mrb[0].mxu0
        %v1912 = vadd.f32 0.0, %v1911
        %v1913 = vpop.f32.mrb[0].mxu0
        %1914 = vmatprep.mubr.bf16.mxu0 0
        %1915 = vmatmul.mubr.bf16.gmra.mrb[0].mxu0 %v1410
        %v1916 = vpop.f32.mrb[0].mxu0
        %v1917 = vadd.f32 0.0, %v1916
        %v1918 = vpop.f32.mrb[0].mxu0
        %v1919 = vpop.f32.mrb[0].mxu0
        %v1920 = vadd.f32 0.0, %v1919
        %v1921 = vpop.f32.mrb[0].mxu0
        %1922 = vmatprep.mubr.bf16.mxu0 0
        %1923 = vmatmul.mubr.bf16.gmra.mrb[0].mxu0 %v1411
        %v1924 = vpop.f32.mrb[0].mxu0
        %v1925 = vadd.f32 0.0, %v1924
        %v1926 = vpop.f32.mrb[0].mxu0
        %v1927 = vpop.f32.mrb[0].mxu0
        %v1928 = vadd.f32 0.0, %v1927
        %v1929 = vpop.f32.mrb[0].mxu0
        %1930 = vmatprep.mubr.bf16.mxu0 0
        %1931 = vmatmul.mubr.bf16.gmra.mrb[0].mxu0 %v1412
        %v1932 = vpop.f32.mrb[0].mxu0
        %v1933 = vadd.f32 0.0, %v1932
        %v1934 = vpop.f32.mrb[0].mxu0
        %v1935 = vpop.f32.mrb[0].mxu0
        %v1936 = vadd.f32 0.0, %v1935
        %v1937 = vpop.f32.mrb[0].mxu0
        %1938 = vmatprep.mubr.bf16.mxu0 0
        %1939 = vmatmul.mubr.bf16.gmra.mrb[0].mxu0 %v1413
        %v1940 = vpop.f32.mrb[0].mxu0
        %v1941 = vadd.f32 0.0, %v1940
        %v1942 = vpop.f32.mrb[0].mxu0
        %v1943 = vpop.f32.mrb[0].mxu0
        %v1944 = vadd.f32 0.0, %v1943
        %v1945 = vpop.f32.mrb[0].mxu0
        %1946 = vmatprep.mubr.bf16.mxu0 0
        %1947 = vmatmul.mubr.bf16.gmra.mrb[0].mxu0 %v1414
        %v1948 = vpop.f32.mrb[0].mxu0
        %v1949 = vadd.f32 0.0, %v1948
        %v1950 = vpop.f32.mrb[0].mxu0
        %v1951 = vpop.f32.mrb[0].mxu0
        %v1952 = vadd.f32 0.0, %v1951
        %v1953 = vpop.f32.mrb[0].mxu0
        %1954 = vmatprep.mubr.bf16.mxu0 0
        %1955 = vmatmul.mubr.bf16.gmra.mrb[0].mxu0 %v1415
        %v1956 = vpop.f32.mrb[0].mxu0
        %v1957 = vadd.f32 0.0, %v1956
        %v1958 = vpop.f32.mrb[0].mxu0
        %v1959 = vpop.f32.mrb[0].mxu0
        %v1960 = vadd.f32 0.0, %v1959
        %v1961 = vpop.f32.mrb[0].mxu0
        %1962 = vmatprep.mubr.bf16.mxu0 0
        %1963 = vmatmul.mubr.bf16.gmra.mrb[0].mxu0 %v1416
        %v1964 = vpop.f32.mrb[0].mxu0
        %v1965 = vadd.f32 0.0, %v1964
        %v1966 = vpop.f32.mrb[0].mxu0
        %v1967 = vpop.f32.mrb[0].mxu0
        %v1968 = vadd.f32 0.0, %v1967
        %v1969 = vpop.f32.mrb[0].mxu0
        %1970 = vmatprep.mubr.bf16.mxu0 0
        %1971 = vmatmul.mubr.bf16.gmra.mrb[0].mxu0 %v1417
        %v1972 = vpop.f32.mrb[0].mxu0
        %v1973 = vadd.f32 0.0, %v1972
        %v1974 = vpop.f32.mrb[0].mxu0
        %v1975 = vpop.f32.mrb[0].mxu0
        %v1976 = vadd.f32 0.0, %v1975
        %v1977 = vpop.f32.mrb[0].mxu0
        %1978 = vmatprep.mubr.bf16.mxu0 0
        %1979 = vmatmul.mubr.bf16.gmra.mrb[0].mxu0 %v1418
        %v1980 = vpop.f32.mrb[0].mxu0
        %v1981 = vadd.f32 0.0, %v1980
        %v1982 = vpop.f32.mrb[0].mxu0
        %v1983 = vpop.f32.mrb[0].mxu0
        %v1984 = vadd.f32 0.0, %v1983
        %v1985 = vpop.f32.mrb[0].mxu0
        %1986 = vmatprep.mubr.bf16.mxu0 0
        %1987 = vmatmul.mubr.bf16.gmra.mrb[0].mxu0 %v1419
        %v1988 = vpop.f32.mrb[0].mxu0
        %v1989 = vadd.f32 0.0, %v1988
        %v1990 = vpop.f32.mrb[0].mxu0
        %v1991 = vpop.f32.mrb[0].mxu0
        %v1992 = vadd.f32 0.0, %v1991
        %v1993 = vpop.f32.mrb[0].mxu0
        %1994 = vmatprep.mubr.bf16.mxu0 0
        %1995 = vmatmul.mubr.bf16.gmra.mrb[0].mxu0 %v1420
        %v1996 = vpop.f32.mrb[0].mxu0
        %v1997 = vadd.f32 0.0, %v1996
        %v1998 = vpop.f32.mrb[0].mxu0
        %v1999 = vpop.f32.mrb[0].mxu0
        %v2000 = vadd.f32 0.0, %v1999
        %v2001 = vpop.f32.mrb[0].mxu0
        %2002 = vmatprep.mubr.bf16.mxu0 0
        %2003 = vmatmul.mubr.bf16.gmra.mrb[0].mxu0 %v1421
        %v2004 = vpop.f32.mrb[0].mxu0
        %v2005 = vadd.f32 0.0, %v2004
        %v2006 = vpop.f32.mrb[0].mxu0
        %v2007 = vpop.f32.mrb[0].mxu0
        %v2008 = vadd.f32 0.0, %v2007
        %v2009 = vpop.f32.mrb[0].mxu0
        %2010 = vmatprep.mubr.bf16.mxu0 0
        %2011 = vmatmul.mubr.bf16.gmra.mrb[0].mxu0 %v1422
        %v2012 = vpop.f32.mrb[0].mxu0
        %v2013 = vadd.f32 0.0, %v2012
        %v2014 = vpop.f32.mrb[0].mxu0
        %v2015 = vpop.f32.mrb[0].mxu0
        %v2016 = vadd.f32 0.0, %v2015
        %v2017 = vpop.f32.mrb[0].mxu0
        %2018 = vmatprep.mubr.bf16.mxu0 0
        %2019 = vmatmul.mubr.bf16.gmra.mrb[0].mxu0 %v1423
        %v2020 = vpop.f32.mrb[0].mxu0
        %v2021 = vadd.f32 0.0, %v2020
        %v2022 = vpop.f32.mrb[0].mxu0
        %v2023 = vpop.f32.mrb[0].mxu0
        %v2024 = vadd.f32 0.0, %v2023
        %v2025 = vpop.f32.mrb[0].mxu0
        %2026 = vmatprep.mubr.bf16.mxu0 0
        %2027 = vmatmul.mubr.bf16.gmra.mrb[0].mxu0 %v1424
        %v2028 = vpop.f32.mrb[0].mxu0
        %v2029 = vadd.f32 0.0, %v2028
        %v2030 = vpop.f32.mrb[0].mxu0
        %v2031 = vpop.f32.mrb[0].mxu0
        %v2032 = vadd.f32 0.0, %v2031
        %v2033 = vpop.f32.mrb[0].mxu0
        %2034 = vdwg.mxu0
        %v2051 = vunpack.c.l.b16 %v768
        %v2052 = vunpack.c.l.b16 %v769
        %v2053 = vunpack.c.l.b16 %v770
        %v2054 = vunpack.c.l.b16 %v771
        %v2055 = vunpack.c.l.b16 %v772
        %v2056 = vunpack.c.l.b16 %v773
        %v2057 = vunpack.c.l.b16 %v774
        %v2058 = vunpack.c.l.b16 %v775
        %v2059 = vunpack.c.l.b16 %v776
        %v2060 = vunpack.c.l.b16 %v777
        %v2061 = vunpack.c.l.b16 %v778
        %v2062 = vunpack.c.l.b16 %v779
        %v2063 = vunpack.c.l.b16 %v780
        %v2064 = vunpack.c.l.b16 %v781
        %v2065 = vunpack.c.l.b16 %v782
        %v2066 = vunpack.c.l.b16 %v783
        %v2067 = vpack.c.b16 %v2052, %v2051
        %v2068 = vpack.c.b16 %v2054, %v2053
        %v2069 = vpack.c.b16 %v2056, %v2055
        %v2070 = vpack.c.b16 %v2058, %v2057
        %v2071 = vpack.c.b16 %v2060, %v2059
        %v2072 = vpack.c.b16 %v2062, %v2061
        %v2073 = vpack.c.b16 %v2064, %v2063
        %v2074 = vpack.c.b16 %v2066, %v2065
        %2083 = vmatprep.subr.bf16.mxu0 0
        %2084 = vmatpush1.bf16.msra.mxu0 %v2067
        %2085 = vmatprep.subr.bf16.mxu0 0
        %2086 = vmatpush1.bf16.msra.mxu0 %v2068
        %2087 = vmatprep.subr.bf16.mxu0 0
        %2088 = vmatpush1.bf16.msra.mxu0 %v2069
        %2089 = vmatprep.subr.bf16.mxu0 0
        %2090 = vmatpush1.bf16.msra.mxu0 %v2070
        %2091 = vmatprep.subr.bf16.mxu0 0
        %2092 = vmatpush1.bf16.msra.mxu0 %v2071
        %2093 = vmatprep.subr.bf16.mxu0 0
        %2094 = vmatpush1.bf16.msra.mxu0 %v2072
        %2095 = vmatprep.subr.bf16.mxu0 0
        %2096 = vmatpush1.bf16.msra.mxu0 %v2073
        %2097 = vmatprep.subr.bf16.mxu0 0
        %2098 = vmatpush1.bf16.msra.mxu0 %v2074
        %2099 = vmatprep.subr.bf16.mxu0 0
        %2100 = vmatpush1.bf16.msra.mxu0 0
        %2101 = vmatprep.subr.bf16.mxu0 0
        %2102 = vmatpush1.bf16.msra.mxu0 0
        %2103 = vmatprep.subr.bf16.mxu0 0
        %2104 = vmatpush1.bf16.msra.mxu0 0
        %2105 = vmatprep.subr.bf16.mxu0 0
        %2106 = vmatpush1.bf16.msra.mxu0 0
        %2107 = vmatprep.subr.bf16.mxu0 0
        %2108 = vmatpush1.bf16.msra.mxu0 0
        %2109 = vmatprep.subr.bf16.mxu0 0
        %2110 = vmatpush1.bf16.msra.mxu0 0
        %2111 = vmatprep.subr.bf16.mxu0 0
        %2112 = vmatpush1.bf16.msra.mxu0 0
        %2113 = vmatprep.subr.bf16.mxu0 0
        %2114 = vmatpush1.bf16.msra.mxu0 0
        %2115 = vmatprep.mubr.bf16.mxu0 0
        %2116 = vmatmul.mubr.bf16.gmra.mrb[0].mxu0 %v704
        %v2117 = vpop.f32.mrb[0].mxu0
        %v2118 = vadd.f32 %v1525, %v2117
        %v2119 = vpop.f32.mrb[0].mxu0
        %v2120 = vpop.f32.mrb[0].mxu0
        %v2121 = vadd.f32 %v1528, %v2120
        %v2122 = vpop.f32.mrb[0].mxu0
        %2123 = vmatprep.mubr.bf16.mxu0 0
        %2124 = vmatmul.mubr.bf16.gmra.mrb[0].mxu0 %v705
        %v2125 = vpop.f32.mrb[0].mxu0
        %v2126 = vadd.f32 %v1533, %v2125
        %v2127 = vpop.f32.mrb[0].mxu0
        %v2128 = vpop.f32.mrb[0].mxu0
        %v2129 = vadd.f32 %v1536, %v2128
        %v2130 = vpop.f32.mrb[0].mxu0
        %2131 = vmatprep.mubr.bf16.mxu0 0
        %2132 = vmatmul.mubr.bf16.gmra.mrb[0].mxu0 %v706
        %v2133 = vpop.f32.mrb[0].mxu0
        %v2134 = vadd.f32 %v1541, %v2133
        %v2135 = vpop.f32.mrb[0].mxu0
        %v2136 = vpop.f32.mrb[0].mxu0
        %v2137 = vadd.f32 %v1544, %v2136
        %v2138 = vpop.f32.mrb[0].mxu0
        %2139 = vmatprep.mubr.bf16.mxu0 0
        %2140 = vmatmul.mubr.bf16.gmra.mrb[0].mxu0 %v707
        %v2141 = vpop.f32.mrb[0].mxu0
        %v2142 = vadd.f32 %v1549, %v2141
        %v2143 = vpop.f32.mrb[0].mxu0
        %v2144 = vpop.f32.mrb[0].mxu0
        %v2145 = vadd.f32 %v1552, %v2144
        %v2146 = vpop.f32.mrb[0].mxu0
        %2147 = vmatprep.mubr.bf16.mxu0 0
        %2148 = vmatmul.mubr.bf16.gmra.mrb[0].mxu0 %v708
        %v2149 = vpop.f32.mrb[0].mxu0
        %v2150 = vadd.f32 %v1557, %v2149
        %v2151 = vpop.f32.mrb[0].mxu0
        %v2152 = vpop.f32.mrb[0].mxu0
        %v2153 = vadd.f32 %v1560, %v2152
        %v2154 = vpop.f32.mrb[0].mxu0
        %2155 = vmatprep.mubr.bf16.mxu0 0
        %2156 = vmatmul.mubr.bf16.gmra.mrb[0].mxu0 %v709
        %v2157 = vpop.f32.mrb[0].mxu0
        %v2158 = vadd.f32 %v1565, %v2157
        %v2159 = vpop.f32.mrb[0].mxu0
        %v2160 = vpop.f32.mrb[0].mxu0
        %v2161 = vadd.f32 %v1568, %v2160
        %v2162 = vpop.f32.mrb[0].mxu0
        %2163 = vmatprep.mubr.bf16.mxu0 0
        %2164 = vmatmul.mubr.bf16.gmra.mrb[0].mxu0 %v710
        %v2165 = vpop.f32.mrb[0].mxu0
        %v2166 = vadd.f32 %v1573, %v2165
        %v2167 = vpop.f32.mrb[0].mxu0
        %v2168 = vpop.f32.mrb[0].mxu0
        %v2169 = vadd.f32 %v1576, %v2168
        %v2170 = vpop.f32.mrb[0].mxu0
        %2171 = vmatprep.mubr.bf16.mxu0 0
        %2172 = vmatmul.mubr.bf16.gmra.mrb[0].mxu0 %v711
        %v2173 = vpop.f32.mrb[0].mxu0
        %v2174 = vadd.f32 %v1581, %v2173
        %v2175 = vpop.f32.mrb[0].mxu0
        %v2176 = vpop.f32.mrb[0].mxu0
        %v2177 = vadd.f32 %v1584, %v2176
        %v2178 = vpop.f32.mrb[0].mxu0
        %2179 = vmatprep.mubr.bf16.mxu0 0
        %2180 = vmatmul.mubr.bf16.gmra.mrb[0].mxu0 %v712
        %v2181 = vpop.f32.mrb[0].mxu0
        %v2182 = vadd.f32 %v1589, %v2181
        %v2183 = vpop.f32.mrb[0].mxu0
        %v2184 = vpop.f32.mrb[0].mxu0
        %v2185 = vadd.f32 %v1592, %v2184
        %v2186 = vpop.f32.mrb[0].mxu0
        %2187 = vmatprep.mubr.bf16.mxu0 0
        %2188 = vmatmul.mubr.bf16.gmra.mrb[0].mxu0 %v713
        %v2189 = vpop.f32.mrb[0].mxu0
        %v2190 = vadd.f32 %v1597, %v2189
        %v2191 = vpop.f32.mrb[0].mxu0
        %v2192 = vpop.f32.mrb[0].mxu0
        %v2193 = vadd.f32 %v1600, %v2192
        %v2194 = vpop.f32.mrb[0].mxu0
        %2195 = vmatprep.mubr.bf16.mxu0 0
        %2196 = vmatmul.mubr.bf16.gmra.mrb[0].mxu0 %v714
        %v2197 = vpop.f32.mrb[0].mxu0
        %v2198 = vadd.f32 %v1605, %v2197
        %v2199 = vpop.f32.mrb[0].mxu0
        %v2200 = vpop.f32.mrb[0].mxu0
        %v2201 = vadd.f32 %v1608, %v2200
        %v2202 = vpop.f32.mrb[0].mxu0
        %2203 = vmatprep.mubr.bf16.mxu0 0
        %2204 = vmatmul.mubr.bf16.gmra.mrb[0].mxu0 %v715
        %v2205 = vpop.f32.mrb[0].mxu0
        %v2206 = vadd.f32 %v1613, %v2205
        %v2207 = vpop.f32.mrb[0].mxu0
        %v2208 = vpop.f32.mrb[0].mxu0
        %v2209 = vadd.f32 %v1616, %v2208
        %v2210 = vpop.f32.mrb[0].mxu0
        %2211 = vmatprep.mubr.bf16.mxu0 0
        %2212 = vmatmul.mubr.bf16.gmra.mrb[0].mxu0 %v716
        %v2213 = vpop.f32.mrb[0].mxu0
        %v2214 = vadd.f32 %v1621, %v2213
        %v2215 = vpop.f32.mrb[0].mxu0
        %v2216 = vpop.f32.mrb[0].mxu0
        %v2217 = vadd.f32 %v1624, %v2216
        %v2218 = vpop.f32.mrb[0].mxu0
        %2219 = vmatprep.mubr.bf16.mxu0 0
        %2220 = vmatmul.mubr.bf16.gmra.mrb[0].mxu0 %v717
        %v2221 = vpop.f32.mrb[0].mxu0
        %v2222 = vadd.f32 %v1629, %v2221
        %v2223 = vpop.f32.mrb[0].mxu0
        %v2224 = vpop.f32.mrb[0].mxu0
        %v2225 = vadd.f32 %v1632, %v2224
        %v2226 = vpop.f32.mrb[0].mxu0
        %2227 = vmatprep.mubr.bf16.mxu0 0
        %2228 = vmatmul.mubr.bf16.gmra.mrb[0].mxu0 %v718
        %v2229 = vpop.f32.mrb[0].mxu0
        %v2230 = vadd.f32 %v1637, %v2229
        %v2231 = vpop.f32.mrb[0].mxu0
        %v2232 = vpop.f32.mrb[0].mxu0
        %v2233 = vadd.f32 %v1640, %v2232
        %v2234 = vpop.f32.mrb[0].mxu0
        %2235 = vmatprep.mubr.bf16.mxu0 0
        %2236 = vmatmul.mubr.bf16.gmra.mrb[0].mxu0 %v719
        %v2237 = vpop.f32.mrb[0].mxu0
        %v2238 = vadd.f32 %v1645, %v2237
        %v2239 = vpop.f32.mrb[0].mxu0
        %v2240 = vpop.f32.mrb[0].mxu0
        %v2241 = vadd.f32 %v1648, %v2240
        %v2242 = vpop.f32.mrb[0].mxu0
        %2243 = vmatprep.mubr.bf16.mxu0 0
        %2244 = vmatmul.mubr.bf16.gmra.mrb[0].mxu0 %v720
        %v2245 = vpop.f32.mrb[0].mxu0
        %v2246 = vadd.f32 %v1653, %v2245
        %v2247 = vpop.f32.mrb[0].mxu0
        %v2248 = vpop.f32.mrb[0].mxu0
        %v2249 = vadd.f32 %v1656, %v2248
        %v2250 = vpop.f32.mrb[0].mxu0
        %2251 = vmatprep.mubr.bf16.mxu0 0
        %2252 = vmatmul.mubr.bf16.gmra.mrb[0].mxu0 %v721
        %v2253 = vpop.f32.mrb[0].mxu0
        %v2254 = vadd.f32 %v1661, %v2253
        %v2255 = vpop.f32.mrb[0].mxu0
        %v2256 = vpop.f32.mrb[0].mxu0
        %v2257 = vadd.f32 %v1664, %v2256
        %v2258 = vpop.f32.mrb[0].mxu0
        %2259 = vmatprep.mubr.bf16.mxu0 0
        %2260 = vmatmul.mubr.bf16.gmra.mrb[0].mxu0 %v722
        %v2261 = vpop.f32.mrb[0].mxu0
        %v2262 = vadd.f32 %v1669, %v2261
        %v2263 = vpop.f32.mrb[0].mxu0
        %v2264 = vpop.f32.mrb[0].mxu0
        %v2265 = vadd.f32 %v1672, %v2264
        %v2266 = vpop.f32.mrb[0].mxu0
        %2267 = vmatprep.mubr.bf16.mxu0 0
        %2268 = vmatmul.mubr.bf16.gmra.mrb[0].mxu0 %v723
        %v2269 = vpop.f32.mrb[0].mxu0
        %v2270 = vadd.f32 %v1677, %v2269
        %v2271 = vpop.f32.mrb[0].mxu0
        %v2272 = vpop.f32.mrb[0].mxu0
        %v2273 = vadd.f32 %v1680, %v2272
        %v2274 = vpop.f32.mrb[0].mxu0
        %2275 = vmatprep.mubr.bf16.mxu0 0
        %2276 = vmatmul.mubr.bf16.gmra.mrb[0].mxu0 %v724
        %v2277 = vpop.f32.mrb[0].mxu0
        %v2278 = vadd.f32 %v1685, %v2277
        %v2279 = vpop.f32.mrb[0].mxu0
        %v2280 = vpop.f32.mrb[0].mxu0
        %v2281 = vadd.f32 %v1688, %v2280
        %v2282 = vpop.f32.mrb[0].mxu0
        %2283 = vmatprep.mubr.bf16.mxu0 0
        %2284 = vmatmul.mubr.bf16.gmra.mrb[0].mxu0 %v725
        %v2285 = vpop.f32.mrb[0].mxu0
        %v2286 = vadd.f32 %v1693, %v2285
        %v2287 = vpop.f32.mrb[0].mxu0
        %v2288 = vpop.f32.mrb[0].mxu0
        %v2289 = vadd.f32 %v1696, %v2288
        %v2290 = vpop.f32.mrb[0].mxu0
        %2291 = vmatprep.mubr.bf16.mxu0 0
        %2292 = vmatmul.mubr.bf16.gmra.mrb[0].mxu0 %v726
        %v2293 = vpop.f32.mrb[0].mxu0
        %v2294 = vadd.f32 %v1701, %v2293
        %v2295 = vpop.f32.mrb[0].mxu0
        %v2296 = vpop.f32.mrb[0].mxu0
        %v2297 = vadd.f32 %v1704, %v2296
        %v2298 = vpop.f32.mrb[0].mxu0
        %2299 = vmatprep.mubr.bf16.mxu0 0
        %2300 = vmatmul.mubr.bf16.gmra.mrb[0].mxu0 %v727
        %v2301 = vpop.f32.mrb[0].mxu0
        %v2302 = vadd.f32 %v1709, %v2301
        %v2303 = vpop.f32.mrb[0].mxu0
        %v2304 = vpop.f32.mrb[0].mxu0
        %v2305 = vadd.f32 %v1712, %v2304
        %v2306 = vpop.f32.mrb[0].mxu0
        %2307 = vmatprep.mubr.bf16.mxu0 0
        %2308 = vmatmul.mubr.bf16.gmra.mrb[0].mxu0 %v728
        %v2309 = vpop.f32.mrb[0].mxu0
        %v2310 = vadd.f32 %v1717, %v2309
        %v2311 = vpop.f32.mrb[0].mxu0
        %v2312 = vpop.f32.mrb[0].mxu0
        %v2313 = vadd.f32 %v1720, %v2312
        %v2314 = vpop.f32.mrb[0].mxu0
        %2315 = vmatprep.mubr.bf16.mxu0 0
        %2316 = vmatmul.mubr.bf16.gmra.mrb[0].mxu0 %v729
        %v2317 = vpop.f32.mrb[0].mxu0
        %v2318 = vadd.f32 %v1725, %v2317
        %v2319 = vpop.f32.mrb[0].mxu0
        %v2320 = vpop.f32.mrb[0].mxu0
        %v2321 = vadd.f32 %v1728, %v2320
        %v2322 = vpop.f32.mrb[0].mxu0
        %2323 = vmatprep.mubr.bf16.mxu0 0
        %2324 = vmatmul.mubr.bf16.gmra.mrb[0].mxu0 %v730
        %v2325 = vpop.f32.mrb[0].mxu0
        %v2326 = vadd.f32 %v1733, %v2325
        %v2327 = vpop.f32.mrb[0].mxu0
        %v2328 = vpop.f32.mrb[0].mxu0
        %v2329 = vadd.f32 %v1736, %v2328
        %v2330 = vpop.f32.mrb[0].mxu0
        %2331 = vmatprep.mubr.bf16.mxu0 0
        %2332 = vmatmul.mubr.bf16.gmra.mrb[0].mxu0 %v731
        %v2333 = vpop.f32.mrb[0].mxu0
        %v2334 = vadd.f32 %v1741, %v2333
        %v2335 = vpop.f32.mrb[0].mxu0
        %v2336 = vpop.f32.mrb[0].mxu0
        %v2337 = vadd.f32 %v1744, %v2336
        %v2338 = vpop.f32.mrb[0].mxu0
        %2339 = vmatprep.mubr.bf16.mxu0 0
        %2340 = vmatmul.mubr.bf16.gmra.mrb[0].mxu0 %v732
        %v2341 = vpop.f32.mrb[0].mxu0
        %v2342 = vadd.f32 %v1749, %v2341
        %v2343 = vpop.f32.mrb[0].mxu0
        %v2344 = vpop.f32.mrb[0].mxu0
        %v2345 = vadd.f32 %v1752, %v2344
        %v2346 = vpop.f32.mrb[0].mxu0
        %2347 = vmatprep.mubr.bf16.mxu0 0
        %2348 = vmatmul.mubr.bf16.gmra.mrb[0].mxu0 %v733
        %v2349 = vpop.f32.mrb[0].mxu0
        %v2350 = vadd.f32 %v1757, %v2349
        %v2351 = vpop.f32.mrb[0].mxu0
        %v2352 = vpop.f32.mrb[0].mxu0
        %v2353 = vadd.f32 %v1760, %v2352
        %v2354 = vpop.f32.mrb[0].mxu0
        %2355 = vmatprep.mubr.bf16.mxu0 0
        %2356 = vmatmul.mubr.bf16.gmra.mrb[0].mxu0 %v734
        %v2357 = vpop.f32.mrb[0].mxu0
        %v2358 = vadd.f32 %v1765, %v2357
        %v2359 = vpop.f32.mrb[0].mxu0
        %v2360 = vpop.f32.mrb[0].mxu0
        %v2361 = vadd.f32 %v1768, %v2360
        %v2362 = vpop.f32.mrb[0].mxu0
        %2363 = vmatprep.mubr.bf16.mxu0 0
        %2364 = vmatmul.mubr.bf16.gmra.mrb[0].mxu0 %v735
        %v2365 = vpop.f32.mrb[0].mxu0
        %v2366 = vadd.f32 %v1773, %v2365
        %v2367 = vpop.f32.mrb[0].mxu0
        %v2368 = vpop.f32.mrb[0].mxu0
        %v2369 = vadd.f32 %v1776, %v2368
        %v2370 = vpop.f32.mrb[0].mxu0
        %2371 = vmatprep.mubr.bf16.mxu0 0
        %2372 = vmatmul.mubr.bf16.gmra.mrb[0].mxu0 %v736
        %v2373 = vpop.f32.mrb[0].mxu0
        %v2374 = vadd.f32 %v1781, %v2373
        %v2375 = vpop.f32.mrb[0].mxu0
        %v2376 = vpop.f32.mrb[0].mxu0
        %v2377 = vadd.f32 %v1784, %v2376
        %v2378 = vpop.f32.mrb[0].mxu0
        %2379 = vmatprep.mubr.bf16.mxu0 0
        %2380 = vmatmul.mubr.bf16.gmra.mrb[0].mxu0 %v737
        %v2381 = vpop.f32.mrb[0].mxu0
        %v2382 = vadd.f32 %v1789, %v2381
        %v2383 = vpop.f32.mrb[0].mxu0
        %v2384 = vpop.f32.mrb[0].mxu0
        %v2385 = vadd.f32 %v1792, %v2384
        %v2386 = vpop.f32.mrb[0].mxu0
        %2387 = vmatprep.mubr.bf16.mxu0 0
        %2388 = vmatmul.mubr.bf16.gmra.mrb[0].mxu0 %v738
        %v2389 = vpop.f32.mrb[0].mxu0
        %v2390 = vadd.f32 %v1797, %v2389
        %v2391 = vpop.f32.mrb[0].mxu0
        %v2392 = vpop.f32.mrb[0].mxu0
        %v2393 = vadd.f32 %v1800, %v2392
        %v2394 = vpop.f32.mrb[0].mxu0
        %2395 = vmatprep.mubr.bf16.mxu0 0
        %2396 = vmatmul.mubr.bf16.gmra.mrb[0].mxu0 %v739
        %v2397 = vpop.f32.mrb[0].mxu0
        %v2398 = vadd.f32 %v1805, %v2397
        %v2399 = vpop.f32.mrb[0].mxu0
        %v2400 = vpop.f32.mrb[0].mxu0
        %v2401 = vadd.f32 %v1808, %v2400
        %v2402 = vpop.f32.mrb[0].mxu0
        %2403 = vmatprep.mubr.bf16.mxu0 0
        %2404 = vmatmul.mubr.bf16.gmra.mrb[0].mxu0 %v740
        %v2405 = vpop.f32.mrb[0].mxu0
        %v2406 = vadd.f32 %v1813, %v2405
        %v2407 = vpop.f32.mrb[0].mxu0
        %v2408 = vpop.f32.mrb[0].mxu0
        %v2409 = vadd.f32 %v1816, %v2408
        %v2410 = vpop.f32.mrb[0].mxu0
        %2411 = vmatprep.mubr.bf16.mxu0 0
        %2412 = vmatmul.mubr.bf16.gmra.mrb[0].mxu0 %v741
        %v2413 = vpop.f32.mrb[0].mxu0
        %v2414 = vadd.f32 %v1821, %v2413
        %v2415 = vpop.f32.mrb[0].mxu0
        %v2416 = vpop.f32.mrb[0].mxu0
        %v2417 = vadd.f32 %v1824, %v2416
        %v2418 = vpop.f32.mrb[0].mxu0
        %2419 = vmatprep.mubr.bf16.mxu0 0
        %2420 = vmatmul.mubr.bf16.gmra.mrb[0].mxu0 %v742
        %v2421 = vpop.f32.mrb[0].mxu0
        %v2422 = vadd.f32 %v1829, %v2421
        %v2423 = vpop.f32.mrb[0].mxu0
        %v2424 = vpop.f32.mrb[0].mxu0
        %v2425 = vadd.f32 %v1832, %v2424
        %v2426 = vpop.f32.mrb[0].mxu0
        %2427 = vmatprep.mubr.bf16.mxu0 0
        %2428 = vmatmul.mubr.bf16.gmra.mrb[0].mxu0 %v743
        %v2429 = vpop.f32.mrb[0].mxu0
        %v2430 = vadd.f32 %v1837, %v2429
        %v2431 = vpop.f32.mrb[0].mxu0
        %v2432 = vpop.f32.mrb[0].mxu0
        %v2433 = vadd.f32 %v1840, %v2432
        %v2434 = vpop.f32.mrb[0].mxu0
        %2435 = vmatprep.mubr.bf16.mxu0 0
        %2436 = vmatmul.mubr.bf16.gmra.mrb[0].mxu0 %v744
        %v2437 = vpop.f32.mrb[0].mxu0
        %v2438 = vadd.f32 %v1845, %v2437
        %v2439 = vpop.f32.mrb[0].mxu0
        %v2440 = vpop.f32.mrb[0].mxu0
        %v2441 = vadd.f32 %v1848, %v2440
        %v2442 = vpop.f32.mrb[0].mxu0
        %2443 = vmatprep.mubr.bf16.mxu0 0
        %2444 = vmatmul.mubr.bf16.gmra.mrb[0].mxu0 %v745
        %v2445 = vpop.f32.mrb[0].mxu0
        %v2446 = vadd.f32 %v1853, %v2445
        %v2447 = vpop.f32.mrb[0].mxu0
        %v2448 = vpop.f32.mrb[0].mxu0
        %v2449 = vadd.f32 %v1856, %v2448
        %v2450 = vpop.f32.mrb[0].mxu0
        %2451 = vmatprep.mubr.bf16.mxu0 0
        %2452 = vmatmul.mubr.bf16.gmra.mrb[0].mxu0 %v746
        %v2453 = vpop.f32.mrb[0].mxu0
        %v2454 = vadd.f32 %v1861, %v2453
        %v2455 = vpop.f32.mrb[0].mxu0
        %v2456 = vpop.f32.mrb[0].mxu0
        %v2457 = vadd.f32 %v1864, %v2456
        %v2458 = vpop.f32.mrb[0].mxu0
        %2459 = vmatprep.mubr.bf16.mxu0 0
        %2460 = vmatmul.mubr.bf16.gmra.mrb[0].mxu0 %v747
        %v2461 = vpop.f32.mrb[0].mxu0
        %v2462 = vadd.f32 %v1869, %v2461
        %v2463 = vpop.f32.mrb[0].mxu0
        %v2464 = vpop.f32.mrb[0].mxu0
        %v2465 = vadd.f32 %v1872, %v2464
        %v2466 = vpop.f32.mrb[0].mxu0
        %2467 = vmatprep.mubr.bf16.mxu0 0
        %2468 = vmatmul.mubr.bf16.gmra.mrb[0].mxu0 %v748
        %v2469 = vpop.f32.mrb[0].mxu0
        %v2470 = vadd.f32 %v1877, %v2469
        %v2471 = vpop.f32.mrb[0].mxu0
        %v2472 = vpop.f32.mrb[0].mxu0
        %v2473 = vadd.f32 %v1880, %v2472
        %v2474 = vpop.f32.mrb[0].mxu0
        %2475 = vmatprep.mubr.bf16.mxu0 0
        %2476 = vmatmul.mubr.bf16.gmra.mrb[0].mxu0 %v749
        %v2477 = vpop.f32.mrb[0].mxu0
        %v2478 = vadd.f32 %v1885, %v2477
        %v2479 = vpop.f32.mrb[0].mxu0
        %v2480 = vpop.f32.mrb[0].mxu0
        %v2481 = vadd.f32 %v1888, %v2480
        %v2482 = vpop.f32.mrb[0].mxu0
        %2483 = vmatprep.mubr.bf16.mxu0 0
        %2484 = vmatmul.mubr.bf16.gmra.mrb[0].mxu0 %v750
        %v2485 = vpop.f32.mrb[0].mxu0
        %v2486 = vadd.f32 %v1893, %v2485
        %v2487 = vpop.f32.mrb[0].mxu0
        %v2488 = vpop.f32.mrb[0].mxu0
        %v2489 = vadd.f32 %v1896, %v2488
        %v2490 = vpop.f32.mrb[0].mxu0
        %2491 = vmatprep.mubr.bf16.mxu0 0
        %2492 = vmatmul.mubr.bf16.gmra.mrb[0].mxu0 %v751
        %v2493 = vpop.f32.mrb[0].mxu0
        %v2494 = vadd.f32 %v1901, %v2493
        %v2495 = vpop.f32.mrb[0].mxu0
        %v2496 = vpop.f32.mrb[0].mxu0
        %v2497 = vadd.f32 %v1904, %v2496
        %v2498 = vpop.f32.mrb[0].mxu0
        %2499 = vmatprep.mubr.bf16.mxu0 0
        %2500 = vmatmul.mubr.bf16.gmra.mrb[0].mxu0 %v752
        %v2501 = vpop.f32.mrb[0].mxu0
        %v2502 = vadd.f32 %v1909, %v2501
        %v2503 = vpop.f32.mrb[0].mxu0
        %v2504 = vpop.f32.mrb[0].mxu0
        %v2505 = vadd.f32 %v1912, %v2504
        %v2506 = vpop.f32.mrb[0].mxu0
        %2507 = vmatprep.mubr.bf16.mxu0 0
        %2508 = vmatmul.mubr.bf16.gmra.mrb[0].mxu0 %v753
        %v2509 = vpop.f32.mrb[0].mxu0
        %v2510 = vadd.f32 %v1917, %v2509
        %v2511 = vpop.f32.mrb[0].mxu0
        %v2512 = vpop.f32.mrb[0].mxu0
        %v2513 = vadd.f32 %v1920, %v2512
        %v2514 = vpop.f32.mrb[0].mxu0
        %2515 = vmatprep.mubr.bf16.mxu0 0
        %2516 = vmatmul.mubr.bf16.gmra.mrb[0].mxu0 %v754
        %v2517 = vpop.f32.mrb[0].mxu0
        %v2518 = vadd.f32 %v1925, %v2517
        %v2519 = vpop.f32.mrb[0].mxu0
        %v2520 = vpop.f32.mrb[0].mxu0
        %v2521 = vadd.f32 %v1928, %v2520
        %v2522 = vpop.f32.mrb[0].mxu0
        %2523 = vmatprep.mubr.bf16.mxu0 0
        %2524 = vmatmul.mubr.bf16.gmra.mrb[0].mxu0 %v755
        %v2525 = vpop.f32.mrb[0].mxu0
        %v2526 = vadd.f32 %v1933, %v2525
        %v2527 = vpop.f32.mrb[0].mxu0
        %v2528 = vpop.f32.mrb[0].mxu0
        %v2529 = vadd.f32 %v1936, %v2528
        %v2530 = vpop.f32.mrb[0].mxu0
        %2531 = vmatprep.mubr.bf16.mxu0 0
        %2532 = vmatmul.mubr.bf16.gmra.mrb[0].mxu0 %v756
        %v2533 = vpop.f32.mrb[0].mxu0
        %v2534 = vadd.f32 %v1941, %v2533
        %v2535 = vpop.f32.mrb[0].mxu0
        %v2536 = vpop.f32.mrb[0].mxu0
        %v2537 = vadd.f32 %v1944, %v2536
        %v2538 = vpop.f32.mrb[0].mxu0
        %2539 = vmatprep.mubr.bf16.mxu0 0
        %2540 = vmatmul.mubr.bf16.gmra.mrb[0].mxu0 %v757
        %v2541 = vpop.f32.mrb[0].mxu0
        %v2542 = vadd.f32 %v1949, %v2541
        %v2543 = vpop.f32.mrb[0].mxu0
        %v2544 = vpop.f32.mrb[0].mxu0
        %v2545 = vadd.f32 %v1952, %v2544
        %v2546 = vpop.f32.mrb[0].mxu0
        %2547 = vmatprep.mubr.bf16.mxu0 0
        %2548 = vmatmul.mubr.bf16.gmra.mrb[0].mxu0 %v758
        %v2549 = vpop.f32.mrb[0].mxu0
        %v2550 = vadd.f32 %v1957, %v2549
        %v2551 = vpop.f32.mrb[0].mxu0
        %v2552 = vpop.f32.mrb[0].mxu0
        %v2553 = vadd.f32 %v1960, %v2552
        %v2554 = vpop.f32.mrb[0].mxu0
        %2555 = vmatprep.mubr.bf16.mxu0 0
        %2556 = vmatmul.mubr.bf16.gmra.mrb[0].mxu0 %v759
        %v2557 = vpop.f32.mrb[0].mxu0
        %v2558 = vadd.f32 %v1965, %v2557
        %v2559 = vpop.f32.mrb[0].mxu0
        %v2560 = vpop.f32.mrb[0].mxu0
        %v2561 = vadd.f32 %v1968, %v2560
        %v2562 = vpop.f32.mrb[0].mxu0
        %2563 = vmatprep.mubr.bf16.mxu0 0
        %2564 = vmatmul.mubr.bf16.gmra.mrb[0].mxu0 %v760
        %v2565 = vpop.f32.mrb[0].mxu0
        %v2566 = vadd.f32 %v1973, %v2565
        %v2567 = vpop.f32.mrb[0].mxu0
        %v2568 = vpop.f32.mrb[0].mxu0
        %v2569 = vadd.f32 %v1976, %v2568
        %v2570 = vpop.f32.mrb[0].mxu0
        %2571 = vmatprep.mubr.bf16.mxu0 0
        %2572 = vmatmul.mubr.bf16.gmra.mrb[0].mxu0 %v761
        %v2573 = vpop.f32.mrb[0].mxu0
        %v2574 = vadd.f32 %v1981, %v2573
        %v2575 = vpop.f32.mrb[0].mxu0
        %v2576 = vpop.f32.mrb[0].mxu0
        %v2577 = vadd.f32 %v1984, %v2576
        %v2578 = vpop.f32.mrb[0].mxu0
        %2579 = vmatprep.mubr.bf16.mxu0 0
        %2580 = vmatmul.mubr.bf16.gmra.mrb[0].mxu0 %v762
        %v2581 = vpop.f32.mrb[0].mxu0
        %v2582 = vadd.f32 %v1989, %v2581
        %v2583 = vpop.f32.mrb[0].mxu0
        %v2584 = vpop.f32.mrb[0].mxu0
        %v2585 = vadd.f32 %v1992, %v2584
        %v2586 = vpop.f32.mrb[0].mxu0
        %2587 = vmatprep.mubr.bf16.mxu0 0
        %2588 = vmatmul.mubr.bf16.gmra.mrb[0].mxu0 %v763
        %v2589 = vpop.f32.mrb[0].mxu0
        %v2590 = vadd.f32 %v1997, %v2589
        %v2591 = vpop.f32.mrb[0].mxu0
        %v2592 = vpop.f32.mrb[0].mxu0
        %v2593 = vadd.f32 %v2000, %v2592
        %v2594 = vpop.f32.mrb[0].mxu0
        %2595 = vmatprep.mubr.bf16.mxu0 0
        %2596 = vmatmul.mubr.bf16.gmra.mrb[0].mxu0 %v764
        %v2597 = vpop.f32.mrb[0].mxu0
        %v2598 = vadd.f32 %v2005, %v2597
        %v2599 = vpop.f32.mrb[0].mxu0
        %v2600 = vpop.f32.mrb[0].mxu0
        %v2601 = vadd.f32 %v2008, %v2600
        %v2602 = vpop.f32.mrb[0].mxu0
        %2603 = vmatprep.mubr.bf16.mxu0 0
        %2604 = vmatmul.mubr.bf16.gmra.mrb[0].mxu0 %v765
        %v2605 = vpop.f32.mrb[0].mxu0
        %v2606 = vadd.f32 %v2013, %v2605
        %v2607 = vpop.f32.mrb[0].mxu0
        %v2608 = vpop.f32.mrb[0].mxu0
        %v2609 = vadd.f32 %v2016, %v2608
        %v2610 = vpop.f32.mrb[0].mxu0
        %2611 = vmatprep.mubr.bf16.mxu0 0
        %2612 = vmatmul.mubr.bf16.gmra.mrb[0].mxu0 %v766
        %v2613 = vpop.f32.mrb[0].mxu0
        %v2614 = vadd.f32 %v2021, %v2613
        %v2615 = vpop.f32.mrb[0].mxu0
        %v2616 = vpop.f32.mrb[0].mxu0
        %v2617 = vadd.f32 %v2024, %v2616
        %v2618 = vpop.f32.mrb[0].mxu0
        %2619 = vmatprep.mubr.bf16.mxu0 0
        %2620 = vmatmul.mubr.bf16.gmra.mrb[0].mxu0 %v767
        %v2621 = vpop.f32.mrb[0].mxu0
        %v2622 = vadd.f32 %v2029, %v2621
        %v2623 = vpop.f32.mrb[0].mxu0
        %v2624 = vpop.f32.mrb[0].mxu0
        %v2625 = vadd.f32 %v2032, %v2624
        %v2626 = vpop.f32.mrb[0].mxu0
        %2627 = vdwg.mxu0
        %vm2628 = vcmask 1045504
        %v2629 = vrot.slane %v534, 2
        %v2630 = vrot.slane %v535, 2
        %v2631 = vsel %vm2628, %v2629, %v2630
        %v2632 = vrot.slane %v536, 2
        %v2633 = vsel %vm2628, %v2630, %v2632
        %v2634 = vrot.slane %v537, 2
        %v2635 = vsel %vm2628, %v2632, %v2634
        %v2636 = vrot.slane %v538, 2
        %v2637 = vsel %vm2628, %v2634, %v2636
        %v2638 = vrot.slane %v539, 2
        %v2639 = vrot.slane %v540, 2
        %v2640 = vsel %vm2628, %v2638, %v2639
        %v2641 = vrot.slane %v541, 2
        %v2642 = vsel %vm2628, %v2639, %v2641
        %v2643 = vrot.slane %v542, 2
        %v2644 = vsel %vm2628, %v2641, %v2643
        %v2645 = vrot.slane %v543, 2
        %v2646 = vsel %vm2628, %v2643, %v2645
        %v2647 = vrot.slane %v544, 2
        %v2648 = vrot.slane %v545, 2
        %v2649 = vsel %vm2628, %v2647, %v2648
        %v2650 = vrot.slane %v546, 2
        %v2651 = vsel %vm2628, %v2648, %v2650
        %v2652 = vrot.slane %v547, 2
        %v2653 = vsel %vm2628, %v2650, %v2652
        %v2654 = vrot.slane %v548, 2
        %v2655 = vsel %vm2628, %v2652, %v2654
        %v2656 = vrot.slane %v549, 2
        %v2657 = vrot.slane %v550, 2
        %v2658 = vsel %vm2628, %v2656, %v2657
        %v2659 = vrot.slane %v551, 2
        %v2660 = vsel %vm2628, %v2657, %v2659
        %v2661 = vrot.slane %v552, 2
        %v2662 = vsel %vm2628, %v2659, %v2661
        %v2663 = vrot.slane %v553, 2
        %v2664 = vsel %vm2628, %v2661, %v2663
        %v2665 = vrot.slane %v554, 2
        %v2666 = vrot.slane %v555, 2
        %v2667 = vsel %vm2628, %v2665, %v2666
        %v2668 = vrot.slane %v556, 2
        %v2669 = vsel %vm2628, %v2666, %v2668
        %v2670 = vrot.slane %v557, 2
        %v2671 = vsel %vm2628, %v2668, %v2670
        %v2672 = vrot.slane %v558, 2
        %v2673 = vsel %vm2628, %v2670, %v2672
        %v2674 = vrot.slane %v559, 2
        %v2675 = vrot.slane %v560, 2
        %v2676 = vsel %vm2628, %v2674, %v2675
        %v2677 = vrot.slane %v561, 2
        %v2678 = vsel %vm2628, %v2675, %v2677
        %v2679 = vrot.slane %v562, 2
        %v2680 = vsel %vm2628, %v2677, %v2679
        %v2681 = vrot.slane %v563, 2
        %v2682 = vsel %vm2628, %v2679, %v2681
        %v2683 = vrot.slane %v564, 2
        %v2684 = vrot.slane %v565, 2
        %v2685 = vsel %vm2628, %v2683, %v2684
        %v2686 = vrot.slane %v566, 2
        %v2687 = vsel %vm2628, %v2684, %v2686
        %v2688 = vrot.slane %v567, 2
        %v2689 = vsel %vm2628, %v2686, %v2688
        %v2690 = vrot.slane %v568, 2
        %v2691 = vsel %vm2628, %v2688, %v2690
        %v2692 = vrot.slane %v569, 2
        %v2693 = vrot.slane %v570, 2
        %v2694 = vsel %vm2628, %v2692, %v2693
        %v2695 = vrot.slane %v571, 2
        %v2696 = vsel %vm2628, %v2693, %v2695
        %v2697 = vrot.slane %v572, 2
        %v2698 = vsel %vm2628, %v2695, %v2697
        %v2699 = vrot.slane %v573, 2
        %v2700 = vsel %vm2628, %v2697, %v2699
        %v2701 = vrot.slane %v574, 2
        %v2702 = vrot.slane %v575, 2
        %v2703 = vsel %vm2628, %v2701, %v2702
        %v2704 = vrot.slane %v576, 2
        %v2705 = vsel %vm2628, %v2702, %v2704
        %v2706 = vrot.slane %v577, 2
        %v2707 = vsel %vm2628, %v2704, %v2706
        %v2708 = vrot.slane %v578, 2
        %v2709 = vsel %vm2628, %v2706, %v2708
        %v2710 = vrot.slane %v579, 2
        %v2711 = vrot.slane %v580, 2
        %v2712 = vsel %vm2628, %v2710, %v2711
        %v2713 = vrot.slane %v581, 2
        %v2714 = vsel %vm2628, %v2711, %v2713
        %v2715 = vrot.slane %v582, 2
        %v2716 = vsel %vm2628, %v2713, %v2715
        %v2717 = vrot.slane %v583, 2
        %v2718 = vsel %vm2628, %v2715, %v2717
        %v2719 = vrot.slane %v584, 2
        %v2720 = vrot.slane %v585, 2
        %v2721 = vsel %vm2628, %v2719, %v2720
        %v2722 = vrot.slane %v586, 2
        %v2723 = vsel %vm2628, %v2720, %v2722
        %v2724 = vrot.slane %v587, 2
        %v2725 = vsel %vm2628, %v2722, %v2724
        %v2726 = vrot.slane %v588, 2
        %v2727 = vsel %vm2628, %v2724, %v2726
        %v2728 = vrot.slane %v589, 2
        %v2729 = vrot.slane %v590, 2
        %v2730 = vsel %vm2628, %v2728, %v2729
        %v2731 = vrot.slane %v591, 2
        %v2732 = vsel %vm2628, %v2729, %v2731
        %v2733 = vrot.slane %v592, 2
        %v2734 = vsel %vm2628, %v2731, %v2733
        %v2735 = vrot.slane %v593, 2
        %v2736 = vsel %vm2628, %v2733, %v2735
        %v2737 = vrot.slane %v594, 2
        %v2738 = vrot.slane %v595, 2
        %v2739 = vsel %vm2628, %v2737, %v2738
        %v2740 = vrot.slane %v596, 2
        %v2741 = vsel %vm2628, %v2738, %v2740
        %v2742 = vrot.slane %v597, 2
        %v2743 = vsel %vm2628, %v2740, %v2742
        %v2744 = vrot.slane %v598, 2
        %v2745 = vsel %vm2628, %v2742, %v2744
        %v2746 = vrot.slane %v599, 2
        %v2747 = vrot.slane %v600, 2
        %v2748 = vsel %vm2628, %v2746, %v2747
        %v2749 = vrot.slane %v601, 2
        %v2750 = vsel %vm2628, %v2747, %v2749
        %v2751 = vrot.slane %v602, 2
        %v2752 = vsel %vm2628, %v2749, %v2751
        %v2753 = vrot.slane %v603, 2
        %v2754 = vsel %vm2628, %v2751, %v2753
        %v2755 = vrot.slane %v604, 2
        %v2756 = vrot.slane %v605, 2
        %v2757 = vsel %vm2628, %v2755, %v2756
        %v2758 = vrot.slane %v606, 2
        %v2759 = vsel %vm2628, %v2756, %v2758
        %v2760 = vrot.slane %v607, 2
        %v2761 = vsel %vm2628, %v2758, %v2760
        %v2762 = vrot.slane %v608, 2
        %v2763 = vsel %vm2628, %v2760, %v2762
        %v2764 = vrot.slane %v609, 2
        %v2765 = vrot.slane %v610, 2
        %v2766 = vsel %vm2628, %v2764, %v2765
        %v2767 = vrot.slane %v611, 2
        %v2768 = vsel %vm2628, %v2765, %v2767
        %v2769 = vrot.slane %v612, 2
        %v2770 = vsel %vm2628, %v2767, %v2769
        %v2771 = vrot.slane %v613, 2
        %v2772 = vsel %vm2628, %v2769, %v2771
        %v2773 = vrot.slane %v614, 2
        %v2774 = vrot.slane %v615, 2
        %v2775 = vsel %vm2628, %v2773, %v2774
        %v2776 = vrot.slane %v616, 2
        %v2777 = vsel %vm2628, %v2774, %v2776
        %v2778 = vrot.slane %v617, 2
        %v2779 = vsel %vm2628, %v2776, %v2778
        %v2780 = vrot.slane %v618, 2
        %v2781 = vsel %vm2628, %v2778, %v2780
        %v2782 = vrot.slane %v619, 2
        %v2783 = vrot.slane %v620, 2
        %v2784 = vsel %vm2628, %v2782, %v2783
        %v2785 = vrot.slane %v621, 2
        %v2786 = vsel %vm2628, %v2783, %v2785
        %v2787 = vrot.slane %v622, 2
        %v2788 = vsel %vm2628, %v2785, %v2787
        %v2789 = vrot.slane %v623, 2
        %v2790 = vsel %vm2628, %v2787, %v2789
        %v2791 = vrot.slane %v624, 2
        %v2792 = vrot.slane %v625, 2
        %v2793 = vsel %vm2628, %v2791, %v2792
        %v2794 = vrot.slane %v626, 2
        %v2795 = vsel %vm2628, %v2792, %v2794
        %v2796 = vrot.slane %v627, 2
        %v2797 = vsel %vm2628, %v2794, %v2796
        %v2798 = vrot.slane %v628, 2
        %v2799 = vsel %vm2628, %v2796, %v2798
        %v2800 = vrot.slane %v629, 2
        %v2801 = vrot.slane %v630, 2
        %v2802 = vsel %vm2628, %v2800, %v2801
        %v2803 = vrot.slane %v631, 2
        %v2804 = vsel %vm2628, %v2801, %v2803
        %v2805 = vrot.slane %v632, 2
        %v2806 = vsel %vm2628, %v2803, %v2805
        %v2807 = vrot.slane %v633, 2
        %v2808 = vsel %vm2628, %v2805, %v2807
        %v2809 = vrot.slane %v634, 2
        %v2810 = vrot.slane %v635, 2
        %v2811 = vsel %vm2628, %v2809, %v2810
        %v2812 = vrot.slane %v636, 2
        %v2813 = vsel %vm2628, %v2810, %v2812
        %v2814 = vrot.slane %v637, 2
        %v2815 = vsel %vm2628, %v2812, %v2814
        %v2816 = vrot.slane %v638, 2
        %v2817 = vsel %vm2628, %v2814, %v2816
        %v2818 = vrot.slane %v639, 2
        %v2819 = vrot.slane %v640, 2
        %v2820 = vsel %vm2628, %v2818, %v2819
        %v2821 = vrot.slane %v641, 2
        %v2822 = vsel %vm2628, %v2819, %v2821
        %v2823 = vrot.slane %v642, 2
        %v2824 = vsel %vm2628, %v2821, %v2823
        %v2825 = vrot.slane %v643, 2
        %v2826 = vsel %vm2628, %v2823, %v2825
        %v2827 = vrot.slane %v644, 2
        %v2828 = vrot.slane %v645, 2
        %v2829 = vsel %vm2628, %v2827, %v2828
        %v2830 = vrot.slane %v646, 2
        %v2831 = vsel %vm2628, %v2828, %v2830
        %v2832 = vrot.slane %v647, 2
        %v2833 = vsel %vm2628, %v2830, %v2832
        %v2834 = vrot.slane %v648, 2
        %v2835 = vsel %vm2628, %v2832, %v2834
        %v2836 = vrot.slane %v649, 2
        %v2837 = vrot.slane %v650, 2
        %v2838 = vsel %vm2628, %v2836, %v2837
        %v2839 = vrot.slane %v651, 2
        %v2840 = vsel %vm2628, %v2837, %v2839
        %v2841 = vrot.slane %v652, 2
        %v2842 = vsel %vm2628, %v2839, %v2841
        %v2843 = vrot.slane %v653, 2
        %v2844 = vsel %vm2628, %v2841, %v2843
        %v2845 = vrot.slane %v654, 2
        %v2846 = vrot.slane %v655, 2
        %v2847 = vsel %vm2628, %v2845, %v2846
        %v2848 = vrot.slane %v656, 2
        %v2849 = vsel %vm2628, %v2846, %v2848
        %v2850 = vrot.slane %v657, 2
        %v2851 = vsel %vm2628, %v2848, %v2850
        %v2852 = vrot.slane %v658, 2
        %v2853 = vsel %vm2628, %v2850, %v2852
        %v2854 = vrot.slane %v659, 2
        %v2855 = vrot.slane %v660, 2
        %v2856 = vsel %vm2628, %v2854, %v2855
        %v2857 = vrot.slane %v661, 2
        %v2858 = vsel %vm2628, %v2855, %v2857
        %v2859 = vrot.slane %v662, 2
        %v2860 = vsel %vm2628, %v2857, %v2859
        %v2861 = vrot.slane %v663, 2
        %v2862 = vsel %vm2628, %v2859, %v2861
        %v2863 = vrot.slane %v664, 2
        %v2864 = vrot.slane %v665, 2
        %v2865 = vsel %vm2628, %v2863, %v2864
        %v2866 = vrot.slane %v666, 2
        %v2867 = vsel %vm2628, %v2864, %v2866
        %v2868 = vrot.slane %v667, 2
        %v2869 = vsel %vm2628, %v2866, %v2868
        %v2870 = vrot.slane %v668, 2
        %v2871 = vsel %vm2628, %v2868, %v2870
        %v2872 = vrot.slane %v669, 2
        %v2873 = vrot.slane %v670, 2
        %v2874 = vsel %vm2628, %v2872, %v2873
        %v2875 = vrot.slane %v671, 2
        %v2876 = vsel %vm2628, %v2873, %v2875
        %v2877 = vrot.slane %v672, 2
        %v2878 = vsel %vm2628, %v2875, %v2877
        %v2879 = vrot.slane %v673, 2
        %v2880 = vsel %vm2628, %v2877, %v2879
        %v2881 = vrot.slane %v674, 2
        %v2882 = vrot.slane %v675, 2
        %v2883 = vsel %vm2628, %v2881, %v2882
        %v2884 = vrot.slane %v676, 2
        %v2885 = vsel %vm2628, %v2882, %v2884
        %v2886 = vrot.slane %v677, 2
        %v2887 = vsel %vm2628, %v2884, %v2886
        %v2888 = vrot.slane %v678, 2
        %v2889 = vsel %vm2628, %v2886, %v2888
        %v2890 = vrot.slane %v679, 2
        %v2891 = vrot.slane %v680, 2
        %v2892 = vsel %vm2628, %v2890, %v2891
        %v2893 = vrot.slane %v681, 2
        %v2894 = vsel %vm2628, %v2891, %v2893
        %v2895 = vrot.slane %v682, 2
        %v2896 = vsel %vm2628, %v2893, %v2895
        %v2897 = vrot.slane %v683, 2
        %v2898 = vsel %vm2628, %v2895, %v2897
        %v2899 = vrot.slane %v684, 2
        %v2900 = vrot.slane %v685, 2
        %v2901 = vsel %vm2628, %v2899, %v2900
        %v2902 = vrot.slane %v686, 2
        %v2903 = vsel %vm2628, %v2900, %v2902
        %v2904 = vrot.slane %v687, 2
        %v2905 = vsel %vm2628, %v2902, %v2904
        %v2906 = vrot.slane %v688, 2
        %v2907 = vsel %vm2628, %v2904, %v2906
        %v2908 = vrot.slane %v689, 2
        %v2909 = vrot.slane %v690, 2
        %v2910 = vsel %vm2628, %v2908, %v2909
        %v2911 = vrot.slane %v691, 2
        %v2912 = vsel %vm2628, %v2909, %v2911
        %v2913 = vrot.slane %v692, 2
        %v2914 = vsel %vm2628, %v2911, %v2913
        %v2915 = vrot.slane %v693, 2
        %v2916 = vsel %vm2628, %v2913, %v2915
        %v3045 = vpack.c.bf16 %v2633, %v2631
        %v3046 = vpack.c.bf16 %v2637, %v2635
        %v3047 = vpack.c.bf16 %v2642, %v2640
        %v3048 = vpack.c.bf16 %v2646, %v2644
        %v3049 = vpack.c.bf16 %v2651, %v2649
        %v3050 = vpack.c.bf16 %v2655, %v2653
        %v3051 = vpack.c.bf16 %v2660, %v2658
        %v3052 = vpack.c.bf16 %v2664, %v2662
        %v3053 = vpack.c.bf16 %v2669, %v2667
        %v3054 = vpack.c.bf16 %v2673, %v2671
        %v3055 = vpack.c.bf16 %v2678, %v2676
        %v3056 = vpack.c.bf16 %v2682, %v2680
        %v3057 = vpack.c.bf16 %v2687, %v2685
        %v3058 = vpack.c.bf16 %v2691, %v2689
        %v3059 = vpack.c.bf16 %v2696, %v2694
        %v3060 = vpack.c.bf16 %v2700, %v2698
        %v3061 = vpack.c.bf16 %v2705, %v2703
        %v3062 = vpack.c.bf16 %v2709, %v2707
        %v3063 = vpack.c.bf16 %v2714, %v2712
        %v3064 = vpack.c.bf16 %v2718, %v2716
        %v3065 = vpack.c.bf16 %v2723, %v2721
        %v3066 = vpack.c.bf16 %v2727, %v2725
        %v3067 = vpack.c.bf16 %v2732, %v2730
        %v3068 = vpack.c.bf16 %v2736, %v2734
        %v3069 = vpack.c.bf16 %v2741, %v2739
        %v3070 = vpack.c.bf16 %v2745, %v2743
        %v3071 = vpack.c.bf16 %v2750, %v2748
        %v3072 = vpack.c.bf16 %v2754, %v2752
        %v3073 = vpack.c.bf16 %v2759, %v2757
        %v3074 = vpack.c.bf16 %v2763, %v2761
        %v3075 = vpack.c.bf16 %v2768, %v2766
        %v3076 = vpack.c.bf16 %v2772, %v2770
        %v3077 = vpack.c.bf16 %v2777, %v2775
        %v3078 = vpack.c.bf16 %v2781, %v2779
        %v3079 = vpack.c.bf16 %v2786, %v2784
        %v3080 = vpack.c.bf16 %v2790, %v2788
        %v3081 = vpack.c.bf16 %v2795, %v2793
        %v3082 = vpack.c.bf16 %v2799, %v2797
        %v3083 = vpack.c.bf16 %v2804, %v2802
        %v3084 = vpack.c.bf16 %v2808, %v2806
        %v3085 = vpack.c.bf16 %v2813, %v2811
        %v3086 = vpack.c.bf16 %v2817, %v2815
        %v3087 = vpack.c.bf16 %v2822, %v2820
        %v3088 = vpack.c.bf16 %v2826, %v2824
        %v3089 = vpack.c.bf16 %v2831, %v2829
        %v3090 = vpack.c.bf16 %v2835, %v2833
        %v3091 = vpack.c.bf16 %v2840, %v2838
        %v3092 = vpack.c.bf16 %v2844, %v2842
        %v3093 = vpack.c.bf16 %v2849, %v2847
        %v3094 = vpack.c.bf16 %v2853, %v2851
        %v3095 = vpack.c.bf16 %v2858, %v2856
        %v3096 = vpack.c.bf16 %v2862, %v2860
        %v3097 = vpack.c.bf16 %v2867, %v2865
        %v3098 = vpack.c.bf16 %v2871, %v2869
        %v3099 = vpack.c.bf16 %v2876, %v2874
        %v3100 = vpack.c.bf16 %v2880, %v2878
        %v3101 = vpack.c.bf16 %v2885, %v2883
        %v3102 = vpack.c.bf16 %v2889, %v2887
        %v3103 = vpack.c.bf16 %v2894, %v2892
        %v3104 = vpack.c.bf16 %v2898, %v2896
        %v3105 = vpack.c.bf16 %v2903, %v2901
        %v3106 = vpack.c.bf16 %v2907, %v2905
        %v3107 = vpack.c.bf16 %v2912, %v2910
        %v3108 = vpack.c.bf16 %v2916, %v2914
        %s3109 = scalar_lea.vmem [#allocation5], 128
        %v3110 = vld [vmem:[%s3109] sm:$0xf]
        %v3111 = vld [vmem:[%s3109 + $0x4] sm:$0xf]
        %v3112 = vld [vmem:[%s3109 + $0x8] sm:$0xf]
        %v3113 = vld [vmem:[%s3109 + $0xc] sm:$0xf]
        %v3114 = vld [vmem:[%s3109 + $0x10] sm:$0xf]
        %v3115 = vld [vmem:[%s3109 + $0x14] sm:$0xf]
        %v3116 = vld [vmem:[%s3109 + $0x18] sm:$0xf]
        %v3117 = vld [vmem:[%s3109 + $0x1c] sm:$0xf]
        %v3118 = vld [vmem:[%s3109 + $0x20] sm:$0xf]
        %v3119 = vld [vmem:[%s3109 + $0x24] sm:$0xf]
        %v3120 = vld [vmem:[%s3109 + $0x28] sm:$0xf]
        %v3121 = vld [vmem:[%s3109 + $0x2c] sm:$0xf]
        %v3122 = vld [vmem:[%s3109 + $0x30] sm:$0xf]
        %v3123 = vld [vmem:[%s3109 + $0x34] sm:$0xf]
        %v3124 = vld [vmem:[%s3109 + $0x38] sm:$0xf]
        %v3125 = vld [vmem:[%s3109 + $0x3c] sm:$0xf]
        %v3142 = vunpack.c.l.b16 %v3110
        %v3143 = vunpack.c.l.b16 %v3111
        %v3144 = vunpack.c.l.b16 %v3112
        %v3145 = vunpack.c.l.b16 %v3113
        %v3146 = vunpack.c.l.b16 %v3114
        %v3147 = vunpack.c.l.b16 %v3115
        %v3148 = vunpack.c.l.b16 %v3116
        %v3149 = vunpack.c.l.b16 %v3117
        %v3150 = vunpack.c.l.b16 %v3118
        %v3151 = vunpack.c.l.b16 %v3119
        %v3152 = vunpack.c.l.b16 %v3120
        %v3153 = vunpack.c.l.b16 %v3121
        %v3154 = vunpack.c.l.b16 %v3122
        %v3155 = vunpack.c.l.b16 %v3123
        %v3156 = vunpack.c.l.b16 %v3124
        %v3157 = vunpack.c.l.b16 %v3125
        %v3158 = vpack.c.b16 %v3143, %v3142
        %v3159 = vpack.c.b16 %v3145, %v3144
        %v3160 = vpack.c.b16 %v3147, %v3146
        %v3161 = vpack.c.b16 %v3149, %v3148
        %v3162 = vpack.c.b16 %v3151, %v3150
        %v3163 = vpack.c.b16 %v3153, %v3152
        %v3164 = vpack.c.b16 %v3155, %v3154
        %v3165 = vpack.c.b16 %v3157, %v3156
        %3174 = vmatprep.subr.bf16.mxu0 0
        %3175 = vmatpush1.bf16.msra.mxu0 %v3158
        %3176 = vmatprep.subr.bf16.mxu0 0
        %3177 = vmatpush1.bf16.msra.mxu0 %v3159
        %3178 = vmatprep.subr.bf16.mxu0 0
        %3179 = vmatpush1.bf16.msra.mxu0 %v3160
        %3180 = vmatprep.subr.bf16.mxu0 0
        %3181 = vmatpush1.bf16.msra.mxu0 %v3161
        %3182 = vmatprep.subr.bf16.mxu0 0
        %3183 = vmatpush1.bf16.msra.mxu0 %v3162
        %3184 = vmatprep.subr.bf16.mxu0 0
        %3185 = vmatpush1.bf16.msra.mxu0 %v3163
        %3186 = vmatprep.subr.bf16.mxu0 0
        %3187 = vmatpush1.bf16.msra.mxu0 %v3164
        %3188 = vmatprep.subr.bf16.mxu0 0
        %3189 = vmatpush1.bf16.msra.mxu0 %v3165
        %3190 = vmatprep.subr.bf16.mxu0 0
        %3191 = vmatpush1.bf16.msra.mxu0 0
        %3192 = vmatprep.subr.bf16.mxu0 0
        %3193 = vmatpush1.bf16.msra.mxu0 0
        %3194 = vmatprep.subr.bf16.mxu0 0
        %3195 = vmatpush1.bf16.msra.mxu0 0
        %3196 = vmatprep.subr.bf16.mxu0 0
        %3197 = vmatpush1.bf16.msra.mxu0 0
        %3198 = vmatprep.subr.bf16.mxu0 0
        %3199 = vmatpush1.bf16.msra.mxu0 0
        %3200 = vmatprep.subr.bf16.mxu0 0
        %3201 = vmatpush1.bf16.msra.mxu0 0
        %3202 = vmatprep.subr.bf16.mxu0 0
        %3203 = vmatpush1.bf16.msra.mxu0 0
        %3204 = vmatprep.subr.bf16.mxu0 0
        %3205 = vmatpush1.bf16.msra.mxu0 0
        %3206 = vmatprep.mubr.bf16.mxu0 0
        %3207 = vmatmul.mubr.bf16.gmra.mrb[0].mxu0 %v3045
        %v3208 = vpop.f32.mrb[0].mxu0
        %v3209 = vadd.f32 0.0, %v3208
        %v3210 = vpop.f32.mrb[0].mxu0
        %v3211 = vpop.f32.mrb[0].mxu0
        %v3212 = vadd.f32 0.0, %v3211
        %v3213 = vpop.f32.mrb[0].mxu0
        %3214 = vmatprep.mubr.bf16.mxu0 0
        %3215 = vmatmul.mubr.bf16.gmra.mrb[0].mxu0 %v3046
        %v3216 = vpop.f32.mrb[0].mxu0
        %v3217 = vadd.f32 0.0, %v3216
        %v3218 = vpop.f32.mrb[0].mxu0
        %v3219 = vpop.f32.mrb[0].mxu0
        %v3220 = vadd.f32 0.0, %v3219
        %v3221 = vpop.f32.mrb[0].mxu0
        %3222 = vmatprep.mubr.bf16.mxu0 0
        %3223 = vmatmul.mubr.bf16.gmra.mrb[0].mxu0 %v3047
        %v3224 = vpop.f32.mrb[0].mxu0
        %v3225 = vadd.f32 0.0, %v3224
        %v3226 = vpop.f32.mrb[0].mxu0
        %v3227 = vpop.f32.mrb[0].mxu0
        %v3228 = vadd.f32 0.0, %v3227
        %v3229 = vpop.f32.mrb[0].mxu0
        %3230 = vmatprep.mubr.bf16.mxu0 0
        %3231 = vmatmul.mubr.bf16.gmra.mrb[0].mxu0 %v3048
        %v3232 = vpop.f32.mrb[0].mxu0
        %v3233 = vadd.f32 0.0, %v3232
        %v3234 = vpop.f32.mrb[0].mxu0
        %v3235 = vpop.f32.mrb[0].mxu0
        %v3236 = vadd.f32 0.0, %v3235
        %v3237 = vpop.f32.mrb[0].mxu0
        %3238 = vmatprep.mubr.bf16.mxu0 0
        %3239 = vmatmul.mubr.bf16.gmra.mrb[0].mxu0 %v3049
        %v3240 = vpop.f32.mrb[0].mxu0
        %v3241 = vadd.f32 0.0, %v3240
        %v3242 = vpop.f32.mrb[0].mxu0
        %v3243 = vpop.f32.mrb[0].mxu0
        %v3244 = vadd.f32 0.0, %v3243
        %v3245 = vpop.f32.mrb[0].mxu0
        %3246 = vmatprep.mubr.bf16.mxu0 0
        %3247 = vmatmul.mubr.bf16.gmra.mrb[0].mxu0 %v3050
        %v3248 = vpop.f32.mrb[0].mxu0
        %v3249 = vadd.f32 0.0, %v3248
        %v3250 = vpop.f32.mrb[0].mxu0
        %v3251 = vpop.f32.mrb[0].mxu0
        %v3252 = vadd.f32 0.0, %v3251
        %v3253 = vpop.f32.mrb[0].mxu0
        %3254 = vmatprep.mubr.bf16.mxu0 0
        %3255 = vmatmul.mubr.bf16.gmra.mrb[0].mxu0 %v3051
        %v3256 = vpop.f32.mrb[0].mxu0
        %v3257 = vadd.f32 0.0, %v3256
        %v3258 = vpop.f32.mrb[0].mxu0
        %v3259 = vpop.f32.mrb[0].mxu0
        %v3260 = vadd.f32 0.0, %v3259
        %v3261 = vpop.f32.mrb[0].mxu0
        %3262 = vmatprep.mubr.bf16.mxu0 0
        %3263 = vmatmul.mubr.bf16.gmra.mrb[0].mxu0 %v3052
        %v3264 = vpop.f32.mrb[0].mxu0
        %v3265 = vadd.f32 0.0, %v3264
        %v3266 = vpop.f32.mrb[0].mxu0
        %v3267 = vpop.f32.mrb[0].mxu0
        %v3268 = vadd.f32 0.0, %v3267
        %v3269 = vpop.f32.mrb[0].mxu0
        %3270 = vmatprep.mubr.bf16.mxu0 0
        %3271 = vmatmul.mubr.bf16.gmra.mrb[0].mxu0 %v3053
        %v3272 = vpop.f32.mrb[0].mxu0
        %v3273 = vadd.f32 0.0, %v3272
        %v3274 = vpop.f32.mrb[0].mxu0
        %v3275 = vpop.f32.mrb[0].mxu0
        %v3276 = vadd.f32 0.0, %v3275
        %v3277 = vpop.f32.mrb[0].mxu0
        %3278 = vmatprep.mubr.bf16.mxu0 0
        %3279 = vmatmul.mubr.bf16.gmra.mrb[0].mxu0 %v3054
        %v3280 = vpop.f32.mrb[0].mxu0
        %v3281 = vadd.f32 0.0, %v3280
        %v3282 = vpop.f32.mrb[0].mxu0
        %v3283 = vpop.f32.mrb[0].mxu0
        %v3284 = vadd.f32 0.0, %v3283
        %v3285 = vpop.f32.mrb[0].mxu0
        %3286 = vmatprep.mubr.bf16.mxu0 0
        %3287 = vmatmul.mubr.bf16.gmra.mrb[0].mxu0 %v3055
        %v3288 = vpop.f32.mrb[0].mxu0
        %v3289 = vadd.f32 0.0, %v3288
        %v3290 = vpop.f32.mrb[0].mxu0
        %v3291 = vpop.f32.mrb[0].mxu0
        %v3292 = vadd.f32 0.0, %v3291
        %v3293 = vpop.f32.mrb[0].mxu0
        %3294 = vmatprep.mubr.bf16.mxu0 0
        %3295 = vmatmul.mubr.bf16.gmra.mrb[0].mxu0 %v3056
        %v3296 = vpop.f32.mrb[0].mxu0
        %v3297 = vadd.f32 0.0, %v3296
        %v3298 = vpop.f32.mrb[0].mxu0
        %v3299 = vpop.f32.mrb[0].mxu0
        %v3300 = vadd.f32 0.0, %v3299
        %v3301 = vpop.f32.mrb[0].mxu0
        %3302 = vmatprep.mubr.bf16.mxu0 0
        %3303 = vmatmul.mubr.bf16.gmra.mrb[0].mxu0 %v3057
        %v3304 = vpop.f32.mrb[0].mxu0
        %v3305 = vadd.f32 0.0, %v3304
        %v3306 = vpop.f32.mrb[0].mxu0
        %v3307 = vpop.f32.mrb[0].mxu0
        %v3308 = vadd.f32 0.0, %v3307
        %v3309 = vpop.f32.mrb[0].mxu0
        %3310 = vmatprep.mubr.bf16.mxu0 0
        %3311 = vmatmul.mubr.bf16.gmra.mrb[0].mxu0 %v3058
        %v3312 = vpop.f32.mrb[0].mxu0
        %v3313 = vadd.f32 0.0, %v3312
        %v3314 = vpop.f32.mrb[0].mxu0
        %v3315 = vpop.f32.mrb[0].mxu0
        %v3316 = vadd.f32 0.0, %v3315
        %v3317 = vpop.f32.mrb[0].mxu0
        %3318 = vmatprep.mubr.bf16.mxu0 0
        %3319 = vmatmul.mubr.bf16.gmra.mrb[0].mxu0 %v3059
        %v3320 = vpop.f32.mrb[0].mxu0
        %v3321 = vadd.f32 0.0, %v3320
        %v3322 = vpop.f32.mrb[0].mxu0
        %v3323 = vpop.f32.mrb[0].mxu0
        %v3324 = vadd.f32 0.0, %v3323
        %v3325 = vpop.f32.mrb[0].mxu0
        %3326 = vmatprep.mubr.bf16.mxu0 0
        %3327 = vmatmul.mubr.bf16.gmra.mrb[0].mxu0 %v3060
        %v3328 = vpop.f32.mrb[0].mxu0
        %v3329 = vadd.f32 0.0, %v3328
        %v3330 = vpop.f32.mrb[0].mxu0
        %v3331 = vpop.f32.mrb[0].mxu0
        %v3332 = vadd.f32 0.0, %v3331
        %v3333 = vpop.f32.mrb[0].mxu0
        %3334 = vmatprep.mubr.bf16.mxu0 0
        %3335 = vmatmul.mubr.bf16.gmra.mrb[0].mxu0 %v3061
        %v3336 = vpop.f32.mrb[0].mxu0
        %v3337 = vadd.f32 0.0, %v3336
        %v3338 = vpop.f32.mrb[0].mxu0
        %v3339 = vpop.f32.mrb[0].mxu0
        %v3340 = vadd.f32 0.0, %v3339
        %v3341 = vpop.f32.mrb[0].mxu0
        %3342 = vmatprep.mubr.bf16.mxu0 0
        %3343 = vmatmul.mubr.bf16.gmra.mrb[0].mxu0 %v3062
        %v3344 = vpop.f32.mrb[0].mxu0
        %v3345 = vadd.f32 0.0, %v3344
        %v3346 = vpop.f32.mrb[0].mxu0
        %v3347 = vpop.f32.mrb[0].mxu0
        %v3348 = vadd.f32 0.0, %v3347
        %v3349 = vpop.f32.mrb[0].mxu0
        %3350 = vmatprep.mubr.bf16.mxu0 0
        %3351 = vmatmul.mubr.bf16.gmra.mrb[0].mxu0 %v3063
        %v3352 = vpop.f32.mrb[0].mxu0
        %v3353 = vadd.f32 0.0, %v3352
        %v3354 = vpop.f32.mrb[0].mxu0
        %v3355 = vpop.f32.mrb[0].mxu0
        %v3356 = vadd.f32 0.0, %v3355
        %v3357 = vpop.f32.mrb[0].mxu0
        %3358 = vmatprep.mubr.bf16.mxu0 0
        %3359 = vmatmul.mubr.bf16.gmra.mrb[0].mxu0 %v3064
        %v3360 = vpop.f32.mrb[0].mxu0
        %v3361 = vadd.f32 0.0, %v3360
        %v3362 = vpop.f32.mrb[0].mxu0
        %v3363 = vpop.f32.mrb[0].mxu0
        %v3364 = vadd.f32 0.0, %v3363
        %v3365 = vpop.f32.mrb[0].mxu0
        %3366 = vmatprep.mubr.bf16.mxu0 0
        %3367 = vmatmul.mubr.bf16.gmra.mrb[0].mxu0 %v3065
        %v3368 = vpop.f32.mrb[0].mxu0
        %v3369 = vadd.f32 0.0, %v3368
        %v3370 = vpop.f32.mrb[0].mxu0
        %v3371 = vpop.f32.mrb[0].mxu0
        %v3372 = vadd.f32 0.0, %v3371
        %v3373 = vpop.f32.mrb[0].mxu0
        %3374 = vmatprep.mubr.bf16.mxu0 0
        %3375 = vmatmul.mubr.bf16.gmra.mrb[0].mxu0 %v3066
        %v3376 = vpop.f32.mrb[0].mxu0
        %v3377 = vadd.f32 0.0, %v3376
        %v3378 = vpop.f32.mrb[0].mxu0
        %v3379 = vpop.f32.mrb[0].mxu0
        %v3380 = vadd.f32 0.0, %v3379
        %v3381 = vpop.f32.mrb[0].mxu0
        %3382 = vmatprep.mubr.bf16.mxu0 0
        %3383 = vmatmul.mubr.bf16.gmra.mrb[0].mxu0 %v3067
        %v3384 = vpop.f32.mrb[0].mxu0
        %v3385 = vadd.f32 0.0, %v3384
        %v3386 = vpop.f32.mrb[0].mxu0
        %v3387 = vpop.f32.mrb[0].mxu0
        %v3388 = vadd.f32 0.0, %v3387
        %v3389 = vpop.f32.mrb[0].mxu0
        %3390 = vmatprep.mubr.bf16.mxu0 0
        %3391 = vmatmul.mubr.bf16.gmra.mrb[0].mxu0 %v3068
        %v3392 = vpop.f32.mrb[0].mxu0
        %v3393 = vadd.f32 0.0, %v3392
        %v3394 = vpop.f32.mrb[0].mxu0
        %v3395 = vpop.f32.mrb[0].mxu0
        %v3396 = vadd.f32 0.0, %v3395
        %v3397 = vpop.f32.mrb[0].mxu0
        %3398 = vmatprep.mubr.bf16.mxu0 0
        %3399 = vmatmul.mubr.bf16.gmra.mrb[0].mxu0 %v3069
        %v3400 = vpop.f32.mrb[0].mxu0
        %v3401 = vadd.f32 0.0, %v3400
        %v3402 = vpop.f32.mrb[0].mxu0
        %v3403 = vpop.f32.mrb[0].mxu0
        %v3404 = vadd.f32 0.0, %v3403
        %v3405 = vpop.f32.mrb[0].mxu0
        %3406 = vmatprep.mubr.bf16.mxu0 0
        %3407 = vmatmul.mubr.bf16.gmra.mrb[0].mxu0 %v3070
        %v3408 = vpop.f32.mrb[0].mxu0
        %v3409 = vadd.f32 0.0, %v3408
        %v3410 = vpop.f32.mrb[0].mxu0
        %v3411 = vpop.f32.mrb[0].mxu0
        %v3412 = vadd.f32 0.0, %v3411
        %v3413 = vpop.f32.mrb[0].mxu0
        %3414 = vmatprep.mubr.bf16.mxu0 0
        %3415 = vmatmul.mubr.bf16.gmra.mrb[0].mxu0 %v3071
        %v3416 = vpop.f32.mrb[0].mxu0
        %v3417 = vadd.f32 0.0, %v3416
        %v3418 = vpop.f32.mrb[0].mxu0
        %v3419 = vpop.f32.mrb[0].mxu0
        %v3420 = vadd.f32 0.0, %v3419
        %v3421 = vpop.f32.mrb[0].mxu0
        %3422 = vmatprep.mubr.bf16.mxu0 0
        %3423 = vmatmul.mubr.bf16.gmra.mrb[0].mxu0 %v3072
        %v3424 = vpop.f32.mrb[0].mxu0
        %v3425 = vadd.f32 0.0, %v3424
        %v3426 = vpop.f32.mrb[0].mxu0
        %v3427 = vpop.f32.mrb[0].mxu0
        %v3428 = vadd.f32 0.0, %v3427
        %v3429 = vpop.f32.mrb[0].mxu0
        %3430 = vmatprep.mubr.bf16.mxu0 0
        %3431 = vmatmul.mubr.bf16.gmra.mrb[0].mxu0 %v3073
        %v3432 = vpop.f32.mrb[0].mxu0
        %v3433 = vadd.f32 0.0, %v3432
        %v3434 = vpop.f32.mrb[0].mxu0
        %v3435 = vpop.f32.mrb[0].mxu0
        %v3436 = vadd.f32 0.0, %v3435
        %v3437 = vpop.f32.mrb[0].mxu0
        %3438 = vmatprep.mubr.bf16.mxu0 0
        %3439 = vmatmul.mubr.bf16.gmra.mrb[0].mxu0 %v3074
        %v3440 = vpop.f32.mrb[0].mxu0
        %v3441 = vadd.f32 0.0, %v3440
        %v3442 = vpop.f32.mrb[0].mxu0
        %v3443 = vpop.f32.mrb[0].mxu0
        %v3444 = vadd.f32 0.0, %v3443
        %v3445 = vpop.f32.mrb[0].mxu0
        %3446 = vmatprep.mubr.bf16.mxu0 0
        %3447 = vmatmul.mubr.bf16.gmra.mrb[0].mxu0 %v3075
        %v3448 = vpop.f32.mrb[0].mxu0
        %v3449 = vadd.f32 0.0, %v3448
        %v3450 = vpop.f32.mrb[0].mxu0
        %v3451 = vpop.f32.mrb[0].mxu0
        %v3452 = vadd.f32 0.0, %v3451
        %v3453 = vpop.f32.mrb[0].mxu0
        %3454 = vmatprep.mubr.bf16.mxu0 0
        %3455 = vmatmul.mubr.bf16.gmra.mrb[0].mxu0 %v3076
        %v3456 = vpop.f32.mrb[0].mxu0
        %v3457 = vadd.f32 0.0, %v3456
        %v3458 = vpop.f32.mrb[0].mxu0
        %v3459 = vpop.f32.mrb[0].mxu0
        %v3460 = vadd.f32 0.0, %v3459
        %v3461 = vpop.f32.mrb[0].mxu0
        %3462 = vmatprep.mubr.bf16.mxu0 0
        %3463 = vmatmul.mubr.bf16.gmra.mrb[0].mxu0 %v3077
        %v3464 = vpop.f32.mrb[0].mxu0
        %v3465 = vadd.f32 0.0, %v3464
        %v3466 = vpop.f32.mrb[0].mxu0
        %v3467 = vpop.f32.mrb[0].mxu0
        %v3468 = vadd.f32 0.0, %v3467
        %v3469 = vpop.f32.mrb[0].mxu0
        %3470 = vmatprep.mubr.bf16.mxu0 0
        %3471 = vmatmul.mubr.bf16.gmra.mrb[0].mxu0 %v3078
        %v3472 = vpop.f32.mrb[0].mxu0
        %v3473 = vadd.f32 0.0, %v3472
        %v3474 = vpop.f32.mrb[0].mxu0
        %v3475 = vpop.f32.mrb[0].mxu0
        %v3476 = vadd.f32 0.0, %v3475
        %v3477 = vpop.f32.mrb[0].mxu0
        %3478 = vmatprep.mubr.bf16.mxu0 0
        %3479 = vmatmul.mubr.bf16.gmra.mrb[0].mxu0 %v3079
        %v3480 = vpop.f32.mrb[0].mxu0
        %v3481 = vadd.f32 0.0, %v3480
        %v3482 = vpop.f32.mrb[0].mxu0
        %v3483 = vpop.f32.mrb[0].mxu0
        %v3484 = vadd.f32 0.0, %v3483
        %v3485 = vpop.f32.mrb[0].mxu0
        %3486 = vmatprep.mubr.bf16.mxu0 0
        %3487 = vmatmul.mubr.bf16.gmra.mrb[0].mxu0 %v3080
        %v3488 = vpop.f32.mrb[0].mxu0
        %v3489 = vadd.f32 0.0, %v3488
        %v3490 = vpop.f32.mrb[0].mxu0
        %v3491 = vpop.f32.mrb[0].mxu0
        %v3492 = vadd.f32 0.0, %v3491
        %v3493 = vpop.f32.mrb[0].mxu0
        %3494 = vmatprep.mubr.bf16.mxu0 0
        %3495 = vmatmul.mubr.bf16.gmra.mrb[0].mxu0 %v3081
        %v3496 = vpop.f32.mrb[0].mxu0
        %v3497 = vadd.f32 0.0, %v3496
        %v3498 = vpop.f32.mrb[0].mxu0
        %v3499 = vpop.f32.mrb[0].mxu0
        %v3500 = vadd.f32 0.0, %v3499
        %v3501 = vpop.f32.mrb[0].mxu0
        %3502 = vmatprep.mubr.bf16.mxu0 0
        %3503 = vmatmul.mubr.bf16.gmra.mrb[0].mxu0 %v3082
        %v3504 = vpop.f32.mrb[0].mxu0
        %v3505 = vadd.f32 0.0, %v3504
        %v3506 = vpop.f32.mrb[0].mxu0
        %v3507 = vpop.f32.mrb[0].mxu0
        %v3508 = vadd.f32 0.0, %v3507
        %v3509 = vpop.f32.mrb[0].mxu0
        %3510 = vmatprep.mubr.bf16.mxu0 0
        %3511 = vmatmul.mubr.bf16.gmra.mrb[0].mxu0 %v3083
        %v3512 = vpop.f32.mrb[0].mxu0
        %v3513 = vadd.f32 0.0, %v3512
        %v3514 = vpop.f32.mrb[0].mxu0
        %v3515 = vpop.f32.mrb[0].mxu0
        %v3516 = vadd.f32 0.0, %v3515
        %v3517 = vpop.f32.mrb[0].mxu0
        %3518 = vmatprep.mubr.bf16.mxu0 0
        %3519 = vmatmul.mubr.bf16.gmra.mrb[0].mxu0 %v3084
        %v3520 = vpop.f32.mrb[0].mxu0
        %v3521 = vadd.f32 0.0, %v3520
        %v3522 = vpop.f32.mrb[0].mxu0
        %v3523 = vpop.f32.mrb[0].mxu0
        %v3524 = vadd.f32 0.0, %v3523
        %v3525 = vpop.f32.mrb[0].mxu0
        %3526 = vmatprep.mubr.bf16.mxu0 0
        %3527 = vmatmul.mubr.bf16.gmra.mrb[0].mxu0 %v3085
        %v3528 = vpop.f32.mrb[0].mxu0
        %v3529 = vadd.f32 0.0, %v3528
        %v3530 = vpop.f32.mrb[0].mxu0
        %v3531 = vpop.f32.mrb[0].mxu0
        %v3532 = vadd.f32 0.0, %v3531
        %v3533 = vpop.f32.mrb[0].mxu0
        %3534 = vmatprep.mubr.bf16.mxu0 0
        %3535 = vmatmul.mubr.bf16.gmra.mrb[0].mxu0 %v3086
        %v3536 = vpop.f32.mrb[0].mxu0
        %v3537 = vadd.f32 0.0, %v3536
        %v3538 = vpop.f32.mrb[0].mxu0
        %v3539 = vpop.f32.mrb[0].mxu0
        %v3540 = vadd.f32 0.0, %v3539
        %v3541 = vpop.f32.mrb[0].mxu0
        %3542 = vmatprep.mubr.bf16.mxu0 0
        %3543 = vmatmul.mubr.bf16.gmra.mrb[0].mxu0 %v3087
        %v3544 = vpop.f32.mrb[0].mxu0
        %v3545 = vadd.f32 0.0, %v3544
        %v3546 = vpop.f32.mrb[0].mxu0
        %v3547 = vpop.f32.mrb[0].mxu0
        %v3548 = vadd.f32 0.0, %v3547
        %v3549 = vpop.f32.mrb[0].mxu0
        %3550 = vmatprep.mubr.bf16.mxu0 0
        %3551 = vmatmul.mubr.bf16.gmra.mrb[0].mxu0 %v3088
        %v3552 = vpop.f32.mrb[0].mxu0
        %v3553 = vadd.f32 0.0, %v3552
        %v3554 = vpop.f32.mrb[0].mxu0
        %v3555 = vpop.f32.mrb[0].mxu0
        %v3556 = vadd.f32 0.0, %v3555
        %v3557 = vpop.f32.mrb[0].mxu0
        %3558 = vmatprep.mubr.bf16.mxu0 0
        %3559 = vmatmul.mubr.bf16.gmra.mrb[0].mxu0 %v3089
        %v3560 = vpop.f32.mrb[0].mxu0
        %v3561 = vadd.f32 0.0, %v3560
        %v3562 = vpop.f32.mrb[0].mxu0
        %v3563 = vpop.f32.mrb[0].mxu0
        %v3564 = vadd.f32 0.0, %v3563
        %v3565 = vpop.f32.mrb[0].mxu0
        %3566 = vmatprep.mubr.bf16.mxu0 0
        %3567 = vmatmul.mubr.bf16.gmra.mrb[0].mxu0 %v3090
        %v3568 = vpop.f32.mrb[0].mxu0
        %v3569 = vadd.f32 0.0, %v3568
        %v3570 = vpop.f32.mrb[0].mxu0
        %v3571 = vpop.f32.mrb[0].mxu0
        %v3572 = vadd.f32 0.0, %v3571
        %v3573 = vpop.f32.mrb[0].mxu0
        %3574 = vmatprep.mubr.bf16.mxu0 0
        %3575 = vmatmul.mubr.bf16.gmra.mrb[0].mxu0 %v3091
        %v3576 = vpop.f32.mrb[0].mxu0
        %v3577 = vadd.f32 0.0, %v3576
        %v3578 = vpop.f32.mrb[0].mxu0
        %v3579 = vpop.f32.mrb[0].mxu0
        %v3580 = vadd.f32 0.0, %v3579
        %v3581 = vpop.f32.mrb[0].mxu0
        %3582 = vmatprep.mubr.bf16.mxu0 0
        %3583 = vmatmul.mubr.bf16.gmra.mrb[0].mxu0 %v3092
        %v3584 = vpop.f32.mrb[0].mxu0
        %v3585 = vadd.f32 0.0, %v3584
        %v3586 = vpop.f32.mrb[0].mxu0
        %v3587 = vpop.f32.mrb[0].mxu0
        %v3588 = vadd.f32 0.0, %v3587
        %v3589 = vpop.f32.mrb[0].mxu0
        %3590 = vmatprep.mubr.bf16.mxu0 0
        %3591 = vmatmul.mubr.bf16.gmra.mrb[0].mxu0 %v3093
        %v3592 = vpop.f32.mrb[0].mxu0
        %v3593 = vadd.f32 0.0, %v3592
        %v3594 = vpop.f32.mrb[0].mxu0
        %v3595 = vpop.f32.mrb[0].mxu0
        %v3596 = vadd.f32 0.0, %v3595
        %v3597 = vpop.f32.mrb[0].mxu0
        %3598 = vmatprep.mubr.bf16.mxu0 0
        %3599 = vmatmul.mubr.bf16.gmra.mrb[0].mxu0 %v3094
        %v3600 = vpop.f32.mrb[0].mxu0
        %v3601 = vadd.f32 0.0, %v3600
        %v3602 = vpop.f32.mrb[0].mxu0
        %v3603 = vpop.f32.mrb[0].mxu0
        %v3604 = vadd.f32 0.0, %v3603
        %v3605 = vpop.f32.mrb[0].mxu0
        %3606 = vmatprep.mubr.bf16.mxu0 0
        %3607 = vmatmul.mubr.bf16.gmra.mrb[0].mxu0 %v3095
        %v3608 = vpop.f32.mrb[0].mxu0
        %v3609 = vadd.f32 0.0, %v3608
        %v3610 = vpop.f32.mrb[0].mxu0
        %v3611 = vpop.f32.mrb[0].mxu0
        %v3612 = vadd.f32 0.0, %v3611
        %v3613 = vpop.f32.mrb[0].mxu0
        %3614 = vmatprep.mubr.bf16.mxu0 0
        %3615 = vmatmul.mubr.bf16.gmra.mrb[0].mxu0 %v3096
        %v3616 = vpop.f32.mrb[0].mxu0
        %v3617 = vadd.f32 0.0, %v3616
        %v3618 = vpop.f32.mrb[0].mxu0
        %v3619 = vpop.f32.mrb[0].mxu0
        %v3620 = vadd.f32 0.0, %v3619
        %v3621 = vpop.f32.mrb[0].mxu0
        %3622 = vmatprep.mubr.bf16.mxu0 0
        %3623 = vmatmul.mubr.bf16.gmra.mrb[0].mxu0 %v3097
        %v3624 = vpop.f32.mrb[0].mxu0
        %v3625 = vadd.f32 0.0, %v3624
        %v3626 = vpop.f32.mrb[0].mxu0
        %v3627 = vpop.f32.mrb[0].mxu0
        %v3628 = vadd.f32 0.0, %v3627
        %v3629 = vpop.f32.mrb[0].mxu0
        %3630 = vmatprep.mubr.bf16.mxu0 0
        %3631 = vmatmul.mubr.bf16.gmra.mrb[0].mxu0 %v3098
        %v3632 = vpop.f32.mrb[0].mxu0
        %v3633 = vadd.f32 0.0, %v3632
        %v3634 = vpop.f32.mrb[0].mxu0
        %v3635 = vpop.f32.mrb[0].mxu0
        %v3636 = vadd.f32 0.0, %v3635
        %v3637 = vpop.f32.mrb[0].mxu0
        %3638 = vmatprep.mubr.bf16.mxu0 0
        %3639 = vmatmul.mubr.bf16.gmra.mrb[0].mxu0 %v3099
        %v3640 = vpop.f32.mrb[0].mxu0
        %v3641 = vadd.f32 0.0, %v3640
        %v3642 = vpop.f32.mrb[0].mxu0
        %v3643 = vpop.f32.mrb[0].mxu0
        %v3644 = vadd.f32 0.0, %v3643
        %v3645 = vpop.f32.mrb[0].mxu0
        %3646 = vmatprep.mubr.bf16.mxu0 0
        %3647 = vmatmul.mubr.bf16.gmra.mrb[0].mxu0 %v3100
        %v3648 = vpop.f32.mrb[0].mxu0
        %v3649 = vadd.f32 0.0, %v3648
        %v3650 = vpop.f32.mrb[0].mxu0
        %v3651 = vpop.f32.mrb[0].mxu0
        %v3652 = vadd.f32 0.0, %v3651
        %v3653 = vpop.f32.mrb[0].mxu0
        %3654 = vmatprep.mubr.bf16.mxu0 0
        %3655 = vmatmul.mubr.bf16.gmra.mrb[0].mxu0 %v3101
        %v3656 = vpop.f32.mrb[0].mxu0
        %v3657 = vadd.f32 0.0, %v3656
        %v3658 = vpop.f32.mrb[0].mxu0
        %v3659 = vpop.f32.mrb[0].mxu0
        %v3660 = vadd.f32 0.0, %v3659
        %v3661 = vpop.f32.mrb[0].mxu0
        %3662 = vmatprep.mubr.bf16.mxu0 0
        %3663 = vmatmul.mubr.bf16.gmra.mrb[0].mxu0 %v3102
        %v3664 = vpop.f32.mrb[0].mxu0
        %v3665 = vadd.f32 0.0, %v3664
        %v3666 = vpop.f32.mrb[0].mxu0
        %v3667 = vpop.f32.mrb[0].mxu0
        %v3668 = vadd.f32 0.0, %v3667
        %v3669 = vpop.f32.mrb[0].mxu0
        %3670 = vmatprep.mubr.bf16.mxu0 0
        %3671 = vmatmul.mubr.bf16.gmra.mrb[0].mxu0 %v3103
        %v3672 = vpop.f32.mrb[0].mxu0
        %v3673 = vadd.f32 0.0, %v3672
        %v3674 = vpop.f32.mrb[0].mxu0
        %v3675 = vpop.f32.mrb[0].mxu0
        %v3676 = vadd.f32 0.0, %v3675
        %v3677 = vpop.f32.mrb[0].mxu0
        %3678 = vmatprep.mubr.bf16.mxu0 0
        %3679 = vmatmul.mubr.bf16.gmra.mrb[0].mxu0 %v3104
        %v3680 = vpop.f32.mrb[0].mxu0
        %v3681 = vadd.f32 0.0, %v3680
        %v3682 = vpop.f32.mrb[0].mxu0
        %v3683 = vpop.f32.mrb[0].mxu0
        %v3684 = vadd.f32 0.0, %v3683
        %v3685 = vpop.f32.mrb[0].mxu0
        %3686 = vmatprep.mubr.bf16.mxu0 0
        %3687 = vmatmul.mubr.bf16.gmra.mrb[0].mxu0 %v3105
        %v3688 = vpop.f32.mrb[0].mxu0
        %v3689 = vadd.f32 0.0, %v3688
        %v3690 = vpop.f32.mrb[0].mxu0
        %v3691 = vpop.f32.mrb[0].mxu0
        %v3692 = vadd.f32 0.0, %v3691
        %v3693 = vpop.f32.mrb[0].mxu0
        %3694 = vmatprep.mubr.bf16.mxu0 0
        %3695 = vmatmul.mubr.bf16.gmra.mrb[0].mxu0 %v3106
        %v3696 = vpop.f32.mrb[0].mxu0
        %v3697 = vadd.f32 0.0, %v3696
        %v3698 = vpop.f32.mrb[0].mxu0
        %v3699 = vpop.f32.mrb[0].mxu0
        %v3700 = vadd.f32 0.0, %v3699
        %v3701 = vpop.f32.mrb[0].mxu0
        %3702 = vmatprep.mubr.bf16.mxu0 0
        %3703 = vmatmul.mubr.bf16.gmra.mrb[0].mxu0 %v3107
        %v3704 = vpop.f32.mrb[0].mxu0
        %v3705 = vadd.f32 0.0, %v3704
        %v3706 = vpop.f32.mrb[0].mxu0
        %v3707 = vpop.f32.mrb[0].mxu0
        %v3708 = vadd.f32 0.0, %v3707
        %v3709 = vpop.f32.mrb[0].mxu0
        %3710 = vmatprep.mubr.bf16.mxu0 0
        %3711 = vmatmul.mubr.bf16.gmra.mrb[0].mxu0 %v3108
        %v3712 = vpop.f32.mrb[0].mxu0
        %v3713 = vadd.f32 0.0, %v3712
        %v3714 = vpop.f32.mrb[0].mxu0
        %v3715 = vpop.f32.mrb[0].mxu0
        %v3716 = vadd.f32 0.0, %v3715
        %v3717 = vpop.f32.mrb[0].mxu0
        %3718 = vdwg.mxu0
        %v3719 = vadd.f32 %v2118, %v3209
        %v3720 = vadd.f32 %v2121, %v3212
        %v3721 = vadd.f32 %v2126, %v3217
        %v3722 = vadd.f32 %v2129, %v3220
        %v3723 = vadd.f32 %v2134, %v3225
        %v3724 = vadd.f32 %v2137, %v3228
        %v3725 = vadd.f32 %v2142, %v3233
        %v3726 = vadd.f32 %v2145, %v3236
        %v3727 = vadd.f32 %v2150, %v3241
        %v3728 = vadd.f32 %v2153, %v3244
        %v3729 = vadd.f32 %v2158, %v3249
        %v3730 = vadd.f32 %v2161, %v3252
        %v3731 = vadd.f32 %v2166, %v3257
        %v3732 = vadd.f32 %v2169, %v3260
        %v3733 = vadd.f32 %v2174, %v3265
        %v3734 = vadd.f32 %v2177, %v3268
        %v3735 = vadd.f32 %v2182, %v3273
        %v3736 = vadd.f32 %v2185, %v3276
        %v3737 = vadd.f32 %v2190, %v3281
        %v3738 = vadd.f32 %v2193, %v3284
        %v3739 = vadd.f32 %v2198, %v3289
        %v3740 = vadd.f32 %v2201, %v3292
        %v3741 = vadd.f32 %v2206, %v3297
        %v3742 = vadd.f32 %v2209, %v3300
        %v3743 = vadd.f32 %v2214, %v3305
        %v3744 = vadd.f32 %v2217, %v3308
        %v3745 = vadd.f32 %v2222, %v3313
        %v3746 = vadd.f32 %v2225, %v3316
        %v3747 = vadd.f32 %v2230, %v3321
        %v3748 = vadd.f32 %v2233, %v3324
        %v3749 = vadd.f32 %v2238, %v3329
        %v3750 = vadd.f32 %v2241, %v3332
        %v3751 = vadd.f32 %v2246, %v3337
        %v3752 = vadd.f32 %v2249, %v3340
        %v3753 = vadd.f32 %v2254, %v3345
        %v3754 = vadd.f32 %v2257, %v3348
        %v3755 = vadd.f32 %v2262, %v3353
        %v3756 = vadd.f32 %v2265, %v3356
        %v3757 = vadd.f32 %v2270, %v3361
        %v3758 = vadd.f32 %v2273, %v3364
        %v3759 = vadd.f32 %v2278, %v3369
        %v3760 = vadd.f32 %v2281, %v3372
        %v3761 = vadd.f32 %v2286, %v3377
        %v3762 = vadd.f32 %v2289, %v3380
        %v3763 = vadd.f32 %v2294, %v3385
        %v3764 = vadd.f32 %v2297, %v3388
        %v3765 = vadd.f32 %v2302, %v3393
        %v3766 = vadd.f32 %v2305, %v3396
        %v3767 = vadd.f32 %v2310, %v3401
        %v3768 = vadd.f32 %v2313, %v3404
        %v3769 = vadd.f32 %v2318, %v3409
        %v3770 = vadd.f32 %v2321, %v3412
        %v3771 = vadd.f32 %v2326, %v3417
        %v3772 = vadd.f32 %v2329, %v3420
        %v3773 = vadd.f32 %v2334, %v3425
        %v3774 = vadd.f32 %v2337, %v3428
        %v3775 = vadd.f32 %v2342, %v3433
        %v3776 = vadd.f32 %v2345, %v3436
        %v3777 = vadd.f32 %v2350, %v3441
        %v3778 = vadd.f32 %v2353, %v3444
        %v3779 = vadd.f32 %v2358, %v3449
        %v3780 = vadd.f32 %v2361, %v3452
        %v3781 = vadd.f32 %v2366, %v3457
        %v3782 = vadd.f32 %v2369, %v3460
        %v3783 = vadd.f32 %v2374, %v3465
        %v3784 = vadd.f32 %v2377, %v3468
        %v3785 = vadd.f32 %v2382, %v3473
        %v3786 = vadd.f32 %v2385, %v3476
        %v3787 = vadd.f32 %v2390, %v3481
        %v3788 = vadd.f32 %v2393, %v3484
        %v3789 = vadd.f32 %v2398, %v3489
        %v3790 = vadd.f32 %v2401, %v3492
        %v3791 = vadd.f32 %v2406, %v3497
        %v3792 = vadd.f32 %v2409, %v3500
        %v3793 = vadd.f32 %v2414, %v3505
        %v3794 = vadd.f32 %v2417, %v3508
        %v3795 = vadd.f32 %v2422, %v3513
        %v3796 = vadd.f32 %v2425, %v3516
        %v3797 = vadd.f32 %v2430, %v3521
        %v3798 = vadd.f32 %v2433, %v3524
        %v3799 = vadd.f32 %v2438, %v3529
        %v3800 = vadd.f32 %v2441, %v3532
        %v3801 = vadd.f32 %v2446, %v3537
        %v3802 = vadd.f32 %v2449, %v3540
        %v3803 = vadd.f32 %v2454, %v3545
        %v3804 = vadd.f32 %v2457, %v3548
        %v3805 = vadd.f32 %v2462, %v3553
        %v3806 = vadd.f32 %v2465, %v3556
        %v3807 = vadd.f32 %v2470, %v3561
        %v3808 = vadd.f32 %v2473, %v3564
        %v3809 = vadd.f32 %v2478, %v3569
        %v3810 = vadd.f32 %v2481, %v3572
        %v3811 = vadd.f32 %v2486, %v3577
        %v3812 = vadd.f32 %v2489, %v3580
        %v3813 = vadd.f32 %v2494, %v3585
        %v3814 = vadd.f32 %v2497, %v3588
        %v3815 = vadd.f32 %v2502, %v3593
        %v3816 = vadd.f32 %v2505, %v3596
        %v3817 = vadd.f32 %v2510, %v3601
        %v3818 = vadd.f32 %v2513, %v3604
        %v3819 = vadd.f32 %v2518, %v3609
        %v3820 = vadd.f32 %v2521, %v3612
        %v3821 = vadd.f32 %v2526, %v3617
        %v3822 = vadd.f32 %v2529, %v3620
        %v3823 = vadd.f32 %v2534, %v3625
        %v3824 = vadd.f32 %v2537, %v3628
        %v3825 = vadd.f32 %v2542, %v3633
        %v3826 = vadd.f32 %v2545, %v3636
        %v3827 = vadd.f32 %v2550, %v3641
        %v3828 = vadd.f32 %v2553, %v3644
        %v3829 = vadd.f32 %v2558, %v3649
        %v3830 = vadd.f32 %v2561, %v3652
        %v3831 = vadd.f32 %v2566, %v3657
        %v3832 = vadd.f32 %v2569, %v3660
        %v3833 = vadd.f32 %v2574, %v3665
        %v3834 = vadd.f32 %v2577, %v3668
        %v3835 = vadd.f32 %v2582, %v3673
        %v3836 = vadd.f32 %v2585, %v3676
        %v3837 = vadd.f32 %v2590, %v3681
        %v3838 = vadd.f32 %v2593, %v3684
        %v3839 = vadd.f32 %v2598, %v3689
        %v3840 = vadd.f32 %v2601, %v3692
        %v3841 = vadd.f32 %v2606, %v3697
        %v3842 = vadd.f32 %v2609, %v3700
        %v3843 = vadd.f32 %v2614, %v3705
        %v3844 = vadd.f32 %v2617, %v3708
        %v3845 = vadd.f32 %v2622, %v3713
        %v3846 = vadd.f32 %v2625, %v3716
        %v3847 = vpack.c.bf16 %v695, %v694
        %v3848 = vpack.c.bf16 %v697, %v696
        %s3849 = scalar_lea.vmem [#allocation5], 192
        %v3850 = vld [vmem:[%s3849] sm:$0xf]
        %v3851 = vld [vmem:[%s3849 + $0x4] sm:$0xf]
        %v3852 = vld [vmem:[%s3849 + $0x8] sm:$0xf]
        %v3853 = vld [vmem:[%s3849 + $0xc] sm:$0xf]
        %v3854 = vld [vmem:[%s3849 + $0x10] sm:$0xf]
        %v3855 = vld [vmem:[%s3849 + $0x14] sm:$0xf]
        %v3856 = vld [vmem:[%s3849 + $0x18] sm:$0xf]
        %v3857 = vld [vmem:[%s3849 + $0x1c] sm:$0xf]
        %v3858 = vld [vmem:[%s3849 + $0x20] sm:$0xf]
        %v3859 = vld [vmem:[%s3849 + $0x24] sm:$0xf]
        %v3860 = vld [vmem:[%s3849 + $0x28] sm:$0xf]
        %v3861 = vld [vmem:[%s3849 + $0x2c] sm:$0xf]
        %v3862 = vld [vmem:[%s3849 + $0x30] sm:$0xf]
        %v3863 = vld [vmem:[%s3849 + $0x34] sm:$0xf]
        %v3864 = vld [vmem:[%s3849 + $0x38] sm:$0xf]
        %v3865 = vld [vmem:[%s3849 + $0x3c] sm:$0xf]
        %v3882 = vunpack.c.l.b16 %v3850
        %v3883 = vunpack.c.l.b16 %v3851
        %v3884 = vunpack.c.l.b16 %v3852
        %v3885 = vunpack.c.l.b16 %v3853
        %v3886 = vunpack.c.l.b16 %v3854
        %v3887 = vunpack.c.l.b16 %v3855
        %v3888 = vunpack.c.l.b16 %v3856
        %v3889 = vunpack.c.l.b16 %v3857
        %v3890 = vunpack.c.l.b16 %v3858
        %v3891 = vunpack.c.l.b16 %v3859
        %v3892 = vunpack.c.l.b16 %v3860
        %v3893 = vunpack.c.l.b16 %v3861
        %v3894 = vunpack.c.l.b16 %v3862
        %v3895 = vunpack.c.l.b16 %v3863
        %v3896 = vunpack.c.l.b16 %v3864
        %v3897 = vunpack.c.l.b16 %v3865
        %v3898 = vpack.c.b16 %v3883, %v3882
        %v3899 = vpack.c.b16 %v3885, %v3884
        %v3900 = vpack.c.b16 %v3887, %v3886
        %v3901 = vpack.c.b16 %v3889, %v3888
        %v3902 = vpack.c.b16 %v3891, %v3890
        %v3903 = vpack.c.b16 %v3893, %v3892
        %v3904 = vpack.c.b16 %v3895, %v3894
        %v3905 = vpack.c.b16 %v3897, %v3896
        %3914 = vmatprep.subr.bf16.mxu0 0
        %3915 = vmatpush1.bf16.msra.mxu0 %v3898
        %3916 = vmatprep.subr.bf16.mxu0 0
        %3917 = vmatpush1.bf16.msra.mxu0 %v3899
        %3918 = vmatprep.subr.bf16.mxu0 0
        %3919 = vmatpush1.bf16.msra.mxu0 %v3900
        %3920 = vmatprep.subr.bf16.mxu0 0
        %3921 = vmatpush1.bf16.msra.mxu0 %v3901
        %3922 = vmatprep.subr.bf16.mxu0 0
        %3923 = vmatpush1.bf16.msra.mxu0 %v3902
        %3924 = vmatprep.subr.bf16.mxu0 0
        %3925 = vmatpush1.bf16.msra.mxu0 %v3903
        %3926 = vmatprep.subr.bf16.mxu0 0
        %3927 = vmatpush1.bf16.msra.mxu0 %v3904
        %3928 = vmatprep.subr.bf16.mxu0 0
        %3929 = vmatpush1.bf16.msra.mxu0 %v3905
        %3930 = vmatprep.subr.bf16.mxu0 0
        %3931 = vmatpush1.bf16.msra.mxu0 0
        %3932 = vmatprep.subr.bf16.mxu0 0
        %3933 = vmatpush1.bf16.msra.mxu0 0
        %3934 = vmatprep.subr.bf16.mxu0 0
        %3935 = vmatpush1.bf16.msra.mxu0 0
        %3936 = vmatprep.subr.bf16.mxu0 0
        %3937 = vmatpush1.bf16.msra.mxu0 0
        %3938 = vmatprep.subr.bf16.mxu0 0
        %3939 = vmatpush1.bf16.msra.mxu0 0
        %3940 = vmatprep.subr.bf16.mxu0 0
        %3941 = vmatpush1.bf16.msra.mxu0 0
        %3942 = vmatprep.subr.bf16.mxu0 0
        %3943 = vmatpush1.bf16.msra.mxu0 0
        %3944 = vmatprep.subr.bf16.mxu0 0
        %3945 = vmatpush1.bf16.msra.mxu0 0
        %3946 = vmatprep.mubr.bf16.mxu0 0
        %3947 = vmatmul.mubr.bf16.gmra.mrb[0].mxu0 %v706
        %v3948 = vpop.f32.mrb[0].mxu0
        %v3949 = vadd.f32 0.0, %v3948
        %v3950 = vpop.f32.mrb[0].mxu0
        %v3951 = vpop.f32.mrb[0].mxu0
        %v3952 = vadd.f32 0.0, %v3951
        %v3953 = vpop.f32.mrb[0].mxu0
        %3954 = vmatprep.mubr.bf16.mxu0 0
        %3955 = vmatmul.mubr.bf16.gmra.mrb[0].mxu0 %v707
        %v3956 = vpop.f32.mrb[0].mxu0
        %v3957 = vadd.f32 0.0, %v3956
        %v3958 = vpop.f32.mrb[0].mxu0
        %v3959 = vpop.f32.mrb[0].mxu0
        %v3960 = vadd.f32 0.0, %v3959
        %v3961 = vpop.f32.mrb[0].mxu0
        %3962 = vmatprep.mubr.bf16.mxu0 0
        %3963 = vmatmul.mubr.bf16.gmra.mrb[0].mxu0 %v708
        %v3964 = vpop.f32.mrb[0].mxu0
        %v3965 = vadd.f32 0.0, %v3964
        %v3966 = vpop.f32.mrb[0].mxu0
        %v3967 = vpop.f32.mrb[0].mxu0
        %v3968 = vadd.f32 0.0, %v3967
        %v3969 = vpop.f32.mrb[0].mxu0
        %3970 = vmatprep.mubr.bf16.mxu0 0
        %3971 = vmatmul.mubr.bf16.gmra.mrb[0].mxu0 %v709
        %v3972 = vpop.f32.mrb[0].mxu0
        %v3973 = vadd.f32 0.0, %v3972
        %v3974 = vpop.f32.mrb[0].mxu0
        %v3975 = vpop.f32.mrb[0].mxu0
        %v3976 = vadd.f32 0.0, %v3975
        %v3977 = vpop.f32.mrb[0].mxu0
        %3978 = vmatprep.mubr.bf16.mxu0 0
        %3979 = vmatmul.mubr.bf16.gmra.mrb[0].mxu0 %v710
        %v3980 = vpop.f32.mrb[0].mxu0
        %v3981 = vadd.f32 0.0, %v3980
        %v3982 = vpop.f32.mrb[0].mxu0
        %v3983 = vpop.f32.mrb[0].mxu0
        %v3984 = vadd.f32 0.0, %v3983
        %v3985 = vpop.f32.mrb[0].mxu0
        %3986 = vmatprep.mubr.bf16.mxu0 0
        %3987 = vmatmul.mubr.bf16.gmra.mrb[0].mxu0 %v711
        %v3988 = vpop.f32.mrb[0].mxu0
        %v3989 = vadd.f32 0.0, %v3988
        %v3990 = vpop.f32.mrb[0].mxu0
        %v3991 = vpop.f32.mrb[0].mxu0
        %v3992 = vadd.f32 0.0, %v3991
        %v3993 = vpop.f32.mrb[0].mxu0
        %3994 = vmatprep.mubr.bf16.mxu0 0
        %3995 = vmatmul.mubr.bf16.gmra.mrb[0].mxu0 %v712
        %v3996 = vpop.f32.mrb[0].mxu0
        %v3997 = vadd.f32 0.0, %v3996
        %v3998 = vpop.f32.mrb[0].mxu0
        %v3999 = vpop.f32.mrb[0].mxu0
        %v4000 = vadd.f32 0.0, %v3999
        %v4001 = vpop.f32.mrb[0].mxu0
        %4002 = vmatprep.mubr.bf16.mxu0 0
        %4003 = vmatmul.mubr.bf16.gmra.mrb[0].mxu0 %v713
        %v4004 = vpop.f32.mrb[0].mxu0
        %v4005 = vadd.f32 0.0, %v4004
        %v4006 = vpop.f32.mrb[0].mxu0
        %v4007 = vpop.f32.mrb[0].mxu0
        %v4008 = vadd.f32 0.0, %v4007
        %v4009 = vpop.f32.mrb[0].mxu0
        %4010 = vmatprep.mubr.bf16.mxu0 0
        %4011 = vmatmul.mubr.bf16.gmra.mrb[0].mxu0 %v714
        %v4012 = vpop.f32.mrb[0].mxu0
        %v4013 = vadd.f32 0.0, %v4012
        %v4014 = vpop.f32.mrb[0].mxu0
        %v4015 = vpop.f32.mrb[0].mxu0
        %v4016 = vadd.f32 0.0, %v4015
        %v4017 = vpop.f32.mrb[0].mxu0
        %4018 = vmatprep.mubr.bf16.mxu0 0
        %4019 = vmatmul.mubr.bf16.gmra.mrb[0].mxu0 %v715
        %v4020 = vpop.f32.mrb[0].mxu0
        %v4021 = vadd.f32 0.0, %v4020
        %v4022 = vpop.f32.mrb[0].mxu0
        %v4023 = vpop.f32.mrb[0].mxu0
        %v4024 = vadd.f32 0.0, %v4023
        %v4025 = vpop.f32.mrb[0].mxu0
        %4026 = vmatprep.mubr.bf16.mxu0 0
        %4027 = vmatmul.mubr.bf16.gmra.mrb[0].mxu0 %v716
        %v4028 = vpop.f32.mrb[0].mxu0
        %v4029 = vadd.f32 0.0, %v4028
        %v4030 = vpop.f32.mrb[0].mxu0
        %v4031 = vpop.f32.mrb[0].mxu0
        %v4032 = vadd.f32 0.0, %v4031
        %v4033 = vpop.f32.mrb[0].mxu0
        %4034 = vmatprep.mubr.bf16.mxu0 0
        %4035 = vmatmul.mubr.bf16.gmra.mrb[0].mxu0 %v717
        %v4036 = vpop.f32.mrb[0].mxu0
        %v4037 = vadd.f32 0.0, %v4036
        %v4038 = vpop.f32.mrb[0].mxu0
        %v4039 = vpop.f32.mrb[0].mxu0
        %v4040 = vadd.f32 0.0, %v4039
        %v4041 = vpop.f32.mrb[0].mxu0
        %4042 = vmatprep.mubr.bf16.mxu0 0
        %4043 = vmatmul.mubr.bf16.gmra.mrb[0].mxu0 %v718
        %v4044 = vpop.f32.mrb[0].mxu0
        %v4045 = vadd.f32 0.0, %v4044
        %v4046 = vpop.f32.mrb[0].mxu0
        %v4047 = vpop.f32.mrb[0].mxu0
        %v4048 = vadd.f32 0.0, %v4047
        %v4049 = vpop.f32.mrb[0].mxu0
        %4050 = vmatprep.mubr.bf16.mxu0 0
        %4051 = vmatmul.mubr.bf16.gmra.mrb[0].mxu0 %v719
        %v4052 = vpop.f32.mrb[0].mxu0
        %v4053 = vadd.f32 0.0, %v4052
        %v4054 = vpop.f32.mrb[0].mxu0
        %v4055 = vpop.f32.mrb[0].mxu0
        %v4056 = vadd.f32 0.0, %v4055
        %v4057 = vpop.f32.mrb[0].mxu0
        %4058 = vmatprep.mubr.bf16.mxu0 0
        %4059 = vmatmul.mubr.bf16.gmra.mrb[0].mxu0 %v720
        %v4060 = vpop.f32.mrb[0].mxu0
        %v4061 = vadd.f32 0.0, %v4060
        %v4062 = vpop.f32.mrb[0].mxu0
        %v4063 = vpop.f32.mrb[0].mxu0
        %v4064 = vadd.f32 0.0, %v4063
        %v4065 = vpop.f32.mrb[0].mxu0
        %4066 = vmatprep.mubr.bf16.mxu0 0
        %4067 = vmatmul.mubr.bf16.gmra.mrb[0].mxu0 %v721
        %v4068 = vpop.f32.mrb[0].mxu0
        %v4069 = vadd.f32 0.0, %v4068
        %v4070 = vpop.f32.mrb[0].mxu0
        %v4071 = vpop.f32.mrb[0].mxu0
        %v4072 = vadd.f32 0.0, %v4071
        %v4073 = vpop.f32.mrb[0].mxu0
        %4074 = vmatprep.mubr.bf16.mxu0 0
        %4075 = vmatmul.mubr.bf16.gmra.mrb[0].mxu0 %v722
        %v4076 = vpop.f32.mrb[0].mxu0
        %v4077 = vadd.f32 0.0, %v4076
        %v4078 = vpop.f32.mrb[0].mxu0
        %v4079 = vpop.f32.mrb[0].mxu0
        %v4080 = vadd.f32 0.0, %v4079
        %v4081 = vpop.f32.mrb[0].mxu0
        %4082 = vmatprep.mubr.bf16.mxu0 0
        %4083 = vmatmul.mubr.bf16.gmra.mrb[0].mxu0 %v723
        %v4084 = vpop.f32.mrb[0].mxu0
        %v4085 = vadd.f32 0.0, %v4084
        %v4086 = vpop.f32.mrb[0].mxu0
        %v4087 = vpop.f32.mrb[0].mxu0
        %v4088 = vadd.f32 0.0, %v4087
        %v4089 = vpop.f32.mrb[0].mxu0
        %4090 = vmatprep.mubr.bf16.mxu0 0
        %4091 = vmatmul.mubr.bf16.gmra.mrb[0].mxu0 %v724
        %v4092 = vpop.f32.mrb[0].mxu0
        %v4093 = vadd.f32 0.0, %v4092
        %v4094 = vpop.f32.mrb[0].mxu0
        %v4095 = vpop.f32.mrb[0].mxu0
        %v4096 = vadd.f32 0.0, %v4095
        %v4097 = vpop.f32.mrb[0].mxu0
        %4098 = vmatprep.mubr.bf16.mxu0 0
        %4099 = vmatmul.mubr.bf16.gmra.mrb[0].mxu0 %v725
        %v4100 = vpop.f32.mrb[0].mxu0
        %v4101 = vadd.f32 0.0, %v4100
        %v4102 = vpop.f32.mrb[0].mxu0
        %v4103 = vpop.f32.mrb[0].mxu0
        %v4104 = vadd.f32 0.0, %v4103
        %v4105 = vpop.f32.mrb[0].mxu0
        %4106 = vmatprep.mubr.bf16.mxu0 0
        %4107 = vmatmul.mubr.bf16.gmra.mrb[0].mxu0 %v726
        %v4108 = vpop.f32.mrb[0].mxu0
        %v4109 = vadd.f32 0.0, %v4108
        %v4110 = vpop.f32.mrb[0].mxu0
        %v4111 = vpop.f32.mrb[0].mxu0
        %v4112 = vadd.f32 0.0, %v4111
        %v4113 = vpop.f32.mrb[0].mxu0
        %4114 = vmatprep.mubr.bf16.mxu0 0
        %4115 = vmatmul.mubr.bf16.gmra.mrb[0].mxu0 %v727
        %v4116 = vpop.f32.mrb[0].mxu0
        %v4117 = vadd.f32 0.0, %v4116
        %v4118 = vpop.f32.mrb[0].mxu0
        %v4119 = vpop.f32.mrb[0].mxu0
        %v4120 = vadd.f32 0.0, %v4119
        %v4121 = vpop.f32.mrb[0].mxu0
        %4122 = vmatprep.mubr.bf16.mxu0 0
        %4123 = vmatmul.mubr.bf16.gmra.mrb[0].mxu0 %v728
        %v4124 = vpop.f32.mrb[0].mxu0
        %v4125 = vadd.f32 0.0, %v4124
        %v4126 = vpop.f32.mrb[0].mxu0
        %v4127 = vpop.f32.mrb[0].mxu0
        %v4128 = vadd.f32 0.0, %v4127
        %v4129 = vpop.f32.mrb[0].mxu0
        %4130 = vmatprep.mubr.bf16.mxu0 0
        %4131 = vmatmul.mubr.bf16.gmra.mrb[0].mxu0 %v729
        %v4132 = vpop.f32.mrb[0].mxu0
        %v4133 = vadd.f32 0.0, %v4132
        %v4134 = vpop.f32.mrb[0].mxu0
        %v4135 = vpop.f32.mrb[0].mxu0
        %v4136 = vadd.f32 0.0, %v4135
        %v4137 = vpop.f32.mrb[0].mxu0
        %4138 = vmatprep.mubr.bf16.mxu0 0
        %4139 = vmatmul.mubr.bf16.gmra.mrb[0].mxu0 %v730
        %v4140 = vpop.f32.mrb[0].mxu0
        %v4141 = vadd.f32 0.0, %v4140
        %v4142 = vpop.f32.mrb[0].mxu0
        %v4143 = vpop.f32.mrb[0].mxu0
        %v4144 = vadd.f32 0.0, %v4143
        %v4145 = vpop.f32.mrb[0].mxu0
        %4146 = vmatprep.mubr.bf16.mxu0 0
        %4147 = vmatmul.mubr.bf16.gmra.mrb[0].mxu0 %v731
        %v4148 = vpop.f32.mrb[0].mxu0
        %v4149 = vadd.f32 0.0, %v4148
        %v4150 = vpop.f32.mrb[0].mxu0
        %v4151 = vpop.f32.mrb[0].mxu0
        %v4152 = vadd.f32 0.0, %v4151
        %v4153 = vpop.f32.mrb[0].mxu0
        %4154 = vmatprep.mubr.bf16.mxu0 0
        %4155 = vmatmul.mubr.bf16.gmra.mrb[0].mxu0 %v732
        %v4156 = vpop.f32.mrb[0].mxu0
        %v4157 = vadd.f32 0.0, %v4156
        %v4158 = vpop.f32.mrb[0].mxu0
        %v4159 = vpop.f32.mrb[0].mxu0
        %v4160 = vadd.f32 0.0, %v4159
        %v4161 = vpop.f32.mrb[0].mxu0
        %4162 = vmatprep.mubr.bf16.mxu0 0
        %4163 = vmatmul.mubr.bf16.gmra.mrb[0].mxu0 %v733
        %v4164 = vpop.f32.mrb[0].mxu0
        %v4165 = vadd.f32 0.0, %v4164
        %v4166 = vpop.f32.mrb[0].mxu0
        %v4167 = vpop.f32.mrb[0].mxu0
        %v4168 = vadd.f32 0.0, %v4167
        %v4169 = vpop.f32.mrb[0].mxu0
        %4170 = vmatprep.mubr.bf16.mxu0 0
        %4171 = vmatmul.mubr.bf16.gmra.mrb[0].mxu0 %v734
        %v4172 = vpop.f32.mrb[0].mxu0
        %v4173 = vadd.f32 0.0, %v4172
        %v4174 = vpop.f32.mrb[0].mxu0
        %v4175 = vpop.f32.mrb[0].mxu0
        %v4176 = vadd.f32 0.0, %v4175
        %v4177 = vpop.f32.mrb[0].mxu0
        %4178 = vmatprep.mubr.bf16.mxu0 0
        %4179 = vmatmul.mubr.bf16.gmra.mrb[0].mxu0 %v735
        %v4180 = vpop.f32.mrb[0].mxu0
        %v4181 = vadd.f32 0.0, %v4180
        %v4182 = vpop.f32.mrb[0].mxu0
        %v4183 = vpop.f32.mrb[0].mxu0
        %v4184 = vadd.f32 0.0, %v4183
        %v4185 = vpop.f32.mrb[0].mxu0
        %4186 = vmatprep.mubr.bf16.mxu0 0
        %4187 = vmatmul.mubr.bf16.gmra.mrb[0].mxu0 %v736
        %v4188 = vpop.f32.mrb[0].mxu0
        %v4189 = vadd.f32 0.0, %v4188
        %v4190 = vpop.f32.mrb[0].mxu0
        %v4191 = vpop.f32.mrb[0].mxu0
        %v4192 = vadd.f32 0.0, %v4191
        %v4193 = vpop.f32.mrb[0].mxu0
        %4194 = vmatprep.mubr.bf16.mxu0 0
        %4195 = vmatmul.mubr.bf16.gmra.mrb[0].mxu0 %v737
        %v4196 = vpop.f32.mrb[0].mxu0
        %v4197 = vadd.f32 0.0, %v4196
        %v4198 = vpop.f32.mrb[0].mxu0
        %v4199 = vpop.f32.mrb[0].mxu0
        %v4200 = vadd.f32 0.0, %v4199
        %v4201 = vpop.f32.mrb[0].mxu0
        %4202 = vmatprep.mubr.bf16.mxu0 0
        %4203 = vmatmul.mubr.bf16.gmra.mrb[0].mxu0 %v738
        %v4204 = vpop.f32.mrb[0].mxu0
        %v4205 = vadd.f32 0.0, %v4204
        %v4206 = vpop.f32.mrb[0].mxu0
        %v4207 = vpop.f32.mrb[0].mxu0
        %v4208 = vadd.f32 0.0, %v4207
        %v4209 = vpop.f32.mrb[0].mxu0
        %4210 = vmatprep.mubr.bf16.mxu0 0
        %4211 = vmatmul.mubr.bf16.gmra.mrb[0].mxu0 %v739
        %v4212 = vpop.f32.mrb[0].mxu0
        %v4213 = vadd.f32 0.0, %v4212
        %v4214 = vpop.f32.mrb[0].mxu0
        %v4215 = vpop.f32.mrb[0].mxu0
        %v4216 = vadd.f32 0.0, %v4215
        %v4217 = vpop.f32.mrb[0].mxu0
        %4218 = vmatprep.mubr.bf16.mxu0 0
        %4219 = vmatmul.mubr.bf16.gmra.mrb[0].mxu0 %v740
        %v4220 = vpop.f32.mrb[0].mxu0
        %v4221 = vadd.f32 0.0, %v4220
        %v4222 = vpop.f32.mrb[0].mxu0
        %v4223 = vpop.f32.mrb[0].mxu0
        %v4224 = vadd.f32 0.0, %v4223
        %v4225 = vpop.f32.mrb[0].mxu0
        %4226 = vmatprep.mubr.bf16.mxu0 0
        %4227 = vmatmul.mubr.bf16.gmra.mrb[0].mxu0 %v741
        %v4228 = vpop.f32.mrb[0].mxu0
        %v4229 = vadd.f32 0.0, %v4228
        %v4230 = vpop.f32.mrb[0].mxu0
        %v4231 = vpop.f32.mrb[0].mxu0
        %v4232 = vadd.f32 0.0, %v4231
        %v4233 = vpop.f32.mrb[0].mxu0
        %4234 = vmatprep.mubr.bf16.mxu0 0
        %4235 = vmatmul.mubr.bf16.gmra.mrb[0].mxu0 %v742
        %v4236 = vpop.f32.mrb[0].mxu0
        %v4237 = vadd.f32 0.0, %v4236
        %v4238 = vpop.f32.mrb[0].mxu0
        %v4239 = vpop.f32.mrb[0].mxu0
        %v4240 = vadd.f32 0.0, %v4239
        %v4241 = vpop.f32.mrb[0].mxu0
        %4242 = vmatprep.mubr.bf16.mxu0 0
        %4243 = vmatmul.mubr.bf16.gmra.mrb[0].mxu0 %v743
        %v4244 = vpop.f32.mrb[0].mxu0
        %v4245 = vadd.f32 0.0, %v4244
        %v4246 = vpop.f32.mrb[0].mxu0
        %v4247 = vpop.f32.mrb[0].mxu0
        %v4248 = vadd.f32 0.0, %v4247
        %v4249 = vpop.f32.mrb[0].mxu0
        %4250 = vmatprep.mubr.bf16.mxu0 0
        %4251 = vmatmul.mubr.bf16.gmra.mrb[0].mxu0 %v744
        %v4252 = vpop.f32.mrb[0].mxu0
        %v4253 = vadd.f32 0.0, %v4252
        %v4254 = vpop.f32.mrb[0].mxu0
        %v4255 = vpop.f32.mrb[0].mxu0
        %v4256 = vadd.f32 0.0, %v4255
        %v4257 = vpop.f32.mrb[0].mxu0
        %4258 = vmatprep.mubr.bf16.mxu0 0
        %4259 = vmatmul.mubr.bf16.gmra.mrb[0].mxu0 %v745
        %v4260 = vpop.f32.mrb[0].mxu0
        %v4261 = vadd.f32 0.0, %v4260
        %v4262 = vpop.f32.mrb[0].mxu0
        %v4263 = vpop.f32.mrb[0].mxu0
        %v4264 = vadd.f32 0.0, %v4263
        %v4265 = vpop.f32.mrb[0].mxu0
        %4266 = vmatprep.mubr.bf16.mxu0 0
        %4267 = vmatmul.mubr.bf16.gmra.mrb[0].mxu0 %v746
        %v4268 = vpop.f32.mrb[0].mxu0
        %v4269 = vadd.f32 0.0, %v4268
        %v4270 = vpop.f32.mrb[0].mxu0
        %v4271 = vpop.f32.mrb[0].mxu0
        %v4272 = vadd.f32 0.0, %v4271
        %v4273 = vpop.f32.mrb[0].mxu0
        %4274 = vmatprep.mubr.bf16.mxu0 0
        %4275 = vmatmul.mubr.bf16.gmra.mrb[0].mxu0 %v747
        %v4276 = vpop.f32.mrb[0].mxu0
        %v4277 = vadd.f32 0.0, %v4276
        %v4278 = vpop.f32.mrb[0].mxu0
        %v4279 = vpop.f32.mrb[0].mxu0
        %v4280 = vadd.f32 0.0, %v4279
        %v4281 = vpop.f32.mrb[0].mxu0
        %4282 = vmatprep.mubr.bf16.mxu0 0
        %4283 = vmatmul.mubr.bf16.gmra.mrb[0].mxu0 %v748
        %v4284 = vpop.f32.mrb[0].mxu0
        %v4285 = vadd.f32 0.0, %v4284
        %v4286 = vpop.f32.mrb[0].mxu0
        %v4287 = vpop.f32.mrb[0].mxu0
        %v4288 = vadd.f32 0.0, %v4287
        %v4289 = vpop.f32.mrb[0].mxu0
        %4290 = vmatprep.mubr.bf16.mxu0 0
        %4291 = vmatmul.mubr.bf16.gmra.mrb[0].mxu0 %v749
        %v4292 = vpop.f32.mrb[0].mxu0
        %v4293 = vadd.f32 0.0, %v4292
        %v4294 = vpop.f32.mrb[0].mxu0
        %v4295 = vpop.f32.mrb[0].mxu0
        %v4296 = vadd.f32 0.0, %v4295
        %v4297 = vpop.f32.mrb[0].mxu0
        %4298 = vmatprep.mubr.bf16.mxu0 0
        %4299 = vmatmul.mubr.bf16.gmra.mrb[0].mxu0 %v750
        %v4300 = vpop.f32.mrb[0].mxu0
        %v4301 = vadd.f32 0.0, %v4300
        %v4302 = vpop.f32.mrb[0].mxu0
        %v4303 = vpop.f32.mrb[0].mxu0
        %v4304 = vadd.f32 0.0, %v4303
        %v4305 = vpop.f32.mrb[0].mxu0
        %4306 = vmatprep.mubr.bf16.mxu0 0
        %4307 = vmatmul.mubr.bf16.gmra.mrb[0].mxu0 %v751
        %v4308 = vpop.f32.mrb[0].mxu0
        %v4309 = vadd.f32 0.0, %v4308
        %v4310 = vpop.f32.mrb[0].mxu0
        %v4311 = vpop.f32.mrb[0].mxu0
        %v4312 = vadd.f32 0.0, %v4311
        %v4313 = vpop.f32.mrb[0].mxu0
        %4314 = vmatprep.mubr.bf16.mxu0 0
        %4315 = vmatmul.mubr.bf16.gmra.mrb[0].mxu0 %v752
        %v4316 = vpop.f32.mrb[0].mxu0
        %v4317 = vadd.f32 0.0, %v4316
        %v4318 = vpop.f32.mrb[0].mxu0
        %v4319 = vpop.f32.mrb[0].mxu0
        %v4320 = vadd.f32 0.0, %v4319
        %v4321 = vpop.f32.mrb[0].mxu0
        %4322 = vmatprep.mubr.bf16.mxu0 0
        %4323 = vmatmul.mubr.bf16.gmra.mrb[0].mxu0 %v753
        %v4324 = vpop.f32.mrb[0].mxu0
        %v4325 = vadd.f32 0.0, %v4324
        %v4326 = vpop.f32.mrb[0].mxu0
        %v4327 = vpop.f32.mrb[0].mxu0
        %v4328 = vadd.f32 0.0, %v4327
        %v4329 = vpop.f32.mrb[0].mxu0
        %4330 = vmatprep.mubr.bf16.mxu0 0
        %4331 = vmatmul.mubr.bf16.gmra.mrb[0].mxu0 %v754
        %v4332 = vpop.f32.mrb[0].mxu0
        %v4333 = vadd.f32 0.0, %v4332
        %v4334 = vpop.f32.mrb[0].mxu0
        %v4335 = vpop.f32.mrb[0].mxu0
        %v4336 = vadd.f32 0.0, %v4335
        %v4337 = vpop.f32.mrb[0].mxu0
        %4338 = vmatprep.mubr.bf16.mxu0 0
        %4339 = vmatmul.mubr.bf16.gmra.mrb[0].mxu0 %v755
        %v4340 = vpop.f32.mrb[0].mxu0
        %v4341 = vadd.f32 0.0, %v4340
        %v4342 = vpop.f32.mrb[0].mxu0
        %v4343 = vpop.f32.mrb[0].mxu0
        %v4344 = vadd.f32 0.0, %v4343
        %v4345 = vpop.f32.mrb[0].mxu0
        %4346 = vmatprep.mubr.bf16.mxu0 0
        %4347 = vmatmul.mubr.bf16.gmra.mrb[0].mxu0 %v756
        %v4348 = vpop.f32.mrb[0].mxu0
        %v4349 = vadd.f32 0.0, %v4348
        %v4350 = vpop.f32.mrb[0].mxu0
        %v4351 = vpop.f32.mrb[0].mxu0
        %v4352 = vadd.f32 0.0, %v4351
        %v4353 = vpop.f32.mrb[0].mxu0
        %4354 = vmatprep.mubr.bf16.mxu0 0
        %4355 = vmatmul.mubr.bf16.gmra.mrb[0].mxu0 %v757
        %v4356 = vpop.f32.mrb[0].mxu0
        %v4357 = vadd.f32 0.0, %v4356
        %v4358 = vpop.f32.mrb[0].mxu0
        %v4359 = vpop.f32.mrb[0].mxu0
        %v4360 = vadd.f32 0.0, %v4359
        %v4361 = vpop.f32.mrb[0].mxu0
        %4362 = vmatprep.mubr.bf16.mxu0 0
        %4363 = vmatmul.mubr.bf16.gmra.mrb[0].mxu0 %v758
        %v4364 = vpop.f32.mrb[0].mxu0
        %v4365 = vadd.f32 0.0, %v4364
        %v4366 = vpop.f32.mrb[0].mxu0
        %v4367 = vpop.f32.mrb[0].mxu0
        %v4368 = vadd.f32 0.0, %v4367
        %v4369 = vpop.f32.mrb[0].mxu0
        %4370 = vmatprep.mubr.bf16.mxu0 0
        %4371 = vmatmul.mubr.bf16.gmra.mrb[0].mxu0 %v759
        %v4372 = vpop.f32.mrb[0].mxu0
        %v4373 = vadd.f32 0.0, %v4372
        %v4374 = vpop.f32.mrb[0].mxu0
        %v4375 = vpop.f32.mrb[0].mxu0
        %v4376 = vadd.f32 0.0, %v4375
        %v4377 = vpop.f32.mrb[0].mxu0
        %4378 = vmatprep.mubr.bf16.mxu0 0
        %4379 = vmatmul.mubr.bf16.gmra.mrb[0].mxu0 %v760
        %v4380 = vpop.f32.mrb[0].mxu0
        %v4381 = vadd.f32 0.0, %v4380
        %v4382 = vpop.f32.mrb[0].mxu0
        %v4383 = vpop.f32.mrb[0].mxu0
        %v4384 = vadd.f32 0.0, %v4383
        %v4385 = vpop.f32.mrb[0].mxu0
        %4386 = vmatprep.mubr.bf16.mxu0 0
        %4387 = vmatmul.mubr.bf16.gmra.mrb[0].mxu0 %v761
        %v4388 = vpop.f32.mrb[0].mxu0
        %v4389 = vadd.f32 0.0, %v4388
        %v4390 = vpop.f32.mrb[0].mxu0
        %v4391 = vpop.f32.mrb[0].mxu0
        %v4392 = vadd.f32 0.0, %v4391
        %v4393 = vpop.f32.mrb[0].mxu0
        %4394 = vmatprep.mubr.bf16.mxu0 0
        %4395 = vmatmul.mubr.bf16.gmra.mrb[0].mxu0 %v762
        %v4396 = vpop.f32.mrb[0].mxu0
        %v4397 = vadd.f32 0.0, %v4396
        %v4398 = vpop.f32.mrb[0].mxu0
        %v4399 = vpop.f32.mrb[0].mxu0
        %v4400 = vadd.f32 0.0, %v4399
        %v4401 = vpop.f32.mrb[0].mxu0
        %4402 = vmatprep.mubr.bf16.mxu0 0
        %4403 = vmatmul.mubr.bf16.gmra.mrb[0].mxu0 %v763
        %v4404 = vpop.f32.mrb[0].mxu0
        %v4405 = vadd.f32 0.0, %v4404
        %v4406 = vpop.f32.mrb[0].mxu0
        %v4407 = vpop.f32.mrb[0].mxu0
        %v4408 = vadd.f32 0.0, %v4407
        %v4409 = vpop.f32.mrb[0].mxu0
        %4410 = vmatprep.mubr.bf16.mxu0 0
        %4411 = vmatmul.mubr.bf16.gmra.mrb[0].mxu0 %v764
        %v4412 = vpop.f32.mrb[0].mxu0
        %v4413 = vadd.f32 0.0, %v4412
        %v4414 = vpop.f32.mrb[0].mxu0
        %v4415 = vpop.f32.mrb[0].mxu0
        %v4416 = vadd.f32 0.0, %v4415
        %v4417 = vpop.f32.mrb[0].mxu0
        %4418 = vmatprep.mubr.bf16.mxu0 0
        %4419 = vmatmul.mubr.bf16.gmra.mrb[0].mxu0 %v765
        %v4420 = vpop.f32.mrb[0].mxu0
        %v4421 = vadd.f32 0.0, %v4420
        %v4422 = vpop.f32.mrb[0].mxu0
        %v4423 = vpop.f32.mrb[0].mxu0
        %v4424 = vadd.f32 0.0, %v4423
        %v4425 = vpop.f32.mrb[0].mxu0
        %4426 = vmatprep.mubr.bf16.mxu0 0
        %4427 = vmatmul.mubr.bf16.gmra.mrb[0].mxu0 %v766
        %v4428 = vpop.f32.mrb[0].mxu0
        %v4429 = vadd.f32 0.0, %v4428
        %v4430 = vpop.f32.mrb[0].mxu0
        %v4431 = vpop.f32.mrb[0].mxu0
        %v4432 = vadd.f32 0.0, %v4431
        %v4433 = vpop.f32.mrb[0].mxu0
        %4434 = vmatprep.mubr.bf16.mxu0 0
        %4435 = vmatmul.mubr.bf16.gmra.mrb[0].mxu0 %v767
        %v4436 = vpop.f32.mrb[0].mxu0
        %v4437 = vadd.f32 0.0, %v4436
        %v4438 = vpop.f32.mrb[0].mxu0
        %v4439 = vpop.f32.mrb[0].mxu0
        %v4440 = vadd.f32 0.0, %v4439
        %v4441 = vpop.f32.mrb[0].mxu0
        %4442 = vmatprep.mubr.bf16.mxu0 0
        %4443 = vmatmul.mubr.bf16.gmra.mrb[0].mxu0 %v3847
        %v4444 = vpop.f32.mrb[0].mxu0
        %v4445 = vadd.f32 0.0, %v4444
        %v4446 = vpop.f32.mrb[0].mxu0
        %v4447 = vpop.f32.mrb[0].mxu0
        %v4448 = vadd.f32 0.0, %v4447
        %v4449 = vpop.f32.mrb[0].mxu0
        %4450 = vmatprep.mubr.bf16.mxu0 0
        %4451 = vmatmul.mubr.bf16.gmra.mrb[0].mxu0 %v3848
        %v4452 = vpop.f32.mrb[0].mxu0
        %v4453 = vadd.f32 0.0, %v4452
        %v4454 = vpop.f32.mrb[0].mxu0
        %v4455 = vpop.f32.mrb[0].mxu0
        %v4456 = vadd.f32 0.0, %v4455
        %v4457 = vpop.f32.mrb[0].mxu0
        %4458 = vdwg.mxu0
        %v4459 = vadd.f32 %v3719, %v3949
        %v4460 = vadd.f32 %v3720, %v3952
        %v4461 = vadd.f32 %v3721, %v3957
        %v4462 = vadd.f32 %v3722, %v3960
        %v4463 = vadd.f32 %v3723, %v3965
        %v4464 = vadd.f32 %v3724, %v3968
        %v4465 = vadd.f32 %v3725, %v3973
        %v4466 = vadd.f32 %v3726, %v3976
        %v4467 = vadd.f32 %v3727, %v3981
        %v4468 = vadd.f32 %v3728, %v3984
        %v4469 = vadd.f32 %v3729, %v3989
        %v4470 = vadd.f32 %v3730, %v3992
        %v4471 = vadd.f32 %v3731, %v3997
        %v4472 = vadd.f32 %v3732, %v4000
        %v4473 = vadd.f32 %v3733, %v4005
        %v4474 = vadd.f32 %v3734, %v4008
        %v4475 = vadd.f32 %v3735, %v4013
        %v4476 = vadd.f32 %v3736, %v4016
        %v4477 = vadd.f32 %v3737, %v4021
        %v4478 = vadd.f32 %v3738, %v4024
        %v4479 = vadd.f32 %v3739, %v4029
        %v4480 = vadd.f32 %v3740, %v4032
        %v4481 = vadd.f32 %v3741, %v4037
        %v4482 = vadd.f32 %v3742, %v4040
        %v4483 = vadd.f32 %v3743, %v4045
        %v4484 = vadd.f32 %v3744, %v4048
        %v4485 = vadd.f32 %v3745, %v4053
        %v4486 = vadd.f32 %v3746, %v4056
        %v4487 = vadd.f32 %v3747, %v4061
        %v4488 = vadd.f32 %v3748, %v4064
        %v4489 = vadd.f32 %v3749, %v4069
        %v4490 = vadd.f32 %v3750, %v4072
        %v4491 = vadd.f32 %v3751, %v4077
        %v4492 = vadd.f32 %v3752, %v4080
        %v4493 = vadd.f32 %v3753, %v4085
        %v4494 = vadd.f32 %v3754, %v4088
        %v4495 = vadd.f32 %v3755, %v4093
        %v4496 = vadd.f32 %v3756, %v4096
        %v4497 = vadd.f32 %v3757, %v4101
        %v4498 = vadd.f32 %v3758, %v4104
        %v4499 = vadd.f32 %v3759, %v4109
        %v4500 = vadd.f32 %v3760, %v4112
        %v4501 = vadd.f32 %v3761, %v4117
        %v4502 = vadd.f32 %v3762, %v4120
        %v4503 = vadd.f32 %v3763, %v4125
        %v4504 = vadd.f32 %v3764, %v4128
        %v4505 = vadd.f32 %v3765, %v4133
        %v4506 = vadd.f32 %v3766, %v4136
        %v4507 = vadd.f32 %v3767, %v4141
        %v4508 = vadd.f32 %v3768, %v4144
        %v4509 = vadd.f32 %v3769, %v4149
        %v4510 = vadd.f32 %v3770, %v4152
        %v4511 = vadd.f32 %v3771, %v4157
        %v4512 = vadd.f32 %v3772, %v4160
        %v4513 = vadd.f32 %v3773, %v4165
        %v4514 = vadd.f32 %v3774, %v4168
        %v4515 = vadd.f32 %v3775, %v4173
        %v4516 = vadd.f32 %v3776, %v4176
        %v4517 = vadd.f32 %v3777, %v4181
        %v4518 = vadd.f32 %v3778, %v4184
        %v4519 = vadd.f32 %v3779, %v4189
        %v4520 = vadd.f32 %v3780, %v4192
        %v4521 = vadd.f32 %v3781, %v4197
        %v4522 = vadd.f32 %v3782, %v4200
        %v4523 = vadd.f32 %v3783, %v4205
        %v4524 = vadd.f32 %v3784, %v4208
        %v4525 = vadd.f32 %v3785, %v4213
        %v4526 = vadd.f32 %v3786, %v4216
        %v4527 = vadd.f32 %v3787, %v4221
        %v4528 = vadd.f32 %v3788, %v4224
        %v4529 = vadd.f32 %v3789, %v4229
        %v4530 = vadd.f32 %v3790, %v4232
        %v4531 = vadd.f32 %v3791, %v4237
        %v4532 = vadd.f32 %v3792, %v4240
        %v4533 = vadd.f32 %v3793, %v4245
        %v4534 = vadd.f32 %v3794, %v4248
        %v4535 = vadd.f32 %v3795, %v4253
        %v4536 = vadd.f32 %v3796, %v4256
        %v4537 = vadd.f32 %v3797, %v4261
        %v4538 = vadd.f32 %v3798, %v4264
        %v4539 = vadd.f32 %v3799, %v4269
        %v4540 = vadd.f32 %v3800, %v4272
        %v4541 = vadd.f32 %v3801, %v4277
        %v4542 = vadd.f32 %v3802, %v4280
        %v4543 = vadd.f32 %v3803, %v4285
        %v4544 = vadd.f32 %v3804, %v4288
        %v4545 = vadd.f32 %v3805, %v4293
        %v4546 = vadd.f32 %v3806, %v4296
        %v4547 = vadd.f32 %v3807, %v4301
        %v4548 = vadd.f32 %v3808, %v4304
        %v4549 = vadd.f32 %v3809, %v4309
        %v4550 = vadd.f32 %v3810, %v4312
        %v4551 = vadd.f32 %v3811, %v4317
        %v4552 = vadd.f32 %v3812, %v4320
        %v4553 = vadd.f32 %v3813, %v4325
        %v4554 = vadd.f32 %v3814, %v4328
        %v4555 = vadd.f32 %v3815, %v4333
        %v4556 = vadd.f32 %v3816, %v4336
        %v4557 = vadd.f32 %v3817, %v4341
        %v4558 = vadd.f32 %v3818, %v4344
        %v4559 = vadd.f32 %v3819, %v4349
        %v4560 = vadd.f32 %v3820, %v4352
        %v4561 = vadd.f32 %v3821, %v4357
        %v4562 = vadd.f32 %v3822, %v4360
        %v4563 = vadd.f32 %v3823, %v4365
        %v4564 = vadd.f32 %v3824, %v4368
        %v4565 = vadd.f32 %v3825, %v4373
        %v4566 = vadd.f32 %v3826, %v4376
        %v4567 = vadd.f32 %v3827, %v4381
        %v4568 = vadd.f32 %v3828, %v4384
        %v4569 = vadd.f32 %v3829, %v4389
        %v4570 = vadd.f32 %v3830, %v4392
        %v4571 = vadd.f32 %v3831, %v4397
        %v4572 = vadd.f32 %v3832, %v4400
        %v4573 = vadd.f32 %v3833, %v4405
        %v4574 = vadd.f32 %v3834, %v4408
        %v4575 = vadd.f32 %v3835, %v4413
        %v4576 = vadd.f32 %v3836, %v4416
        %v4577 = vadd.f32 %v3837, %v4421
        %v4578 = vadd.f32 %v3838, %v4424
        %v4579 = vadd.f32 %v3839, %v4429
        %v4580 = vadd.f32 %v3840, %v4432
        %v4581 = vadd.f32 %v3841, %v4437
        %v4582 = vadd.f32 %v3842, %v4440
        %v4583 = vadd.f32 %v3843, %v4445
        %v4584 = vadd.f32 %v3844, %v4448
        %v4585 = vadd.f32 %v3845, %v4453
        %v4586 = vadd.f32 %v3846, %v4456
        %v4592 = vrot.slane %v694, 1
        %v4593 = vrot.slane %v695, 1
        %v4594 = vsel %vm944, %v4592, %v4593
        %v4595 = vrot.slane %v696, 1
        %v4596 = vsel %vm944, %v4593, %v4595
        %v4597 = vrot.slane %v697, 1
        %v4598 = vsel %vm944, %v4595, %v4597
        %v4599 = vrot.slane %v698, 1
        %v4600 = vsel %vm944, %v4597, %v4599
        %v4605 = vpack.c.bf16 %v4596, %v4594
        %v4606 = vpack.c.bf16 %v4600, %v4598
        %s4607 = scalar_lea.vmem [#allocation5], 256
        %v4608 = vld [vmem:[%s4607] sm:$0xf]
        %v4609 = vld [vmem:[%s4607 + $0x4] sm:$0xf]
        %v4610 = vld [vmem:[%s4607 + $0x8] sm:$0xf]
        %v4611 = vld [vmem:[%s4607 + $0xc] sm:$0xf]
        %v4612 = vld [vmem:[%s4607 + $0x10] sm:$0xf]
        %v4613 = vld [vmem:[%s4607 + $0x14] sm:$0xf]
        %v4614 = vld [vmem:[%s4607 + $0x18] sm:$0xf]
        %v4615 = vld [vmem:[%s4607 + $0x1c] sm:$0xf]
        %v4616 = vld [vmem:[%s4607 + $0x20] sm:$0xf]
        %v4617 = vld [vmem:[%s4607 + $0x24] sm:$0xf]
        %v4618 = vld [vmem:[%s4607 + $0x28] sm:$0xf]
        %v4619 = vld [vmem:[%s4607 + $0x2c] sm:$0xf]
        %v4620 = vld [vmem:[%s4607 + $0x30] sm:$0xf]
        %v4621 = vld [vmem:[%s4607 + $0x34] sm:$0xf]
        %v4622 = vld [vmem:[%s4607 + $0x38] sm:$0xf]
        %v4623 = vld [vmem:[%s4607 + $0x3c] sm:$0xf]
        %v4640 = vunpack.c.l.b16 %v4608
        %v4641 = vunpack.c.l.b16 %v4609
        %v4642 = vunpack.c.l.b16 %v4610
        %v4643 = vunpack.c.l.b16 %v4611
        %v4644 = vunpack.c.l.b16 %v4612
        %v4645 = vunpack.c.l.b16 %v4613
        %v4646 = vunpack.c.l.b16 %v4614
        %v4647 = vunpack.c.l.b16 %v4615
        %v4648 = vunpack.c.l.b16 %v4616
        %v4649 = vunpack.c.l.b16 %v4617
        %v4650 = vunpack.c.l.b16 %v4618
        %v4651 = vunpack.c.l.b16 %v4619
        %v4652 = vunpack.c.l.b16 %v4620
        %v4653 = vunpack.c.l.b16 %v4621
        %v4654 = vunpack.c.l.b16 %v4622
        %v4655 = vunpack.c.l.b16 %v4623
        %v4656 = vpack.c.b16 %v4641, %v4640
        %v4657 = vpack.c.b16 %v4643, %v4642
        %v4658 = vpack.c.b16 %v4645, %v4644
        %v4659 = vpack.c.b16 %v4647, %v4646
        %v4660 = vpack.c.b16 %v4649, %v4648
        %v4661 = vpack.c.b16 %v4651, %v4650
        %v4662 = vpack.c.b16 %v4653, %v4652
        %v4663 = vpack.c.b16 %v4655, %v4654
        %4672 = vmatprep.subr.bf16.mxu0 0
        %4673 = vmatpush1.bf16.msra.mxu0 %v4656
        %4674 = vmatprep.subr.bf16.mxu0 0
        %4675 = vmatpush1.bf16.msra.mxu0 %v4657
        %4676 = vmatprep.subr.bf16.mxu0 0
        %4677 = vmatpush1.bf16.msra.mxu0 %v4658
        %4678 = vmatprep.subr.bf16.mxu0 0
        %4679 = vmatpush1.bf16.msra.mxu0 %v4659
        %4680 = vmatprep.subr.bf16.mxu0 0
        %4681 = vmatpush1.bf16.msra.mxu0 %v4660
        %4682 = vmatprep.subr.bf16.mxu0 0
        %4683 = vmatpush1.bf16.msra.mxu0 %v4661
        %4684 = vmatprep.subr.bf16.mxu0 0
        %4685 = vmatpush1.bf16.msra.mxu0 %v4662
        %4686 = vmatprep.subr.bf16.mxu0 0
        %4687 = vmatpush1.bf16.msra.mxu0 %v4663
        %4688 = vmatprep.subr.bf16.mxu0 0
        %4689 = vmatpush1.bf16.msra.mxu0 0
        %4690 = vmatprep.subr.bf16.mxu0 0
        %4691 = vmatpush1.bf16.msra.mxu0 0
        %4692 = vmatprep.subr.bf16.mxu0 0
        %4693 = vmatpush1.bf16.msra.mxu0 0
        %4694 = vmatprep.subr.bf16.mxu0 0
        %4695 = vmatpush1.bf16.msra.mxu0 0
        %4696 = vmatprep.subr.bf16.mxu0 0
        %4697 = vmatpush1.bf16.msra.mxu0 0
        %4698 = vmatprep.subr.bf16.mxu0 0
        %4699 = vmatpush1.bf16.msra.mxu0 0
        %4700 = vmatprep.subr.bf16.mxu0 0
        %4701 = vmatpush1.bf16.msra.mxu0 0
        %4702 = vmatprep.subr.bf16.mxu0 0
        %4703 = vmatpush1.bf16.msra.mxu0 0
        %4704 = vmatprep.mubr.bf16.mxu0 0
        %4705 = vmatmul.mubr.bf16.gmra.mrb[0].mxu0 %v1363
        %v4706 = vpop.f32.mrb[0].mxu0
        %v4707 = vadd.f32 0.0, %v4706
        %v4708 = vpop.f32.mrb[0].mxu0
        %v4709 = vpop.f32.mrb[0].mxu0
        %v4710 = vadd.f32 0.0, %v4709
        %v4711 = vpop.f32.mrb[0].mxu0
        %4712 = vmatprep.mubr.bf16.mxu0 0
        %4713 = vmatmul.mubr.bf16.gmra.mrb[0].mxu0 %v1364
        %v4714 = vpop.f32.mrb[0].mxu0
        %v4715 = vadd.f32 0.0, %v4714
        %v4716 = vpop.f32.mrb[0].mxu0
        %v4717 = vpop.f32.mrb[0].mxu0
        %v4718 = vadd.f32 0.0, %v4717
        %v4719 = vpop.f32.mrb[0].mxu0
        %4720 = vmatprep.mubr.bf16.mxu0 0
        %4721 = vmatmul.mubr.bf16.gmra.mrb[0].mxu0 %v1365
        %v4722 = vpop.f32.mrb[0].mxu0
        %v4723 = vadd.f32 0.0, %v4722
        %v4724 = vpop.f32.mrb[0].mxu0
        %v4725 = vpop.f32.mrb[0].mxu0
        %v4726 = vadd.f32 0.0, %v4725
        %v4727 = vpop.f32.mrb[0].mxu0
        %4728 = vmatprep.mubr.bf16.mxu0 0
        %4729 = vmatmul.mubr.bf16.gmra.mrb[0].mxu0 %v1366
        %v4730 = vpop.f32.mrb[0].mxu0
        %v4731 = vadd.f32 0.0, %v4730
        %v4732 = vpop.f32.mrb[0].mxu0
        %v4733 = vpop.f32.mrb[0].mxu0
        %v4734 = vadd.f32 0.0, %v4733
        %v4735 = vpop.f32.mrb[0].mxu0
        %4736 = vmatprep.mubr.bf16.mxu0 0
        %4737 = vmatmul.mubr.bf16.gmra.mrb[0].mxu0 %v1367
        %v4738 = vpop.f32.mrb[0].mxu0
        %v4739 = vadd.f32 0.0, %v4738
        %v4740 = vpop.f32.mrb[0].mxu0
        %v4741 = vpop.f32.mrb[0].mxu0
        %v4742 = vadd.f32 0.0, %v4741
        %v4743 = vpop.f32.mrb[0].mxu0
        %4744 = vmatprep.mubr.bf16.mxu0 0
        %4745 = vmatmul.mubr.bf16.gmra.mrb[0].mxu0 %v1368
        %v4746 = vpop.f32.mrb[0].mxu0
        %v4747 = vadd.f32 0.0, %v4746
        %v4748 = vpop.f32.mrb[0].mxu0
        %v4749 = vpop.f32.mrb[0].mxu0
        %v4750 = vadd.f32 0.0, %v4749
        %v4751 = vpop.f32.mrb[0].mxu0
        %4752 = vmatprep.mubr.bf16.mxu0 0
        %4753 = vmatmul.mubr.bf16.gmra.mrb[0].mxu0 %v1369
        %v4754 = vpop.f32.mrb[0].mxu0
        %v4755 = vadd.f32 0.0, %v4754
        %v4756 = vpop.f32.mrb[0].mxu0
        %v4757 = vpop.f32.mrb[0].mxu0
        %v4758 = vadd.f32 0.0, %v4757
        %v4759 = vpop.f32.mrb[0].mxu0
        %4760 = vmatprep.mubr.bf16.mxu0 0
        %4761 = vmatmul.mubr.bf16.gmra.mrb[0].mxu0 %v1370
        %v4762 = vpop.f32.mrb[0].mxu0
        %v4763 = vadd.f32 0.0, %v4762
        %v4764 = vpop.f32.mrb[0].mxu0
        %v4765 = vpop.f32.mrb[0].mxu0
        %v4766 = vadd.f32 0.0, %v4765
        %v4767 = vpop.f32.mrb[0].mxu0
        %4768 = vmatprep.mubr.bf16.mxu0 0
        %4769 = vmatmul.mubr.bf16.gmra.mrb[0].mxu0 %v1371
        %v4770 = vpop.f32.mrb[0].mxu0
        %v4771 = vadd.f32 0.0, %v4770
        %v4772 = vpop.f32.mrb[0].mxu0
        %v4773 = vpop.f32.mrb[0].mxu0
        %v4774 = vadd.f32 0.0, %v4773
        %v4775 = vpop.f32.mrb[0].mxu0
        %4776 = vmatprep.mubr.bf16.mxu0 0
        %4777 = vmatmul.mubr.bf16.gmra.mrb[0].mxu0 %v1372
        %v4778 = vpop.f32.mrb[0].mxu0
        %v4779 = vadd.f32 0.0, %v4778
        %v4780 = vpop.f32.mrb[0].mxu0
        %v4781 = vpop.f32.mrb[0].mxu0
        %v4782 = vadd.f32 0.0, %v4781
        %v4783 = vpop.f32.mrb[0].mxu0
        %4784 = vmatprep.mubr.bf16.mxu0 0
        %4785 = vmatmul.mubr.bf16.gmra.mrb[0].mxu0 %v1373
        %v4786 = vpop.f32.mrb[0].mxu0
        %v4787 = vadd.f32 0.0, %v4786
        %v4788 = vpop.f32.mrb[0].mxu0
        %v4789 = vpop.f32.mrb[0].mxu0
        %v4790 = vadd.f32 0.0, %v4789
        %v4791 = vpop.f32.mrb[0].mxu0
        %4792 = vmatprep.mubr.bf16.mxu0 0
        %4793 = vmatmul.mubr.bf16.gmra.mrb[0].mxu0 %v1374
        %v4794 = vpop.f32.mrb[0].mxu0
        %v4795 = vadd.f32 0.0, %v4794
        %v4796 = vpop.f32.mrb[0].mxu0
        %v4797 = vpop.f32.mrb[0].mxu0
        %v4798 = vadd.f32 0.0, %v4797
        %v4799 = vpop.f32.mrb[0].mxu0
        %4800 = vmatprep.mubr.bf16.mxu0 0
        %4801 = vmatmul.mubr.bf16.gmra.mrb[0].mxu0 %v1375
        %v4802 = vpop.f32.mrb[0].mxu0
        %v4803 = vadd.f32 0.0, %v4802
        %v4804 = vpop.f32.mrb[0].mxu0
        %v4805 = vpop.f32.mrb[0].mxu0
        %v4806 = vadd.f32 0.0, %v4805
        %v4807 = vpop.f32.mrb[0].mxu0
        %4808 = vmatprep.mubr.bf16.mxu0 0
        %4809 = vmatmul.mubr.bf16.gmra.mrb[0].mxu0 %v1376
        %v4810 = vpop.f32.mrb[0].mxu0
        %v4811 = vadd.f32 0.0, %v4810
        %v4812 = vpop.f32.mrb[0].mxu0
        %v4813 = vpop.f32.mrb[0].mxu0
        %v4814 = vadd.f32 0.0, %v4813
        %v4815 = vpop.f32.mrb[0].mxu0
        %4816 = vmatprep.mubr.bf16.mxu0 0
        %4817 = vmatmul.mubr.bf16.gmra.mrb[0].mxu0 %v1377
        %v4818 = vpop.f32.mrb[0].mxu0
        %v4819 = vadd.f32 0.0, %v4818
        %v4820 = vpop.f32.mrb[0].mxu0
        %v4821 = vpop.f32.mrb[0].mxu0
        %v4822 = vadd.f32 0.0, %v4821
        %v4823 = vpop.f32.mrb[0].mxu0
        %4824 = vmatprep.mubr.bf16.mxu0 0
        %4825 = vmatmul.mubr.bf16.gmra.mrb[0].mxu0 %v1378
        %v4826 = vpop.f32.mrb[0].mxu0
        %v4827 = vadd.f32 0.0, %v4826
        %v4828 = vpop.f32.mrb[0].mxu0
        %v4829 = vpop.f32.mrb[0].mxu0
        %v4830 = vadd.f32 0.0, %v4829
        %v4831 = vpop.f32.mrb[0].mxu0
        %4832 = vmatprep.mubr.bf16.mxu0 0
        %4833 = vmatmul.mubr.bf16.gmra.mrb[0].mxu0 %v1379
        %v4834 = vpop.f32.mrb[0].mxu0
        %v4835 = vadd.f32 0.0, %v4834
        %v4836 = vpop.f32.mrb[0].mxu0
        %v4837 = vpop.f32.mrb[0].mxu0
        %v4838 = vadd.f32 0.0, %v4837
        %v4839 = vpop.f32.mrb[0].mxu0
        %4840 = vmatprep.mubr.bf16.mxu0 0
        %4841 = vmatmul.mubr.bf16.gmra.mrb[0].mxu0 %v1380
        %v4842 = vpop.f32.mrb[0].mxu0
        %v4843 = vadd.f32 0.0, %v4842
        %v4844 = vpop.f32.mrb[0].mxu0
        %v4845 = vpop.f32.mrb[0].mxu0
        %v4846 = vadd.f32 0.0, %v4845
        %v4847 = vpop.f32.mrb[0].mxu0
        %4848 = vmatprep.mubr.bf16.mxu0 0
        %4849 = vmatmul.mubr.bf16.gmra.mrb[0].mxu0 %v1381
        %v4850 = vpop.f32.mrb[0].mxu0
        %v4851 = vadd.f32 0.0, %v4850
        %v4852 = vpop.f32.mrb[0].mxu0
        %v4853 = vpop.f32.mrb[0].mxu0
        %v4854 = vadd.f32 0.0, %v4853
        %v4855 = vpop.f32.mrb[0].mxu0
        %4856 = vmatprep.mubr.bf16.mxu0 0
        %4857 = vmatmul.mubr.bf16.gmra.mrb[0].mxu0 %v1382
        %v4858 = vpop.f32.mrb[0].mxu0
        %v4859 = vadd.f32 0.0, %v4858
        %v4860 = vpop.f32.mrb[0].mxu0
        %v4861 = vpop.f32.mrb[0].mxu0
        %v4862 = vadd.f32 0.0, %v4861
        %v4863 = vpop.f32.mrb[0].mxu0
        %4864 = vmatprep.mubr.bf16.mxu0 0
        %4865 = vmatmul.mubr.bf16.gmra.mrb[0].mxu0 %v1383
        %v4866 = vpop.f32.mrb[0].mxu0
        %v4867 = vadd.f32 0.0, %v4866
        %v4868 = vpop.f32.mrb[0].mxu0
        %v4869 = vpop.f32.mrb[0].mxu0
        %v4870 = vadd.f32 0.0, %v4869
        %v4871 = vpop.f32.mrb[0].mxu0
        %4872 = vmatprep.mubr.bf16.mxu0 0
        %4873 = vmatmul.mubr.bf16.gmra.mrb[0].mxu0 %v1384
        %v4874 = vpop.f32.mrb[0].mxu0
        %v4875 = vadd.f32 0.0, %v4874
        %v4876 = vpop.f32.mrb[0].mxu0
        %v4877 = vpop.f32.mrb[0].mxu0
        %v4878 = vadd.f32 0.0, %v4877
        %v4879 = vpop.f32.mrb[0].mxu0
        %4880 = vmatprep.mubr.bf16.mxu0 0
        %4881 = vmatmul.mubr.bf16.gmra.mrb[0].mxu0 %v1385
        %v4882 = vpop.f32.mrb[0].mxu0
        %v4883 = vadd.f32 0.0, %v4882
        %v4884 = vpop.f32.mrb[0].mxu0
        %v4885 = vpop.f32.mrb[0].mxu0
        %v4886 = vadd.f32 0.0, %v4885
        %v4887 = vpop.f32.mrb[0].mxu0
        %4888 = vmatprep.mubr.bf16.mxu0 0
        %4889 = vmatmul.mubr.bf16.gmra.mrb[0].mxu0 %v1386
        %v4890 = vpop.f32.mrb[0].mxu0
        %v4891 = vadd.f32 0.0, %v4890
        %v4892 = vpop.f32.mrb[0].mxu0
        %v4893 = vpop.f32.mrb[0].mxu0
        %v4894 = vadd.f32 0.0, %v4893
        %v4895 = vpop.f32.mrb[0].mxu0
        %4896 = vmatprep.mubr.bf16.mxu0 0
        %4897 = vmatmul.mubr.bf16.gmra.mrb[0].mxu0 %v1387
        %v4898 = vpop.f32.mrb[0].mxu0
        %v4899 = vadd.f32 0.0, %v4898
        %v4900 = vpop.f32.mrb[0].mxu0
        %v4901 = vpop.f32.mrb[0].mxu0
        %v4902 = vadd.f32 0.0, %v4901
        %v4903 = vpop.f32.mrb[0].mxu0
        %4904 = vmatprep.mubr.bf16.mxu0 0
        %4905 = vmatmul.mubr.bf16.gmra.mrb[0].mxu0 %v1388
        %v4906 = vpop.f32.mrb[0].mxu0
        %v4907 = vadd.f32 0.0, %v4906
        %v4908 = vpop.f32.mrb[0].mxu0
        %v4909 = vpop.f32.mrb[0].mxu0
        %v4910 = vadd.f32 0.0, %v4909
        %v4911 = vpop.f32.mrb[0].mxu0
        %4912 = vmatprep.mubr.bf16.mxu0 0
        %4913 = vmatmul.mubr.bf16.gmra.mrb[0].mxu0 %v1389
        %v4914 = vpop.f32.mrb[0].mxu0
        %v4915 = vadd.f32 0.0, %v4914
        %v4916 = vpop.f32.mrb[0].mxu0
        %v4917 = vpop.f32.mrb[0].mxu0
        %v4918 = vadd.f32 0.0, %v4917
        %v4919 = vpop.f32.mrb[0].mxu0
        %4920 = vmatprep.mubr.bf16.mxu0 0
        %4921 = vmatmul.mubr.bf16.gmra.mrb[0].mxu0 %v1390
        %v4922 = vpop.f32.mrb[0].mxu0
        %v4923 = vadd.f32 0.0, %v4922
        %v4924 = vpop.f32.mrb[0].mxu0
        %v4925 = vpop.f32.mrb[0].mxu0
        %v4926 = vadd.f32 0.0, %v4925
        %v4927 = vpop.f32.mrb[0].mxu0
        %4928 = vmatprep.mubr.bf16.mxu0 0
        %4929 = vmatmul.mubr.bf16.gmra.mrb[0].mxu0 %v1391
        %v4930 = vpop.f32.mrb[0].mxu0
        %v4931 = vadd.f32 0.0, %v4930
        %v4932 = vpop.f32.mrb[0].mxu0
        %v4933 = vpop.f32.mrb[0].mxu0
        %v4934 = vadd.f32 0.0, %v4933
        %v4935 = vpop.f32.mrb[0].mxu0
        %4936 = vmatprep.mubr.bf16.mxu0 0
        %4937 = vmatmul.mubr.bf16.gmra.mrb[0].mxu0 %v1392
        %v4938 = vpop.f32.mrb[0].mxu0
        %v4939 = vadd.f32 0.0, %v4938
        %v4940 = vpop.f32.mrb[0].mxu0
        %v4941 = vpop.f32.mrb[0].mxu0
        %v4942 = vadd.f32 0.0, %v4941
        %v4943 = vpop.f32.mrb[0].mxu0
        %4944 = vmatprep.mubr.bf16.mxu0 0
        %4945 = vmatmul.mubr.bf16.gmra.mrb[0].mxu0 %v1393
        %v4946 = vpop.f32.mrb[0].mxu0
        %v4947 = vadd.f32 0.0, %v4946
        %v4948 = vpop.f32.mrb[0].mxu0
        %v4949 = vpop.f32.mrb[0].mxu0
        %v4950 = vadd.f32 0.0, %v4949
        %v4951 = vpop.f32.mrb[0].mxu0
        %4952 = vmatprep.mubr.bf16.mxu0 0
        %4953 = vmatmul.mubr.bf16.gmra.mrb[0].mxu0 %v1394
        %v4954 = vpop.f32.mrb[0].mxu0
        %v4955 = vadd.f32 0.0, %v4954
        %v4956 = vpop.f32.mrb[0].mxu0
        %v4957 = vpop.f32.mrb[0].mxu0
        %v4958 = vadd.f32 0.0, %v4957
        %v4959 = vpop.f32.mrb[0].mxu0
        %4960 = vmatprep.mubr.bf16.mxu0 0
        %4961 = vmatmul.mubr.bf16.gmra.mrb[0].mxu0 %v1395
        %v4962 = vpop.f32.mrb[0].mxu0
        %v4963 = vadd.f32 0.0, %v4962
        %v4964 = vpop.f32.mrb[0].mxu0
        %v4965 = vpop.f32.mrb[0].mxu0
        %v4966 = vadd.f32 0.0, %v4965
        %v4967 = vpop.f32.mrb[0].mxu0
        %4968 = vmatprep.mubr.bf16.mxu0 0
        %4969 = vmatmul.mubr.bf16.gmra.mrb[0].mxu0 %v1396
        %v4970 = vpop.f32.mrb[0].mxu0
        %v4971 = vadd.f32 0.0, %v4970
        %v4972 = vpop.f32.mrb[0].mxu0
        %v4973 = vpop.f32.mrb[0].mxu0
        %v4974 = vadd.f32 0.0, %v4973
        %v4975 = vpop.f32.mrb[0].mxu0
        %4976 = vmatprep.mubr.bf16.mxu0 0
        %4977 = vmatmul.mubr.bf16.gmra.mrb[0].mxu0 %v1397
        %v4978 = vpop.f32.mrb[0].mxu0
        %v4979 = vadd.f32 0.0, %v4978
        %v4980 = vpop.f32.mrb[0].mxu0
        %v4981 = vpop.f32.mrb[0].mxu0
        %v4982 = vadd.f32 0.0, %v4981
        %v4983 = vpop.f32.mrb[0].mxu0
        %4984 = vmatprep.mubr.bf16.mxu0 0
        %4985 = vmatmul.mubr.bf16.gmra.mrb[0].mxu0 %v1398
        %v4986 = vpop.f32.mrb[0].mxu0
        %v4987 = vadd.f32 0.0, %v4986
        %v4988 = vpop.f32.mrb[0].mxu0
        %v4989 = vpop.f32.mrb[0].mxu0
        %v4990 = vadd.f32 0.0, %v4989
        %v4991 = vpop.f32.mrb[0].mxu0
        %4992 = vmatprep.mubr.bf16.mxu0 0
        %4993 = vmatmul.mubr.bf16.gmra.mrb[0].mxu0 %v1399
        %v4994 = vpop.f32.mrb[0].mxu0
        %v4995 = vadd.f32 0.0, %v4994
        %v4996 = vpop.f32.mrb[0].mxu0
        %v4997 = vpop.f32.mrb[0].mxu0
        %v4998 = vadd.f32 0.0, %v4997
        %v4999 = vpop.f32.mrb[0].mxu0
        %5000 = vmatprep.mubr.bf16.mxu0 0
        %5001 = vmatmul.mubr.bf16.gmra.mrb[0].mxu0 %v1400
        %v5002 = vpop.f32.mrb[0].mxu0
        %v5003 = vadd.f32 0.0, %v5002
        %v5004 = vpop.f32.mrb[0].mxu0
        %v5005 = vpop.f32.mrb[0].mxu0
        %v5006 = vadd.f32 0.0, %v5005
        %v5007 = vpop.f32.mrb[0].mxu0
        %5008 = vmatprep.mubr.bf16.mxu0 0
        %5009 = vmatmul.mubr.bf16.gmra.mrb[0].mxu0 %v1401
        %v5010 = vpop.f32.mrb[0].mxu0
        %v5011 = vadd.f32 0.0, %v5010
        %v5012 = vpop.f32.mrb[0].mxu0
        %v5013 = vpop.f32.mrb[0].mxu0
        %v5014 = vadd.f32 0.0, %v5013
        %v5015 = vpop.f32.mrb[0].mxu0
        %5016 = vmatprep.mubr.bf16.mxu0 0
        %5017 = vmatmul.mubr.bf16.gmra.mrb[0].mxu0 %v1402
        %v5018 = vpop.f32.mrb[0].mxu0
        %v5019 = vadd.f32 0.0, %v5018
        %v5020 = vpop.f32.mrb[0].mxu0
        %v5021 = vpop.f32.mrb[0].mxu0
        %v5022 = vadd.f32 0.0, %v5021
        %v5023 = vpop.f32.mrb[0].mxu0
        %5024 = vmatprep.mubr.bf16.mxu0 0
        %5025 = vmatmul.mubr.bf16.gmra.mrb[0].mxu0 %v1403
        %v5026 = vpop.f32.mrb[0].mxu0
        %v5027 = vadd.f32 0.0, %v5026
        %v5028 = vpop.f32.mrb[0].mxu0
        %v5029 = vpop.f32.mrb[0].mxu0
        %v5030 = vadd.f32 0.0, %v5029
        %v5031 = vpop.f32.mrb[0].mxu0
        %5032 = vmatprep.mubr.bf16.mxu0 0
        %5033 = vmatmul.mubr.bf16.gmra.mrb[0].mxu0 %v1404
        %v5034 = vpop.f32.mrb[0].mxu0
        %v5035 = vadd.f32 0.0, %v5034
        %v5036 = vpop.f32.mrb[0].mxu0
        %v5037 = vpop.f32.mrb[0].mxu0
        %v5038 = vadd.f32 0.0, %v5037
        %v5039 = vpop.f32.mrb[0].mxu0
        %5040 = vmatprep.mubr.bf16.mxu0 0
        %5041 = vmatmul.mubr.bf16.gmra.mrb[0].mxu0 %v1405
        %v5042 = vpop.f32.mrb[0].mxu0
        %v5043 = vadd.f32 0.0, %v5042
        %v5044 = vpop.f32.mrb[0].mxu0
        %v5045 = vpop.f32.mrb[0].mxu0
        %v5046 = vadd.f32 0.0, %v5045
        %v5047 = vpop.f32.mrb[0].mxu0
        %5048 = vmatprep.mubr.bf16.mxu0 0
        %5049 = vmatmul.mubr.bf16.gmra.mrb[0].mxu0 %v1406
        %v5050 = vpop.f32.mrb[0].mxu0
        %v5051 = vadd.f32 0.0, %v5050
        %v5052 = vpop.f32.mrb[0].mxu0
        %v5053 = vpop.f32.mrb[0].mxu0
        %v5054 = vadd.f32 0.0, %v5053
        %v5055 = vpop.f32.mrb[0].mxu0
        %5056 = vmatprep.mubr.bf16.mxu0 0
        %5057 = vmatmul.mubr.bf16.gmra.mrb[0].mxu0 %v1407
        %v5058 = vpop.f32.mrb[0].mxu0
        %v5059 = vadd.f32 0.0, %v5058
        %v5060 = vpop.f32.mrb[0].mxu0
        %v5061 = vpop.f32.mrb[0].mxu0
        %v5062 = vadd.f32 0.0, %v5061
        %v5063 = vpop.f32.mrb[0].mxu0
        %5064 = vmatprep.mubr.bf16.mxu0 0
        %5065 = vmatmul.mubr.bf16.gmra.mrb[0].mxu0 %v1408
        %v5066 = vpop.f32.mrb[0].mxu0
        %v5067 = vadd.f32 0.0, %v5066
        %v5068 = vpop.f32.mrb[0].mxu0
        %v5069 = vpop.f32.mrb[0].mxu0
        %v5070 = vadd.f32 0.0, %v5069
        %v5071 = vpop.f32.mrb[0].mxu0
        %5072 = vmatprep.mubr.bf16.mxu0 0
        %5073 = vmatmul.mubr.bf16.gmra.mrb[0].mxu0 %v1409
        %v5074 = vpop.f32.mrb[0].mxu0
        %v5075 = vadd.f32 0.0, %v5074
        %v5076 = vpop.f32.mrb[0].mxu0
        %v5077 = vpop.f32.mrb[0].mxu0
        %v5078 = vadd.f32 0.0, %v5077
        %v5079 = vpop.f32.mrb[0].mxu0
        %5080 = vmatprep.mubr.bf16.mxu0 0
        %5081 = vmatmul.mubr.bf16.gmra.mrb[0].mxu0 %v1410
        %v5082 = vpop.f32.mrb[0].mxu0
        %v5083 = vadd.f32 0.0, %v5082
        %v5084 = vpop.f32.mrb[0].mxu0
        %v5085 = vpop.f32.mrb[0].mxu0
        %v5086 = vadd.f32 0.0, %v5085
        %v5087 = vpop.f32.mrb[0].mxu0
        %5088 = vmatprep.mubr.bf16.mxu0 0
        %5089 = vmatmul.mubr.bf16.gmra.mrb[0].mxu0 %v1411
        %v5090 = vpop.f32.mrb[0].mxu0
        %v5091 = vadd.f32 0.0, %v5090
        %v5092 = vpop.f32.mrb[0].mxu0
        %v5093 = vpop.f32.mrb[0].mxu0
        %v5094 = vadd.f32 0.0, %v5093
        %v5095 = vpop.f32.mrb[0].mxu0
        %5096 = vmatprep.mubr.bf16.mxu0 0
        %5097 = vmatmul.mubr.bf16.gmra.mrb[0].mxu0 %v1412
        %v5098 = vpop.f32.mrb[0].mxu0
        %v5099 = vadd.f32 0.0, %v5098
        %v5100 = vpop.f32.mrb[0].mxu0
        %v5101 = vpop.f32.mrb[0].mxu0
        %v5102 = vadd.f32 0.0, %v5101
        %v5103 = vpop.f32.mrb[0].mxu0
        %5104 = vmatprep.mubr.bf16.mxu0 0
        %5105 = vmatmul.mubr.bf16.gmra.mrb[0].mxu0 %v1413
        %v5106 = vpop.f32.mrb[0].mxu0
        %v5107 = vadd.f32 0.0, %v5106
        %v5108 = vpop.f32.mrb[0].mxu0
        %v5109 = vpop.f32.mrb[0].mxu0
        %v5110 = vadd.f32 0.0, %v5109
        %v5111 = vpop.f32.mrb[0].mxu0
        %5112 = vmatprep.mubr.bf16.mxu0 0
        %5113 = vmatmul.mubr.bf16.gmra.mrb[0].mxu0 %v1414
        %v5114 = vpop.f32.mrb[0].mxu0
        %v5115 = vadd.f32 0.0, %v5114
        %v5116 = vpop.f32.mrb[0].mxu0
        %v5117 = vpop.f32.mrb[0].mxu0
        %v5118 = vadd.f32 0.0, %v5117
        %v5119 = vpop.f32.mrb[0].mxu0
        %5120 = vmatprep.mubr.bf16.mxu0 0
        %5121 = vmatmul.mubr.bf16.gmra.mrb[0].mxu0 %v1415
        %v5122 = vpop.f32.mrb[0].mxu0
        %v5123 = vadd.f32 0.0, %v5122
        %v5124 = vpop.f32.mrb[0].mxu0
        %v5125 = vpop.f32.mrb[0].mxu0
        %v5126 = vadd.f32 0.0, %v5125
        %v5127 = vpop.f32.mrb[0].mxu0
        %5128 = vmatprep.mubr.bf16.mxu0 0
        %5129 = vmatmul.mubr.bf16.gmra.mrb[0].mxu0 %v1416
        %v5130 = vpop.f32.mrb[0].mxu0
        %v5131 = vadd.f32 0.0, %v5130
        %v5132 = vpop.f32.mrb[0].mxu0
        %v5133 = vpop.f32.mrb[0].mxu0
        %v5134 = vadd.f32 0.0, %v5133
        %v5135 = vpop.f32.mrb[0].mxu0
        %5136 = vmatprep.mubr.bf16.mxu0 0
        %5137 = vmatmul.mubr.bf16.gmra.mrb[0].mxu0 %v1417
        %v5138 = vpop.f32.mrb[0].mxu0
        %v5139 = vadd.f32 0.0, %v5138
        %v5140 = vpop.f32.mrb[0].mxu0
        %v5141 = vpop.f32.mrb[0].mxu0
        %v5142 = vadd.f32 0.0, %v5141
        %v5143 = vpop.f32.mrb[0].mxu0
        %5144 = vmatprep.mubr.bf16.mxu0 0
        %5145 = vmatmul.mubr.bf16.gmra.mrb[0].mxu0 %v1418
        %v5146 = vpop.f32.mrb[0].mxu0
        %v5147 = vadd.f32 0.0, %v5146
        %v5148 = vpop.f32.mrb[0].mxu0
        %v5149 = vpop.f32.mrb[0].mxu0
        %v5150 = vadd.f32 0.0, %v5149
        %v5151 = vpop.f32.mrb[0].mxu0
        %5152 = vmatprep.mubr.bf16.mxu0 0
        %5153 = vmatmul.mubr.bf16.gmra.mrb[0].mxu0 %v1419
        %v5154 = vpop.f32.mrb[0].mxu0
        %v5155 = vadd.f32 0.0, %v5154
        %v5156 = vpop.f32.mrb[0].mxu0
        %v5157 = vpop.f32.mrb[0].mxu0
        %v5158 = vadd.f32 0.0, %v5157
        %v5159 = vpop.f32.mrb[0].mxu0
        %5160 = vmatprep.mubr.bf16.mxu0 0
        %5161 = vmatmul.mubr.bf16.gmra.mrb[0].mxu0 %v1420
        %v5162 = vpop.f32.mrb[0].mxu0
        %v5163 = vadd.f32 0.0, %v5162
        %v5164 = vpop.f32.mrb[0].mxu0
        %v5165 = vpop.f32.mrb[0].mxu0
        %v5166 = vadd.f32 0.0, %v5165
        %v5167 = vpop.f32.mrb[0].mxu0
        %5168 = vmatprep.mubr.bf16.mxu0 0
        %5169 = vmatmul.mubr.bf16.gmra.mrb[0].mxu0 %v1421
        %v5170 = vpop.f32.mrb[0].mxu0
        %v5171 = vadd.f32 0.0, %v5170
        %v5172 = vpop.f32.mrb[0].mxu0
        %v5173 = vpop.f32.mrb[0].mxu0
        %v5174 = vadd.f32 0.0, %v5173
        %v5175 = vpop.f32.mrb[0].mxu0
        %5176 = vmatprep.mubr.bf16.mxu0 0
        %5177 = vmatmul.mubr.bf16.gmra.mrb[0].mxu0 %v1422
        %v5178 = vpop.f32.mrb[0].mxu0
        %v5179 = vadd.f32 0.0, %v5178
        %v5180 = vpop.f32.mrb[0].mxu0
        %v5181 = vpop.f32.mrb[0].mxu0
        %v5182 = vadd.f32 0.0, %v5181
        %v5183 = vpop.f32.mrb[0].mxu0
        %5184 = vmatprep.mubr.bf16.mxu0 0
        %5185 = vmatmul.mubr.bf16.gmra.mrb[0].mxu0 %v1423
        %v5186 = vpop.f32.mrb[0].mxu0
        %v5187 = vadd.f32 0.0, %v5186
        %v5188 = vpop.f32.mrb[0].mxu0
        %v5189 = vpop.f32.mrb[0].mxu0
        %v5190 = vadd.f32 0.0, %v5189
        %v5191 = vpop.f32.mrb[0].mxu0
        %5192 = vmatprep.mubr.bf16.mxu0 0
        %5193 = vmatmul.mubr.bf16.gmra.mrb[0].mxu0 %v1424
        %v5194 = vpop.f32.mrb[0].mxu0
        %v5195 = vadd.f32 0.0, %v5194
        %v5196 = vpop.f32.mrb[0].mxu0
        %v5197 = vpop.f32.mrb[0].mxu0
        %v5198 = vadd.f32 0.0, %v5197
        %v5199 = vpop.f32.mrb[0].mxu0
        %5200 = vmatprep.mubr.bf16.mxu0 0
        %5201 = vmatmul.mubr.bf16.gmra.mrb[0].mxu0 %v4605
        %v5202 = vpop.f32.mrb[0].mxu0
        %v5203 = vadd.f32 0.0, %v5202
        %v5204 = vpop.f32.mrb[0].mxu0
        %v5205 = vpop.f32.mrb[0].mxu0
        %v5206 = vadd.f32 0.0, %v5205
        %v5207 = vpop.f32.mrb[0].mxu0
        %5208 = vmatprep.mubr.bf16.mxu0 0
        %5209 = vmatmul.mubr.bf16.gmra.mrb[0].mxu0 %v4606
        %v5210 = vpop.f32.mrb[0].mxu0
        %v5211 = vadd.f32 0.0, %v5210
        %v5212 = vpop.f32.mrb[0].mxu0
        %v5213 = vpop.f32.mrb[0].mxu0
        %v5214 = vadd.f32 0.0, %v5213
        %v5215 = vpop.f32.mrb[0].mxu0
        %5216 = vdwg.mxu0
        %v5217 = vadd.f32 %v4459, %v4707
        %v5218 = vadd.f32 %v4460, %v4710
        %v5219 = vadd.f32 %v4461, %v4715
        %v5220 = vadd.f32 %v4462, %v4718
        %v5221 = vadd.f32 %v4463, %v4723
        %v5222 = vadd.f32 %v4464, %v4726
        %v5223 = vadd.f32 %v4465, %v4731
        %v5224 = vadd.f32 %v4466, %v4734
        %v5225 = vadd.f32 %v4467, %v4739
        %v5226 = vadd.f32 %v4468, %v4742
        %v5227 = vadd.f32 %v4469, %v4747
        %v5228 = vadd.f32 %v4470, %v4750
        %v5229 = vadd.f32 %v4471, %v4755
        %v5230 = vadd.f32 %v4472, %v4758
        %v5231 = vadd.f32 %v4473, %v4763
        %v5232 = vadd.f32 %v4474, %v4766
        %v5233 = vadd.f32 %v4475, %v4771
        %v5234 = vadd.f32 %v4476, %v4774
        %v5235 = vadd.f32 %v4477, %v4779
        %v5236 = vadd.f32 %v4478, %v4782
        %v5237 = vadd.f32 %v4479, %v4787
        %v5238 = vadd.f32 %v4480, %v4790
        %v5239 = vadd.f32 %v4481, %v4795
        %v5240 = vadd.f32 %v4482, %v4798
        %v5241 = vadd.f32 %v4483, %v4803
        %v5242 = vadd.f32 %v4484, %v4806
        %v5243 = vadd.f32 %v4485, %v4811
        %v5244 = vadd.f32 %v4486, %v4814
        %v5245 = vadd.f32 %v4487, %v4819
        %v5246 = vadd.f32 %v4488, %v4822
        %v5247 = vadd.f32 %v4489, %v4827
        %v5248 = vadd.f32 %v4490, %v4830
        %v5249 = vadd.f32 %v4491, %v4835
        %v5250 = vadd.f32 %v4492, %v4838
        %v5251 = vadd.f32 %v4493, %v4843
        %v5252 = vadd.f32 %v4494, %v4846
        %v5253 = vadd.f32 %v4495, %v4851
        %v5254 = vadd.f32 %v4496, %v4854
        %v5255 = vadd.f32 %v4497, %v4859
        %v5256 = vadd.f32 %v4498, %v4862
        %v5257 = vadd.f32 %v4499, %v4867
        %v5258 = vadd.f32 %v4500, %v4870
        %v5259 = vadd.f32 %v4501, %v4875
        %v5260 = vadd.f32 %v4502, %v4878
        %v5261 = vadd.f32 %v4503, %v4883
        %v5262 = vadd.f32 %v4504, %v4886
        %v5263 = vadd.f32 %v4505, %v4891
        %v5264 = vadd.f32 %v4506, %v4894
        %v5265 = vadd.f32 %v4507, %v4899
        %v5266 = vadd.f32 %v4508, %v4902
        %v5267 = vadd.f32 %v4509, %v4907
        %v5268 = vadd.f32 %v4510, %v4910
        %v5269 = vadd.f32 %v4511, %v4915
        %v5270 = vadd.f32 %v4512, %v4918
        %v5271 = vadd.f32 %v4513, %v4923
        %v5272 = vadd.f32 %v4514, %v4926
        %v5273 = vadd.f32 %v4515, %v4931
        %v5274 = vadd.f32 %v4516, %v4934
        %v5275 = vadd.f32 %v4517, %v4939
        %v5276 = vadd.f32 %v4518, %v4942
        %v5277 = vadd.f32 %v4519, %v4947
        %v5278 = vadd.f32 %v4520, %v4950
        %v5279 = vadd.f32 %v4521, %v4955
        %v5280 = vadd.f32 %v4522, %v4958
        %v5281 = vadd.f32 %v4523, %v4963
        %v5282 = vadd.f32 %v4524, %v4966
        %v5283 = vadd.f32 %v4525, %v4971
        %v5284 = vadd.f32 %v4526, %v4974
        %v5285 = vadd.f32 %v4527, %v4979
        %v5286 = vadd.f32 %v4528, %v4982
        %v5287 = vadd.f32 %v4529, %v4987
        %v5288 = vadd.f32 %v4530, %v4990
        %v5289 = vadd.f32 %v4531, %v4995
        %v5290 = vadd.f32 %v4532, %v4998
        %v5291 = vadd.f32 %v4533, %v5003
        %v5292 = vadd.f32 %v4534, %v5006
        %v5293 = vadd.f32 %v4535, %v5011
        %v5294 = vadd.f32 %v4536, %v5014
        %v5295 = vadd.f32 %v4537, %v5019
        %v5296 = vadd.f32 %v4538, %v5022
        %v5297 = vadd.f32 %v4539, %v5027
        %v5298 = vadd.f32 %v4540, %v5030
        %v5299 = vadd.f32 %v4541, %v5035
        %v5300 = vadd.f32 %v4542, %v5038
        %v5301 = vadd.f32 %v4543, %v5043
        %v5302 = vadd.f32 %v4544, %v5046
        %v5303 = vadd.f32 %v4545, %v5051
        %v5304 = vadd.f32 %v4546, %v5054
        %v5305 = vadd.f32 %v4547, %v5059
        %v5306 = vadd.f32 %v4548, %v5062
        %v5307 = vadd.f32 %v4549, %v5067
        %v5308 = vadd.f32 %v4550, %v5070
        %v5309 = vadd.f32 %v4551, %v5075
        %v5310 = vadd.f32 %v4552, %v5078
        %v5311 = vadd.f32 %v4553, %v5083
        %v5312 = vadd.f32 %v4554, %v5086
        %v5313 = vadd.f32 %v4555, %v5091
        %v5314 = vadd.f32 %v4556, %v5094
        %v5315 = vadd.f32 %v4557, %v5099
        %v5316 = vadd.f32 %v4558, %v5102
        %v5317 = vadd.f32 %v4559, %v5107
        %v5318 = vadd.f32 %v4560, %v5110
        %v5319 = vadd.f32 %v4561, %v5115
        %v5320 = vadd.f32 %v4562, %v5118
        %v5321 = vadd.f32 %v4563, %v5123
        %v5322 = vadd.f32 %v4564, %v5126
        %v5323 = vadd.f32 %v4565, %v5131
        %v5324 = vadd.f32 %v4566, %v5134
        %v5325 = vadd.f32 %v4567, %v5139
        %v5326 = vadd.f32 %v4568, %v5142
        %v5327 = vadd.f32 %v4569, %v5147
        %v5328 = vadd.f32 %v4570, %v5150
        %v5329 = vadd.f32 %v4571, %v5155
        %v5330 = vadd.f32 %v4572, %v5158
        %v5331 = vadd.f32 %v4573, %v5163
        %v5332 = vadd.f32 %v4574, %v5166
        %v5333 = vadd.f32 %v4575, %v5171
        %v5334 = vadd.f32 %v4576, %v5174
        %v5335 = vadd.f32 %v4577, %v5179
        %v5336 = vadd.f32 %v4578, %v5182
        %v5337 = vadd.f32 %v4579, %v5187
        %v5338 = vadd.f32 %v4580, %v5190
        %v5339 = vadd.f32 %v4581, %v5195
        %v5340 = vadd.f32 %v4582, %v5198
        %v5341 = vadd.f32 %v4583, %v5203
        %v5342 = vadd.f32 %v4584, %v5206
        %v5343 = vadd.f32 %v4585, %v5211
        %v5344 = vadd.f32 %v4586, %v5214
        %v5345 = vrot.slane %v694, 2
        %v5346 = vrot.slane %v695, 2
        %v5347 = vsel %vm2628, %v5345, %v5346
        %v5348 = vrot.slane %v696, 2
        %v5349 = vsel %vm2628, %v5346, %v5348
        %v5350 = vrot.slane %v697, 2
        %v5351 = vsel %vm2628, %v5348, %v5350
        %v5352 = vrot.slane %v698, 2
        %v5353 = vsel %vm2628, %v5350, %v5352
        %v5358 = vpack.c.bf16 %v5349, %v5347
        %v5359 = vpack.c.bf16 %v5353, %v5351
        %s5360 = scalar_lea.vmem [#allocation5], 320
        %v5361 = vld [vmem:[%s5360] sm:$0xf]
        %v5362 = vld [vmem:[%s5360 + $0x4] sm:$0xf]
        %v5363 = vld [vmem:[%s5360 + $0x8] sm:$0xf]
        %v5364 = vld [vmem:[%s5360 + $0xc] sm:$0xf]
        %v5365 = vld [vmem:[%s5360 + $0x10] sm:$0xf]
        %v5366 = vld [vmem:[%s5360 + $0x14] sm:$0xf]
        %v5367 = vld [vmem:[%s5360 + $0x18] sm:$0xf]
        %v5368 = vld [vmem:[%s5360 + $0x1c] sm:$0xf]
        %v5369 = vld [vmem:[%s5360 + $0x20] sm:$0xf]
        %v5370 = vld [vmem:[%s5360 + $0x24] sm:$0xf]
        %v5371 = vld [vmem:[%s5360 + $0x28] sm:$0xf]
        %v5372 = vld [vmem:[%s5360 + $0x2c] sm:$0xf]
        %v5373 = vld [vmem:[%s5360 + $0x30] sm:$0xf]
        %v5374 = vld [vmem:[%s5360 + $0x34] sm:$0xf]
        %v5375 = vld [vmem:[%s5360 + $0x38] sm:$0xf]
        %v5376 = vld [vmem:[%s5360 + $0x3c] sm:$0xf]
        %v5393 = vunpack.c.l.b16 %v5361
        %v5394 = vunpack.c.l.b16 %v5362
        %v5395 = vunpack.c.l.b16 %v5363
        %v5396 = vunpack.c.l.b16 %v5364
        %v5397 = vunpack.c.l.b16 %v5365
        %v5398 = vunpack.c.l.b16 %v5366
        %v5399 = vunpack.c.l.b16 %v5367
        %v5400 = vunpack.c.l.b16 %v5368
        %v5401 = vunpack.c.l.b16 %v5369
        %v5402 = vunpack.c.l.b16 %v5370
        %v5403 = vunpack.c.l.b16 %v5371
        %v5404 = vunpack.c.l.b16 %v5372
        %v5405 = vunpack.c.l.b16 %v5373
        %v5406 = vunpack.c.l.b16 %v5374
        %v5407 = vunpack.c.l.b16 %v5375
        %v5408 = vunpack.c.l.b16 %v5376
        %v5409 = vpack.c.b16 %v5394, %v5393
        %v5410 = vpack.c.b16 %v5396, %v5395
        %v5411 = vpack.c.b16 %v5398, %v5397
        %v5412 = vpack.c.b16 %v5400, %v5399
        %v5413 = vpack.c.b16 %v5402, %v5401
        %v5414 = vpack.c.b16 %v5404, %v5403
        %v5415 = vpack.c.b16 %v5406, %v5405
        %v5416 = vpack.c.b16 %v5408, %v5407
        %5425 = vmatprep.subr.bf16.mxu0 0
        %5426 = vmatpush1.bf16.msra.mxu0 %v5409
        %5427 = vmatprep.subr.bf16.mxu0 0
        %5428 = vmatpush1.bf16.msra.mxu0 %v5410
        %5429 = vmatprep.subr.bf16.mxu0 0
        %5430 = vmatpush1.bf16.msra.mxu0 %v5411
        %5431 = vmatprep.subr.bf16.mxu0 0
        %5432 = vmatpush1.bf16.msra.mxu0 %v5412
        %5433 = vmatprep.subr.bf16.mxu0 0
        %5434 = vmatpush1.bf16.msra.mxu0 %v5413
        %5435 = vmatprep.subr.bf16.mxu0 0
        %5436 = vmatpush1.bf16.msra.mxu0 %v5414
        %5437 = vmatprep.subr.bf16.mxu0 0
        %5438 = vmatpush1.bf16.msra.mxu0 %v5415
        %5439 = vmatprep.subr.bf16.mxu0 0
        %5440 = vmatpush1.bf16.msra.mxu0 %v5416
        %5441 = vmatprep.subr.bf16.mxu0 0
        %5442 = vmatpush1.bf16.msra.mxu0 0
        %5443 = vmatprep.subr.bf16.mxu0 0
        %5444 = vmatpush1.bf16.msra.mxu0 0
        %5445 = vmatprep.subr.bf16.mxu0 0
        %5446 = vmatpush1.bf16.msra.mxu0 0
        %5447 = vmatprep.subr.bf16.mxu0 0
        %5448 = vmatpush1.bf16.msra.mxu0 0
        %5449 = vmatprep.subr.bf16.mxu0 0
        %5450 = vmatpush1.bf16.msra.mxu0 0
        %5451 = vmatprep.subr.bf16.mxu0 0
        %5452 = vmatpush1.bf16.msra.mxu0 0
        %5453 = vmatprep.subr.bf16.mxu0 0
        %5454 = vmatpush1.bf16.msra.mxu0 0
        %5455 = vmatprep.subr.bf16.mxu0 0
        %5456 = vmatpush1.bf16.msra.mxu0 0
        %5457 = vmatprep.mubr.bf16.mxu0 0
        %5458 = vmatmul.mubr.bf16.gmra.mrb[0].mxu0 %v3047
        %v5459 = vpop.f32.mrb[0].mxu0
        %v5460 = vadd.f32 0.0, %v5459
        %v5461 = vpop.f32.mrb[0].mxu0
        %v5462 = vpop.f32.mrb[0].mxu0
        %v5463 = vadd.f32 0.0, %v5462
        %v5464 = vpop.f32.mrb[0].mxu0
        %5465 = vmatprep.mubr.bf16.mxu0 0
        %5466 = vmatmul.mubr.bf16.gmra.mrb[0].mxu0 %v3048
        %v5467 = vpop.f32.mrb[0].mxu0
        %v5468 = vadd.f32 0.0, %v5467
        %v5469 = vpop.f32.mrb[0].mxu0
        %v5470 = vpop.f32.mrb[0].mxu0
        %v5471 = vadd.f32 0.0, %v5470
        %v5472 = vpop.f32.mrb[0].mxu0
        %5473 = vmatprep.mubr.bf16.mxu0 0
        %5474 = vmatmul.mubr.bf16.gmra.mrb[0].mxu0 %v3049
        %v5475 = vpop.f32.mrb[0].mxu0
        %v5476 = vadd.f32 0.0, %v5475
        %v5477 = vpop.f32.mrb[0].mxu0
        %v5478 = vpop.f32.mrb[0].mxu0
        %v5479 = vadd.f32 0.0, %v5478
        %v5480 = vpop.f32.mrb[0].mxu0
        %5481 = vmatprep.mubr.bf16.mxu0 0
        %5482 = vmatmul.mubr.bf16.gmra.mrb[0].mxu0 %v3050
        %v5483 = vpop.f32.mrb[0].mxu0
        %v5484 = vadd.f32 0.0, %v5483
        %v5485 = vpop.f32.mrb[0].mxu0
        %v5486 = vpop.f32.mrb[0].mxu0
        %v5487 = vadd.f32 0.0, %v5486
        %v5488 = vpop.f32.mrb[0].mxu0
        %5489 = vmatprep.mubr.bf16.mxu0 0
        %5490 = vmatmul.mubr.bf16.gmra.mrb[0].mxu0 %v3051
        %v5491 = vpop.f32.mrb[0].mxu0
        %v5492 = vadd.f32 0.0, %v5491
        %v5493 = vpop.f32.mrb[0].mxu0
        %v5494 = vpop.f32.mrb[0].mxu0
        %v5495 = vadd.f32 0.0, %v5494
        %v5496 = vpop.f32.mrb[0].mxu0
        %5497 = vmatprep.mubr.bf16.mxu0 0
        %5498 = vmatmul.mubr.bf16.gmra.mrb[0].mxu0 %v3052
        %v5499 = vpop.f32.mrb[0].mxu0
        %v5500 = vadd.f32 0.0, %v5499
        %v5501 = vpop.f32.mrb[0].mxu0
        %v5502 = vpop.f32.mrb[0].mxu0
        %v5503 = vadd.f32 0.0, %v5502
        %v5504 = vpop.f32.mrb[0].mxu0
        %5505 = vmatprep.mubr.bf16.mxu0 0
        %5506 = vmatmul.mubr.bf16.gmra.mrb[0].mxu0 %v3053
        %v5507 = vpop.f32.mrb[0].mxu0
        %v5508 = vadd.f32 0.0, %v5507
        %v5509 = vpop.f32.mrb[0].mxu0
        %v5510 = vpop.f32.mrb[0].mxu0
        %v5511 = vadd.f32 0.0, %v5510
        %v5512 = vpop.f32.mrb[0].mxu0
        %5513 = vmatprep.mubr.bf16.mxu0 0
        %5514 = vmatmul.mubr.bf16.gmra.mrb[0].mxu0 %v3054
        %v5515 = vpop.f32.mrb[0].mxu0
        %v5516 = vadd.f32 0.0, %v5515
        %v5517 = vpop.f32.mrb[0].mxu0
        %v5518 = vpop.f32.mrb[0].mxu0
        %v5519 = vadd.f32 0.0, %v5518
        %v5520 = vpop.f32.mrb[0].mxu0
        %5521 = vmatprep.mubr.bf16.mxu0 0
        %5522 = vmatmul.mubr.bf16.gmra.mrb[0].mxu0 %v3055
        %v5523 = vpop.f32.mrb[0].mxu0
        %v5524 = vadd.f32 0.0, %v5523
        %v5525 = vpop.f32.mrb[0].mxu0
        %v5526 = vpop.f32.mrb[0].mxu0
        %v5527 = vadd.f32 0.0, %v5526
        %v5528 = vpop.f32.mrb[0].mxu0
        %5529 = vmatprep.mubr.bf16.mxu0 0
        %5530 = vmatmul.mubr.bf16.gmra.mrb[0].mxu0 %v3056
        %v5531 = vpop.f32.mrb[0].mxu0
        %v5532 = vadd.f32 0.0, %v5531
        %v5533 = vpop.f32.mrb[0].mxu0
        %v5534 = vpop.f32.mrb[0].mxu0
        %v5535 = vadd.f32 0.0, %v5534
        %v5536 = vpop.f32.mrb[0].mxu0
        %5537 = vmatprep.mubr.bf16.mxu0 0
        %5538 = vmatmul.mubr.bf16.gmra.mrb[0].mxu0 %v3057
        %v5539 = vpop.f32.mrb[0].mxu0
        %v5540 = vadd.f32 0.0, %v5539
        %v5541 = vpop.f32.mrb[0].mxu0
        %v5542 = vpop.f32.mrb[0].mxu0
        %v5543 = vadd.f32 0.0, %v5542
        %v5544 = vpop.f32.mrb[0].mxu0
        %5545 = vmatprep.mubr.bf16.mxu0 0
        %5546 = vmatmul.mubr.bf16.gmra.mrb[0].mxu0 %v3058
        %v5547 = vpop.f32.mrb[0].mxu0
        %v5548 = vadd.f32 0.0, %v5547
        %v5549 = vpop.f32.mrb[0].mxu0
        %v5550 = vpop.f32.mrb[0].mxu0
        %v5551 = vadd.f32 0.0, %v5550
        %v5552 = vpop.f32.mrb[0].mxu0
        %5553 = vmatprep.mubr.bf16.mxu0 0
        %5554 = vmatmul.mubr.bf16.gmra.mrb[0].mxu0 %v3059
        %v5555 = vpop.f32.mrb[0].mxu0
        %v5556 = vadd.f32 0.0, %v5555
        %v5557 = vpop.f32.mrb[0].mxu0
        %v5558 = vpop.f32.mrb[0].mxu0
        %v5559 = vadd.f32 0.0, %v5558
        %v5560 = vpop.f32.mrb[0].mxu0
        %5561 = vmatprep.mubr.bf16.mxu0 0
        %5562 = vmatmul.mubr.bf16.gmra.mrb[0].mxu0 %v3060
        %v5563 = vpop.f32.mrb[0].mxu0
        %v5564 = vadd.f32 0.0, %v5563
        %v5565 = vpop.f32.mrb[0].mxu0
        %v5566 = vpop.f32.mrb[0].mxu0
        %v5567 = vadd.f32 0.0, %v5566
        %v5568 = vpop.f32.mrb[0].mxu0
        %5569 = vmatprep.mubr.bf16.mxu0 0
        %5570 = vmatmul.mubr.bf16.gmra.mrb[0].mxu0 %v3061
        %v5571 = vpop.f32.mrb[0].mxu0
        %v5572 = vadd.f32 0.0, %v5571
        %v5573 = vpop.f32.mrb[0].mxu0
        %v5574 = vpop.f32.mrb[0].mxu0
        %v5575 = vadd.f32 0.0, %v5574
        %v5576 = vpop.f32.mrb[0].mxu0
        %5577 = vmatprep.mubr.bf16.mxu0 0
        %5578 = vmatmul.mubr.bf16.gmra.mrb[0].mxu0 %v3062
        %v5579 = vpop.f32.mrb[0].mxu0
        %v5580 = vadd.f32 0.0, %v5579
        %v5581 = vpop.f32.mrb[0].mxu0
        %v5582 = vpop.f32.mrb[0].mxu0
        %v5583 = vadd.f32 0.0, %v5582
        %v5584 = vpop.f32.mrb[0].mxu0
        %5585 = vmatprep.mubr.bf16.mxu0 0
        %5586 = vmatmul.mubr.bf16.gmra.mrb[0].mxu0 %v3063
        %v5587 = vpop.f32.mrb[0].mxu0
        %v5588 = vadd.f32 0.0, %v5587
        %v5589 = vpop.f32.mrb[0].mxu0
        %v5590 = vpop.f32.mrb[0].mxu0
        %v5591 = vadd.f32 0.0, %v5590
        %v5592 = vpop.f32.mrb[0].mxu0
        %5593 = vmatprep.mubr.bf16.mxu0 0
        %5594 = vmatmul.mubr.bf16.gmra.mrb[0].mxu0 %v3064
        %v5595 = vpop.f32.mrb[0].mxu0
        %v5596 = vadd.f32 0.0, %v5595
        %v5597 = vpop.f32.mrb[0].mxu0
        %v5598 = vpop.f32.mrb[0].mxu0
        %v5599 = vadd.f32 0.0, %v5598
        %v5600 = vpop.f32.mrb[0].mxu0
        %5601 = vmatprep.mubr.bf16.mxu0 0
        %5602 = vmatmul.mubr.bf16.gmra.mrb[0].mxu0 %v3065
        %v5603 = vpop.f32.mrb[0].mxu0
        %v5604 = vadd.f32 0.0, %v5603
        %v5605 = vpop.f32.mrb[0].mxu0
        %v5606 = vpop.f32.mrb[0].mxu0
        %v5607 = vadd.f32 0.0, %v5606
        %v5608 = vpop.f32.mrb[0].mxu0
        %5609 = vmatprep.mubr.bf16.mxu0 0
        %5610 = vmatmul.mubr.bf16.gmra.mrb[0].mxu0 %v3066
        %v5611 = vpop.f32.mrb[0].mxu0
        %v5612 = vadd.f32 0.0, %v5611
        %v5613 = vpop.f32.mrb[0].mxu0
        %v5614 = vpop.f32.mrb[0].mxu0
        %v5615 = vadd.f32 0.0, %v5614
        %v5616 = vpop.f32.mrb[0].mxu0
        %5617 = vmatprep.mubr.bf16.mxu0 0
        %5618 = vmatmul.mubr.bf16.gmra.mrb[0].mxu0 %v3067
        %v5619 = vpop.f32.mrb[0].mxu0
        %v5620 = vadd.f32 0.0, %v5619
        %v5621 = vpop.f32.mrb[0].mxu0
        %v5622 = vpop.f32.mrb[0].mxu0
        %v5623 = vadd.f32 0.0, %v5622
        %v5624 = vpop.f32.mrb[0].mxu0
        %5625 = vmatprep.mubr.bf16.mxu0 0
        %5626 = vmatmul.mubr.bf16.gmra.mrb[0].mxu0 %v3068
        %v5627 = vpop.f32.mrb[0].mxu0
        %v5628 = vadd.f32 0.0, %v5627
        %v5629 = vpop.f32.mrb[0].mxu0
        %v5630 = vpop.f32.mrb[0].mxu0
        %v5631 = vadd.f32 0.0, %v5630
        %v5632 = vpop.f32.mrb[0].mxu0
        %5633 = vmatprep.mubr.bf16.mxu0 0
        %5634 = vmatmul.mubr.bf16.gmra.mrb[0].mxu0 %v3069
        %v5635 = vpop.f32.mrb[0].mxu0
        %v5636 = vadd.f32 0.0, %v5635
        %v5637 = vpop.f32.mrb[0].mxu0
        %v5638 = vpop.f32.mrb[0].mxu0
        %v5639 = vadd.f32 0.0, %v5638
        %v5640 = vpop.f32.mrb[0].mxu0
        %5641 = vmatprep.mubr.bf16.mxu0 0
        %5642 = vmatmul.mubr.bf16.gmra.mrb[0].mxu0 %v3070
        %v5643 = vpop.f32.mrb[0].mxu0
        %v5644 = vadd.f32 0.0, %v5643
        %v5645 = vpop.f32.mrb[0].mxu0
        %v5646 = vpop.f32.mrb[0].mxu0
        %v5647 = vadd.f32 0.0, %v5646
        %v5648 = vpop.f32.mrb[0].mxu0
        %5649 = vmatprep.mubr.bf16.mxu0 0
        %5650 = vmatmul.mubr.bf16.gmra.mrb[0].mxu0 %v3071
        %v5651 = vpop.f32.mrb[0].mxu0
        %v5652 = vadd.f32 0.0, %v5651
        %v5653 = vpop.f32.mrb[0].mxu0
        %v5654 = vpop.f32.mrb[0].mxu0
        %v5655 = vadd.f32 0.0, %v5654
        %v5656 = vpop.f32.mrb[0].mxu0
        %5657 = vmatprep.mubr.bf16.mxu0 0
        %5658 = vmatmul.mubr.bf16.gmra.mrb[0].mxu0 %v3072
        %v5659 = vpop.f32.mrb[0].mxu0
        %v5660 = vadd.f32 0.0, %v5659
        %v5661 = vpop.f32.mrb[0].mxu0
        %v5662 = vpop.f32.mrb[0].mxu0
        %v5663 = vadd.f32 0.0, %v5662
        %v5664 = vpop.f32.mrb[0].mxu0
        %5665 = vmatprep.mubr.bf16.mxu0 0
        %5666 = vmatmul.mubr.bf16.gmra.mrb[0].mxu0 %v3073
        %v5667 = vpop.f32.mrb[0].mxu0
        %v5668 = vadd.f32 0.0, %v5667
        %v5669 = vpop.f32.mrb[0].mxu0
        %v5670 = vpop.f32.mrb[0].mxu0
        %v5671 = vadd.f32 0.0, %v5670
        %v5672 = vpop.f32.mrb[0].mxu0
        %5673 = vmatprep.mubr.bf16.mxu0 0
        %5674 = vmatmul.mubr.bf16.gmra.mrb[0].mxu0 %v3074
        %v5675 = vpop.f32.mrb[0].mxu0
        %v5676 = vadd.f32 0.0, %v5675
        %v5677 = vpop.f32.mrb[0].mxu0
        %v5678 = vpop.f32.mrb[0].mxu0
        %v5679 = vadd.f32 0.0, %v5678
        %v5680 = vpop.f32.mrb[0].mxu0
        %5681 = vmatprep.mubr.bf16.mxu0 0
        %5682 = vmatmul.mubr.bf16.gmra.mrb[0].mxu0 %v3075
        %v5683 = vpop.f32.mrb[0].mxu0
        %v5684 = vadd.f32 0.0, %v5683
        %v5685 = vpop.f32.mrb[0].mxu0
        %v5686 = vpop.f32.mrb[0].mxu0
        %v5687 = vadd.f32 0.0, %v5686
        %v5688 = vpop.f32.mrb[0].mxu0
        %5689 = vmatprep.mubr.bf16.mxu0 0
        %5690 = vmatmul.mubr.bf16.gmra.mrb[0].mxu0 %v3076
        %v5691 = vpop.f32.mrb[0].mxu0
        %v5692 = vadd.f32 0.0, %v5691
        %v5693 = vpop.f32.mrb[0].mxu0
        %v5694 = vpop.f32.mrb[0].mxu0
        %v5695 = vadd.f32 0.0, %v5694
        %v5696 = vpop.f32.mrb[0].mxu0
        %5697 = vmatprep.mubr.bf16.mxu0 0
        %5698 = vmatmul.mubr.bf16.gmra.mrb[0].mxu0 %v3077
        %v5699 = vpop.f32.mrb[0].mxu0
        %v5700 = vadd.f32 0.0, %v5699
        %v5701 = vpop.f32.mrb[0].mxu0
        %v5702 = vpop.f32.mrb[0].mxu0
        %v5703 = vadd.f32 0.0, %v5702
        %v5704 = vpop.f32.mrb[0].mxu0
        %5705 = vmatprep.mubr.bf16.mxu0 0
        %5706 = vmatmul.mubr.bf16.gmra.mrb[0].mxu0 %v3078
        %v5707 = vpop.f32.mrb[0].mxu0
        %v5708 = vadd.f32 0.0, %v5707
        %v5709 = vpop.f32.mrb[0].mxu0
        %v5710 = vpop.f32.mrb[0].mxu0
        %v5711 = vadd.f32 0.0, %v5710
        %v5712 = vpop.f32.mrb[0].mxu0
        %5713 = vmatprep.mubr.bf16.mxu0 0
        %5714 = vmatmul.mubr.bf16.gmra.mrb[0].mxu0 %v3079
        %v5715 = vpop.f32.mrb[0].mxu0
        %v5716 = vadd.f32 0.0, %v5715
        %v5717 = vpop.f32.mrb[0].mxu0
        %v5718 = vpop.f32.mrb[0].mxu0
        %v5719 = vadd.f32 0.0, %v5718
        %v5720 = vpop.f32.mrb[0].mxu0
        %5721 = vmatprep.mubr.bf16.mxu0 0
        %5722 = vmatmul.mubr.bf16.gmra.mrb[0].mxu0 %v3080
        %v5723 = vpop.f32.mrb[0].mxu0
        %v5724 = vadd.f32 0.0, %v5723
        %v5725 = vpop.f32.mrb[0].mxu0
        %v5726 = vpop.f32.mrb[0].mxu0
        %v5727 = vadd.f32 0.0, %v5726
        %v5728 = vpop.f32.mrb[0].mxu0
        %5729 = vmatprep.mubr.bf16.mxu0 0
        %5730 = vmatmul.mubr.bf16.gmra.mrb[0].mxu0 %v3081
        %v5731 = vpop.f32.mrb[0].mxu0
        %v5732 = vadd.f32 0.0, %v5731
        %v5733 = vpop.f32.mrb[0].mxu0
        %v5734 = vpop.f32.mrb[0].mxu0
        %v5735 = vadd.f32 0.0, %v5734
        %v5736 = vpop.f32.mrb[0].mxu0
        %5737 = vmatprep.mubr.bf16.mxu0 0
        %5738 = vmatmul.mubr.bf16.gmra.mrb[0].mxu0 %v3082
        %v5739 = vpop.f32.mrb[0].mxu0
        %v5740 = vadd.f32 0.0, %v5739
        %v5741 = vpop.f32.mrb[0].mxu0
        %v5742 = vpop.f32.mrb[0].mxu0
        %v5743 = vadd.f32 0.0, %v5742
        %v5744 = vpop.f32.mrb[0].mxu0
        %5745 = vmatprep.mubr.bf16.mxu0 0
        %5746 = vmatmul.mubr.bf16.gmra.mrb[0].mxu0 %v3083
        %v5747 = vpop.f32.mrb[0].mxu0
        %v5748 = vadd.f32 0.0, %v5747
        %v5749 = vpop.f32.mrb[0].mxu0
        %v5750 = vpop.f32.mrb[0].mxu0
        %v5751 = vadd.f32 0.0, %v5750
        %v5752 = vpop.f32.mrb[0].mxu0
        %5753 = vmatprep.mubr.bf16.mxu0 0
        %5754 = vmatmul.mubr.bf16.gmra.mrb[0].mxu0 %v3084
        %v5755 = vpop.f32.mrb[0].mxu0
        %v5756 = vadd.f32 0.0, %v5755
        %v5757 = vpop.f32.mrb[0].mxu0
        %v5758 = vpop.f32.mrb[0].mxu0
        %v5759 = vadd.f32 0.0, %v5758
        %v5760 = vpop.f32.mrb[0].mxu0
        %5761 = vmatprep.mubr.bf16.mxu0 0
        %5762 = vmatmul.mubr.bf16.gmra.mrb[0].mxu0 %v3085
        %v5763 = vpop.f32.mrb[0].mxu0
        %v5764 = vadd.f32 0.0, %v5763
        %v5765 = vpop.f32.mrb[0].mxu0
        %v5766 = vpop.f32.mrb[0].mxu0
        %v5767 = vadd.f32 0.0, %v5766
        %v5768 = vpop.f32.mrb[0].mxu0
        %5769 = vmatprep.mubr.bf16.mxu0 0
        %5770 = vmatmul.mubr.bf16.gmra.mrb[0].mxu0 %v3086
        %v5771 = vpop.f32.mrb[0].mxu0
        %v5772 = vadd.f32 0.0, %v5771
        %v5773 = vpop.f32.mrb[0].mxu0
        %v5774 = vpop.f32.mrb[0].mxu0
        %v5775 = vadd.f32 0.0, %v5774
        %v5776 = vpop.f32.mrb[0].mxu0
        %5777 = vmatprep.mubr.bf16.mxu0 0
        %5778 = vmatmul.mubr.bf16.gmra.mrb[0].mxu0 %v3087
        %v5779 = vpop.f32.mrb[0].mxu0
        %v5780 = vadd.f32 0.0, %v5779
        %v5781 = vpop.f32.mrb[0].mxu0
        %v5782 = vpop.f32.mrb[0].mxu0
        %v5783 = vadd.f32 0.0, %v5782
        %v5784 = vpop.f32.mrb[0].mxu0
        %5785 = vmatprep.mubr.bf16.mxu0 0
        %5786 = vmatmul.mubr.bf16.gmra.mrb[0].mxu0 %v3088
        %v5787 = vpop.f32.mrb[0].mxu0
        %v5788 = vadd.f32 0.0, %v5787
        %v5789 = vpop.f32.mrb[0].mxu0
        %v5790 = vpop.f32.mrb[0].mxu0
        %v5791 = vadd.f32 0.0, %v5790
        %v5792 = vpop.f32.mrb[0].mxu0
        %5793 = vmatprep.mubr.bf16.mxu0 0
        %5794 = vmatmul.mubr.bf16.gmra.mrb[0].mxu0 %v3089
        %v5795 = vpop.f32.mrb[0].mxu0
        %v5796 = vadd.f32 0.0, %v5795
        %v5797 = vpop.f32.mrb[0].mxu0
        %v5798 = vpop.f32.mrb[0].mxu0
        %v5799 = vadd.f32 0.0, %v5798
        %v5800 = vpop.f32.mrb[0].mxu0
        %5801 = vmatprep.mubr.bf16.mxu0 0
        %5802 = vmatmul.mubr.bf16.gmra.mrb[0].mxu0 %v3090
        %v5803 = vpop.f32.mrb[0].mxu0
        %v5804 = vadd.f32 0.0, %v5803
        %v5805 = vpop.f32.mrb[0].mxu0
        %v5806 = vpop.f32.mrb[0].mxu0
        %v5807 = vadd.f32 0.0, %v5806
        %v5808 = vpop.f32.mrb[0].mxu0
        %5809 = vmatprep.mubr.bf16.mxu0 0
        %5810 = vmatmul.mubr.bf16.gmra.mrb[0].mxu0 %v3091
        %v5811 = vpop.f32.mrb[0].mxu0
        %v5812 = vadd.f32 0.0, %v5811
        %v5813 = vpop.f32.mrb[0].mxu0
        %v5814 = vpop.f32.mrb[0].mxu0
        %v5815 = vadd.f32 0.0, %v5814
        %v5816 = vpop.f32.mrb[0].mxu0
        %5817 = vmatprep.mubr.bf16.mxu0 0
        %5818 = vmatmul.mubr.bf16.gmra.mrb[0].mxu0 %v3092
        %v5819 = vpop.f32.mrb[0].mxu0
        %v5820 = vadd.f32 0.0, %v5819
        %v5821 = vpop.f32.mrb[0].mxu0
        %v5822 = vpop.f32.mrb[0].mxu0
        %v5823 = vadd.f32 0.0, %v5822
        %v5824 = vpop.f32.mrb[0].mxu0
        %5825 = vmatprep.mubr.bf16.mxu0 0
        %5826 = vmatmul.mubr.bf16.gmra.mrb[0].mxu0 %v3093
        %v5827 = vpop.f32.mrb[0].mxu0
        %v5828 = vadd.f32 0.0, %v5827
        %v5829 = vpop.f32.mrb[0].mxu0
        %v5830 = vpop.f32.mrb[0].mxu0
        %v5831 = vadd.f32 0.0, %v5830
        %v5832 = vpop.f32.mrb[0].mxu0
        %5833 = vmatprep.mubr.bf16.mxu0 0
        %5834 = vmatmul.mubr.bf16.gmra.mrb[0].mxu0 %v3094
        %v5835 = vpop.f32.mrb[0].mxu0
        %v5836 = vadd.f32 0.0, %v5835
        %v5837 = vpop.f32.mrb[0].mxu0
        %v5838 = vpop.f32.mrb[0].mxu0
        %v5839 = vadd.f32 0.0, %v5838
        %v5840 = vpop.f32.mrb[0].mxu0
        %5841 = vmatprep.mubr.bf16.mxu0 0
        %5842 = vmatmul.mubr.bf16.gmra.mrb[0].mxu0 %v3095
        %v5843 = vpop.f32.mrb[0].mxu0
        %v5844 = vadd.f32 0.0, %v5843
        %v5845 = vpop.f32.mrb[0].mxu0
        %v5846 = vpop.f32.mrb[0].mxu0
        %v5847 = vadd.f32 0.0, %v5846
        %v5848 = vpop.f32.mrb[0].mxu0
        %5849 = vmatprep.mubr.bf16.mxu0 0
        %5850 = vmatmul.mubr.bf16.gmra.mrb[0].mxu0 %v3096
        %v5851 = vpop.f32.mrb[0].mxu0
        %v5852 = vadd.f32 0.0, %v5851
        %v5853 = vpop.f32.mrb[0].mxu0
        %v5854 = vpop.f32.mrb[0].mxu0
        %v5855 = vadd.f32 0.0, %v5854
        %v5856 = vpop.f32.mrb[0].mxu0
        %5857 = vmatprep.mubr.bf16.mxu0 0
        %5858 = vmatmul.mubr.bf16.gmra.mrb[0].mxu0 %v3097
        %v5859 = vpop.f32.mrb[0].mxu0
        %v5860 = vadd.f32 0.0, %v5859
        %v5861 = vpop.f32.mrb[0].mxu0
        %v5862 = vpop.f32.mrb[0].mxu0
        %v5863 = vadd.f32 0.0, %v5862
        %v5864 = vpop.f32.mrb[0].mxu0
        %5865 = vmatprep.mubr.bf16.mxu0 0
        %5866 = vmatmul.mubr.bf16.gmra.mrb[0].mxu0 %v3098
        %v5867 = vpop.f32.mrb[0].mxu0
        %v5868 = vadd.f32 0.0, %v5867
        %v5869 = vpop.f32.mrb[0].mxu0
        %v5870 = vpop.f32.mrb[0].mxu0
        %v5871 = vadd.f32 0.0, %v5870
        %v5872 = vpop.f32.mrb[0].mxu0
        %5873 = vmatprep.mubr.bf16.mxu0 0
        %5874 = vmatmul.mubr.bf16.gmra.mrb[0].mxu0 %v3099
        %v5875 = vpop.f32.mrb[0].mxu0
        %v5876 = vadd.f32 0.0, %v5875
        %v5877 = vpop.f32.mrb[0].mxu0
        %v5878 = vpop.f32.mrb[0].mxu0
        %v5879 = vadd.f32 0.0, %v5878
        %v5880 = vpop.f32.mrb[0].mxu0
        %5881 = vmatprep.mubr.bf16.mxu0 0
        %5882 = vmatmul.mubr.bf16.gmra.mrb[0].mxu0 %v3100
        %v5883 = vpop.f32.mrb[0].mxu0
        %v5884 = vadd.f32 0.0, %v5883
        %v5885 = vpop.f32.mrb[0].mxu0
        %v5886 = vpop.f32.mrb[0].mxu0
        %v5887 = vadd.f32 0.0, %v5886
        %v5888 = vpop.f32.mrb[0].mxu0
        %5889 = vmatprep.mubr.bf16.mxu0 0
        %5890 = vmatmul.mubr.bf16.gmra.mrb[0].mxu0 %v3101
        %v5891 = vpop.f32.mrb[0].mxu0
        %v5892 = vadd.f32 0.0, %v5891
        %v5893 = vpop.f32.mrb[0].mxu0
        %v5894 = vpop.f32.mrb[0].mxu0
        %v5895 = vadd.f32 0.0, %v5894
        %v5896 = vpop.f32.mrb[0].mxu0
        %5897 = vmatprep.mubr.bf16.mxu0 0
        %5898 = vmatmul.mubr.bf16.gmra.mrb[0].mxu0 %v3102
        %v5899 = vpop.f32.mrb[0].mxu0
        %v5900 = vadd.f32 0.0, %v5899
        %v5901 = vpop.f32.mrb[0].mxu0
        %v5902 = vpop.f32.mrb[0].mxu0
        %v5903 = vadd.f32 0.0, %v5902
        %v5904 = vpop.f32.mrb[0].mxu0
        %5905 = vmatprep.mubr.bf16.mxu0 0
        %5906 = vmatmul.mubr.bf16.gmra.mrb[0].mxu0 %v3103
        %v5907 = vpop.f32.mrb[0].mxu0
        %v5908 = vadd.f32 0.0, %v5907
        %v5909 = vpop.f32.mrb[0].mxu0
        %v5910 = vpop.f32.mrb[0].mxu0
        %v5911 = vadd.f32 0.0, %v5910
        %v5912 = vpop.f32.mrb[0].mxu0
        %5913 = vmatprep.mubr.bf16.mxu0 0
        %5914 = vmatmul.mubr.bf16.gmra.mrb[0].mxu0 %v3104
        %v5915 = vpop.f32.mrb[0].mxu0
        %v5916 = vadd.f32 0.0, %v5915
        %v5917 = vpop.f32.mrb[0].mxu0
        %v5918 = vpop.f32.mrb[0].mxu0
        %v5919 = vadd.f32 0.0, %v5918
        %v5920 = vpop.f32.mrb[0].mxu0
        %5921 = vmatprep.mubr.bf16.mxu0 0
        %5922 = vmatmul.mubr.bf16.gmra.mrb[0].mxu0 %v3105
        %v5923 = vpop.f32.mrb[0].mxu0
        %v5924 = vadd.f32 0.0, %v5923
        %v5925 = vpop.f32.mrb[0].mxu0
        %v5926 = vpop.f32.mrb[0].mxu0
        %v5927 = vadd.f32 0.0, %v5926
        %v5928 = vpop.f32.mrb[0].mxu0
        %5929 = vmatprep.mubr.bf16.mxu0 0
        %5930 = vmatmul.mubr.bf16.gmra.mrb[0].mxu0 %v3106
        %v5931 = vpop.f32.mrb[0].mxu0
        %v5932 = vadd.f32 0.0, %v5931
        %v5933 = vpop.f32.mrb[0].mxu0
        %v5934 = vpop.f32.mrb[0].mxu0
        %v5935 = vadd.f32 0.0, %v5934
        %v5936 = vpop.f32.mrb[0].mxu0
        %5937 = vmatprep.mubr.bf16.mxu0 0
        %5938 = vmatmul.mubr.bf16.gmra.mrb[0].mxu0 %v3107
        %v5939 = vpop.f32.mrb[0].mxu0
        %v5940 = vadd.f32 0.0, %v5939
        %v5941 = vpop.f32.mrb[0].mxu0
        %v5942 = vpop.f32.mrb[0].mxu0
        %v5943 = vadd.f32 0.0, %v5942
        %v5944 = vpop.f32.mrb[0].mxu0
        %5945 = vmatprep.mubr.bf16.mxu0 0
        %5946 = vmatmul.mubr.bf16.gmra.mrb[0].mxu0 %v3108
        %v5947 = vpop.f32.mrb[0].mxu0
        %v5948 = vadd.f32 0.0, %v5947
        %v5949 = vpop.f32.mrb[0].mxu0
        %v5950 = vpop.f32.mrb[0].mxu0
        %v5951 = vadd.f32 0.0, %v5950
        %v5952 = vpop.f32.mrb[0].mxu0
        %5953 = vmatprep.mubr.bf16.mxu0 0
        %5954 = vmatmul.mubr.bf16.gmra.mrb[0].mxu0 %v5358
        %v5955 = vpop.f32.mrb[0].mxu0
        %v5956 = vadd.f32 0.0, %v5955
        %v5957 = vpop.f32.mrb[0].mxu0
        %v5958 = vpop.f32.mrb[0].mxu0
        %v5959 = vadd.f32 0.0, %v5958
        %v5960 = vpop.f32.mrb[0].mxu0
        %5961 = vmatprep.mubr.bf16.mxu0 0
        %5962 = vmatmul.mubr.bf16.gmra.mrb[0].mxu0 %v5359
        %v5963 = vpop.f32.mrb[0].mxu0
        %v5964 = vadd.f32 0.0, %v5963
        %v5965 = vpop.f32.mrb[0].mxu0
        %v5966 = vpop.f32.mrb[0].mxu0
        %v5967 = vadd.f32 0.0, %v5966
        %v5968 = vpop.f32.mrb[0].mxu0
        %5969 = vdwg.mxu0
        %v5970 = vadd.f32 %v5217, %v5460
        %v5971 = vadd.f32 %v5218, %v5463
        %v5972 = vadd.f32 %v5219, %v5468
        %v5973 = vadd.f32 %v5220, %v5471
        %v5974 = vadd.f32 %v5221, %v5476
        %v5975 = vadd.f32 %v5222, %v5479
        %v5976 = vadd.f32 %v5223, %v5484
        %v5977 = vadd.f32 %v5224, %v5487
        %v5978 = vadd.f32 %v5225, %v5492
        %v5979 = vadd.f32 %v5226, %v5495
        %v5980 = vadd.f32 %v5227, %v5500
        %v5981 = vadd.f32 %v5228, %v5503
        %v5982 = vadd.f32 %v5229, %v5508
        %v5983 = vadd.f32 %v5230, %v5511
        %v5984 = vadd.f32 %v5231, %v5516
        %v5985 = vadd.f32 %v5232, %v5519
        %v5986 = vadd.f32 %v5233, %v5524
        %v5987 = vadd.f32 %v5234, %v5527
        %v5988 = vadd.f32 %v5235, %v5532
        %v5989 = vadd.f32 %v5236, %v5535
        %v5990 = vadd.f32 %v5237, %v5540
        %v5991 = vadd.f32 %v5238, %v5543
        %v5992 = vadd.f32 %v5239, %v5548
        %v5993 = vadd.f32 %v5240, %v5551
        %v5994 = vadd.f32 %v5241, %v5556
        %v5995 = vadd.f32 %v5242, %v5559
        %v5996 = vadd.f32 %v5243, %v5564
        %v5997 = vadd.f32 %v5244, %v5567
        %v5998 = vadd.f32 %v5245, %v5572
        %v5999 = vadd.f32 %v5246, %v5575
        %v6000 = vadd.f32 %v5247, %v5580
        %v6001 = vadd.f32 %v5248, %v5583
        %v6002 = vadd.f32 %v5249, %v5588
        %v6003 = vadd.f32 %v5250, %v5591
        %v6004 = vadd.f32 %v5251, %v5596
        %v6005 = vadd.f32 %v5252, %v5599
        %v6006 = vadd.f32 %v5253, %v5604
        %v6007 = vadd.f32 %v5254, %v5607
        %v6008 = vadd.f32 %v5255, %v5612
        %v6009 = vadd.f32 %v5256, %v5615
        %v6010 = vadd.f32 %v5257, %v5620
        %v6011 = vadd.f32 %v5258, %v5623
        %v6012 = vadd.f32 %v5259, %v5628
        %v6013 = vadd.f32 %v5260, %v5631
        %v6014 = vadd.f32 %v5261, %v5636
        %v6015 = vadd.f32 %v5262, %v5639
        %v6016 = vadd.f32 %v5263, %v5644
        %v6017 = vadd.f32 %v5264, %v5647
        %v6018 = vadd.f32 %v5265, %v5652
        %v6019 = vadd.f32 %v5266, %v5655
        %v6020 = vadd.f32 %v5267, %v5660
        %v6021 = vadd.f32 %v5268, %v5663
        %v6022 = vadd.f32 %v5269, %v5668
        %v6023 = vadd.f32 %v5270, %v5671
        %v6024 = vadd.f32 %v5271, %v5676
        %v6025 = vadd.f32 %v5272, %v5679
        %v6026 = vadd.f32 %v5273, %v5684
        %v6027 = vadd.f32 %v5274, %v5687
        %v6028 = vadd.f32 %v5275, %v5692
        %v6029 = vadd.f32 %v5276, %v5695
        %v6030 = vadd.f32 %v5277, %v5700
        %v6031 = vadd.f32 %v5278, %v5703
        %v6032 = vadd.f32 %v5279, %v5708
        %v6033 = vadd.f32 %v5280, %v5711
        %v6034 = vadd.f32 %v5281, %v5716
        %v6035 = vadd.f32 %v5282, %v5719
        %v6036 = vadd.f32 %v5283, %v5724
        %v6037 = vadd.f32 %v5284, %v5727
        %v6038 = vadd.f32 %v5285, %v5732
        %v6039 = vadd.f32 %v5286, %v5735
        %v6040 = vadd.f32 %v5287, %v5740
        %v6041 = vadd.f32 %v5288, %v5743
        %v6042 = vadd.f32 %v5289, %v5748
        %v6043 = vadd.f32 %v5290, %v5751
        %v6044 = vadd.f32 %v5291, %v5756
        %v6045 = vadd.f32 %v5292, %v5759
        %v6046 = vadd.f32 %v5293, %v5764
        %v6047 = vadd.f32 %v5294, %v5767
        %v6048 = vadd.f32 %v5295, %v5772
        %v6049 = vadd.f32 %v5296, %v5775
        %v6050 = vadd.f32 %v5297, %v5780
        %v6051 = vadd.f32 %v5298, %v5783
        %v6052 = vadd.f32 %v5299, %v5788
        %v6053 = vadd.f32 %v5300, %v5791
        %v6054 = vadd.f32 %v5301, %v5796
        %v6055 = vadd.f32 %v5302, %v5799
        %v6056 = vadd.f32 %v5303, %v5804
        %v6057 = vadd.f32 %v5304, %v5807
        %v6058 = vadd.f32 %v5305, %v5812
        %v6059 = vadd.f32 %v5306, %v5815
        %v6060 = vadd.f32 %v5307, %v5820
        %v6061 = vadd.f32 %v5308, %v5823
        %v6062 = vadd.f32 %v5309, %v5828
        %v6063 = vadd.f32 %v5310, %v5831
        %v6064 = vadd.f32 %v5311, %v5836
        %v6065 = vadd.f32 %v5312, %v5839
        %v6066 = vadd.f32 %v5313, %v5844
        %v6067 = vadd.f32 %v5314, %v5847
        %v6068 = vadd.f32 %v5315, %v5852
        %v6069 = vadd.f32 %v5316, %v5855
        %v6070 = vadd.f32 %v5317, %v5860
        %v6071 = vadd.f32 %v5318, %v5863
        %v6072 = vadd.f32 %v5319, %v5868
        %v6073 = vadd.f32 %v5320, %v5871
        %v6074 = vadd.f32 %v5321, %v5876
        %v6075 = vadd.f32 %v5322, %v5879
        %v6076 = vadd.f32 %v5323, %v5884
        %v6077 = vadd.f32 %v5324, %v5887
        %v6078 = vadd.f32 %v5325, %v5892
        %v6079 = vadd.f32 %v5326, %v5895
        %v6080 = vadd.f32 %v5327, %v5900
        %v6081 = vadd.f32 %v5328, %v5903
        %v6082 = vadd.f32 %v5329, %v5908
        %v6083 = vadd.f32 %v5330, %v5911
        %v6084 = vadd.f32 %v5331, %v5916
        %v6085 = vadd.f32 %v5332, %v5919
        %v6086 = vadd.f32 %v5333, %v5924
        %v6087 = vadd.f32 %v5334, %v5927
        %v6088 = vadd.f32 %v5335, %v5932
        %v6089 = vadd.f32 %v5336, %v5935
        %v6090 = vadd.f32 %v5337, %v5940
        %v6091 = vadd.f32 %v5338, %v5943
        %v6092 = vadd.f32 %v5339, %v5948
        %v6093 = vadd.f32 %v5340, %v5951
        %v6094 = vadd.f32 %v5341, %v5956
        %v6095 = vadd.f32 %v5342, %v5959
        %v6096 = vadd.f32 %v5343, %v5964
        %v6097 = vadd.f32 %v5344, %v5967
        %v6098 = vpack.c.bf16 %v700, %v699
        %v6099 = vpack.c.bf16 %v702, %v701
        %s6100 = scalar_lea.vmem [#allocation5], 384
        %v6101 = vld [vmem:[%s6100] sm:$0xf]
        %v6102 = vld [vmem:[%s6100 + $0x4] sm:$0xf]
        %v6103 = vld [vmem:[%s6100 + $0x8] sm:$0xf]
        %v6104 = vld [vmem:[%s6100 + $0xc] sm:$0xf]
        %v6105 = vld [vmem:[%s6100 + $0x10] sm:$0xf]
        %v6106 = vld [vmem:[%s6100 + $0x14] sm:$0xf]
        %v6107 = vld [vmem:[%s6100 + $0x18] sm:$0xf]
        %v6108 = vld [vmem:[%s6100 + $0x1c] sm:$0xf]
        %v6109 = vld [vmem:[%s6100 + $0x20] sm:$0xf]
        %v6110 = vld [vmem:[%s6100 + $0x24] sm:$0xf]
        %v6111 = vld [vmem:[%s6100 + $0x28] sm:$0xf]
        %v6112 = vld [vmem:[%s6100 + $0x2c] sm:$0xf]
        %v6113 = vld [vmem:[%s6100 + $0x30] sm:$0xf]
        %v6114 = vld [vmem:[%s6100 + $0x34] sm:$0xf]
        %v6115 = vld [vmem:[%s6100 + $0x38] sm:$0xf]
        %v6116 = vld [vmem:[%s6100 + $0x3c] sm:$0xf]
        %v6133 = vunpack.c.l.b16 %v6101
        %v6134 = vunpack.c.l.b16 %v6102
        %v6135 = vunpack.c.l.b16 %v6103
        %v6136 = vunpack.c.l.b16 %v6104
        %v6137 = vunpack.c.l.b16 %v6105
        %v6138 = vunpack.c.l.b16 %v6106
        %v6139 = vunpack.c.l.b16 %v6107
        %v6140 = vunpack.c.l.b16 %v6108
        %v6141 = vunpack.c.l.b16 %v6109
        %v6142 = vunpack.c.l.b16 %v6110
        %v6143 = vunpack.c.l.b16 %v6111
        %v6144 = vunpack.c.l.b16 %v6112
        %v6145 = vunpack.c.l.b16 %v6113
        %v6146 = vunpack.c.l.b16 %v6114
        %v6147 = vunpack.c.l.b16 %v6115
        %v6148 = vunpack.c.l.b16 %v6116
        %v6149 = vpack.c.b16 %v6134, %v6133
        %v6150 = vpack.c.b16 %v6136, %v6135
        %v6151 = vpack.c.b16 %v6138, %v6137
        %v6152 = vpack.c.b16 %v6140, %v6139
        %v6153 = vpack.c.b16 %v6142, %v6141
        %v6154 = vpack.c.b16 %v6144, %v6143
        %v6155 = vpack.c.b16 %v6146, %v6145
        %v6156 = vpack.c.b16 %v6148, %v6147
        %6165 = vmatprep.subr.bf16.mxu0 0
        %6166 = vmatpush1.bf16.msra.mxu0 %v6149
        %6167 = vmatprep.subr.bf16.mxu0 0
        %6168 = vmatpush1.bf16.msra.mxu0 %v6150
        %6169 = vmatprep.subr.bf16.mxu0 0
        %6170 = vmatpush1.bf16.msra.mxu0 %v6151
        %6171 = vmatprep.subr.bf16.mxu0 0
        %6172 = vmatpush1.bf16.msra.mxu0 %v6152
        %6173 = vmatprep.subr.bf16.mxu0 0
        %6174 = vmatpush1.bf16.msra.mxu0 %v6153
        %6175 = vmatprep.subr.bf16.mxu0 0
        %6176 = vmatpush1.bf16.msra.mxu0 %v6154
        %6177 = vmatprep.subr.bf16.mxu0 0
        %6178 = vmatpush1.bf16.msra.mxu0 %v6155
        %6179 = vmatprep.subr.bf16.mxu0 0
        %6180 = vmatpush1.bf16.msra.mxu0 %v6156
        %6181 = vmatprep.subr.bf16.mxu0 0
        %6182 = vmatpush1.bf16.msra.mxu0 0
        %6183 = vmatprep.subr.bf16.mxu0 0
        %6184 = vmatpush1.bf16.msra.mxu0 0
        %6185 = vmatprep.subr.bf16.mxu0 0
        %6186 = vmatpush1.bf16.msra.mxu0 0
        %6187 = vmatprep.subr.bf16.mxu0 0
        %6188 = vmatpush1.bf16.msra.mxu0 0
        %6189 = vmatprep.subr.bf16.mxu0 0
        %6190 = vmatpush1.bf16.msra.mxu0 0
        %6191 = vmatprep.subr.bf16.mxu0 0
        %6192 = vmatpush1.bf16.msra.mxu0 0
        %6193 = vmatprep.subr.bf16.mxu0 0
        %6194 = vmatpush1.bf16.msra.mxu0 0
        %6195 = vmatprep.subr.bf16.mxu0 0
        %6196 = vmatpush1.bf16.msra.mxu0 0
        %6197 = vmatprep.mubr.bf16.mxu0 0
        %6198 = vmatmul.mubr.bf16.gmra.mrb[0].mxu0 %v708
        %v6199 = vpop.f32.mrb[0].mxu0
        %v6200 = vadd.f32 0.0, %v6199
        %v6201 = vpop.f32.mrb[0].mxu0
        %v6202 = vpop.f32.mrb[0].mxu0
        %v6203 = vadd.f32 0.0, %v6202
        %v6204 = vpop.f32.mrb[0].mxu0
        %6205 = vmatprep.mubr.bf16.mxu0 0
        %6206 = vmatmul.mubr.bf16.gmra.mrb[0].mxu0 %v709
        %v6207 = vpop.f32.mrb[0].mxu0
        %v6208 = vadd.f32 0.0, %v6207
        %v6209 = vpop.f32.mrb[0].mxu0
        %v6210 = vpop.f32.mrb[0].mxu0
        %v6211 = vadd.f32 0.0, %v6210
        %v6212 = vpop.f32.mrb[0].mxu0
        %6213 = vmatprep.mubr.bf16.mxu0 0
        %6214 = vmatmul.mubr.bf16.gmra.mrb[0].mxu0 %v710
        %v6215 = vpop.f32.mrb[0].mxu0
        %v6216 = vadd.f32 0.0, %v6215
        %v6217 = vpop.f32.mrb[0].mxu0
        %v6218 = vpop.f32.mrb[0].mxu0
        %v6219 = vadd.f32 0.0, %v6218
        %v6220 = vpop.f32.mrb[0].mxu0
        %6221 = vmatprep.mubr.bf16.mxu0 0
        %6222 = vmatmul.mubr.bf16.gmra.mrb[0].mxu0 %v711
        %v6223 = vpop.f32.mrb[0].mxu0
        %v6224 = vadd.f32 0.0, %v6223
        %v6225 = vpop.f32.mrb[0].mxu0
        %v6226 = vpop.f32.mrb[0].mxu0
        %v6227 = vadd.f32 0.0, %v6226
        %v6228 = vpop.f32.mrb[0].mxu0
        %6229 = vmatprep.mubr.bf16.mxu0 0
        %6230 = vmatmul.mubr.bf16.gmra.mrb[0].mxu0 %v712
        %v6231 = vpop.f32.mrb[0].mxu0
        %v6232 = vadd.f32 0.0, %v6231
        %v6233 = vpop.f32.mrb[0].mxu0
        %v6234 = vpop.f32.mrb[0].mxu0
        %v6235 = vadd.f32 0.0, %v6234
        %v6236 = vpop.f32.mrb[0].mxu0
        %6237 = vmatprep.mubr.bf16.mxu0 0
        %6238 = vmatmul.mubr.bf16.gmra.mrb[0].mxu0 %v713
        %v6239 = vpop.f32.mrb[0].mxu0
        %v6240 = vadd.f32 0.0, %v6239
        %v6241 = vpop.f32.mrb[0].mxu0
        %v6242 = vpop.f32.mrb[0].mxu0
        %v6243 = vadd.f32 0.0, %v6242
        %v6244 = vpop.f32.mrb[0].mxu0
        %6245 = vmatprep.mubr.bf16.mxu0 0
        %6246 = vmatmul.mubr.bf16.gmra.mrb[0].mxu0 %v714
        %v6247 = vpop.f32.mrb[0].mxu0
        %v6248 = vadd.f32 0.0, %v6247
        %v6249 = vpop.f32.mrb[0].mxu0
        %v6250 = vpop.f32.mrb[0].mxu0
        %v6251 = vadd.f32 0.0, %v6250
        %v6252 = vpop.f32.mrb[0].mxu0
        %6253 = vmatprep.mubr.bf16.mxu0 0
        %6254 = vmatmul.mubr.bf16.gmra.mrb[0].mxu0 %v715
        %v6255 = vpop.f32.mrb[0].mxu0
        %v6256 = vadd.f32 0.0, %v6255
        %v6257 = vpop.f32.mrb[0].mxu0
        %v6258 = vpop.f32.mrb[0].mxu0
        %v6259 = vadd.f32 0.0, %v6258
        %v6260 = vpop.f32.mrb[0].mxu0
        %6261 = vmatprep.mubr.bf16.mxu0 0
        %6262 = vmatmul.mubr.bf16.gmra.mrb[0].mxu0 %v716
        %v6263 = vpop.f32.mrb[0].mxu0
        %v6264 = vadd.f32 0.0, %v6263
        %v6265 = vpop.f32.mrb[0].mxu0
        %v6266 = vpop.f32.mrb[0].mxu0
        %v6267 = vadd.f32 0.0, %v6266
        %v6268 = vpop.f32.mrb[0].mxu0
        %6269 = vmatprep.mubr.bf16.mxu0 0
        %6270 = vmatmul.mubr.bf16.gmra.mrb[0].mxu0 %v717
        %v6271 = vpop.f32.mrb[0].mxu0
        %v6272 = vadd.f32 0.0, %v6271
        %v6273 = vpop.f32.mrb[0].mxu0
        %v6274 = vpop.f32.mrb[0].mxu0
        %v6275 = vadd.f32 0.0, %v6274
        %v6276 = vpop.f32.mrb[0].mxu0
        %6277 = vmatprep.mubr.bf16.mxu0 0
        %6278 = vmatmul.mubr.bf16.gmra.mrb[0].mxu0 %v718
        %v6279 = vpop.f32.mrb[0].mxu0
        %v6280 = vadd.f32 0.0, %v6279
        %v6281 = vpop.f32.mrb[0].mxu0
        %v6282 = vpop.f32.mrb[0].mxu0
        %v6283 = vadd.f32 0.0, %v6282
        %v6284 = vpop.f32.mrb[0].mxu0
        %6285 = vmatprep.mubr.bf16.mxu0 0
        %6286 = vmatmul.mubr.bf16.gmra.mrb[0].mxu0 %v719
        %v6287 = vpop.f32.mrb[0].mxu0
        %v6288 = vadd.f32 0.0, %v6287
        %v6289 = vpop.f32.mrb[0].mxu0
        %v6290 = vpop.f32.mrb[0].mxu0
        %v6291 = vadd.f32 0.0, %v6290
        %v6292 = vpop.f32.mrb[0].mxu0
        %6293 = vmatprep.mubr.bf16.mxu0 0
        %6294 = vmatmul.mubr.bf16.gmra.mrb[0].mxu0 %v720
        %v6295 = vpop.f32.mrb[0].mxu0
        %v6296 = vadd.f32 0.0, %v6295
        %v6297 = vpop.f32.mrb[0].mxu0
        %v6298 = vpop.f32.mrb[0].mxu0
        %v6299 = vadd.f32 0.0, %v6298
        %v6300 = vpop.f32.mrb[0].mxu0
        %6301 = vmatprep.mubr.bf16.mxu0 0
        %6302 = vmatmul.mubr.bf16.gmra.mrb[0].mxu0 %v721
        %v6303 = vpop.f32.mrb[0].mxu0
        %v6304 = vadd.f32 0.0, %v6303
        %v6305 = vpop.f32.mrb[0].mxu0
        %v6306 = vpop.f32.mrb[0].mxu0
        %v6307 = vadd.f32 0.0, %v6306
        %v6308 = vpop.f32.mrb[0].mxu0
        %6309 = vmatprep.mubr.bf16.mxu0 0
        %6310 = vmatmul.mubr.bf16.gmra.mrb[0].mxu0 %v722
        %v6311 = vpop.f32.mrb[0].mxu0
        %v6312 = vadd.f32 0.0, %v6311
        %v6313 = vpop.f32.mrb[0].mxu0
        %v6314 = vpop.f32.mrb[0].mxu0
        %v6315 = vadd.f32 0.0, %v6314
        %v6316 = vpop.f32.mrb[0].mxu0
        %6317 = vmatprep.mubr.bf16.mxu0 0
        %6318 = vmatmul.mubr.bf16.gmra.mrb[0].mxu0 %v723
        %v6319 = vpop.f32.mrb[0].mxu0
        %v6320 = vadd.f32 0.0, %v6319
        %v6321 = vpop.f32.mrb[0].mxu0
        %v6322 = vpop.f32.mrb[0].mxu0
        %v6323 = vadd.f32 0.0, %v6322
        %v6324 = vpop.f32.mrb[0].mxu0
        %6325 = vmatprep.mubr.bf16.mxu0 0
        %6326 = vmatmul.mubr.bf16.gmra.mrb[0].mxu0 %v724
        %v6327 = vpop.f32.mrb[0].mxu0
        %v6328 = vadd.f32 0.0, %v6327
        %v6329 = vpop.f32.mrb[0].mxu0
        %v6330 = vpop.f32.mrb[0].mxu0
        %v6331 = vadd.f32 0.0, %v6330
        %v6332 = vpop.f32.mrb[0].mxu0
        %6333 = vmatprep.mubr.bf16.mxu0 0
        %6334 = vmatmul.mubr.bf16.gmra.mrb[0].mxu0 %v725
        %v6335 = vpop.f32.mrb[0].mxu0
        %v6336 = vadd.f32 0.0, %v6335
        %v6337 = vpop.f32.mrb[0].mxu0
        %v6338 = vpop.f32.mrb[0].mxu0
        %v6339 = vadd.f32 0.0, %v6338
        %v6340 = vpop.f32.mrb[0].mxu0
        %6341 = vmatprep.mubr.bf16.mxu0 0
        %6342 = vmatmul.mubr.bf16.gmra.mrb[0].mxu0 %v726
        %v6343 = vpop.f32.mrb[0].mxu0
        %v6344 = vadd.f32 0.0, %v6343
        %v6345 = vpop.f32.mrb[0].mxu0
        %v6346 = vpop.f32.mrb[0].mxu0
        %v6347 = vadd.f32 0.0, %v6346
        %v6348 = vpop.f32.mrb[0].mxu0
        %6349 = vmatprep.mubr.bf16.mxu0 0
        %6350 = vmatmul.mubr.bf16.gmra.mrb[0].mxu0 %v727
        %v6351 = vpop.f32.mrb[0].mxu0
        %v6352 = vadd.f32 0.0, %v6351
        %v6353 = vpop.f32.mrb[0].mxu0
        %v6354 = vpop.f32.mrb[0].mxu0
        %v6355 = vadd.f32 0.0, %v6354
        %v6356 = vpop.f32.mrb[0].mxu0
        %6357 = vmatprep.mubr.bf16.mxu0 0
        %6358 = vmatmul.mubr.bf16.gmra.mrb[0].mxu0 %v728
        %v6359 = vpop.f32.mrb[0].mxu0
        %v6360 = vadd.f32 0.0, %v6359
        %v6361 = vpop.f32.mrb[0].mxu0
        %v6362 = vpop.f32.mrb[0].mxu0
        %v6363 = vadd.f32 0.0, %v6362
        %v6364 = vpop.f32.mrb[0].mxu0
        %6365 = vmatprep.mubr.bf16.mxu0 0
        %6366 = vmatmul.mubr.bf16.gmra.mrb[0].mxu0 %v729
        %v6367 = vpop.f32.mrb[0].mxu0
        %v6368 = vadd.f32 0.0, %v6367
        %v6369 = vpop.f32.mrb[0].mxu0
        %v6370 = vpop.f32.mrb[0].mxu0
        %v6371 = vadd.f32 0.0, %v6370
        %v6372 = vpop.f32.mrb[0].mxu0
        %6373 = vmatprep.mubr.bf16.mxu0 0
        %6374 = vmatmul.mubr.bf16.gmra.mrb[0].mxu0 %v730
        %v6375 = vpop.f32.mrb[0].mxu0
        %v6376 = vadd.f32 0.0, %v6375
        %v6377 = vpop.f32.mrb[0].mxu0
        %v6378 = vpop.f32.mrb[0].mxu0
        %v6379 = vadd.f32 0.0, %v6378
        %v6380 = vpop.f32.mrb[0].mxu0
        %6381 = vmatprep.mubr.bf16.mxu0 0
        %6382 = vmatmul.mubr.bf16.gmra.mrb[0].mxu0 %v731
        %v6383 = vpop.f32.mrb[0].mxu0
        %v6384 = vadd.f32 0.0, %v6383
        %v6385 = vpop.f32.mrb[0].mxu0
        %v6386 = vpop.f32.mrb[0].mxu0
        %v6387 = vadd.f32 0.0, %v6386
        %v6388 = vpop.f32.mrb[0].mxu0
        %6389 = vmatprep.mubr.bf16.mxu0 0
        %6390 = vmatmul.mubr.bf16.gmra.mrb[0].mxu0 %v732
        %v6391 = vpop.f32.mrb[0].mxu0
        %v6392 = vadd.f32 0.0, %v6391
        %v6393 = vpop.f32.mrb[0].mxu0
        %v6394 = vpop.f32.mrb[0].mxu0
        %v6395 = vadd.f32 0.0, %v6394
        %v6396 = vpop.f32.mrb[0].mxu0
        %6397 = vmatprep.mubr.bf16.mxu0 0
        %6398 = vmatmul.mubr.bf16.gmra.mrb[0].mxu0 %v733
        %v6399 = vpop.f32.mrb[0].mxu0
        %v6400 = vadd.f32 0.0, %v6399
        %v6401 = vpop.f32.mrb[0].mxu0
        %v6402 = vpop.f32.mrb[0].mxu0
        %v6403 = vadd.f32 0.0, %v6402
        %v6404 = vpop.f32.mrb[0].mxu0
        %6405 = vmatprep.mubr.bf16.mxu0 0
        %6406 = vmatmul.mubr.bf16.gmra.mrb[0].mxu0 %v734
        %v6407 = vpop.f32.mrb[0].mxu0
        %v6408 = vadd.f32 0.0, %v6407
        %v6409 = vpop.f32.mrb[0].mxu0
        %v6410 = vpop.f32.mrb[0].mxu0
        %v6411 = vadd.f32 0.0, %v6410
        %v6412 = vpop.f32.mrb[0].mxu0
        %6413 = vmatprep.mubr.bf16.mxu0 0
        %6414 = vmatmul.mubr.bf16.gmra.mrb[0].mxu0 %v735
        %v6415 = vpop.f32.mrb[0].mxu0
        %v6416 = vadd.f32 0.0, %v6415
        %v6417 = vpop.f32.mrb[0].mxu0
        %v6418 = vpop.f32.mrb[0].mxu0
        %v6419 = vadd.f32 0.0, %v6418
        %v6420 = vpop.f32.mrb[0].mxu0
        %6421 = vmatprep.mubr.bf16.mxu0 0
        %6422 = vmatmul.mubr.bf16.gmra.mrb[0].mxu0 %v736
        %v6423 = vpop.f32.mrb[0].mxu0
        %v6424 = vadd.f32 0.0, %v6423
        %v6425 = vpop.f32.mrb[0].mxu0
        %v6426 = vpop.f32.mrb[0].mxu0
        %v6427 = vadd.f32 0.0, %v6426
        %v6428 = vpop.f32.mrb[0].mxu0
        %6429 = vmatprep.mubr.bf16.mxu0 0
        %6430 = vmatmul.mubr.bf16.gmra.mrb[0].mxu0 %v737
        %v6431 = vpop.f32.mrb[0].mxu0
        %v6432 = vadd.f32 0.0, %v6431
        %v6433 = vpop.f32.mrb[0].mxu0
        %v6434 = vpop.f32.mrb[0].mxu0
        %v6435 = vadd.f32 0.0, %v6434
        %v6436 = vpop.f32.mrb[0].mxu0
        %6437 = vmatprep.mubr.bf16.mxu0 0
        %6438 = vmatmul.mubr.bf16.gmra.mrb[0].mxu0 %v738
        %v6439 = vpop.f32.mrb[0].mxu0
        %v6440 = vadd.f32 0.0, %v6439
        %v6441 = vpop.f32.mrb[0].mxu0
        %v6442 = vpop.f32.mrb[0].mxu0
        %v6443 = vadd.f32 0.0, %v6442
        %v6444 = vpop.f32.mrb[0].mxu0
        %6445 = vmatprep.mubr.bf16.mxu0 0
        %6446 = vmatmul.mubr.bf16.gmra.mrb[0].mxu0 %v739
        %v6447 = vpop.f32.mrb[0].mxu0
        %v6448 = vadd.f32 0.0, %v6447
        %v6449 = vpop.f32.mrb[0].mxu0
        %v6450 = vpop.f32.mrb[0].mxu0
        %v6451 = vadd.f32 0.0, %v6450
        %v6452 = vpop.f32.mrb[0].mxu0
        %6453 = vmatprep.mubr.bf16.mxu0 0
        %6454 = vmatmul.mubr.bf16.gmra.mrb[0].mxu0 %v740
        %v6455 = vpop.f32.mrb[0].mxu0
        %v6456 = vadd.f32 0.0, %v6455
        %v6457 = vpop.f32.mrb[0].mxu0
        %v6458 = vpop.f32.mrb[0].mxu0
        %v6459 = vadd.f32 0.0, %v6458
        %v6460 = vpop.f32.mrb[0].mxu0
        %6461 = vmatprep.mubr.bf16.mxu0 0
        %6462 = vmatmul.mubr.bf16.gmra.mrb[0].mxu0 %v741
        %v6463 = vpop.f32.mrb[0].mxu0
        %v6464 = vadd.f32 0.0, %v6463
        %v6465 = vpop.f32.mrb[0].mxu0
        %v6466 = vpop.f32.mrb[0].mxu0
        %v6467 = vadd.f32 0.0, %v6466
        %v6468 = vpop.f32.mrb[0].mxu0
        %6469 = vmatprep.mubr.bf16.mxu0 0
        %6470 = vmatmul.mubr.bf16.gmra.mrb[0].mxu0 %v742
        %v6471 = vpop.f32.mrb[0].mxu0
        %v6472 = vadd.f32 0.0, %v6471
        %v6473 = vpop.f32.mrb[0].mxu0
        %v6474 = vpop.f32.mrb[0].mxu0
        %v6475 = vadd.f32 0.0, %v6474
        %v6476 = vpop.f32.mrb[0].mxu0
        %6477 = vmatprep.mubr.bf16.mxu0 0
        %6478 = vmatmul.mubr.bf16.gmra.mrb[0].mxu0 %v743
        %v6479 = vpop.f32.mrb[0].mxu0
        %v6480 = vadd.f32 0.0, %v6479
        %v6481 = vpop.f32.mrb[0].mxu0
        %v6482 = vpop.f32.mrb[0].mxu0
        %v6483 = vadd.f32 0.0, %v6482
        %v6484 = vpop.f32.mrb[0].mxu0
        %6485 = vmatprep.mubr.bf16.mxu0 0
        %6486 = vmatmul.mubr.bf16.gmra.mrb[0].mxu0 %v744
        %v6487 = vpop.f32.mrb[0].mxu0
        %v6488 = vadd.f32 0.0, %v6487
        %v6489 = vpop.f32.mrb[0].mxu0
        %v6490 = vpop.f32.mrb[0].mxu0
        %v6491 = vadd.f32 0.0, %v6490
        %v6492 = vpop.f32.mrb[0].mxu0
        %6493 = vmatprep.mubr.bf16.mxu0 0
        %6494 = vmatmul.mubr.bf16.gmra.mrb[0].mxu0 %v745
        %v6495 = vpop.f32.mrb[0].mxu0
        %v6496 = vadd.f32 0.0, %v6495
        %v6497 = vpop.f32.mrb[0].mxu0
        %v6498 = vpop.f32.mrb[0].mxu0
        %v6499 = vadd.f32 0.0, %v6498
        %v6500 = vpop.f32.mrb[0].mxu0
        %6501 = vmatprep.mubr.bf16.mxu0 0
        %6502 = vmatmul.mubr.bf16.gmra.mrb[0].mxu0 %v746
        %v6503 = vpop.f32.mrb[0].mxu0
        %v6504 = vadd.f32 0.0, %v6503
        %v6505 = vpop.f32.mrb[0].mxu0
        %v6506 = vpop.f32.mrb[0].mxu0
        %v6507 = vadd.f32 0.0, %v6506
        %v6508 = vpop.f32.mrb[0].mxu0
        %6509 = vmatprep.mubr.bf16.mxu0 0
        %6510 = vmatmul.mubr.bf16.gmra.mrb[0].mxu0 %v747
        %v6511 = vpop.f32.mrb[0].mxu0
        %v6512 = vadd.f32 0.0, %v6511
        %v6513 = vpop.f32.mrb[0].mxu0
        %v6514 = vpop.f32.mrb[0].mxu0
        %v6515 = vadd.f32 0.0, %v6514
        %v6516 = vpop.f32.mrb[0].mxu0
        %6517 = vmatprep.mubr.bf16.mxu0 0
        %6518 = vmatmul.mubr.bf16.gmra.mrb[0].mxu0 %v748
        %v6519 = vpop.f32.mrb[0].mxu0
        %v6520 = vadd.f32 0.0, %v6519
        %v6521 = vpop.f32.mrb[0].mxu0
        %v6522 = vpop.f32.mrb[0].mxu0
        %v6523 = vadd.f32 0.0, %v6522
        %v6524 = vpop.f32.mrb[0].mxu0
        %6525 = vmatprep.mubr.bf16.mxu0 0
        %6526 = vmatmul.mubr.bf16.gmra.mrb[0].mxu0 %v749
        %v6527 = vpop.f32.mrb[0].mxu0
        %v6528 = vadd.f32 0.0, %v6527
        %v6529 = vpop.f32.mrb[0].mxu0
        %v6530 = vpop.f32.mrb[0].mxu0
        %v6531 = vadd.f32 0.0, %v6530
        %v6532 = vpop.f32.mrb[0].mxu0
        %6533 = vmatprep.mubr.bf16.mxu0 0
        %6534 = vmatmul.mubr.bf16.gmra.mrb[0].mxu0 %v750
        %v6535 = vpop.f32.mrb[0].mxu0
        %v6536 = vadd.f32 0.0, %v6535
        %v6537 = vpop.f32.mrb[0].mxu0
        %v6538 = vpop.f32.mrb[0].mxu0
        %v6539 = vadd.f32 0.0, %v6538
        %v6540 = vpop.f32.mrb[0].mxu0
        %6541 = vmatprep.mubr.bf16.mxu0 0
        %6542 = vmatmul.mubr.bf16.gmra.mrb[0].mxu0 %v751
        %v6543 = vpop.f32.mrb[0].mxu0
        %v6544 = vadd.f32 0.0, %v6543
        %v6545 = vpop.f32.mrb[0].mxu0
        %v6546 = vpop.f32.mrb[0].mxu0
        %v6547 = vadd.f32 0.0, %v6546
        %v6548 = vpop.f32.mrb[0].mxu0
        %6549 = vmatprep.mubr.bf16.mxu0 0
        %6550 = vmatmul.mubr.bf16.gmra.mrb[0].mxu0 %v752
        %v6551 = vpop.f32.mrb[0].mxu0
        %v6552 = vadd.f32 0.0, %v6551
        %v6553 = vpop.f32.mrb[0].mxu0
        %v6554 = vpop.f32.mrb[0].mxu0
        %v6555 = vadd.f32 0.0, %v6554
        %v6556 = vpop.f32.mrb[0].mxu0
        %6557 = vmatprep.mubr.bf16.mxu0 0
        %6558 = vmatmul.mubr.bf16.gmra.mrb[0].mxu0 %v753
        %v6559 = vpop.f32.mrb[0].mxu0
        %v6560 = vadd.f32 0.0, %v6559
        %v6561 = vpop.f32.mrb[0].mxu0
        %v6562 = vpop.f32.mrb[0].mxu0
        %v6563 = vadd.f32 0.0, %v6562
        %v6564 = vpop.f32.mrb[0].mxu0
        %6565 = vmatprep.mubr.bf16.mxu0 0
        %6566 = vmatmul.mubr.bf16.gmra.mrb[0].mxu0 %v754
        %v6567 = vpop.f32.mrb[0].mxu0
        %v6568 = vadd.f32 0.0, %v6567
        %v6569 = vpop.f32.mrb[0].mxu0
        %v6570 = vpop.f32.mrb[0].mxu0
        %v6571 = vadd.f32 0.0, %v6570
        %v6572 = vpop.f32.mrb[0].mxu0
        %6573 = vmatprep.mubr.bf16.mxu0 0
        %6574 = vmatmul.mubr.bf16.gmra.mrb[0].mxu0 %v755
        %v6575 = vpop.f32.mrb[0].mxu0
        %v6576 = vadd.f32 0.0, %v6575
        %v6577 = vpop.f32.mrb[0].mxu0
        %v6578 = vpop.f32.mrb[0].mxu0
        %v6579 = vadd.f32 0.0, %v6578
        %v6580 = vpop.f32.mrb[0].mxu0
        %6581 = vmatprep.mubr.bf16.mxu0 0
        %6582 = vmatmul.mubr.bf16.gmra.mrb[0].mxu0 %v756
        %v6583 = vpop.f32.mrb[0].mxu0
        %v6584 = vadd.f32 0.0, %v6583
        %v6585 = vpop.f32.mrb[0].mxu0
        %v6586 = vpop.f32.mrb[0].mxu0
        %v6587 = vadd.f32 0.0, %v6586
        %v6588 = vpop.f32.mrb[0].mxu0
        %6589 = vmatprep.mubr.bf16.mxu0 0
        %6590 = vmatmul.mubr.bf16.gmra.mrb[0].mxu0 %v757
        %v6591 = vpop.f32.mrb[0].mxu0
        %v6592 = vadd.f32 0.0, %v6591
        %v6593 = vpop.f32.mrb[0].mxu0
        %v6594 = vpop.f32.mrb[0].mxu0
        %v6595 = vadd.f32 0.0, %v6594
        %v6596 = vpop.f32.mrb[0].mxu0
        %6597 = vmatprep.mubr.bf16.mxu0 0
        %6598 = vmatmul.mubr.bf16.gmra.mrb[0].mxu0 %v758
        %v6599 = vpop.f32.mrb[0].mxu0
        %v6600 = vadd.f32 0.0, %v6599
        %v6601 = vpop.f32.mrb[0].mxu0
        %v6602 = vpop.f32.mrb[0].mxu0
        %v6603 = vadd.f32 0.0, %v6602
        %v6604 = vpop.f32.mrb[0].mxu0
        %6605 = vmatprep.mubr.bf16.mxu0 0
        %6606 = vmatmul.mubr.bf16.gmra.mrb[0].mxu0 %v759
        %v6607 = vpop.f32.mrb[0].mxu0
        %v6608 = vadd.f32 0.0, %v6607
        %v6609 = vpop.f32.mrb[0].mxu0
        %v6610 = vpop.f32.mrb[0].mxu0
        %v6611 = vadd.f32 0.0, %v6610
        %v6612 = vpop.f32.mrb[0].mxu0
        %6613 = vmatprep.mubr.bf16.mxu0 0
        %6614 = vmatmul.mubr.bf16.gmra.mrb[0].mxu0 %v760
        %v6615 = vpop.f32.mrb[0].mxu0
        %v6616 = vadd.f32 0.0, %v6615
        %v6617 = vpop.f32.mrb[0].mxu0
        %v6618 = vpop.f32.mrb[0].mxu0
        %v6619 = vadd.f32 0.0, %v6618
        %v6620 = vpop.f32.mrb[0].mxu0
        %6621 = vmatprep.mubr.bf16.mxu0 0
        %6622 = vmatmul.mubr.bf16.gmra.mrb[0].mxu0 %v761
        %v6623 = vpop.f32.mrb[0].mxu0
        %v6624 = vadd.f32 0.0, %v6623
        %v6625 = vpop.f32.mrb[0].mxu0
        %v6626 = vpop.f32.mrb[0].mxu0
        %v6627 = vadd.f32 0.0, %v6626
        %v6628 = vpop.f32.mrb[0].mxu0
        %6629 = vmatprep.mubr.bf16.mxu0 0
        %6630 = vmatmul.mubr.bf16.gmra.mrb[0].mxu0 %v762
        %v6631 = vpop.f32.mrb[0].mxu0
        %v6632 = vadd.f32 0.0, %v6631
        %v6633 = vpop.f32.mrb[0].mxu0
        %v6634 = vpop.f32.mrb[0].mxu0
        %v6635 = vadd.f32 0.0, %v6634
        %v6636 = vpop.f32.mrb[0].mxu0
        %6637 = vmatprep.mubr.bf16.mxu0 0
        %6638 = vmatmul.mubr.bf16.gmra.mrb[0].mxu0 %v763
        %v6639 = vpop.f32.mrb[0].mxu0
        %v6640 = vadd.f32 0.0, %v6639
        %v6641 = vpop.f32.mrb[0].mxu0
        %v6642 = vpop.f32.mrb[0].mxu0
        %v6643 = vadd.f32 0.0, %v6642
        %v6644 = vpop.f32.mrb[0].mxu0
        %6645 = vmatprep.mubr.bf16.mxu0 0
        %6646 = vmatmul.mubr.bf16.gmra.mrb[0].mxu0 %v764
        %v6647 = vpop.f32.mrb[0].mxu0
        %v6648 = vadd.f32 0.0, %v6647
        %v6649 = vpop.f32.mrb[0].mxu0
        %v6650 = vpop.f32.mrb[0].mxu0
        %v6651 = vadd.f32 0.0, %v6650
        %v6652 = vpop.f32.mrb[0].mxu0
        %6653 = vmatprep.mubr.bf16.mxu0 0
        %6654 = vmatmul.mubr.bf16.gmra.mrb[0].mxu0 %v765
        %v6655 = vpop.f32.mrb[0].mxu0
        %v6656 = vadd.f32 0.0, %v6655
        %v6657 = vpop.f32.mrb[0].mxu0
        %v6658 = vpop.f32.mrb[0].mxu0
        %v6659 = vadd.f32 0.0, %v6658
        %v6660 = vpop.f32.mrb[0].mxu0
        %6661 = vmatprep.mubr.bf16.mxu0 0
        %6662 = vmatmul.mubr.bf16.gmra.mrb[0].mxu0 %v766
        %v6663 = vpop.f32.mrb[0].mxu0
        %v6664 = vadd.f32 0.0, %v6663
        %v6665 = vpop.f32.mrb[0].mxu0
        %v6666 = vpop.f32.mrb[0].mxu0
        %v6667 = vadd.f32 0.0, %v6666
        %v6668 = vpop.f32.mrb[0].mxu0
        %6669 = vmatprep.mubr.bf16.mxu0 0
        %6670 = vmatmul.mubr.bf16.gmra.mrb[0].mxu0 %v767
        %v6671 = vpop.f32.mrb[0].mxu0
        %v6672 = vadd.f32 0.0, %v6671
        %v6673 = vpop.f32.mrb[0].mxu0
        %v6674 = vpop.f32.mrb[0].mxu0
        %v6675 = vadd.f32 0.0, %v6674
        %v6676 = vpop.f32.mrb[0].mxu0
        %6677 = vmatprep.mubr.bf16.mxu0 0
        %6678 = vmatmul.mubr.bf16.gmra.mrb[0].mxu0 %v3847
        %v6679 = vpop.f32.mrb[0].mxu0
        %v6680 = vadd.f32 0.0, %v6679
        %v6681 = vpop.f32.mrb[0].mxu0
        %v6682 = vpop.f32.mrb[0].mxu0
        %v6683 = vadd.f32 0.0, %v6682
        %v6684 = vpop.f32.mrb[0].mxu0
        %6685 = vmatprep.mubr.bf16.mxu0 0
        %6686 = vmatmul.mubr.bf16.gmra.mrb[0].mxu0 %v3848
        %v6687 = vpop.f32.mrb[0].mxu0
        %v6688 = vadd.f32 0.0, %v6687
        %v6689 = vpop.f32.mrb[0].mxu0
        %v6690 = vpop.f32.mrb[0].mxu0
        %v6691 = vadd.f32 0.0, %v6690
        %v6692 = vpop.f32.mrb[0].mxu0
        %6693 = vmatprep.mubr.bf16.mxu0 0
        %6694 = vmatmul.mubr.bf16.gmra.mrb[0].mxu0 %v6098
        %v6695 = vpop.f32.mrb[0].mxu0
        %v6696 = vadd.f32 0.0, %v6695
        %v6697 = vpop.f32.mrb[0].mxu0
        %v6698 = vpop.f32.mrb[0].mxu0
        %v6699 = vadd.f32 0.0, %v6698
        %v6700 = vpop.f32.mrb[0].mxu0
        %6701 = vmatprep.mubr.bf16.mxu0 0
        %6702 = vmatmul.mubr.bf16.gmra.mrb[0].mxu0 %v6099
        %v6703 = vpop.f32.mrb[0].mxu0
        %v6704 = vadd.f32 0.0, %v6703
        %v6705 = vpop.f32.mrb[0].mxu0
        %v6706 = vpop.f32.mrb[0].mxu0
        %v6707 = vadd.f32 0.0, %v6706
        %v6708 = vpop.f32.mrb[0].mxu0
        %6709 = vdwg.mxu0
        %v6710 = vadd.f32 %v5970, %v6200
        %v6711 = vadd.f32 %v5971, %v6203
        %v6712 = vadd.f32 %v5972, %v6208
        %v6713 = vadd.f32 %v5973, %v6211
        %v6714 = vadd.f32 %v5974, %v6216
        %v6715 = vadd.f32 %v5975, %v6219
        %v6716 = vadd.f32 %v5976, %v6224
        %v6717 = vadd.f32 %v5977, %v6227
        %v6718 = vadd.f32 %v5978, %v6232
        %v6719 = vadd.f32 %v5979, %v6235
        %v6720 = vadd.f32 %v5980, %v6240
        %v6721 = vadd.f32 %v5981, %v6243
        %v6722 = vadd.f32 %v5982, %v6248
        %v6723 = vadd.f32 %v5983, %v6251
        %v6724 = vadd.f32 %v5984, %v6256
        %v6725 = vadd.f32 %v5985, %v6259
        %v6726 = vadd.f32 %v5986, %v6264
        %v6727 = vadd.f32 %v5987, %v6267
        %v6728 = vadd.f32 %v5988, %v6272
        %v6729 = vadd.f32 %v5989, %v6275
        %v6730 = vadd.f32 %v5990, %v6280
        %v6731 = vadd.f32 %v5991, %v6283
        %v6732 = vadd.f32 %v5992, %v6288
        %v6733 = vadd.f32 %v5993, %v6291
        %v6734 = vadd.f32 %v5994, %v6296
        %v6735 = vadd.f32 %v5995, %v6299
        %v6736 = vadd.f32 %v5996, %v6304
        %v6737 = vadd.f32 %v5997, %v6307
        %v6738 = vadd.f32 %v5998, %v6312
        %v6739 = vadd.f32 %v5999, %v6315
        %v6740 = vadd.f32 %v6000, %v6320
        %v6741 = vadd.f32 %v6001, %v6323
        %v6742 = vadd.f32 %v6002, %v6328
        %v6743 = vadd.f32 %v6003, %v6331
        %v6744 = vadd.f32 %v6004, %v6336
        %v6745 = vadd.f32 %v6005, %v6339
        %v6746 = vadd.f32 %v6006, %v6344
        %v6747 = vadd.f32 %v6007, %v6347
        %v6748 = vadd.f32 %v6008, %v6352
        %v6749 = vadd.f32 %v6009, %v6355
        %v6750 = vadd.f32 %v6010, %v6360
        %v6751 = vadd.f32 %v6011, %v6363
        %v6752 = vadd.f32 %v6012, %v6368
        %v6753 = vadd.f32 %v6013, %v6371
        %v6754 = vadd.f32 %v6014, %v6376
        %v6755 = vadd.f32 %v6015, %v6379
        %v6756 = vadd.f32 %v6016, %v6384
        %v6757 = vadd.f32 %v6017, %v6387
        %v6758 = vadd.f32 %v6018, %v6392
        %v6759 = vadd.f32 %v6019, %v6395
        %v6760 = vadd.f32 %v6020, %v6400
        %v6761 = vadd.f32 %v6021, %v6403
        %v6762 = vadd.f32 %v6022, %v6408
        %v6763 = vadd.f32 %v6023, %v6411
        %v6764 = vadd.f32 %v6024, %v6416
        %v6765 = vadd.f32 %v6025, %v6419
        %v6766 = vadd.f32 %v6026, %v6424
        %v6767 = vadd.f32 %v6027, %v6427
        %v6768 = vadd.f32 %v6028, %v6432
        %v6769 = vadd.f32 %v6029, %v6435
        %v6770 = vadd.f32 %v6030, %v6440
        %v6771 = vadd.f32 %v6031, %v6443
        %v6772 = vadd.f32 %v6032, %v6448
        %v6773 = vadd.f32 %v6033, %v6451
        %v6774 = vadd.f32 %v6034, %v6456
        %v6775 = vadd.f32 %v6035, %v6459
        %v6776 = vadd.f32 %v6036, %v6464
        %v6777 = vadd.f32 %v6037, %v6467
        %v6778 = vadd.f32 %v6038, %v6472
        %v6779 = vadd.f32 %v6039, %v6475
        %v6780 = vadd.f32 %v6040, %v6480
        %v6781 = vadd.f32 %v6041, %v6483
        %v6782 = vadd.f32 %v6042, %v6488
        %v6783 = vadd.f32 %v6043, %v6491
        %v6784 = vadd.f32 %v6044, %v6496
        %v6785 = vadd.f32 %v6045, %v6499
        %v6786 = vadd.f32 %v6046, %v6504
        %v6787 = vadd.f32 %v6047, %v6507
        %v6788 = vadd.f32 %v6048, %v6512
        %v6789 = vadd.f32 %v6049, %v6515
        %v6790 = vadd.f32 %v6050, %v6520
        %v6791 = vadd.f32 %v6051, %v6523
        %v6792 = vadd.f32 %v6052, %v6528
        %v6793 = vadd.f32 %v6053, %v6531
        %v6794 = vadd.f32 %v6054, %v6536
        %v6795 = vadd.f32 %v6055, %v6539
        %v6796 = vadd.f32 %v6056, %v6544
        %v6797 = vadd.f32 %v6057, %v6547
        %v6798 = vadd.f32 %v6058, %v6552
        %v6799 = vadd.f32 %v6059, %v6555
        %v6800 = vadd.f32 %v6060, %v6560
        %v6801 = vadd.f32 %v6061, %v6563
        %v6802 = vadd.f32 %v6062, %v6568
        %v6803 = vadd.f32 %v6063, %v6571
        %v6804 = vadd.f32 %v6064, %v6576
        %v6805 = vadd.f32 %v6065, %v6579
        %v6806 = vadd.f32 %v6066, %v6584
        %v6807 = vadd.f32 %v6067, %v6587
        %v6808 = vadd.f32 %v6068, %v6592
        %v6809 = vadd.f32 %v6069, %v6595
        %v6810 = vadd.f32 %v6070, %v6600
        %v6811 = vadd.f32 %v6071, %v6603
        %v6812 = vadd.f32 %v6072, %v6608
        %v6813 = vadd.f32 %v6073, %v6611
        %v6814 = vadd.f32 %v6074, %v6616
        %v6815 = vadd.f32 %v6075, %v6619
        %v6816 = vadd.f32 %v6076, %v6624
        %v6817 = vadd.f32 %v6077, %v6627
        %v6818 = vadd.f32 %v6078, %v6632
        %v6819 = vadd.f32 %v6079, %v6635
        %v6820 = vadd.f32 %v6080, %v6640
        %v6821 = vadd.f32 %v6081, %v6643
        %v6822 = vadd.f32 %v6082, %v6648
        %v6823 = vadd.f32 %v6083, %v6651
        %v6824 = vadd.f32 %v6084, %v6656
        %v6825 = vadd.f32 %v6085, %v6659
        %v6826 = vadd.f32 %v6086, %v6664
        %v6827 = vadd.f32 %v6087, %v6667
        %v6828 = vadd.f32 %v6088, %v6672
        %v6829 = vadd.f32 %v6089, %v6675
        %v6830 = vadd.f32 %v6090, %v6680
        %v6831 = vadd.f32 %v6091, %v6683
        %v6832 = vadd.f32 %v6092, %v6688
        %v6833 = vadd.f32 %v6093, %v6691
        %v6834 = vadd.f32 %v6094, %v6696
        %v6835 = vadd.f32 %v6095, %v6699
        %v6836 = vadd.f32 %v6096, %v6704
        %v6837 = vadd.f32 %v6097, %v6707
        %v6843 = vrot.slane %v699, 1
        %v6844 = vrot.slane %v700, 1
        %v6845 = vsel %vm944, %v6843, %v6844
        %v6846 = vrot.slane %v701, 1
        %v6847 = vsel %vm944, %v6844, %v6846
        %v6848 = vrot.slane %v702, 1
        %v6849 = vsel %vm944, %v6846, %v6848
        %v6850 = vrot.slane %v703, 1
        %v6851 = vsel %vm944, %v6848, %v6850
        %v6856 = vpack.c.bf16 %v6847, %v6845
        %v6857 = vpack.c.bf16 %v6851, %v6849
        %s6858 = scalar_lea.vmem [#allocation5], 448
        %v6859 = vld [vmem:[%s6858] sm:$0xf]
        %v6860 = vld [vmem:[%s6858 + $0x4] sm:$0xf]
        %v6861 = vld [vmem:[%s6858 + $0x8] sm:$0xf]
        %v6862 = vld [vmem:[%s6858 + $0xc] sm:$0xf]
        %v6863 = vld [vmem:[%s6858 + $0x10] sm:$0xf]
        %v6864 = vld [vmem:[%s6858 + $0x14] sm:$0xf]
        %v6865 = vld [vmem:[%s6858 + $0x18] sm:$0xf]
        %v6866 = vld [vmem:[%s6858 + $0x1c] sm:$0xf]
        %v6867 = vld [vmem:[%s6858 + $0x20] sm:$0xf]
        %v6868 = vld [vmem:[%s6858 + $0x24] sm:$0xf]
        %v6869 = vld [vmem:[%s6858 + $0x28] sm:$0xf]
        %v6870 = vld [vmem:[%s6858 + $0x2c] sm:$0xf]
        %v6871 = vld [vmem:[%s6858 + $0x30] sm:$0xf]
        %v6872 = vld [vmem:[%s6858 + $0x34] sm:$0xf]
        %v6873 = vld [vmem:[%s6858 + $0x38] sm:$0xf]
        %v6874 = vld [vmem:[%s6858 + $0x3c] sm:$0xf]
        %v6891 = vunpack.c.l.b16 %v6859
        %v6892 = vunpack.c.l.b16 %v6860
        %v6893 = vunpack.c.l.b16 %v6861
        %v6894 = vunpack.c.l.b16 %v6862
        %v6895 = vunpack.c.l.b16 %v6863
        %v6896 = vunpack.c.l.b16 %v6864
        %v6897 = vunpack.c.l.b16 %v6865
        %v6898 = vunpack.c.l.b16 %v6866
        %v6899 = vunpack.c.l.b16 %v6867
        %v6900 = vunpack.c.l.b16 %v6868
        %v6901 = vunpack.c.l.b16 %v6869
        %v6902 = vunpack.c.l.b16 %v6870
        %v6903 = vunpack.c.l.b16 %v6871
        %v6904 = vunpack.c.l.b16 %v6872
        %v6905 = vunpack.c.l.b16 %v6873
        %v6906 = vunpack.c.l.b16 %v6874
        %v6907 = vpack.c.b16 %v6892, %v6891
        %v6908 = vpack.c.b16 %v6894, %v6893
        %v6909 = vpack.c.b16 %v6896, %v6895
        %v6910 = vpack.c.b16 %v6898, %v6897
        %v6911 = vpack.c.b16 %v6900, %v6899
        %v6912 = vpack.c.b16 %v6902, %v6901
        %v6913 = vpack.c.b16 %v6904, %v6903
        %v6914 = vpack.c.b16 %v6906, %v6905
        %6923 = vmatprep.subr.bf16.mxu0 0
        %6924 = vmatpush1.bf16.msra.mxu0 %v6907
        %6925 = vmatprep.subr.bf16.mxu0 0
        %6926 = vmatpush1.bf16.msra.mxu0 %v6908
        %6927 = vmatprep.subr.bf16.mxu0 0
        %6928 = vmatpush1.bf16.msra.mxu0 %v6909
        %6929 = vmatprep.subr.bf16.mxu0 0
        %6930 = vmatpush1.bf16.msra.mxu0 %v6910
        %6931 = vmatprep.subr.bf16.mxu0 0
        %6932 = vmatpush1.bf16.msra.mxu0 %v6911
        %6933 = vmatprep.subr.bf16.mxu0 0
        %6934 = vmatpush1.bf16.msra.mxu0 %v6912
        %6935 = vmatprep.subr.bf16.mxu0 0
        %6936 = vmatpush1.bf16.msra.mxu0 %v6913
        %6937 = vmatprep.subr.bf16.mxu0 0
        %6938 = vmatpush1.bf16.msra.mxu0 %v6914
        %6939 = vmatprep.subr.bf16.mxu0 0
        %6940 = vmatpush1.bf16.msra.mxu0 0
        %6941 = vmatprep.subr.bf16.mxu0 0
        %6942 = vmatpush1.bf16.msra.mxu0 0
        %6943 = vmatprep.subr.bf16.mxu0 0
        %6944 = vmatpush1.bf16.msra.mxu0 0
        %6945 = vmatprep.subr.bf16.mxu0 0
        %6946 = vmatpush1.bf16.msra.mxu0 0
        %6947 = vmatprep.subr.bf16.mxu0 0
        %6948 = vmatpush1.bf16.msra.mxu0 0
        %6949 = vmatprep.subr.bf16.mxu0 0
        %6950 = vmatpush1.bf16.msra.mxu0 0
        %6951 = vmatprep.subr.bf16.mxu0 0
        %6952 = vmatpush1.bf16.msra.mxu0 0
        %6953 = vmatprep.subr.bf16.mxu0 0
        %6954 = vmatpush1.bf16.msra.mxu0 0
        %6955 = vmatprep.mubr.bf16.mxu0 0
        %6956 = vmatmul.mubr.bf16.gmra.mrb[0].mxu0 %v1365
        %v6957 = vpop.f32.mrb[0].mxu0
        %v6958 = vadd.f32 0.0, %v6957
        %v6959 = vpop.f32.mrb[0].mxu0
        %v6960 = vpop.f32.mrb[0].mxu0
        %v6961 = vadd.f32 0.0, %v6960
        %v6962 = vpop.f32.mrb[0].mxu0
        %6963 = vmatprep.mubr.bf16.mxu0 0
        %6964 = vmatmul.mubr.bf16.gmra.mrb[0].mxu0 %v1366
        %v6965 = vpop.f32.mrb[0].mxu0
        %v6966 = vadd.f32 0.0, %v6965
        %v6967 = vpop.f32.mrb[0].mxu0
        %v6968 = vpop.f32.mrb[0].mxu0
        %v6969 = vadd.f32 0.0, %v6968
        %v6970 = vpop.f32.mrb[0].mxu0
        %6971 = vmatprep.mubr.bf16.mxu0 0
        %6972 = vmatmul.mubr.bf16.gmra.mrb[0].mxu0 %v1367
        %v6973 = vpop.f32.mrb[0].mxu0
        %v6974 = vadd.f32 0.0, %v6973
        %v6975 = vpop.f32.mrb[0].mxu0
        %v6976 = vpop.f32.mrb[0].mxu0
        %v6977 = vadd.f32 0.0, %v6976
        %v6978 = vpop.f32.mrb[0].mxu0
        %6979 = vmatprep.mubr.bf16.mxu0 0
        %6980 = vmatmul.mubr.bf16.gmra.mrb[0].mxu0 %v1368
        %v6981 = vpop.f32.mrb[0].mxu0
        %v6982 = vadd.f32 0.0, %v6981
        %v6983 = vpop.f32.mrb[0].mxu0
        %v6984 = vpop.f32.mrb[0].mxu0
        %v6985 = vadd.f32 0.0, %v6984
        %v6986 = vpop.f32.mrb[0].mxu0
        %6987 = vmatprep.mubr.bf16.mxu0 0
        %6988 = vmatmul.mubr.bf16.gmra.mrb[0].mxu0 %v1369
        %v6989 = vpop.f32.mrb[0].mxu0
        %v6990 = vadd.f32 0.0, %v6989
        %v6991 = vpop.f32.mrb[0].mxu0
        %v6992 = vpop.f32.mrb[0].mxu0
        %v6993 = vadd.f32 0.0, %v6992
        %v6994 = vpop.f32.mrb[0].mxu0
        %6995 = vmatprep.mubr.bf16.mxu0 0
        %6996 = vmatmul.mubr.bf16.gmra.mrb[0].mxu0 %v1370
        %v6997 = vpop.f32.mrb[0].mxu0
        %v6998 = vadd.f32 0.0, %v6997
        %v6999 = vpop.f32.mrb[0].mxu0
        %v7000 = vpop.f32.mrb[0].mxu0
        %v7001 = vadd.f32 0.0, %v7000
        %v7002 = vpop.f32.mrb[0].mxu0
        %7003 = vmatprep.mubr.bf16.mxu0 0
        %7004 = vmatmul.mubr.bf16.gmra.mrb[0].mxu0 %v1371
        %v7005 = vpop.f32.mrb[0].mxu0
        %v7006 = vadd.f32 0.0, %v7005
        %v7007 = vpop.f32.mrb[0].mxu0
        %v7008 = vpop.f32.mrb[0].mxu0
        %v7009 = vadd.f32 0.0, %v7008
        %v7010 = vpop.f32.mrb[0].mxu0
        %7011 = vmatprep.mubr.bf16.mxu0 0
        %7012 = vmatmul.mubr.bf16.gmra.mrb[0].mxu0 %v1372
        %v7013 = vpop.f32.mrb[0].mxu0
        %v7014 = vadd.f32 0.0, %v7013
        %v7015 = vpop.f32.mrb[0].mxu0
        %v7016 = vpop.f32.mrb[0].mxu0
        %v7017 = vadd.f32 0.0, %v7016
        %v7018 = vpop.f32.mrb[0].mxu0
        %7019 = vmatprep.mubr.bf16.mxu0 0
        %7020 = vmatmul.mubr.bf16.gmra.mrb[0].mxu0 %v1373
        %v7021 = vpop.f32.mrb[0].mxu0
        %v7022 = vadd.f32 0.0, %v7021
        %v7023 = vpop.f32.mrb[0].mxu0
        %v7024 = vpop.f32.mrb[0].mxu0
        %v7025 = vadd.f32 0.0, %v7024
        %v7026 = vpop.f32.mrb[0].mxu0
        %7027 = vmatprep.mubr.bf16.mxu0 0
        %7028 = vmatmul.mubr.bf16.gmra.mrb[0].mxu0 %v1374
        %v7029 = vpop.f32.mrb[0].mxu0
        %v7030 = vadd.f32 0.0, %v7029
        %v7031 = vpop.f32.mrb[0].mxu0
        %v7032 = vpop.f32.mrb[0].mxu0
        %v7033 = vadd.f32 0.0, %v7032
        %v7034 = vpop.f32.mrb[0].mxu0
        %7035 = vmatprep.mubr.bf16.mxu0 0
        %7036 = vmatmul.mubr.bf16.gmra.mrb[0].mxu0 %v1375
        %v7037 = vpop.f32.mrb[0].mxu0
        %v7038 = vadd.f32 0.0, %v7037
        %v7039 = vpop.f32.mrb[0].mxu0
        %v7040 = vpop.f32.mrb[0].mxu0
        %v7041 = vadd.f32 0.0, %v7040
        %v7042 = vpop.f32.mrb[0].mxu0
        %7043 = vmatprep.mubr.bf16.mxu0 0
        %7044 = vmatmul.mubr.bf16.gmra.mrb[0].mxu0 %v1376
        %v7045 = vpop.f32.mrb[0].mxu0
        %v7046 = vadd.f32 0.0, %v7045
        %v7047 = vpop.f32.mrb[0].mxu0
        %v7048 = vpop.f32.mrb[0].mxu0
        %v7049 = vadd.f32 0.0, %v7048
        %v7050 = vpop.f32.mrb[0].mxu0
        %7051 = vmatprep.mubr.bf16.mxu0 0
        %7052 = vmatmul.mubr.bf16.gmra.mrb[0].mxu0 %v1377
        %v7053 = vpop.f32.mrb[0].mxu0
        %v7054 = vadd.f32 0.0, %v7053
        %v7055 = vpop.f32.mrb[0].mxu0
        %v7056 = vpop.f32.mrb[0].mxu0
        %v7057 = vadd.f32 0.0, %v7056
        %v7058 = vpop.f32.mrb[0].mxu0
        %7059 = vmatprep.mubr.bf16.mxu0 0
        %7060 = vmatmul.mubr.bf16.gmra.mrb[0].mxu0 %v1378
        %v7061 = vpop.f32.mrb[0].mxu0
        %v7062 = vadd.f32 0.0, %v7061
        %v7063 = vpop.f32.mrb[0].mxu0
        %v7064 = vpop.f32.mrb[0].mxu0
        %v7065 = vadd.f32 0.0, %v7064
        %v7066 = vpop.f32.mrb[0].mxu0
        %7067 = vmatprep.mubr.bf16.mxu0 0
        %7068 = vmatmul.mubr.bf16.gmra.mrb[0].mxu0 %v1379
        %v7069 = vpop.f32.mrb[0].mxu0
        %v7070 = vadd.f32 0.0, %v7069
        %v7071 = vpop.f32.mrb[0].mxu0
        %v7072 = vpop.f32.mrb[0].mxu0
        %v7073 = vadd.f32 0.0, %v7072
        %v7074 = vpop.f32.mrb[0].mxu0
        %7075 = vmatprep.mubr.bf16.mxu0 0
        %7076 = vmatmul.mubr.bf16.gmra.mrb[0].mxu0 %v1380
        %v7077 = vpop.f32.mrb[0].mxu0
        %v7078 = vadd.f32 0.0, %v7077
        %v7079 = vpop.f32.mrb[0].mxu0
        %v7080 = vpop.f32.mrb[0].mxu0
        %v7081 = vadd.f32 0.0, %v7080
        %v7082 = vpop.f32.mrb[0].mxu0
        %7083 = vmatprep.mubr.bf16.mxu0 0
        %7084 = vmatmul.mubr.bf16.gmra.mrb[0].mxu0 %v1381
        %v7085 = vpop.f32.mrb[0].mxu0
        %v7086 = vadd.f32 0.0, %v7085
        %v7087 = vpop.f32.mrb[0].mxu0
        %v7088 = vpop.f32.mrb[0].mxu0
        %v7089 = vadd.f32 0.0, %v7088
        %v7090 = vpop.f32.mrb[0].mxu0
        %7091 = vmatprep.mubr.bf16.mxu0 0
        %7092 = vmatmul.mubr.bf16.gmra.mrb[0].mxu0 %v1382
        %v7093 = vpop.f32.mrb[0].mxu0
        %v7094 = vadd.f32 0.0, %v7093
        %v7095 = vpop.f32.mrb[0].mxu0
        %v7096 = vpop.f32.mrb[0].mxu0
        %v7097 = vadd.f32 0.0, %v7096
        %v7098 = vpop.f32.mrb[0].mxu0
        %7099 = vmatprep.mubr.bf16.mxu0 0
        %7100 = vmatmul.mubr.bf16.gmra.mrb[0].mxu0 %v1383
        %v7101 = vpop.f32.mrb[0].mxu0
        %v7102 = vadd.f32 0.0, %v7101
        %v7103 = vpop.f32.mrb[0].mxu0
        %v7104 = vpop.f32.mrb[0].mxu0
        %v7105 = vadd.f32 0.0, %v7104
        %v7106 = vpop.f32.mrb[0].mxu0
        %7107 = vmatprep.mubr.bf16.mxu0 0
        %7108 = vmatmul.mubr.bf16.gmra.mrb[0].mxu0 %v1384
        %v7109 = vpop.f32.mrb[0].mxu0
        %v7110 = vadd.f32 0.0, %v7109
        %v7111 = vpop.f32.mrb[0].mxu0
        %v7112 = vpop.f32.mrb[0].mxu0
        %v7113 = vadd.f32 0.0, %v7112
        %v7114 = vpop.f32.mrb[0].mxu0
        %7115 = vmatprep.mubr.bf16.mxu0 0
        %7116 = vmatmul.mubr.bf16.gmra.mrb[0].mxu0 %v1385
        %v7117 = vpop.f32.mrb[0].mxu0
        %v7118 = vadd.f32 0.0, %v7117
        %v7119 = vpop.f32.mrb[0].mxu0
        %v7120 = vpop.f32.mrb[0].mxu0
        %v7121 = vadd.f32 0.0, %v7120
        %v7122 = vpop.f32.mrb[0].mxu0
        %7123 = vmatprep.mubr.bf16.mxu0 0
        %7124 = vmatmul.mubr.bf16.gmra.mrb[0].mxu0 %v1386
        %v7125 = vpop.f32.mrb[0].mxu0
        %v7126 = vadd.f32 0.0, %v7125
        %v7127 = vpop.f32.mrb[0].mxu0
        %v7128 = vpop.f32.mrb[0].mxu0
        %v7129 = vadd.f32 0.0, %v7128
        %v7130 = vpop.f32.mrb[0].mxu0
        %7131 = vmatprep.mubr.bf16.mxu0 0
        %7132 = vmatmul.mubr.bf16.gmra.mrb[0].mxu0 %v1387
        %v7133 = vpop.f32.mrb[0].mxu0
        %v7134 = vadd.f32 0.0, %v7133
        %v7135 = vpop.f32.mrb[0].mxu0
        %v7136 = vpop.f32.mrb[0].mxu0
        %v7137 = vadd.f32 0.0, %v7136
        %v7138 = vpop.f32.mrb[0].mxu0
        %7139 = vmatprep.mubr.bf16.mxu0 0
        %7140 = vmatmul.mubr.bf16.gmra.mrb[0].mxu0 %v1388
        %v7141 = vpop.f32.mrb[0].mxu0
        %v7142 = vadd.f32 0.0, %v7141
        %v7143 = vpop.f32.mrb[0].mxu0
        %v7144 = vpop.f32.mrb[0].mxu0
        %v7145 = vadd.f32 0.0, %v7144
        %v7146 = vpop.f32.mrb[0].mxu0
        %7147 = vmatprep.mubr.bf16.mxu0 0
        %7148 = vmatmul.mubr.bf16.gmra.mrb[0].mxu0 %v1389
        %v7149 = vpop.f32.mrb[0].mxu0
        %v7150 = vadd.f32 0.0, %v7149
        %v7151 = vpop.f32.mrb[0].mxu0
        %v7152 = vpop.f32.mrb[0].mxu0
        %v7153 = vadd.f32 0.0, %v7152
        %v7154 = vpop.f32.mrb[0].mxu0
        %7155 = vmatprep.mubr.bf16.mxu0 0
        %7156 = vmatmul.mubr.bf16.gmra.mrb[0].mxu0 %v1390
        %v7157 = vpop.f32.mrb[0].mxu0
        %v7158 = vadd.f32 0.0, %v7157
        %v7159 = vpop.f32.mrb[0].mxu0
        %v7160 = vpop.f32.mrb[0].mxu0
        %v7161 = vadd.f32 0.0, %v7160
        %v7162 = vpop.f32.mrb[0].mxu0
        %7163 = vmatprep.mubr.bf16.mxu0 0
        %7164 = vmatmul.mubr.bf16.gmra.mrb[0].mxu0 %v1391
        %v7165 = vpop.f32.mrb[0].mxu0
        %v7166 = vadd.f32 0.0, %v7165
        %v7167 = vpop.f32.mrb[0].mxu0
        %v7168 = vpop.f32.mrb[0].mxu0
        %v7169 = vadd.f32 0.0, %v7168
        %v7170 = vpop.f32.mrb[0].mxu0
        %7171 = vmatprep.mubr.bf16.mxu0 0
        %7172 = vmatmul.mubr.bf16.gmra.mrb[0].mxu0 %v1392
        %v7173 = vpop.f32.mrb[0].mxu0
        %v7174 = vadd.f32 0.0, %v7173
        %v7175 = vpop.f32.mrb[0].mxu0
        %v7176 = vpop.f32.mrb[0].mxu0
        %v7177 = vadd.f32 0.0, %v7176
        %v7178 = vpop.f32.mrb[0].mxu0
        %7179 = vmatprep.mubr.bf16.mxu0 0
        %7180 = vmatmul.mubr.bf16.gmra.mrb[0].mxu0 %v1393
        %v7181 = vpop.f32.mrb[0].mxu0
        %v7182 = vadd.f32 0.0, %v7181
        %v7183 = vpop.f32.mrb[0].mxu0
        %v7184 = vpop.f32.mrb[0].mxu0
        %v7185 = vadd.f32 0.0, %v7184
        %v7186 = vpop.f32.mrb[0].mxu0
        %7187 = vmatprep.mubr.bf16.mxu0 0
        %7188 = vmatmul.mubr.bf16.gmra.mrb[0].mxu0 %v1394
        %v7189 = vpop.f32.mrb[0].mxu0
        %v7190 = vadd.f32 0.0, %v7189
        %v7191 = vpop.f32.mrb[0].mxu0
        %v7192 = vpop.f32.mrb[0].mxu0
        %v7193 = vadd.f32 0.0, %v7192
        %v7194 = vpop.f32.mrb[0].mxu0
        %7195 = vmatprep.mubr.bf16.mxu0 0
        %7196 = vmatmul.mubr.bf16.gmra.mrb[0].mxu0 %v1395
        %v7197 = vpop.f32.mrb[0].mxu0
        %v7198 = vadd.f32 0.0, %v7197
        %v7199 = vpop.f32.mrb[0].mxu0
        %v7200 = vpop.f32.mrb[0].mxu0
        %v7201 = vadd.f32 0.0, %v7200
        %v7202 = vpop.f32.mrb[0].mxu0
        %7203 = vmatprep.mubr.bf16.mxu0 0
        %7204 = vmatmul.mubr.bf16.gmra.mrb[0].mxu0 %v1396
        %v7205 = vpop.f32.mrb[0].mxu0
        %v7206 = vadd.f32 0.0, %v7205
        %v7207 = vpop.f32.mrb[0].mxu0
        %v7208 = vpop.f32.mrb[0].mxu0
        %v7209 = vadd.f32 0.0, %v7208
        %v7210 = vpop.f32.mrb[0].mxu0
        %7211 = vmatprep.mubr.bf16.mxu0 0
        %7212 = vmatmul.mubr.bf16.gmra.mrb[0].mxu0 %v1397
        %v7213 = vpop.f32.mrb[0].mxu0
        %v7214 = vadd.f32 0.0, %v7213
        %v7215 = vpop.f32.mrb[0].mxu0
        %v7216 = vpop.f32.mrb[0].mxu0
        %v7217 = vadd.f32 0.0, %v7216
        %v7218 = vpop.f32.mrb[0].mxu0
        %7219 = vmatprep.mubr.bf16.mxu0 0
        %7220 = vmatmul.mubr.bf16.gmra.mrb[0].mxu0 %v1398
        %v7221 = vpop.f32.mrb[0].mxu0
        %v7222 = vadd.f32 0.0, %v7221
        %v7223 = vpop.f32.mrb[0].mxu0
        %v7224 = vpop.f32.mrb[0].mxu0
        %v7225 = vadd.f32 0.0, %v7224
        %v7226 = vpop.f32.mrb[0].mxu0
        %7227 = vmatprep.mubr.bf16.mxu0 0
        %7228 = vmatmul.mubr.bf16.gmra.mrb[0].mxu0 %v1399
        %v7229 = vpop.f32.mrb[0].mxu0
        %v7230 = vadd.f32 0.0, %v7229
        %v7231 = vpop.f32.mrb[0].mxu0
        %v7232 = vpop.f32.mrb[0].mxu0
        %v7233 = vadd.f32 0.0, %v7232
        %v7234 = vpop.f32.mrb[0].mxu0
        %7235 = vmatprep.mubr.bf16.mxu0 0
        %7236 = vmatmul.mubr.bf16.gmra.mrb[0].mxu0 %v1400
        %v7237 = vpop.f32.mrb[0].mxu0
        %v7238 = vadd.f32 0.0, %v7237
        %v7239 = vpop.f32.mrb[0].mxu0
        %v7240 = vpop.f32.mrb[0].mxu0
        %v7241 = vadd.f32 0.0, %v7240
        %v7242 = vpop.f32.mrb[0].mxu0
        %7243 = vmatprep.mubr.bf16.mxu0 0
        %7244 = vmatmul.mubr.bf16.gmra.mrb[0].mxu0 %v1401
        %v7245 = vpop.f32.mrb[0].mxu0
        %v7246 = vadd.f32 0.0, %v7245
        %v7247 = vpop.f32.mrb[0].mxu0
        %v7248 = vpop.f32.mrb[0].mxu0
        %v7249 = vadd.f32 0.0, %v7248
        %v7250 = vpop.f32.mrb[0].mxu0
        %7251 = vmatprep.mubr.bf16.mxu0 0
        %7252 = vmatmul.mubr.bf16.gmra.mrb[0].mxu0 %v1402
        %v7253 = vpop.f32.mrb[0].mxu0
        %v7254 = vadd.f32 0.0, %v7253
        %v7255 = vpop.f32.mrb[0].mxu0
        %v7256 = vpop.f32.mrb[0].mxu0
        %v7257 = vadd.f32 0.0, %v7256
        %v7258 = vpop.f32.mrb[0].mxu0
        %7259 = vmatprep.mubr.bf16.mxu0 0
        %7260 = vmatmul.mubr.bf16.gmra.mrb[0].mxu0 %v1403
        %v7261 = vpop.f32.mrb[0].mxu0
        %v7262 = vadd.f32 0.0, %v7261
        %v7263 = vpop.f32.mrb[0].mxu0
        %v7264 = vpop.f32.mrb[0].mxu0
        %v7265 = vadd.f32 0.0, %v7264
        %v7266 = vpop.f32.mrb[0].mxu0
        %7267 = vmatprep.mubr.bf16.mxu0 0
        %7268 = vmatmul.mubr.bf16.gmra.mrb[0].mxu0 %v1404
        %v7269 = vpop.f32.mrb[0].mxu0
        %v7270 = vadd.f32 0.0, %v7269
        %v7271 = vpop.f32.mrb[0].mxu0
        %v7272 = vpop.f32.mrb[0].mxu0
        %v7273 = vadd.f32 0.0, %v7272
        %v7274 = vpop.f32.mrb[0].mxu0
        %7275 = vmatprep.mubr.bf16.mxu0 0
        %7276 = vmatmul.mubr.bf16.gmra.mrb[0].mxu0 %v1405
        %v7277 = vpop.f32.mrb[0].mxu0
        %v7278 = vadd.f32 0.0, %v7277
        %v7279 = vpop.f32.mrb[0].mxu0
        %v7280 = vpop.f32.mrb[0].mxu0
        %v7281 = vadd.f32 0.0, %v7280
        %v7282 = vpop.f32.mrb[0].mxu0
        %7283 = vmatprep.mubr.bf16.mxu0 0
        %7284 = vmatmul.mubr.bf16.gmra.mrb[0].mxu0 %v1406
        %v7285 = vpop.f32.mrb[0].mxu0
        %v7286 = vadd.f32 0.0, %v7285
        %v7287 = vpop.f32.mrb[0].mxu0
        %v7288 = vpop.f32.mrb[0].mxu0
        %v7289 = vadd.f32 0.0, %v7288
        %v7290 = vpop.f32.mrb[0].mxu0
        %7291 = vmatprep.mubr.bf16.mxu0 0
        %7292 = vmatmul.mubr.bf16.gmra.mrb[0].mxu0 %v1407
        %v7293 = vpop.f32.mrb[0].mxu0
        %v7294 = vadd.f32 0.0, %v7293
        %v7295 = vpop.f32.mrb[0].mxu0
        %v7296 = vpop.f32.mrb[0].mxu0
        %v7297 = vadd.f32 0.0, %v7296
        %v7298 = vpop.f32.mrb[0].mxu0
        %7299 = vmatprep.mubr.bf16.mxu0 0
        %7300 = vmatmul.mubr.bf16.gmra.mrb[0].mxu0 %v1408
        %v7301 = vpop.f32.mrb[0].mxu0
        %v7302 = vadd.f32 0.0, %v7301
        %v7303 = vpop.f32.mrb[0].mxu0
        %v7304 = vpop.f32.mrb[0].mxu0
        %v7305 = vadd.f32 0.0, %v7304
        %v7306 = vpop.f32.mrb[0].mxu0
        %7307 = vmatprep.mubr.bf16.mxu0 0
        %7308 = vmatmul.mubr.bf16.gmra.mrb[0].mxu0 %v1409
        %v7309 = vpop.f32.mrb[0].mxu0
        %v7310 = vadd.f32 0.0, %v7309
        %v7311 = vpop.f32.mrb[0].mxu0
        %v7312 = vpop.f32.mrb[0].mxu0
        %v7313 = vadd.f32 0.0, %v7312
        %v7314 = vpop.f32.mrb[0].mxu0
        %7315 = vmatprep.mubr.bf16.mxu0 0
        %7316 = vmatmul.mubr.bf16.gmra.mrb[0].mxu0 %v1410
        %v7317 = vpop.f32.mrb[0].mxu0
        %v7318 = vadd.f32 0.0, %v7317
        %v7319 = vpop.f32.mrb[0].mxu0
        %v7320 = vpop.f32.mrb[0].mxu0
        %v7321 = vadd.f32 0.0, %v7320
        %v7322 = vpop.f32.mrb[0].mxu0
        %7323 = vmatprep.mubr.bf16.mxu0 0
        %7324 = vmatmul.mubr.bf16.gmra.mrb[0].mxu0 %v1411
        %v7325 = vpop.f32.mrb[0].mxu0
        %v7326 = vadd.f32 0.0, %v7325
        %v7327 = vpop.f32.mrb[0].mxu0
        %v7328 = vpop.f32.mrb[0].mxu0
        %v7329 = vadd.f32 0.0, %v7328
        %v7330 = vpop.f32.mrb[0].mxu0
        %7331 = vmatprep.mubr.bf16.mxu0 0
        %7332 = vmatmul.mubr.bf16.gmra.mrb[0].mxu0 %v1412
        %v7333 = vpop.f32.mrb[0].mxu0
        %v7334 = vadd.f32 0.0, %v7333
        %v7335 = vpop.f32.mrb[0].mxu0
        %v7336 = vpop.f32.mrb[0].mxu0
        %v7337 = vadd.f32 0.0, %v7336
        %v7338 = vpop.f32.mrb[0].mxu0
        %7339 = vmatprep.mubr.bf16.mxu0 0
        %7340 = vmatmul.mubr.bf16.gmra.mrb[0].mxu0 %v1413
        %v7341 = vpop.f32.mrb[0].mxu0
        %v7342 = vadd.f32 0.0, %v7341
        %v7343 = vpop.f32.mrb[0].mxu0
        %v7344 = vpop.f32.mrb[0].mxu0
        %v7345 = vadd.f32 0.0, %v7344
        %v7346 = vpop.f32.mrb[0].mxu0
        %7347 = vmatprep.mubr.bf16.mxu0 0
        %7348 = vmatmul.mubr.bf16.gmra.mrb[0].mxu0 %v1414
        %v7349 = vpop.f32.mrb[0].mxu0
        %v7350 = vadd.f32 0.0, %v7349
        %v7351 = vpop.f32.mrb[0].mxu0
        %v7352 = vpop.f32.mrb[0].mxu0
        %v7353 = vadd.f32 0.0, %v7352
        %v7354 = vpop.f32.mrb[0].mxu0
        %7355 = vmatprep.mubr.bf16.mxu0 0
        %7356 = vmatmul.mubr.bf16.gmra.mrb[0].mxu0 %v1415
        %v7357 = vpop.f32.mrb[0].mxu0
        %v7358 = vadd.f32 0.0, %v7357
        %v7359 = vpop.f32.mrb[0].mxu0
        %v7360 = vpop.f32.mrb[0].mxu0
        %v7361 = vadd.f32 0.0, %v7360
        %v7362 = vpop.f32.mrb[0].mxu0
        %7363 = vmatprep.mubr.bf16.mxu0 0
        %7364 = vmatmul.mubr.bf16.gmra.mrb[0].mxu0 %v1416
        %v7365 = vpop.f32.mrb[0].mxu0
        %v7366 = vadd.f32 0.0, %v7365
        %v7367 = vpop.f32.mrb[0].mxu0
        %v7368 = vpop.f32.mrb[0].mxu0
        %v7369 = vadd.f32 0.0, %v7368
        %v7370 = vpop.f32.mrb[0].mxu0
        %7371 = vmatprep.mubr.bf16.mxu0 0
        %7372 = vmatmul.mubr.bf16.gmra.mrb[0].mxu0 %v1417
        %v7373 = vpop.f32.mrb[0].mxu0
        %v7374 = vadd.f32 0.0, %v7373
        %v7375 = vpop.f32.mrb[0].mxu0
        %v7376 = vpop.f32.mrb[0].mxu0
        %v7377 = vadd.f32 0.0, %v7376
        %v7378 = vpop.f32.mrb[0].mxu0
        %7379 = vmatprep.mubr.bf16.mxu0 0
        %7380 = vmatmul.mubr.bf16.gmra.mrb[0].mxu0 %v1418
        %v7381 = vpop.f32.mrb[0].mxu0
        %v7382 = vadd.f32 0.0, %v7381
        %v7383 = vpop.f32.mrb[0].mxu0
        %v7384 = vpop.f32.mrb[0].mxu0
        %v7385 = vadd.f32 0.0, %v7384
        %v7386 = vpop.f32.mrb[0].mxu0
        %7387 = vmatprep.mubr.bf16.mxu0 0
        %7388 = vmatmul.mubr.bf16.gmra.mrb[0].mxu0 %v1419
        %v7389 = vpop.f32.mrb[0].mxu0
        %v7390 = vadd.f32 0.0, %v7389
        %v7391 = vpop.f32.mrb[0].mxu0
        %v7392 = vpop.f32.mrb[0].mxu0
        %v7393 = vadd.f32 0.0, %v7392
        %v7394 = vpop.f32.mrb[0].mxu0
        %7395 = vmatprep.mubr.bf16.mxu0 0
        %7396 = vmatmul.mubr.bf16.gmra.mrb[0].mxu0 %v1420
        %v7397 = vpop.f32.mrb[0].mxu0
        %v7398 = vadd.f32 0.0, %v7397
        %v7399 = vpop.f32.mrb[0].mxu0
        %v7400 = vpop.f32.mrb[0].mxu0
        %v7401 = vadd.f32 0.0, %v7400
        %v7402 = vpop.f32.mrb[0].mxu0
        %7403 = vmatprep.mubr.bf16.mxu0 0
        %7404 = vmatmul.mubr.bf16.gmra.mrb[0].mxu0 %v1421
        %v7405 = vpop.f32.mrb[0].mxu0
        %v7406 = vadd.f32 0.0, %v7405
        %v7407 = vpop.f32.mrb[0].mxu0
        %v7408 = vpop.f32.mrb[0].mxu0
        %v7409 = vadd.f32 0.0, %v7408
        %v7410 = vpop.f32.mrb[0].mxu0
        %7411 = vmatprep.mubr.bf16.mxu0 0
        %7412 = vmatmul.mubr.bf16.gmra.mrb[0].mxu0 %v1422
        %v7413 = vpop.f32.mrb[0].mxu0
        %v7414 = vadd.f32 0.0, %v7413
        %v7415 = vpop.f32.mrb[0].mxu0
        %v7416 = vpop.f32.mrb[0].mxu0
        %v7417 = vadd.f32 0.0, %v7416
        %v7418 = vpop.f32.mrb[0].mxu0
        %7419 = vmatprep.mubr.bf16.mxu0 0
        %7420 = vmatmul.mubr.bf16.gmra.mrb[0].mxu0 %v1423
        %v7421 = vpop.f32.mrb[0].mxu0
        %v7422 = vadd.f32 0.0, %v7421
        %v7423 = vpop.f32.mrb[0].mxu0
        %v7424 = vpop.f32.mrb[0].mxu0
        %v7425 = vadd.f32 0.0, %v7424
        %v7426 = vpop.f32.mrb[0].mxu0
        %7427 = vmatprep.mubr.bf16.mxu0 0
        %7428 = vmatmul.mubr.bf16.gmra.mrb[0].mxu0 %v1424
        %v7429 = vpop.f32.mrb[0].mxu0
        %v7430 = vadd.f32 0.0, %v7429
        %v7431 = vpop.f32.mrb[0].mxu0
        %v7432 = vpop.f32.mrb[0].mxu0
        %v7433 = vadd.f32 0.0, %v7432
        %v7434 = vpop.f32.mrb[0].mxu0
        %7435 = vmatprep.mubr.bf16.mxu0 0
        %7436 = vmatmul.mubr.bf16.gmra.mrb[0].mxu0 %v4605
        %v7437 = vpop.f32.mrb[0].mxu0
        %v7438 = vadd.f32 0.0, %v7437
        %v7439 = vpop.f32.mrb[0].mxu0
        %v7440 = vpop.f32.mrb[0].mxu0
        %v7441 = vadd.f32 0.0, %v7440
        %v7442 = vpop.f32.mrb[0].mxu0
        %7443 = vmatprep.mubr.bf16.mxu0 0
        %7444 = vmatmul.mubr.bf16.gmra.mrb[0].mxu0 %v4606
        %v7445 = vpop.f32.mrb[0].mxu0
        %v7446 = vadd.f32 0.0, %v7445
        %v7447 = vpop.f32.mrb[0].mxu0
        %v7448 = vpop.f32.mrb[0].mxu0
        %v7449 = vadd.f32 0.0, %v7448
        %v7450 = vpop.f32.mrb[0].mxu0
        %7451 = vmatprep.mubr.bf16.mxu0 0
        %7452 = vmatmul.mubr.bf16.gmra.mrb[0].mxu0 %v6856
        %v7453 = vpop.f32.mrb[0].mxu0
        %v7454 = vadd.f32 0.0, %v7453
        %v7455 = vpop.f32.mrb[0].mxu0
        %v7456 = vpop.f32.mrb[0].mxu0
        %v7457 = vadd.f32 0.0, %v7456
        %v7458 = vpop.f32.mrb[0].mxu0
        %7459 = vmatprep.mubr.bf16.mxu0 0
        %7460 = vmatmul.mubr.bf16.gmra.mrb[0].mxu0 %v6857
        %v7461 = vpop.f32.mrb[0].mxu0
        %v7462 = vadd.f32 0.0, %v7461
        %v7463 = vpop.f32.mrb[0].mxu0
        %v7464 = vpop.f32.mrb[0].mxu0
        %v7465 = vadd.f32 0.0, %v7464
        %v7466 = vpop.f32.mrb[0].mxu0
        %7467 = vdwg.mxu0
        %v7468 = vadd.f32 %v6710, %v6958
        %v7469 = vadd.f32 %v6711, %v6961
        %v7470 = vadd.f32 %v6712, %v6966
        %v7471 = vadd.f32 %v6713, %v6969
        %v7472 = vadd.f32 %v6714, %v6974
        %v7473 = vadd.f32 %v6715, %v6977
        %v7474 = vadd.f32 %v6716, %v6982
        %v7475 = vadd.f32 %v6717, %v6985
        %v7476 = vadd.f32 %v6718, %v6990
        %v7477 = vadd.f32 %v6719, %v6993
        %v7478 = vadd.f32 %v6720, %v6998
        %v7479 = vadd.f32 %v6721, %v7001
        %v7480 = vadd.f32 %v6722, %v7006
        %v7481 = vadd.f32 %v6723, %v7009
        %v7482 = vadd.f32 %v6724, %v7014
        %v7483 = vadd.f32 %v6725, %v7017
        %v7484 = vadd.f32 %v6726, %v7022
        %v7485 = vadd.f32 %v6727, %v7025
        %v7486 = vadd.f32 %v6728, %v7030
        %v7487 = vadd.f32 %v6729, %v7033
        %v7488 = vadd.f32 %v6730, %v7038
        %v7489 = vadd.f32 %v6731, %v7041
        %v7490 = vadd.f32 %v6732, %v7046
        %v7491 = vadd.f32 %v6733, %v7049
        %v7492 = vadd.f32 %v6734, %v7054
        %v7493 = vadd.f32 %v6735, %v7057
        %v7494 = vadd.f32 %v6736, %v7062
        %v7495 = vadd.f32 %v6737, %v7065
        %v7496 = vadd.f32 %v6738, %v7070
        %v7497 = vadd.f32 %v6739, %v7073
        %v7498 = vadd.f32 %v6740, %v7078
        %v7499 = vadd.f32 %v6741, %v7081
        %v7500 = vadd.f32 %v6742, %v7086
        %v7501 = vadd.f32 %v6743, %v7089
        %v7502 = vadd.f32 %v6744, %v7094
        %v7503 = vadd.f32 %v6745, %v7097
        %v7504 = vadd.f32 %v6746, %v7102
        %v7505 = vadd.f32 %v6747, %v7105
        %v7506 = vadd.f32 %v6748, %v7110
        %v7507 = vadd.f32 %v6749, %v7113
        %v7508 = vadd.f32 %v6750, %v7118
        %v7509 = vadd.f32 %v6751, %v7121
        %v7510 = vadd.f32 %v6752, %v7126
        %v7511 = vadd.f32 %v6753, %v7129
        %v7512 = vadd.f32 %v6754, %v7134
        %v7513 = vadd.f32 %v6755, %v7137
        %v7514 = vadd.f32 %v6756, %v7142
        %v7515 = vadd.f32 %v6757, %v7145
        %v7516 = vadd.f32 %v6758, %v7150
        %v7517 = vadd.f32 %v6759, %v7153
        %v7518 = vadd.f32 %v6760, %v7158
        %v7519 = vadd.f32 %v6761, %v7161
        %v7520 = vadd.f32 %v6762, %v7166
        %v7521 = vadd.f32 %v6763, %v7169
        %v7522 = vadd.f32 %v6764, %v7174
        %v7523 = vadd.f32 %v6765, %v7177
        %v7524 = vadd.f32 %v6766, %v7182
        %v7525 = vadd.f32 %v6767, %v7185
        %v7526 = vadd.f32 %v6768, %v7190
        %v7527 = vadd.f32 %v6769, %v7193
        %v7528 = vadd.f32 %v6770, %v7198
        %v7529 = vadd.f32 %v6771, %v7201
        %v7530 = vadd.f32 %v6772, %v7206
        %v7531 = vadd.f32 %v6773, %v7209
        %v7532 = vadd.f32 %v6774, %v7214
        %v7533 = vadd.f32 %v6775, %v7217
        %v7534 = vadd.f32 %v6776, %v7222
        %v7535 = vadd.f32 %v6777, %v7225
        %v7536 = vadd.f32 %v6778, %v7230
        %v7537 = vadd.f32 %v6779, %v7233
        %v7538 = vadd.f32 %v6780, %v7238
        %v7539 = vadd.f32 %v6781, %v7241
        %v7540 = vadd.f32 %v6782, %v7246
        %v7541 = vadd.f32 %v6783, %v7249
        %v7542 = vadd.f32 %v6784, %v7254
        %v7543 = vadd.f32 %v6785, %v7257
        %v7544 = vadd.f32 %v6786, %v7262
        %v7545 = vadd.f32 %v6787, %v7265
        %v7546 = vadd.f32 %v6788, %v7270
        %v7547 = vadd.f32 %v6789, %v7273
        %v7548 = vadd.f32 %v6790, %v7278
        %v7549 = vadd.f32 %v6791, %v7281
        %v7550 = vadd.f32 %v6792, %v7286
        %v7551 = vadd.f32 %v6793, %v7289
        %v7552 = vadd.f32 %v6794, %v7294
        %v7553 = vadd.f32 %v6795, %v7297
        %v7554 = vadd.f32 %v6796, %v7302
        %v7555 = vadd.f32 %v6797, %v7305
        %v7556 = vadd.f32 %v6798, %v7310
        %v7557 = vadd.f32 %v6799, %v7313
        %v7558 = vadd.f32 %v6800, %v7318
        %v7559 = vadd.f32 %v6801, %v7321
        %v7560 = vadd.f32 %v6802, %v7326
        %v7561 = vadd.f32 %v6803, %v7329
        %v7562 = vadd.f32 %v6804, %v7334
        %v7563 = vadd.f32 %v6805, %v7337
        %v7564 = vadd.f32 %v6806, %v7342
        %v7565 = vadd.f32 %v6807, %v7345
        %v7566 = vadd.f32 %v6808, %v7350
        %v7567 = vadd.f32 %v6809, %v7353
        %v7568 = vadd.f32 %v6810, %v7358
        %v7569 = vadd.f32 %v6811, %v7361
        %v7570 = vadd.f32 %v6812, %v7366
        %v7571 = vadd.f32 %v6813, %v7369
        %v7572 = vadd.f32 %v6814, %v7374
        %v7573 = vadd.f32 %v6815, %v7377
        %v7574 = vadd.f32 %v6816, %v7382
        %v7575 = vadd.f32 %v6817, %v7385
        %v7576 = vadd.f32 %v6818, %v7390
        %v7577 = vadd.f32 %v6819, %v7393
        %v7578 = vadd.f32 %v6820, %v7398
        %v7579 = vadd.f32 %v6821, %v7401
        %v7580 = vadd.f32 %v6822, %v7406
        %v7581 = vadd.f32 %v6823, %v7409
        %v7582 = vadd.f32 %v6824, %v7414
        %v7583 = vadd.f32 %v6825, %v7417
        %v7584 = vadd.f32 %v6826, %v7422
        %v7585 = vadd.f32 %v6827, %v7425
        %v7586 = vadd.f32 %v6828, %v7430
        %v7587 = vadd.f32 %v6829, %v7433
        %v7588 = vadd.f32 %v6830, %v7438
        %v7589 = vadd.f32 %v6831, %v7441
        %v7590 = vadd.f32 %v6832, %v7446
        %v7591 = vadd.f32 %v6833, %v7449
        %v7592 = vadd.f32 %v6834, %v7454
        %v7593 = vadd.f32 %v6835, %v7457
        %v7594 = vadd.f32 %v6836, %v7462
        %v7595 = vadd.f32 %v6837, %v7465
        %v7596 = vrot.slane %v699, 2
        %v7597 = vrot.slane %v700, 2
        %v7598 = vsel %vm2628, %v7596, %v7597
        %v7599 = vrot.slane %v701, 2
        %v7600 = vsel %vm2628, %v7597, %v7599
        %v7601 = vrot.slane %v702, 2
        %v7602 = vsel %vm2628, %v7599, %v7601
        %v7603 = vrot.slane %v703, 2
        %v7604 = vsel %vm2628, %v7601, %v7603
        %v7609 = vpack.c.bf16 %v7600, %v7598
        %v7610 = vpack.c.bf16 %v7604, %v7602
        %s7611 = scalar_lea.vmem [#allocation5], 512
        %v7612 = vld [vmem:[%s7611] sm:$0xf]
        %v7613 = vld [vmem:[%s7611 + $0x4] sm:$0xf]
        %v7614 = vld [vmem:[%s7611 + $0x8] sm:$0xf]
        %v7615 = vld [vmem:[%s7611 + $0xc] sm:$0xf]
        %v7616 = vld [vmem:[%s7611 + $0x10] sm:$0xf]
        %v7617 = vld [vmem:[%s7611 + $0x14] sm:$0xf]
        %v7618 = vld [vmem:[%s7611 + $0x18] sm:$0xf]
        %v7619 = vld [vmem:[%s7611 + $0x1c] sm:$0xf]
        %v7620 = vld [vmem:[%s7611 + $0x20] sm:$0xf]
        %v7621 = vld [vmem:[%s7611 + $0x24] sm:$0xf]
        %v7622 = vld [vmem:[%s7611 + $0x28] sm:$0xf]
        %v7623 = vld [vmem:[%s7611 + $0x2c] sm:$0xf]
        %v7624 = vld [vmem:[%s7611 + $0x30] sm:$0xf]
        %v7625 = vld [vmem:[%s7611 + $0x34] sm:$0xf]
        %v7626 = vld [vmem:[%s7611 + $0x38] sm:$0xf]
        %v7627 = vld [vmem:[%s7611 + $0x3c] sm:$0xf]
        %v7644 = vunpack.c.l.b16 %v7612
        %v7645 = vunpack.c.l.b16 %v7613
        %v7646 = vunpack.c.l.b16 %v7614
        %v7647 = vunpack.c.l.b16 %v7615
        %v7648 = vunpack.c.l.b16 %v7616
        %v7649 = vunpack.c.l.b16 %v7617
        %v7650 = vunpack.c.l.b16 %v7618
        %v7651 = vunpack.c.l.b16 %v7619
        %v7652 = vunpack.c.l.b16 %v7620
        %v7653 = vunpack.c.l.b16 %v7621
        %v7654 = vunpack.c.l.b16 %v7622
        %v7655 = vunpack.c.l.b16 %v7623
        %v7656 = vunpack.c.l.b16 %v7624
        %v7657 = vunpack.c.l.b16 %v7625
        %v7658 = vunpack.c.l.b16 %v7626
        %v7659 = vunpack.c.l.b16 %v7627
        %v7660 = vpack.c.b16 %v7645, %v7644
        %v7661 = vpack.c.b16 %v7647, %v7646
        %v7662 = vpack.c.b16 %v7649, %v7648
        %v7663 = vpack.c.b16 %v7651, %v7650
        %v7664 = vpack.c.b16 %v7653, %v7652
        %v7665 = vpack.c.b16 %v7655, %v7654
        %v7666 = vpack.c.b16 %v7657, %v7656
        %v7667 = vpack.c.b16 %v7659, %v7658
        %7676 = vmatprep.subr.bf16.mxu0 0
        %7677 = vmatpush1.bf16.msra.mxu0 %v7660
        %7678 = vmatprep.subr.bf16.mxu0 0
        %7679 = vmatpush1.bf16.msra.mxu0 %v7661
        %7680 = vmatprep.subr.bf16.mxu0 0
        %7681 = vmatpush1.bf16.msra.mxu0 %v7662
        %7682 = vmatprep.subr.bf16.mxu0 0
        %7683 = vmatpush1.bf16.msra.mxu0 %v7663
        %7684 = vmatprep.subr.bf16.mxu0 0
        %7685 = vmatpush1.bf16.msra.mxu0 %v7664
        %7686 = vmatprep.subr.bf16.mxu0 0
        %7687 = vmatpush1.bf16.msra.mxu0 %v7665
        %7688 = vmatprep.subr.bf16.mxu0 0
        %7689 = vmatpush1.bf16.msra.mxu0 %v7666
        %7690 = vmatprep.subr.bf16.mxu0 0
        %7691 = vmatpush1.bf16.msra.mxu0 %v7667
        %7692 = vmatprep.subr.bf16.mxu0 0
        %7693 = vmatpush1.bf16.msra.mxu0 0
        %7694 = vmatprep.subr.bf16.mxu0 0
        %7695 = vmatpush1.bf16.msra.mxu0 0
        %7696 = vmatprep.subr.bf16.mxu0 0
        %7697 = vmatpush1.bf16.msra.mxu0 0
        %7698 = vmatprep.subr.bf16.mxu0 0
        %7699 = vmatpush1.bf16.msra.mxu0 0
        %7700 = vmatprep.subr.bf16.mxu0 0
        %7701 = vmatpush1.bf16.msra.mxu0 0
        %7702 = vmatprep.subr.bf16.mxu0 0
        %7703 = vmatpush1.bf16.msra.mxu0 0
        %7704 = vmatprep.subr.bf16.mxu0 0
        %7705 = vmatpush1.bf16.msra.mxu0 0
        %7706 = vmatprep.subr.bf16.mxu0 0
        %7707 = vmatpush1.bf16.msra.mxu0 0
        %7708 = vmatprep.mubr.bf16.mxu0 0
        %7709 = vmatmul.mubr.bf16.gmra.mrb[0].mxu0 %v3049
        %v7710 = vpop.f32.mrb[0].mxu0
        %v7711 = vadd.f32 0.0, %v7710
        %v7712 = vpop.f32.mrb[0].mxu0
        %v7713 = vpop.f32.mrb[0].mxu0
        %v7714 = vadd.f32 0.0, %v7713
        %v7715 = vpop.f32.mrb[0].mxu0
        %7716 = vmatprep.mubr.bf16.mxu0 0
        %7717 = vmatmul.mubr.bf16.gmra.mrb[0].mxu0 %v3050
        %v7718 = vpop.f32.mrb[0].mxu0
        %v7719 = vadd.f32 0.0, %v7718
        %v7720 = vpop.f32.mrb[0].mxu0
        %v7721 = vpop.f32.mrb[0].mxu0
        %v7722 = vadd.f32 0.0, %v7721
        %v7723 = vpop.f32.mrb[0].mxu0
        %7724 = vmatprep.mubr.bf16.mxu0 0
        %7725 = vmatmul.mubr.bf16.gmra.mrb[0].mxu0 %v3051
        %v7726 = vpop.f32.mrb[0].mxu0
        %v7727 = vadd.f32 0.0, %v7726
        %v7728 = vpop.f32.mrb[0].mxu0
        %v7729 = vpop.f32.mrb[0].mxu0
        %v7730 = vadd.f32 0.0, %v7729
        %v7731 = vpop.f32.mrb[0].mxu0
        %7732 = vmatprep.mubr.bf16.mxu0 0
        %7733 = vmatmul.mubr.bf16.gmra.mrb[0].mxu0 %v3052
        %v7734 = vpop.f32.mrb[0].mxu0
        %v7735 = vadd.f32 0.0, %v7734
        %v7736 = vpop.f32.mrb[0].mxu0
        %v7737 = vpop.f32.mrb[0].mxu0
        %v7738 = vadd.f32 0.0, %v7737
        %v7739 = vpop.f32.mrb[0].mxu0
        %7740 = vmatprep.mubr.bf16.mxu0 0
        %7741 = vmatmul.mubr.bf16.gmra.mrb[0].mxu0 %v3053
        %v7742 = vpop.f32.mrb[0].mxu0
        %v7743 = vadd.f32 0.0, %v7742
        %v7744 = vpop.f32.mrb[0].mxu0
        %v7745 = vpop.f32.mrb[0].mxu0
        %v7746 = vadd.f32 0.0, %v7745
        %v7747 = vpop.f32.mrb[0].mxu0
        %7748 = vmatprep.mubr.bf16.mxu0 0
        %7749 = vmatmul.mubr.bf16.gmra.mrb[0].mxu0 %v3054
        %v7750 = vpop.f32.mrb[0].mxu0
        %v7751 = vadd.f32 0.0, %v7750
        %v7752 = vpop.f32.mrb[0].mxu0
        %v7753 = vpop.f32.mrb[0].mxu0
        %v7754 = vadd.f32 0.0, %v7753
        %v7755 = vpop.f32.mrb[0].mxu0
        %7756 = vmatprep.mubr.bf16.mxu0 0
        %7757 = vmatmul.mubr.bf16.gmra.mrb[0].mxu0 %v3055
        %v7758 = vpop.f32.mrb[0].mxu0
        %v7759 = vadd.f32 0.0, %v7758
        %v7760 = vpop.f32.mrb[0].mxu0
        %v7761 = vpop.f32.mrb[0].mxu0
        %v7762 = vadd.f32 0.0, %v7761
        %v7763 = vpop.f32.mrb[0].mxu0
        %7764 = vmatprep.mubr.bf16.mxu0 0
        %7765 = vmatmul.mubr.bf16.gmra.mrb[0].mxu0 %v3056
        %v7766 = vpop.f32.mrb[0].mxu0
        %v7767 = vadd.f32 0.0, %v7766
        %v7768 = vpop.f32.mrb[0].mxu0
        %v7769 = vpop.f32.mrb[0].mxu0
        %v7770 = vadd.f32 0.0, %v7769
        %v7771 = vpop.f32.mrb[0].mxu0
        %7772 = vmatprep.mubr.bf16.mxu0 0
        %7773 = vmatmul.mubr.bf16.gmra.mrb[0].mxu0 %v3057
        %v7774 = vpop.f32.mrb[0].mxu0
        %v7775 = vadd.f32 0.0, %v7774
        %v7776 = vpop.f32.mrb[0].mxu0
        %v7777 = vpop.f32.mrb[0].mxu0
        %v7778 = vadd.f32 0.0, %v7777
        %v7779 = vpop.f32.mrb[0].mxu0
        %7780 = vmatprep.mubr.bf16.mxu0 0
        %7781 = vmatmul.mubr.bf16.gmra.mrb[0].mxu0 %v3058
        %v7782 = vpop.f32.mrb[0].mxu0
        %v7783 = vadd.f32 0.0, %v7782
        %v7784 = vpop.f32.mrb[0].mxu0
        %v7785 = vpop.f32.mrb[0].mxu0
        %v7786 = vadd.f32 0.0, %v7785
        %v7787 = vpop.f32.mrb[0].mxu0
        %7788 = vmatprep.mubr.bf16.mxu0 0
        %7789 = vmatmul.mubr.bf16.gmra.mrb[0].mxu0 %v3059
        %v7790 = vpop.f32.mrb[0].mxu0
        %v7791 = vadd.f32 0.0, %v7790
        %v7792 = vpop.f32.mrb[0].mxu0
        %v7793 = vpop.f32.mrb[0].mxu0
        %v7794 = vadd.f32 0.0, %v7793
        %v7795 = vpop.f32.mrb[0].mxu0
        %7796 = vmatprep.mubr.bf16.mxu0 0
        %7797 = vmatmul.mubr.bf16.gmra.mrb[0].mxu0 %v3060
        %v7798 = vpop.f32.mrb[0].mxu0
        %v7799 = vadd.f32 0.0, %v7798
        %v7800 = vpop.f32.mrb[0].mxu0
        %v7801 = vpop.f32.mrb[0].mxu0
        %v7802 = vadd.f32 0.0, %v7801
        %v7803 = vpop.f32.mrb[0].mxu0
        %7804 = vmatprep.mubr.bf16.mxu0 0
        %7805 = vmatmul.mubr.bf16.gmra.mrb[0].mxu0 %v3061
        %v7806 = vpop.f32.mrb[0].mxu0
        %v7807 = vadd.f32 0.0, %v7806
        %v7808 = vpop.f32.mrb[0].mxu0
        %v7809 = vpop.f32.mrb[0].mxu0
        %v7810 = vadd.f32 0.0, %v7809
        %v7811 = vpop.f32.mrb[0].mxu0
        %7812 = vmatprep.mubr.bf16.mxu0 0
        %7813 = vmatmul.mubr.bf16.gmra.mrb[0].mxu0 %v3062
        %v7814 = vpop.f32.mrb[0].mxu0
        %v7815 = vadd.f32 0.0, %v7814
        %v7816 = vpop.f32.mrb[0].mxu0
        %v7817 = vpop.f32.mrb[0].mxu0
        %v7818 = vadd.f32 0.0, %v7817
        %v7819 = vpop.f32.mrb[0].mxu0
        %7820 = vmatprep.mubr.bf16.mxu0 0
        %7821 = vmatmul.mubr.bf16.gmra.mrb[0].mxu0 %v3063
        %v7822 = vpop.f32.mrb[0].mxu0
        %v7823 = vadd.f32 0.0, %v7822
        %v7824 = vpop.f32.mrb[0].mxu0
        %v7825 = vpop.f32.mrb[0].mxu0
        %v7826 = vadd.f32 0.0, %v7825
        %v7827 = vpop.f32.mrb[0].mxu0
        %7828 = vmatprep.mubr.bf16.mxu0 0
        %7829 = vmatmul.mubr.bf16.gmra.mrb[0].mxu0 %v3064
        %v7830 = vpop.f32.mrb[0].mxu0
        %v7831 = vadd.f32 0.0, %v7830
        %v7832 = vpop.f32.mrb[0].mxu0
        %v7833 = vpop.f32.mrb[0].mxu0
        %v7834 = vadd.f32 0.0, %v7833
        %v7835 = vpop.f32.mrb[0].mxu0
        %7836 = vmatprep.mubr.bf16.mxu0 0
        %7837 = vmatmul.mubr.bf16.gmra.mrb[0].mxu0 %v3065
        %v7838 = vpop.f32.mrb[0].mxu0
        %v7839 = vadd.f32 0.0, %v7838
        %v7840 = vpop.f32.mrb[0].mxu0
        %v7841 = vpop.f32.mrb[0].mxu0
        %v7842 = vadd.f32 0.0, %v7841
        %v7843 = vpop.f32.mrb[0].mxu0
        %7844 = vmatprep.mubr.bf16.mxu0 0
        %7845 = vmatmul.mubr.bf16.gmra.mrb[0].mxu0 %v3066
        %v7846 = vpop.f32.mrb[0].mxu0
        %v7847 = vadd.f32 0.0, %v7846
        %v7848 = vpop.f32.mrb[0].mxu0
        %v7849 = vpop.f32.mrb[0].mxu0
        %v7850 = vadd.f32 0.0, %v7849
        %v7851 = vpop.f32.mrb[0].mxu0
        %7852 = vmatprep.mubr.bf16.mxu0 0
        %7853 = vmatmul.mubr.bf16.gmra.mrb[0].mxu0 %v3067
        %v7854 = vpop.f32.mrb[0].mxu0
        %v7855 = vadd.f32 0.0, %v7854
        %v7856 = vpop.f32.mrb[0].mxu0
        %v7857 = vpop.f32.mrb[0].mxu0
        %v7858 = vadd.f32 0.0, %v7857
        %v7859 = vpop.f32.mrb[0].mxu0
        %7860 = vmatprep.mubr.bf16.mxu0 0
        %7861 = vmatmul.mubr.bf16.gmra.mrb[0].mxu0 %v3068
        %v7862 = vpop.f32.mrb[0].mxu0
        %v7863 = vadd.f32 0.0, %v7862
        %v7864 = vpop.f32.mrb[0].mxu0
        %v7865 = vpop.f32.mrb[0].mxu0
        %v7866 = vadd.f32 0.0, %v7865
        %v7867 = vpop.f32.mrb[0].mxu0
        %7868 = vmatprep.mubr.bf16.mxu0 0
        %7869 = vmatmul.mubr.bf16.gmra.mrb[0].mxu0 %v3069
        %v7870 = vpop.f32.mrb[0].mxu0
        %v7871 = vadd.f32 0.0, %v7870
        %v7872 = vpop.f32.mrb[0].mxu0
        %v7873 = vpop.f32.mrb[0].mxu0
        %v7874 = vadd.f32 0.0, %v7873
        %v7875 = vpop.f32.mrb[0].mxu0
        %7876 = vmatprep.mubr.bf16.mxu0 0
        %7877 = vmatmul.mubr.bf16.gmra.mrb[0].mxu0 %v3070
        %v7878 = vpop.f32.mrb[0].mxu0
        %v7879 = vadd.f32 0.0, %v7878
        %v7880 = vpop.f32.mrb[0].mxu0
        %v7881 = vpop.f32.mrb[0].mxu0
        %v7882 = vadd.f32 0.0, %v7881
        %v7883 = vpop.f32.mrb[0].mxu0
        %7884 = vmatprep.mubr.bf16.mxu0 0
        %7885 = vmatmul.mubr.bf16.gmra.mrb[0].mxu0 %v3071
        %v7886 = vpop.f32.mrb[0].mxu0
        %v7887 = vadd.f32 0.0, %v7886
        %v7888 = vpop.f32.mrb[0].mxu0
        %v7889 = vpop.f32.mrb[0].mxu0
        %v7890 = vadd.f32 0.0, %v7889
        %v7891 = vpop.f32.mrb[0].mxu0
        %7892 = vmatprep.mubr.bf16.mxu0 0
        %7893 = vmatmul.mubr.bf16.gmra.mrb[0].mxu0 %v3072
        %v7894 = vpop.f32.mrb[0].mxu0
        %v7895 = vadd.f32 0.0, %v7894
        %v7896 = vpop.f32.mrb[0].mxu0
        %v7897 = vpop.f32.mrb[0].mxu0
        %v7898 = vadd.f32 0.0, %v7897
        %v7899 = vpop.f32.mrb[0].mxu0
        %7900 = vmatprep.mubr.bf16.mxu0 0
        %7901 = vmatmul.mubr.bf16.gmra.mrb[0].mxu0 %v3073
        %v7902 = vpop.f32.mrb[0].mxu0
        %v7903 = vadd.f32 0.0, %v7902
        %v7904 = vpop.f32.mrb[0].mxu0
        %v7905 = vpop.f32.mrb[0].mxu0
        %v7906 = vadd.f32 0.0, %v7905
        %v7907 = vpop.f32.mrb[0].mxu0
        %7908 = vmatprep.mubr.bf16.mxu0 0
        %7909 = vmatmul.mubr.bf16.gmra.mrb[0].mxu0 %v3074
        %v7910 = vpop.f32.mrb[0].mxu0
        %v7911 = vadd.f32 0.0, %v7910
        %v7912 = vpop.f32.mrb[0].mxu0
        %v7913 = vpop.f32.mrb[0].mxu0
        %v7914 = vadd.f32 0.0, %v7913
        %v7915 = vpop.f32.mrb[0].mxu0
        %7916 = vmatprep.mubr.bf16.mxu0 0
        %7917 = vmatmul.mubr.bf16.gmra.mrb[0].mxu0 %v3075
        %v7918 = vpop.f32.mrb[0].mxu0
        %v7919 = vadd.f32 0.0, %v7918
        %v7920 = vpop.f32.mrb[0].mxu0
        %v7921 = vpop.f32.mrb[0].mxu0
        %v7922 = vadd.f32 0.0, %v7921
        %v7923 = vpop.f32.mrb[0].mxu0
        %7924 = vmatprep.mubr.bf16.mxu0 0
        %7925 = vmatmul.mubr.bf16.gmra.mrb[0].mxu0 %v3076
        %v7926 = vpop.f32.mrb[0].mxu0
        %v7927 = vadd.f32 0.0, %v7926
        %v7928 = vpop.f32.mrb[0].mxu0
        %v7929 = vpop.f32.mrb[0].mxu0
        %v7930 = vadd.f32 0.0, %v7929
        %v7931 = vpop.f32.mrb[0].mxu0
        %7932 = vmatprep.mubr.bf16.mxu0 0
        %7933 = vmatmul.mubr.bf16.gmra.mrb[0].mxu0 %v3077
        %v7934 = vpop.f32.mrb[0].mxu0
        %v7935 = vadd.f32 0.0, %v7934
        %v7936 = vpop.f32.mrb[0].mxu0
        %v7937 = vpop.f32.mrb[0].mxu0
        %v7938 = vadd.f32 0.0, %v7937
        %v7939 = vpop.f32.mrb[0].mxu0
        %7940 = vmatprep.mubr.bf16.mxu0 0
        %7941 = vmatmul.mubr.bf16.gmra.mrb[0].mxu0 %v3078
        %v7942 = vpop.f32.mrb[0].mxu0
        %v7943 = vadd.f32 0.0, %v7942
        %v7944 = vpop.f32.mrb[0].mxu0
        %v7945 = vpop.f32.mrb[0].mxu0
        %v7946 = vadd.f32 0.0, %v7945
        %v7947 = vpop.f32.mrb[0].mxu0
        %7948 = vmatprep.mubr.bf16.mxu0 0
        %7949 = vmatmul.mubr.bf16.gmra.mrb[0].mxu0 %v3079
        %v7950 = vpop.f32.mrb[0].mxu0
        %v7951 = vadd.f32 0.0, %v7950
        %v7952 = vpop.f32.mrb[0].mxu0
        %v7953 = vpop.f32.mrb[0].mxu0
        %v7954 = vadd.f32 0.0, %v7953
        %v7955 = vpop.f32.mrb[0].mxu0
        %7956 = vmatprep.mubr.bf16.mxu0 0
        %7957 = vmatmul.mubr.bf16.gmra.mrb[0].mxu0 %v3080
        %v7958 = vpop.f32.mrb[0].mxu0
        %v7959 = vadd.f32 0.0, %v7958
        %v7960 = vpop.f32.mrb[0].mxu0
        %v7961 = vpop.f32.mrb[0].mxu0
        %v7962 = vadd.f32 0.0, %v7961
        %v7963 = vpop.f32.mrb[0].mxu0
        %7964 = vmatprep.mubr.bf16.mxu0 0
        %7965 = vmatmul.mubr.bf16.gmra.mrb[0].mxu0 %v3081
        %v7966 = vpop.f32.mrb[0].mxu0
        %v7967 = vadd.f32 0.0, %v7966
        %v7968 = vpop.f32.mrb[0].mxu0
        %v7969 = vpop.f32.mrb[0].mxu0
        %v7970 = vadd.f32 0.0, %v7969
        %v7971 = vpop.f32.mrb[0].mxu0
        %7972 = vmatprep.mubr.bf16.mxu0 0
        %7973 = vmatmul.mubr.bf16.gmra.mrb[0].mxu0 %v3082
        %v7974 = vpop.f32.mrb[0].mxu0
        %v7975 = vadd.f32 0.0, %v7974
        %v7976 = vpop.f32.mrb[0].mxu0
        %v7977 = vpop.f32.mrb[0].mxu0
        %v7978 = vadd.f32 0.0, %v7977
        %v7979 = vpop.f32.mrb[0].mxu0
        %7980 = vmatprep.mubr.bf16.mxu0 0
        %7981 = vmatmul.mubr.bf16.gmra.mrb[0].mxu0 %v3083
        %v7982 = vpop.f32.mrb[0].mxu0
        %v7983 = vadd.f32 0.0, %v7982
        %v7984 = vpop.f32.mrb[0].mxu0
        %v7985 = vpop.f32.mrb[0].mxu0
        %v7986 = vadd.f32 0.0, %v7985
        %v7987 = vpop.f32.mrb[0].mxu0
        %7988 = vmatprep.mubr.bf16.mxu0 0
        %7989 = vmatmul.mubr.bf16.gmra.mrb[0].mxu0 %v3084
        %v7990 = vpop.f32.mrb[0].mxu0
        %v7991 = vadd.f32 0.0, %v7990
        %v7992 = vpop.f32.mrb[0].mxu0
        %v7993 = vpop.f32.mrb[0].mxu0
        %v7994 = vadd.f32 0.0, %v7993
        %v7995 = vpop.f32.mrb[0].mxu0
        %7996 = vmatprep.mubr.bf16.mxu0 0
        %7997 = vmatmul.mubr.bf16.gmra.mrb[0].mxu0 %v3085
        %v7998 = vpop.f32.mrb[0].mxu0
        %v7999 = vadd.f32 0.0, %v7998
        %v8000 = vpop.f32.mrb[0].mxu0
        %v8001 = vpop.f32.mrb[0].mxu0
        %v8002 = vadd.f32 0.0, %v8001
        %v8003 = vpop.f32.mrb[0].mxu0
        %8004 = vmatprep.mubr.bf16.mxu0 0
        %8005 = vmatmul.mubr.bf16.gmra.mrb[0].mxu0 %v3086
        %v8006 = vpop.f32.mrb[0].mxu0
        %v8007 = vadd.f32 0.0, %v8006
        %v8008 = vpop.f32.mrb[0].mxu0
        %v8009 = vpop.f32.mrb[0].mxu0
        %v8010 = vadd.f32 0.0, %v8009
        %v8011 = vpop.f32.mrb[0].mxu0
        %8012 = vmatprep.mubr.bf16.mxu0 0
        %8013 = vmatmul.mubr.bf16.gmra.mrb[0].mxu0 %v3087
        %v8014 = vpop.f32.mrb[0].mxu0
        %v8015 = vadd.f32 0.0, %v8014
        %v8016 = vpop.f32.mrb[0].mxu0
        %v8017 = vpop.f32.mrb[0].mxu0
        %v8018 = vadd.f32 0.0, %v8017
        %v8019 = vpop.f32.mrb[0].mxu0
        %8020 = vmatprep.mubr.bf16.mxu0 0
        %8021 = vmatmul.mubr.bf16.gmra.mrb[0].mxu0 %v3088
        %v8022 = vpop.f32.mrb[0].mxu0
        %v8023 = vadd.f32 0.0, %v8022
        %v8024 = vpop.f32.mrb[0].mxu0
        %v8025 = vpop.f32.mrb[0].mxu0
        %v8026 = vadd.f32 0.0, %v8025
        %v8027 = vpop.f32.mrb[0].mxu0
        %8028 = vmatprep.mubr.bf16.mxu0 0
        %8029 = vmatmul.mubr.bf16.gmra.mrb[0].mxu0 %v3089
        %v8030 = vpop.f32.mrb[0].mxu0
        %v8031 = vadd.f32 0.0, %v8030
        %v8032 = vpop.f32.mrb[0].mxu0
        %v8033 = vpop.f32.mrb[0].mxu0
        %v8034 = vadd.f32 0.0, %v8033
        %v8035 = vpop.f32.mrb[0].mxu0
        %8036 = vmatprep.mubr.bf16.mxu0 0
        %8037 = vmatmul.mubr.bf16.gmra.mrb[0].mxu0 %v3090
        %v8038 = vpop.f32.mrb[0].mxu0
        %v8039 = vadd.f32 0.0, %v8038
        %v8040 = vpop.f32.mrb[0].mxu0
        %v8041 = vpop.f32.mrb[0].mxu0
        %v8042 = vadd.f32 0.0, %v8041
        %v8043 = vpop.f32.mrb[0].mxu0
        %8044 = vmatprep.mubr.bf16.mxu0 0
        %8045 = vmatmul.mubr.bf16.gmra.mrb[0].mxu0 %v3091
        %v8046 = vpop.f32.mrb[0].mxu0
        %v8047 = vadd.f32 0.0, %v8046
        %v8048 = vpop.f32.mrb[0].mxu0
        %v8049 = vpop.f32.mrb[0].mxu0
        %v8050 = vadd.f32 0.0, %v8049
        %v8051 = vpop.f32.mrb[0].mxu0
        %8052 = vmatprep.mubr.bf16.mxu0 0
        %8053 = vmatmul.mubr.bf16.gmra.mrb[0].mxu0 %v3092
        %v8054 = vpop.f32.mrb[0].mxu0
        %v8055 = vadd.f32 0.0, %v8054
        %v8056 = vpop.f32.mrb[0].mxu0
        %v8057 = vpop.f32.mrb[0].mxu0
        %v8058 = vadd.f32 0.0, %v8057
        %v8059 = vpop.f32.mrb[0].mxu0
        %8060 = vmatprep.mubr.bf16.mxu0 0
        %8061 = vmatmul.mubr.bf16.gmra.mrb[0].mxu0 %v3093
        %v8062 = vpop.f32.mrb[0].mxu0
        %v8063 = vadd.f32 0.0, %v8062
        %v8064 = vpop.f32.mrb[0].mxu0
        %v8065 = vpop.f32.mrb[0].mxu0
        %v8066 = vadd.f32 0.0, %v8065
        %v8067 = vpop.f32.mrb[0].mxu0
        %8068 = vmatprep.mubr.bf16.mxu0 0
        %8069 = vmatmul.mubr.bf16.gmra.mrb[0].mxu0 %v3094
        %v8070 = vpop.f32.mrb[0].mxu0
        %v8071 = vadd.f32 0.0, %v8070
        %v8072 = vpop.f32.mrb[0].mxu0
        %v8073 = vpop.f32.mrb[0].mxu0
        %v8074 = vadd.f32 0.0, %v8073
        %v8075 = vpop.f32.mrb[0].mxu0
        %8076 = vmatprep.mubr.bf16.mxu0 0
        %8077 = vmatmul.mubr.bf16.gmra.mrb[0].mxu0 %v3095
        %v8078 = vpop.f32.mrb[0].mxu0
        %v8079 = vadd.f32 0.0, %v8078
        %v8080 = vpop.f32.mrb[0].mxu0
        %v8081 = vpop.f32.mrb[0].mxu0
        %v8082 = vadd.f32 0.0, %v8081
        %v8083 = vpop.f32.mrb[0].mxu0
        %8084 = vmatprep.mubr.bf16.mxu0 0
        %8085 = vmatmul.mubr.bf16.gmra.mrb[0].mxu0 %v3096
        %v8086 = vpop.f32.mrb[0].mxu0
        %v8087 = vadd.f32 0.0, %v8086
        %v8088 = vpop.f32.mrb[0].mxu0
        %v8089 = vpop.f32.mrb[0].mxu0
        %v8090 = vadd.f32 0.0, %v8089
        %v8091 = vpop.f32.mrb[0].mxu0
        %8092 = vmatprep.mubr.bf16.mxu0 0
        %8093 = vmatmul.mubr.bf16.gmra.mrb[0].mxu0 %v3097
        %v8094 = vpop.f32.mrb[0].mxu0
        %v8095 = vadd.f32 0.0, %v8094
        %v8096 = vpop.f32.mrb[0].mxu0
        %v8097 = vpop.f32.mrb[0].mxu0
        %v8098 = vadd.f32 0.0, %v8097
        %v8099 = vpop.f32.mrb[0].mxu0
        %8100 = vmatprep.mubr.bf16.mxu0 0
        %8101 = vmatmul.mubr.bf16.gmra.mrb[0].mxu0 %v3098
        %v8102 = vpop.f32.mrb[0].mxu0
        %v8103 = vadd.f32 0.0, %v8102
        %v8104 = vpop.f32.mrb[0].mxu0
        %v8105 = vpop.f32.mrb[0].mxu0
        %v8106 = vadd.f32 0.0, %v8105
        %v8107 = vpop.f32.mrb[0].mxu0
        %8108 = vmatprep.mubr.bf16.mxu0 0
        %8109 = vmatmul.mubr.bf16.gmra.mrb[0].mxu0 %v3099
        %v8110 = vpop.f32.mrb[0].mxu0
        %v8111 = vadd.f32 0.0, %v8110
        %v8112 = vpop.f32.mrb[0].mxu0
        %v8113 = vpop.f32.mrb[0].mxu0
        %v8114 = vadd.f32 0.0, %v8113
        %v8115 = vpop.f32.mrb[0].mxu0
        %8116 = vmatprep.mubr.bf16.mxu0 0
        %8117 = vmatmul.mubr.bf16.gmra.mrb[0].mxu0 %v3100
        %v8118 = vpop.f32.mrb[0].mxu0
        %v8119 = vadd.f32 0.0, %v8118
        %v8120 = vpop.f32.mrb[0].mxu0
        %v8121 = vpop.f32.mrb[0].mxu0
        %v8122 = vadd.f32 0.0, %v8121
        %v8123 = vpop.f32.mrb[0].mxu0
        %8124 = vmatprep.mubr.bf16.mxu0 0
        %8125 = vmatmul.mubr.bf16.gmra.mrb[0].mxu0 %v3101
        %v8126 = vpop.f32.mrb[0].mxu0
        %v8127 = vadd.f32 0.0, %v8126
        %v8128 = vpop.f32.mrb[0].mxu0
        %v8129 = vpop.f32.mrb[0].mxu0
        %v8130 = vadd.f32 0.0, %v8129
        %v8131 = vpop.f32.mrb[0].mxu0
        %8132 = vmatprep.mubr.bf16.mxu0 0
        %8133 = vmatmul.mubr.bf16.gmra.mrb[0].mxu0 %v3102
        %v8134 = vpop.f32.mrb[0].mxu0
        %v8135 = vadd.f32 0.0, %v8134
        %v8136 = vpop.f32.mrb[0].mxu0
        %v8137 = vpop.f32.mrb[0].mxu0
        %v8138 = vadd.f32 0.0, %v8137
        %v8139 = vpop.f32.mrb[0].mxu0
        %8140 = vmatprep.mubr.bf16.mxu0 0
        %8141 = vmatmul.mubr.bf16.gmra.mrb[0].mxu0 %v3103
        %v8142 = vpop.f32.mrb[0].mxu0
        %v8143 = vadd.f32 0.0, %v8142
        %v8144 = vpop.f32.mrb[0].mxu0
        %v8145 = vpop.f32.mrb[0].mxu0
        %v8146 = vadd.f32 0.0, %v8145
        %v8147 = vpop.f32.mrb[0].mxu0
        %8148 = vmatprep.mubr.bf16.mxu0 0
        %8149 = vmatmul.mubr.bf16.gmra.mrb[0].mxu0 %v3104
        %v8150 = vpop.f32.mrb[0].mxu0
        %v8151 = vadd.f32 0.0, %v8150
        %v8152 = vpop.f32.mrb[0].mxu0
        %v8153 = vpop.f32.mrb[0].mxu0
        %v8154 = vadd.f32 0.0, %v8153
        %v8155 = vpop.f32.mrb[0].mxu0
        %8156 = vmatprep.mubr.bf16.mxu0 0
        %8157 = vmatmul.mubr.bf16.gmra.mrb[0].mxu0 %v3105
        %v8158 = vpop.f32.mrb[0].mxu0
        %v8159 = vadd.f32 0.0, %v8158
        %v8160 = vpop.f32.mrb[0].mxu0
        %v8161 = vpop.f32.mrb[0].mxu0
        %v8162 = vadd.f32 0.0, %v8161
        %v8163 = vpop.f32.mrb[0].mxu0
        %8164 = vmatprep.mubr.bf16.mxu0 0
        %8165 = vmatmul.mubr.bf16.gmra.mrb[0].mxu0 %v3106
        %v8166 = vpop.f32.mrb[0].mxu0
        %v8167 = vadd.f32 0.0, %v8166
        %v8168 = vpop.f32.mrb[0].mxu0
        %v8169 = vpop.f32.mrb[0].mxu0
        %v8170 = vadd.f32 0.0, %v8169
        %v8171 = vpop.f32.mrb[0].mxu0
        %8172 = vmatprep.mubr.bf16.mxu0 0
        %8173 = vmatmul.mubr.bf16.gmra.mrb[0].mxu0 %v3107
        %v8174 = vpop.f32.mrb[0].mxu0
        %v8175 = vadd.f32 0.0, %v8174
        %v8176 = vpop.f32.mrb[0].mxu0
        %v8177 = vpop.f32.mrb[0].mxu0
        %v8178 = vadd.f32 0.0, %v8177
        %v8179 = vpop.f32.mrb[0].mxu0
        %8180 = vmatprep.mubr.bf16.mxu0 0
        %8181 = vmatmul.mubr.bf16.gmra.mrb[0].mxu0 %v3108
        %v8182 = vpop.f32.mrb[0].mxu0
        %v8183 = vadd.f32 0.0, %v8182
        %v8184 = vpop.f32.mrb[0].mxu0
        %v8185 = vpop.f32.mrb[0].mxu0
        %v8186 = vadd.f32 0.0, %v8185
        %v8187 = vpop.f32.mrb[0].mxu0
        %8188 = vmatprep.mubr.bf16.mxu0 0
        %8189 = vmatmul.mubr.bf16.gmra.mrb[0].mxu0 %v5358
        %v8190 = vpop.f32.mrb[0].mxu0
        %v8191 = vadd.f32 0.0, %v8190
        %v8192 = vpop.f32.mrb[0].mxu0
        %v8193 = vpop.f32.mrb[0].mxu0
        %v8194 = vadd.f32 0.0, %v8193
        %v8195 = vpop.f32.mrb[0].mxu0
        %8196 = vmatprep.mubr.bf16.mxu0 0
        %8197 = vmatmul.mubr.bf16.gmra.mrb[0].mxu0 %v5359
        %v8198 = vpop.f32.mrb[0].mxu0
        %v8199 = vadd.f32 0.0, %v8198
        %v8200 = vpop.f32.mrb[0].mxu0
        %v8201 = vpop.f32.mrb[0].mxu0
        %v8202 = vadd.f32 0.0, %v8201
        %v8203 = vpop.f32.mrb[0].mxu0
        %8204 = vmatprep.mubr.bf16.mxu0 0
        %8205 = vmatmul.mubr.bf16.gmra.mrb[0].mxu0 %v7609
        %v8206 = vpop.f32.mrb[0].mxu0
        %v8207 = vadd.f32 0.0, %v8206
        %v8208 = vpop.f32.mrb[0].mxu0
        %v8209 = vpop.f32.mrb[0].mxu0
        %v8210 = vadd.f32 0.0, %v8209
        %v8211 = vpop.f32.mrb[0].mxu0
        %8212 = vmatprep.mubr.bf16.mxu0 0
        %8213 = vmatmul.mubr.bf16.gmra.mrb[0].mxu0 %v7610
        %v8214 = vpop.f32.mrb[0].mxu0
        %v8215 = vadd.f32 0.0, %v8214
        %v8216 = vpop.f32.mrb[0].mxu0
        %v8217 = vpop.f32.mrb[0].mxu0
        %v8218 = vadd.f32 0.0, %v8217
        %v8219 = vpop.f32.mrb[0].mxu0
        %8220 = vdwg.mxu0
        %v8221 = vadd.f32 %v7468, %v7711
        %v8222 = vadd.f32 %v7469, %v7714
        %v8223 = vadd.f32 %v7470, %v7719
        %v8224 = vadd.f32 %v7471, %v7722
        %v8225 = vadd.f32 %v7472, %v7727
        %v8226 = vadd.f32 %v7473, %v7730
        %v8227 = vadd.f32 %v7474, %v7735
        %v8228 = vadd.f32 %v7475, %v7738
        %v8229 = vadd.f32 %v7476, %v7743
        %v8230 = vadd.f32 %v7477, %v7746
        %v8231 = vadd.f32 %v7478, %v7751
        %v8232 = vadd.f32 %v7479, %v7754
        %v8233 = vadd.f32 %v7480, %v7759
        %v8234 = vadd.f32 %v7481, %v7762
        %v8235 = vadd.f32 %v7482, %v7767
        %v8236 = vadd.f32 %v7483, %v7770
        %v8237 = vadd.f32 %v7484, %v7775
        %v8238 = vadd.f32 %v7485, %v7778
        %v8239 = vadd.f32 %v7486, %v7783
        %v8240 = vadd.f32 %v7487, %v7786
        %v8241 = vadd.f32 %v7488, %v7791
        %v8242 = vadd.f32 %v7489, %v7794
        %v8243 = vadd.f32 %v7490, %v7799
        %v8244 = vadd.f32 %v7491, %v7802
        %v8245 = vadd.f32 %v7492, %v7807
        %v8246 = vadd.f32 %v7493, %v7810
        %v8247 = vadd.f32 %v7494, %v7815
        %v8248 = vadd.f32 %v7495, %v7818
        %v8249 = vadd.f32 %v7496, %v7823
        %v8250 = vadd.f32 %v7497, %v7826
        %v8251 = vadd.f32 %v7498, %v7831
        %v8252 = vadd.f32 %v7499, %v7834
        %v8253 = vadd.f32 %v7500, %v7839
        %v8254 = vadd.f32 %v7501, %v7842
        %v8255 = vadd.f32 %v7502, %v7847
        %v8256 = vadd.f32 %v7503, %v7850
        %v8257 = vadd.f32 %v7504, %v7855
        %v8258 = vadd.f32 %v7505, %v7858
        %v8259 = vadd.f32 %v7506, %v7863
        %v8260 = vadd.f32 %v7507, %v7866
        %v8261 = vadd.f32 %v7508, %v7871
        %v8262 = vadd.f32 %v7509, %v7874
        %v8263 = vadd.f32 %v7510, %v7879
        %v8264 = vadd.f32 %v7511, %v7882
        %v8265 = vadd.f32 %v7512, %v7887
        %v8266 = vadd.f32 %v7513, %v7890
        %v8267 = vadd.f32 %v7514, %v7895
        %v8268 = vadd.f32 %v7515, %v7898
        %v8269 = vadd.f32 %v7516, %v7903
        %v8270 = vadd.f32 %v7517, %v7906
        %v8271 = vadd.f32 %v7518, %v7911
        %v8272 = vadd.f32 %v7519, %v7914
        %v8273 = vadd.f32 %v7520, %v7919
        %v8274 = vadd.f32 %v7521, %v7922
        %v8275 = vadd.f32 %v7522, %v7927
        %v8276 = vadd.f32 %v7523, %v7930
        %v8277 = vadd.f32 %v7524, %v7935
        %v8278 = vadd.f32 %v7525, %v7938
        %v8279 = vadd.f32 %v7526, %v7943
        %v8280 = vadd.f32 %v7527, %v7946
        %v8281 = vadd.f32 %v7528, %v7951
        %v8282 = vadd.f32 %v7529, %v7954
        %v8283 = vadd.f32 %v7530, %v7959
        %v8284 = vadd.f32 %v7531, %v7962
        %v8285 = vadd.f32 %v7532, %v7967
        %v8286 = vadd.f32 %v7533, %v7970
        %v8287 = vadd.f32 %v7534, %v7975
        %v8288 = vadd.f32 %v7535, %v7978
        %v8289 = vadd.f32 %v7536, %v7983
        %v8290 = vadd.f32 %v7537, %v7986
        %v8291 = vadd.f32 %v7538, %v7991
        %v8292 = vadd.f32 %v7539, %v7994
        %v8293 = vadd.f32 %v7540, %v7999
        %v8294 = vadd.f32 %v7541, %v8002
        %v8295 = vadd.f32 %v7542, %v8007
        %v8296 = vadd.f32 %v7543, %v8010
        %v8297 = vadd.f32 %v7544, %v8015
        %v8298 = vadd.f32 %v7545, %v8018
        %v8299 = vadd.f32 %v7546, %v8023
        %v8300 = vadd.f32 %v7547, %v8026
        %v8301 = vadd.f32 %v7548, %v8031
        %v8302 = vadd.f32 %v7549, %v8034
        %v8303 = vadd.f32 %v7550, %v8039
        %v8304 = vadd.f32 %v7551, %v8042
        %v8305 = vadd.f32 %v7552, %v8047
        %v8306 = vadd.f32 %v7553, %v8050
        %v8307 = vadd.f32 %v7554, %v8055
        %v8308 = vadd.f32 %v7555, %v8058
        %v8309 = vadd.f32 %v7556, %v8063
        %v8310 = vadd.f32 %v7557, %v8066
        %v8311 = vadd.f32 %v7558, %v8071
        %v8312 = vadd.f32 %v7559, %v8074
        %v8313 = vadd.f32 %v7560, %v8079
        %v8314 = vadd.f32 %v7561, %v8082
        %v8315 = vadd.f32 %v7562, %v8087
        %v8316 = vadd.f32 %v7563, %v8090
        %v8317 = vadd.f32 %v7564, %v8095
        %v8318 = vadd.f32 %v7565, %v8098
        %v8319 = vadd.f32 %v7566, %v8103
        %v8320 = vadd.f32 %v7567, %v8106
        %v8321 = vadd.f32 %v7568, %v8111
        %v8322 = vadd.f32 %v7569, %v8114
        %v8323 = vadd.f32 %v7570, %v8119
        %v8324 = vadd.f32 %v7571, %v8122
        %v8325 = vadd.f32 %v7572, %v8127
        %v8326 = vadd.f32 %v7573, %v8130
        %v8327 = vadd.f32 %v7574, %v8135
        %v8328 = vadd.f32 %v7575, %v8138
        %v8329 = vadd.f32 %v7576, %v8143
        %v8330 = vadd.f32 %v7577, %v8146
        %v8331 = vadd.f32 %v7578, %v8151
        %v8332 = vadd.f32 %v7579, %v8154
        %v8333 = vadd.f32 %v7580, %v8159
        %v8334 = vadd.f32 %v7581, %v8162
        %v8335 = vadd.f32 %v7582, %v8167
        %v8336 = vadd.f32 %v7583, %v8170
        %v8337 = vadd.f32 %v7584, %v8175
        %v8338 = vadd.f32 %v7585, %v8178
        %v8339 = vadd.f32 %v7586, %v8183
        %v8340 = vadd.f32 %v7587, %v8186
        %v8341 = vadd.f32 %v7588, %v8191
        %v8342 = vadd.f32 %v7589, %v8194
        %v8343 = vadd.f32 %v7590, %v8199
        %v8344 = vadd.f32 %v7591, %v8202
        %v8345 = vadd.f32 %v7592, %v8207
        %v8346 = vadd.f32 %v7593, %v8210
        %v8347 = vadd.f32 %v7594, %v8215
        %v8348 = vadd.f32 %v7595, %v8218
        %v8349 = vld [vmem:[#allocation7] sm:$0x1]
        %v8351 = vlaneseq
        %v8352 = vshrl.u32 %v8351, 7
        %v8353 = vsub.s32 0, %v8352
        %v8354 = vrot.slane %v8349, %v8353
        %v8356 = vadd.f32 %v8221, %v8354
        %v8357 = vadd.f32 %v8222, %v8354
        %v8358 = vadd.f32 %v8223, %v8354
        %v8359 = vadd.f32 %v8224, %v8354
        %v8360 = vadd.f32 %v8225, %v8354
        %v8361 = vadd.f32 %v8226, %v8354
        %v8362 = vadd.f32 %v8227, %v8354
        %v8363 = vadd.f32 %v8228, %v8354
        %v8364 = vadd.f32 %v8229, %v8354
        %v8365 = vadd.f32 %v8230, %v8354
        %v8366 = vadd.f32 %v8231, %v8354
        %v8367 = vadd.f32 %v8232, %v8354
        %v8368 = vadd.f32 %v8233, %v8354
        %v8369 = vadd.f32 %v8234, %v8354
        %v8370 = vadd.f32 %v8235, %v8354
        %v8371 = vadd.f32 %v8236, %v8354
        %v8372 = vadd.f32 %v8237, %v8354
        %v8373 = vadd.f32 %v8238, %v8354
        %v8374 = vadd.f32 %v8239, %v8354
        %v8375 = vadd.f32 %v8240, %v8354
        %v8376 = vadd.f32 %v8241, %v8354
        %v8377 = vadd.f32 %v8242, %v8354
        %v8378 = vadd.f32 %v8243, %v8354
        %v8379 = vadd.f32 %v8244, %v8354
        %v8380 = vadd.f32 %v8245, %v8354
        %v8381 = vadd.f32 %v8246, %v8354
        %v8382 = vadd.f32 %v8247, %v8354
        %v8383 = vadd.f32 %v8248, %v8354
        %v8384 = vadd.f32 %v8249, %v8354
        %v8385 = vadd.f32 %v8250, %v8354
        %v8386 = vadd.f32 %v8251, %v8354
        %v8387 = vadd.f32 %v8252, %v8354
        %v8388 = vadd.f32 %v8253, %v8354
        %v8389 = vadd.f32 %v8254, %v8354
        %v8390 = vadd.f32 %v8255, %v8354
        %v8391 = vadd.f32 %v8256, %v8354
        %v8392 = vadd.f32 %v8257, %v8354
        %v8393 = vadd.f32 %v8258, %v8354
        %v8394 = vadd.f32 %v8259, %v8354
        %v8395 = vadd.f32 %v8260, %v8354
        %v8396 = vadd.f32 %v8261, %v8354
        %v8397 = vadd.f32 %v8262, %v8354
        %v8398 = vadd.f32 %v8263, %v8354
        %v8399 = vadd.f32 %v8264, %v8354
        %v8400 = vadd.f32 %v8265, %v8354
        %v8401 = vadd.f32 %v8266, %v8354
        %v8402 = vadd.f32 %v8267, %v8354
        %v8403 = vadd.f32 %v8268, %v8354
        %v8404 = vadd.f32 %v8269, %v8354
        %v8405 = vadd.f32 %v8270, %v8354
        %v8406 = vadd.f32 %v8271, %v8354
        %v8407 = vadd.f32 %v8272, %v8354
        %v8408 = vadd.f32 %v8273, %v8354
        %v8409 = vadd.f32 %v8274, %v8354
        %v8410 = vadd.f32 %v8275, %v8354
        %v8411 = vadd.f32 %v8276, %v8354
        %v8412 = vadd.f32 %v8277, %v8354
        %v8413 = vadd.f32 %v8278, %v8354
        %v8414 = vadd.f32 %v8279, %v8354
        %v8415 = vadd.f32 %v8280, %v8354
        %v8416 = vadd.f32 %v8281, %v8354
        %v8417 = vadd.f32 %v8282, %v8354
        %v8418 = vadd.f32 %v8283, %v8354
        %v8419 = vadd.f32 %v8284, %v8354
        %v8420 = vadd.f32 %v8285, %v8354
        %v8421 = vadd.f32 %v8286, %v8354
        %v8422 = vadd.f32 %v8287, %v8354
        %v8423 = vadd.f32 %v8288, %v8354
        %v8424 = vadd.f32 %v8289, %v8354
        %v8425 = vadd.f32 %v8290, %v8354
        %v8426 = vadd.f32 %v8291, %v8354
        %v8427 = vadd.f32 %v8292, %v8354
        %v8428 = vadd.f32 %v8293, %v8354
        %v8429 = vadd.f32 %v8294, %v8354
        %v8430 = vadd.f32 %v8295, %v8354
        %v8431 = vadd.f32 %v8296, %v8354
        %v8432 = vadd.f32 %v8297, %v8354
        %v8433 = vadd.f32 %v8298, %v8354
        %v8434 = vadd.f32 %v8299, %v8354
        %v8435 = vadd.f32 %v8300, %v8354
        %v8436 = vadd.f32 %v8301, %v8354
        %v8437 = vadd.f32 %v8302, %v8354
        %v8438 = vadd.f32 %v8303, %v8354
        %v8439 = vadd.f32 %v8304, %v8354
        %v8440 = vadd.f32 %v8305, %v8354
        %v8441 = vadd.f32 %v8306, %v8354
        %v8442 = vadd.f32 %v8307, %v8354
        %v8443 = vadd.f32 %v8308, %v8354
        %v8444 = vadd.f32 %v8309, %v8354
        %v8445 = vadd.f32 %v8310, %v8354
        %v8446 = vadd.f32 %v8311, %v8354
        %v8447 = vadd.f32 %v8312, %v8354
        %v8448 = vadd.f32 %v8313, %v8354
        %v8449 = vadd.f32 %v8314, %v8354
        %v8450 = vadd.f32 %v8315, %v8354
        %v8451 = vadd.f32 %v8316, %v8354
        %v8452 = vadd.f32 %v8317, %v8354
        %v8453 = vadd.f32 %v8318, %v8354
        %v8454 = vadd.f32 %v8319, %v8354
        %v8455 = vadd.f32 %v8320, %v8354
        %v8456 = vadd.f32 %v8321, %v8354
        %v8457 = vadd.f32 %v8322, %v8354
        %v8458 = vadd.f32 %v8323, %v8354
        %v8459 = vadd.f32 %v8324, %v8354
        %v8460 = vadd.f32 %v8325, %v8354
        %v8461 = vadd.f32 %v8326, %v8354
        %v8462 = vadd.f32 %v8327, %v8354
        %v8463 = vadd.f32 %v8328, %v8354
        %v8464 = vadd.f32 %v8329, %v8354
        %v8465 = vadd.f32 %v8330, %v8354
        %v8466 = vadd.f32 %v8331, %v8354
        %v8467 = vadd.f32 %v8332, %v8354
        %v8468 = vadd.f32 %v8333, %v8354
        %v8469 = vadd.f32 %v8334, %v8354
        %v8470 = vadd.f32 %v8335, %v8354
        %v8471 = vadd.f32 %v8336, %v8354
        %v8472 = vadd.f32 %v8337, %v8354
        %v8473 = vadd.f32 %v8338, %v8354
        %v8474 = vadd.f32 %v8339, %v8354
        %v8475 = vadd.f32 %v8340, %v8354
        %v8476 = vadd.f32 %v8341, %v8354
        %v8477 = vadd.f32 %v8342, %v8354
        %v8478 = vadd.f32 %v8343, %v8354
        %v8479 = vadd.f32 %v8344, %v8354
        %v8480 = vadd.f32 %v8345, %v8354
        %v8481 = vadd.f32 %v8346, %v8354
        %v8482 = vadd.f32 %v8347, %v8354
        %v8483 = vadd.f32 %v8348, %v8354
        %v8484 = vadd.f32 %v8356, %v8357
        %v8485 = vadd.f32 %v8484, %v8358
        %v8486 = vadd.f32 %v8485, %v8359
        %v8487 = vadd.f32 %v8486, %v8360
        %v8488 = vadd.f32 %v8487, %v8361
        %v8489 = vadd.f32 %v8488, %v8362
        %v8490 = vadd.f32 %v8489, %v8363
        %v8491 = vadd.f32 %v8490, %v8364
        %v8492 = vadd.f32 %v8491, %v8365
        %v8493 = vadd.f32 %v8492, %v8366
        %v8494 = vadd.f32 %v8493, %v8367
        %v8495 = vadd.f32 %v8494, %v8368
        %v8496 = vadd.f32 %v8495, %v8369
        %v8497 = vadd.f32 %v8496, %v8370
        %v8498 = vadd.f32 %v8497, %v8371
        %v8499 = vadd.f32 %v8498, %v8372
        %v8500 = vadd.f32 %v8499, %v8373
        %v8501 = vadd.f32 %v8500, %v8374
        %v8502 = vadd.f32 %v8501, %v8375
        %v8503 = vadd.f32 %v8502, %v8376
        %v8504 = vadd.f32 %v8503, %v8377
        %v8505 = vadd.f32 %v8504, %v8378
        %v8506 = vadd.f32 %v8505, %v8379
        %v8507 = vadd.f32 %v8506, %v8380
        %v8508 = vadd.f32 %v8507, %v8381
        %v8509 = vadd.f32 %v8508, %v8382
        %v8510 = vadd.f32 %v8509, %v8383
        %v8511 = vadd.f32 %v8510, %v8384
        %v8512 = vadd.f32 %v8511, %v8385
        %v8513 = vadd.f32 %v8512, %v8386
        %v8514 = vadd.f32 %v8513, %v8387
        %v8515 = vadd.f32 %v8514, %v8388
        %v8516 = vadd.f32 %v8515, %v8389
        %v8517 = vadd.f32 %v8516, %v8390
        %v8518 = vadd.f32 %v8517, %v8391
        %v8519 = vadd.f32 %v8518, %v8392
        %v8520 = vadd.f32 %v8519, %v8393
        %v8521 = vadd.f32 %v8520, %v8394
        %v8522 = vadd.f32 %v8521, %v8395
        %v8523 = vadd.f32 %v8522, %v8396
        %v8524 = vadd.f32 %v8523, %v8397
        %v8525 = vadd.f32 %v8524, %v8398
        %v8526 = vadd.f32 %v8525, %v8399
        %v8527 = vadd.f32 %v8526, %v8400
        %v8528 = vadd.f32 %v8527, %v8401
        %v8529 = vadd.f32 %v8528, %v8402
        %v8530 = vadd.f32 %v8529, %v8403
        %v8531 = vadd.f32 %v8530, %v8404
        %v8532 = vadd.f32 %v8531, %v8405
        %v8533 = vadd.f32 %v8532, %v8406
        %v8534 = vadd.f32 %v8533, %v8407
        %v8535 = vadd.f32 %v8534, %v8408
        %v8536 = vadd.f32 %v8535, %v8409
        %v8537 = vadd.f32 %v8536, %v8410
        %v8538 = vadd.f32 %v8537, %v8411
        %v8539 = vadd.f32 %v8538, %v8412
        %v8540 = vadd.f32 %v8539, %v8413
        %v8541 = vadd.f32 %v8540, %v8414
        %v8542 = vadd.f32 %v8541, %v8415
        %v8543 = vadd.f32 %v8542, %v8416
        %v8544 = vadd.f32 %v8543, %v8417
        %v8545 = vadd.f32 %v8544, %v8418
        %v8546 = vadd.f32 %v8545, %v8419
        %v8547 = vadd.f32 %v8546, %v8420
        %v8548 = vadd.f32 %v8547, %v8421
        %v8549 = vadd.f32 %v8548, %v8422
        %v8550 = vadd.f32 %v8549, %v8423
        %v8551 = vadd.f32 %v8550, %v8424
        %v8552 = vadd.f32 %v8551, %v8425
        %v8553 = vadd.f32 %v8552, %v8426
        %v8554 = vadd.f32 %v8553, %v8427
        %v8555 = vadd.f32 %v8554, %v8428
        %v8556 = vadd.f32 %v8555, %v8429
        %v8557 = vadd.f32 %v8556, %v8430
        %v8558 = vadd.f32 %v8557, %v8431
        %v8559 = vadd.f32 %v8558, %v8432
        %v8560 = vadd.f32 %v8559, %v8433
        %v8561 = vadd.f32 %v8560, %v8434
        %v8562 = vadd.f32 %v8561, %v8435
        %v8563 = vadd.f32 %v8562, %v8436
        %v8564 = vadd.f32 %v8563, %v8437
        %v8565 = vadd.f32 %v8564, %v8438
        %v8566 = vadd.f32 %v8565, %v8439
        %v8567 = vadd.f32 %v8566, %v8440
        %v8568 = vadd.f32 %v8567, %v8441
        %v8569 = vadd.f32 %v8568, %v8442
        %v8570 = vadd.f32 %v8569, %v8443
        %v8571 = vadd.f32 %v8570, %v8444
        %v8572 = vadd.f32 %v8571, %v8445
        %v8573 = vadd.f32 %v8572, %v8446
        %v8574 = vadd.f32 %v8573, %v8447
        %v8575 = vadd.f32 %v8574, %v8448
        %v8576 = vadd.f32 %v8575, %v8449
        %v8577 = vadd.f32 %v8576, %v8450
        %v8578 = vadd.f32 %v8577, %v8451
        %v8579 = vadd.f32 %v8578, %v8452
        %v8580 = vadd.f32 %v8579, %v8453
        %v8581 = vadd.f32 %v8580, %v8454
        %v8582 = vadd.f32 %v8581, %v8455
        %v8583 = vadd.f32 %v8582, %v8456
        %v8584 = vadd.f32 %v8583, %v8457
        %v8585 = vadd.f32 %v8584, %v8458
        %v8586 = vadd.f32 %v8585, %v8459
        %v8587 = vadd.f32 %v8586, %v8460
        %v8588 = vadd.f32 %v8587, %v8461
        %v8589 = vadd.f32 %v8588, %v8462
        %v8590 = vadd.f32 %v8589, %v8463
        %v8591 = vadd.f32 %v8590, %v8464
        %v8592 = vadd.f32 %v8591, %v8465
        %v8593 = vadd.f32 %v8592, %v8466
        %v8594 = vadd.f32 %v8593, %v8467
        %v8595 = vadd.f32 %v8594, %v8468
        %v8596 = vadd.f32 %v8595, %v8469
        %v8597 = vadd.f32 %v8596, %v8470
        %v8598 = vadd.f32 %v8597, %v8471
        %v8599 = vadd.f32 %v8598, %v8472
        %v8600 = vadd.f32 %v8599, %v8473
        %v8601 = vadd.f32 %v8600, %v8474
        %v8602 = vadd.f32 %v8601, %v8475
        %v8603 = vadd.f32 %v8602, %v8476
        %v8604 = vadd.f32 %v8603, %v8477
        %v8605 = vadd.f32 %v8604, %v8478
        %v8606 = vadd.f32 %v8605, %v8479
        %v8607 = vadd.f32 %v8606, %v8480
        %v8608 = vadd.f32 %v8607, %v8481
        %v8609 = vadd.f32 %v8608, %v8482
        %v8610 = vadd.f32 %v8609, %v8483
        %v8611 = vrot.slane %v8610, 4
        %v8612 = vadd.f32 %v8610, %v8611
        %v8613 = vrot.slane %v8612, 2
        %v8614 = vadd.f32 %v8612, %v8613
        %v8615 = vrot.slane %v8614, 1
        %v8616 = vadd.f32 %v8614, %v8615
        %8617 = vst [vmem:[%s362] sm:$0x1] %v8616
        %v8618 = vmul.f32 %v8356, %v8356
        %v8619 = vmul.f32 %v8357, %v8357
        %v8620 = vmul.f32 %v8358, %v8358
        %v8621 = vmul.f32 %v8359, %v8359
        %v8622 = vmul.f32 %v8360, %v8360
        %v8623 = vmul.f32 %v8361, %v8361
        %v8624 = vmul.f32 %v8362, %v8362
        %v8625 = vmul.f32 %v8363, %v8363
        %v8626 = vmul.f32 %v8364, %v8364
        %v8627 = vmul.f32 %v8365, %v8365
        %v8628 = vmul.f32 %v8366, %v8366
        %v8629 = vmul.f32 %v8367, %v8367
        %v8630 = vmul.f32 %v8368, %v8368
        %v8631 = vmul.f32 %v8369, %v8369
        %v8632 = vmul.f32 %v8370, %v8370
        %v8633 = vmul.f32 %v8371, %v8371
        %v8634 = vmul.f32 %v8372, %v8372
        %v8635 = vmul.f32 %v8373, %v8373
        %v8636 = vmul.f32 %v8374, %v8374
        %v8637 = vmul.f32 %v8375, %v8375
        %v8638 = vmul.f32 %v8376, %v8376
        %v8639 = vmul.f32 %v8377, %v8377
        %v8640 = vmul.f32 %v8378, %v8378
        %v8641 = vmul.f32 %v8379, %v8379
        %v8642 = vmul.f32 %v8380, %v8380
        %v8643 = vmul.f32 %v8381, %v8381
        %v8644 = vmul.f32 %v8382, %v8382
        %v8645 = vmul.f32 %v8383, %v8383
        %v8646 = vmul.f32 %v8384, %v8384
        %v8647 = vmul.f32 %v8385, %v8385
        %v8648 = vmul.f32 %v8386, %v8386
        %v8649 = vmul.f32 %v8387, %v8387
        %v8650 = vmul.f32 %v8388, %v8388
        %v8651 = vmul.f32 %v8389, %v8389
        %v8652 = vmul.f32 %v8390, %v8390
        %v8653 = vmul.f32 %v8391, %v8391
        %v8654 = vmul.f32 %v8392, %v8392
        %v8655 = vmul.f32 %v8393, %v8393
        %v8656 = vmul.f32 %v8394, %v8394
        %v8657 = vmul.f32 %v8395, %v8395
        %v8658 = vmul.f32 %v8396, %v8396
        %v8659 = vmul.f32 %v8397, %v8397
        %v8660 = vmul.f32 %v8398, %v8398
        %v8661 = vmul.f32 %v8399, %v8399
        %v8662 = vmul.f32 %v8400, %v8400
        %v8663 = vmul.f32 %v8401, %v8401
        %v8664 = vmul.f32 %v8402, %v8402
        %v8665 = vmul.f32 %v8403, %v8403
        %v8666 = vmul.f32 %v8404, %v8404
        %v8667 = vmul.f32 %v8405, %v8405
        %v8668 = vmul.f32 %v8406, %v8406
        %v8669 = vmul.f32 %v8407, %v8407
        %v8670 = vmul.f32 %v8408, %v8408
        %v8671 = vmul.f32 %v8409, %v8409
        %v8672 = vmul.f32 %v8410, %v8410
        %v8673 = vmul.f32 %v8411, %v8411
        %v8674 = vmul.f32 %v8412, %v8412
        %v8675 = vmul.f32 %v8413, %v8413
        %v8676 = vmul.f32 %v8414, %v8414
        %v8677 = vmul.f32 %v8415, %v8415
        %v8678 = vmul.f32 %v8416, %v8416
        %v8679 = vmul.f32 %v8417, %v8417
        %v8680 = vmul.f32 %v8418, %v8418
        %v8681 = vmul.f32 %v8419, %v8419
        %v8682 = vmul.f32 %v8420, %v8420
        %v8683 = vmul.f32 %v8421, %v8421
        %v8684 = vmul.f32 %v8422, %v8422
        %v8685 = vmul.f32 %v8423, %v8423
        %v8686 = vmul.f32 %v8424, %v8424
        %v8687 = vmul.f32 %v8425, %v8425
        %v8688 = vmul.f32 %v8426, %v8426
        %v8689 = vmul.f32 %v8427, %v8427
        %v8690 = vmul.f32 %v8428, %v8428
        %v8691 = vmul.f32 %v8429, %v8429
        %v8692 = vmul.f32 %v8430, %v8430
        %v8693 = vmul.f32 %v8431, %v8431
        %v8694 = vmul.f32 %v8432, %v8432
        %v8695 = vmul.f32 %v8433, %v8433
        %v8696 = vmul.f32 %v8434, %v8434
        %v8697 = vmul.f32 %v8435, %v8435
        %v8698 = vmul.f32 %v8436, %v8436
        %v8699 = vmul.f32 %v8437, %v8437
        %v8700 = vmul.f32 %v8438, %v8438
        %v8701 = vmul.f32 %v8439, %v8439
        %v8702 = vmul.f32 %v8440, %v8440
        %v8703 = vmul.f32 %v8441, %v8441
        %v8704 = vmul.f32 %v8442, %v8442
        %v8705 = vmul.f32 %v8443, %v8443
        %v8706 = vmul.f32 %v8444, %v8444
        %v8707 = vmul.f32 %v8445, %v8445
        %v8708 = vmul.f32 %v8446, %v8446
        %v8709 = vmul.f32 %v8447, %v8447
        %v8710 = vmul.f32 %v8448, %v8448
        %v8711 = vmul.f32 %v8449, %v8449
        %v8712 = vmul.f32 %v8450, %v8450
        %v8713 = vmul.f32 %v8451, %v8451
        %v8714 = vmul.f32 %v8452, %v8452
        %v8715 = vmul.f32 %v8453, %v8453
        %v8716 = vmul.f32 %v8454, %v8454
        %v8717 = vmul.f32 %v8455, %v8455
        %v8718 = vmul.f32 %v8456, %v8456
        %v8719 = vmul.f32 %v8457, %v8457
        %v8720 = vmul.f32 %v8458, %v8458
        %v8721 = vmul.f32 %v8459, %v8459
        %v8722 = vmul.f32 %v8460, %v8460
        %v8723 = vmul.f32 %v8461, %v8461
        %v8724 = vmul.f32 %v8462, %v8462
        %v8725 = vmul.f32 %v8463, %v8463
        %v8726 = vmul.f32 %v8464, %v8464
        %v8727 = vmul.f32 %v8465, %v8465
        %v8728 = vmul.f32 %v8466, %v8466
        %v8729 = vmul.f32 %v8467, %v8467
        %v8730 = vmul.f32 %v8468, %v8468
        %v8731 = vmul.f32 %v8469, %v8469
        %v8732 = vmul.f32 %v8470, %v8470
        %v8733 = vmul.f32 %v8471, %v8471
        %v8734 = vmul.f32 %v8472, %v8472
        %v8735 = vmul.f32 %v8473, %v8473
        %v8736 = vmul.f32 %v8474, %v8474
        %v8737 = vmul.f32 %v8475, %v8475
        %v8738 = vmul.f32 %v8476, %v8476
        %v8739 = vmul.f32 %v8477, %v8477
        %v8740 = vmul.f32 %v8478, %v8478
        %v8741 = vmul.f32 %v8479, %v8479
        %v8742 = vmul.f32 %v8480, %v8480
        %v8743 = vmul.f32 %v8481, %v8481
        %v8744 = vmul.f32 %v8482, %v8482
        %v8745 = vmul.f32 %v8483, %v8483
        %v8746 = vadd.f32 %v8618, %v8619
        %v8747 = vadd.f32 %v8746, %v8620
        %v8748 = vadd.f32 %v8747, %v8621
        %v8749 = vadd.f32 %v8748, %v8622
        %v8750 = vadd.f32 %v8749, %v8623
        %v8751 = vadd.f32 %v8750, %v8624
        %v8752 = vadd.f32 %v8751, %v8625
        %v8753 = vadd.f32 %v8752, %v8626
        %v8754 = vadd.f32 %v8753, %v8627
        %v8755 = vadd.f32 %v8754, %v8628
        %v8756 = vadd.f32 %v8755, %v8629
        %v8757 = vadd.f32 %v8756, %v8630
        %v8758 = vadd.f32 %v8757, %v8631
        %v8759 = vadd.f32 %v8758, %v8632
        %v8760 = vadd.f32 %v8759, %v8633
        %v8761 = vadd.f32 %v8760, %v8634
        %v8762 = vadd.f32 %v8761, %v8635
        %v8763 = vadd.f32 %v8762, %v8636
        %v8764 = vadd.f32 %v8763, %v8637
        %v8765 = vadd.f32 %v8764, %v8638
        %v8766 = vadd.f32 %v8765, %v8639
        %v8767 = vadd.f32 %v8766, %v8640
        %v8768 = vadd.f32 %v8767, %v8641
        %v8769 = vadd.f32 %v8768, %v8642
        %v8770 = vadd.f32 %v8769, %v8643
        %v8771 = vadd.f32 %v8770, %v8644
        %v8772 = vadd.f32 %v8771, %v8645
        %v8773 = vadd.f32 %v8772, %v8646
        %v8774 = vadd.f32 %v8773, %v8647
        %v8775 = vadd.f32 %v8774, %v8648
        %v8776 = vadd.f32 %v8775, %v8649
        %v8777 = vadd.f32 %v8776, %v8650
        %v8778 = vadd.f32 %v8777, %v8651
        %v8779 = vadd.f32 %v8778, %v8652
        %v8780 = vadd.f32 %v8779, %v8653
        %v8781 = vadd.f32 %v8780, %v8654
        %v8782 = vadd.f32 %v8781, %v8655
        %v8783 = vadd.f32 %v8782, %v8656
        %v8784 = vadd.f32 %v8783, %v8657
        %v8785 = vadd.f32 %v8784, %v8658
        %v8786 = vadd.f32 %v8785, %v8659
        %v8787 = vadd.f32 %v8786, %v8660
        %v8788 = vadd.f32 %v8787, %v8661
        %v8789 = vadd.f32 %v8788, %v8662
        %v8790 = vadd.f32 %v8789, %v8663
        %v8791 = vadd.f32 %v8790, %v8664
        %v8792 = vadd.f32 %v8791, %v8665
        %v8793 = vadd.f32 %v8792, %v8666
        %v8794 = vadd.f32 %v8793, %v8667
        %v8795 = vadd.f32 %v8794, %v8668
        %v8796 = vadd.f32 %v8795, %v8669
        %v8797 = vadd.f32 %v8796, %v8670
        %v8798 = vadd.f32 %v8797, %v8671
        %v8799 = vadd.f32 %v8798, %v8672
        %v8800 = vadd.f32 %v8799, %v8673
        %v8801 = vadd.f32 %v8800, %v8674
        %v8802 = vadd.f32 %v8801, %v8675
        %v8803 = vadd.f32 %v8802, %v8676
        %v8804 = vadd.f32 %v8803, %v8677
        %v8805 = vadd.f32 %v8804, %v8678
        %v8806 = vadd.f32 %v8805, %v8679
        %v8807 = vadd.f32 %v8806, %v8680
        %v8808 = vadd.f32 %v8807, %v8681
        %v8809 = vadd.f32 %v8808, %v8682
        %v8810 = vadd.f32 %v8809, %v8683
        %v8811 = vadd.f32 %v8810, %v8684
        %v8812 = vadd.f32 %v8811, %v8685
        %v8813 = vadd.f32 %v8812, %v8686
        %v8814 = vadd.f32 %v8813, %v8687
        %v8815 = vadd.f32 %v8814, %v8688
        %v8816 = vadd.f32 %v8815, %v8689
        %v8817 = vadd.f32 %v8816, %v8690
        %v8818 = vadd.f32 %v8817, %v8691
        %v8819 = vadd.f32 %v8818, %v8692
        %v8820 = vadd.f32 %v8819, %v8693
        %v8821 = vadd.f32 %v8820, %v8694
        %v8822 = vadd.f32 %v8821, %v8695
        %v8823 = vadd.f32 %v8822, %v8696
        %v8824 = vadd.f32 %v8823, %v8697
        %v8825 = vadd.f32 %v8824, %v8698
        %v8826 = vadd.f32 %v8825, %v8699
        %v8827 = vadd.f32 %v8826, %v8700
        %v8828 = vadd.f32 %v8827, %v8701
        %v8829 = vadd.f32 %v8828, %v8702
        %v8830 = vadd.f32 %v8829, %v8703
        %v8831 = vadd.f32 %v8830, %v8704
        %v8832 = vadd.f32 %v8831, %v8705
        %v8833 = vadd.f32 %v8832, %v8706
        %v8834 = vadd.f32 %v8833, %v8707
        %v8835 = vadd.f32 %v8834, %v8708
        %v8836 = vadd.f32 %v8835, %v8709
        %v8837 = vadd.f32 %v8836, %v8710
        %v8838 = vadd.f32 %v8837, %v8711
        %v8839 = vadd.f32 %v8838, %v8712
        %v8840 = vadd.f32 %v8839, %v8713
        %v8841 = vadd.f32 %v8840, %v8714
        %v8842 = vadd.f32 %v8841, %v8715
        %v8843 = vadd.f32 %v8842, %v8716
        %v8844 = vadd.f32 %v8843, %v8717
        %v8845 = vadd.f32 %v8844, %v8718
        %v8846 = vadd.f32 %v8845, %v8719
        %v8847 = vadd.f32 %v8846, %v8720
        %v8848 = vadd.f32 %v8847, %v8721
        %v8849 = vadd.f32 %v8848, %v8722
        %v8850 = vadd.f32 %v8849, %v8723
        %v8851 = vadd.f32 %v8850, %v8724
        %v8852 = vadd.f32 %v8851, %v8725
        %v8853 = vadd.f32 %v8852, %v8726
        %v8854 = vadd.f32 %v8853, %v8727
        %v8855 = vadd.f32 %v8854, %v8728
        %v8856 = vadd.f32 %v8855, %v8729
        %v8857 = vadd.f32 %v8856, %v8730
        %v8858 = vadd.f32 %v8857, %v8731
        %v8859 = vadd.f32 %v8858, %v8732
        %v8860 = vadd.f32 %v8859, %v8733
        %v8861 = vadd.f32 %v8860, %v8734
        %v8862 = vadd.f32 %v8861, %v8735
        %v8863 = vadd.f32 %v8862, %v8736
        %v8864 = vadd.f32 %v8863, %v8737
        %v8865 = vadd.f32 %v8864, %v8738
        %v8866 = vadd.f32 %v8865, %v8739
        %v8867 = vadd.f32 %v8866, %v8740
        %v8868 = vadd.f32 %v8867, %v8741
        %v8869 = vadd.f32 %v8868, %v8742
        %v8870 = vadd.f32 %v8869, %v8743
        %v8871 = vadd.f32 %v8870, %v8744
        %v8872 = vadd.f32 %v8871, %v8745
        %v8873 = vrot.slane %v8872, 4
        %v8874 = vadd.f32 %v8872, %v8873
        %v8875 = vrot.slane %v8874, 2
        %v8876 = vadd.f32 %v8874, %v8875
        %v8877 = vrot.slane %v8876, 1
        %v8878 = vadd.f32 %v8876, %v8877
        %8879 = vst [vmem:[%s362 + $0x1] sm:$0x1] %v8878
        %v8880 = vpack.c.bf16 %v8357, %v8356
        %v8881 = vpack.c.bf16 %v8359, %v8358
        %v8882 = vpack.c.bf16 %v8361, %v8360
        %v8883 = vpack.c.bf16 %v8363, %v8362
        %v8884 = vpack.c.bf16 %v8365, %v8364
        %v8885 = vpack.c.bf16 %v8367, %v8366
        %v8886 = vpack.c.bf16 %v8369, %v8368
        %v8887 = vpack.c.bf16 %v8371, %v8370
        %v8888 = vpack.c.bf16 %v8373, %v8372
        %v8889 = vpack.c.bf16 %v8375, %v8374
        %v8890 = vpack.c.bf16 %v8377, %v8376
        %v8891 = vpack.c.bf16 %v8379, %v8378
        %v8892 = vpack.c.bf16 %v8381, %v8380
        %v8893 = vpack.c.bf16 %v8383, %v8382
        %v8894 = vpack.c.bf16 %v8385, %v8384
        %v8895 = vpack.c.bf16 %v8387, %v8386
        %v8896 = vpack.c.bf16 %v8389, %v8388
        %v8897 = vpack.c.bf16 %v8391, %v8390
        %v8898 = vpack.c.bf16 %v8393, %v8392
        %v8899 = vpack.c.bf16 %v8395, %v8394
        %v8900 = vpack.c.bf16 %v8397, %v8396
        %v8901 = vpack.c.bf16 %v8399, %v8398
        %v8902 = vpack.c.bf16 %v8401, %v8400
        %v8903 = vpack.c.bf16 %v8403, %v8402
        %v8904 = vpack.c.bf16 %v8405, %v8404
        %v8905 = vpack.c.bf16 %v8407, %v8406
        %v8906 = vpack.c.bf16 %v8409, %v8408
        %v8907 = vpack.c.bf16 %v8411, %v8410
        %v8908 = vpack.c.bf16 %v8413, %v8412
        %v8909 = vpack.c.bf16 %v8415, %v8414
        %v8910 = vpack.c.bf16 %v8417, %v8416
        %v8911 = vpack.c.bf16 %v8419, %v8418
        %v8912 = vpack.c.bf16 %v8421, %v8420
        %v8913 = vpack.c.bf16 %v8423, %v8422
        %v8914 = vpack.c.bf16 %v8425, %v8424
        %v8915 = vpack.c.bf16 %v8427, %v8426
        %v8916 = vpack.c.bf16 %v8429, %v8428
        %v8917 = vpack.c.bf16 %v8431, %v8430
        %v8918 = vpack.c.bf16 %v8433, %v8432
        %v8919 = vpack.c.bf16 %v8435, %v8434
        %v8920 = vpack.c.bf16 %v8437, %v8436
        %v8921 = vpack.c.bf16 %v8439, %v8438
        %v8922 = vpack.c.bf16 %v8441, %v8440
        %v8923 = vpack.c.bf16 %v8443, %v8442
        %v8924 = vpack.c.bf16 %v8445, %v8444
        %v8925 = vpack.c.bf16 %v8447, %v8446
        %v8926 = vpack.c.bf16 %v8449, %v8448
        %v8927 = vpack.c.bf16 %v8451, %v8450
        %v8928 = vpack.c.bf16 %v8453, %v8452
        %v8929 = vpack.c.bf16 %v8455, %v8454
        %v8930 = vpack.c.bf16 %v8457, %v8456
        %v8931 = vpack.c.bf16 %v8459, %v8458
        %v8932 = vpack.c.bf16 %v8461, %v8460
        %v8933 = vpack.c.bf16 %v8463, %v8462
        %v8934 = vpack.c.bf16 %v8465, %v8464
        %v8935 = vpack.c.bf16 %v8467, %v8466
        %v8936 = vpack.c.bf16 %v8469, %v8468
        %v8937 = vpack.c.bf16 %v8471, %v8470
        %v8938 = vpack.c.bf16 %v8473, %v8472
        %v8939 = vpack.c.bf16 %v8475, %v8474
        %v8940 = vpack.c.bf16 %v8477, %v8476
        %v8941 = vpack.c.bf16 %v8479, %v8478
        %v8942 = vpack.c.bf16 %v8481, %v8480
        %v8943 = vpack.c.bf16 %v8483, %v8482
        %v9008 = vunpack.c.l.b16 %v8880
        %v9009 = vunpack.c.h.b16 %v8880
        %v9010 = vunpack.c.l.b16 %v8881
        %v9011 = vunpack.c.h.b16 %v8881
        %v9012 = vunpack.c.l.b16 %v8882
        %v9013 = vunpack.c.h.b16 %v8882
        %v9014 = vunpack.c.l.b16 %v8883
        %v9015 = vunpack.c.h.b16 %v8883
        %v9016 = vunpack.c.l.b16 %v8884
        %v9017 = vunpack.c.h.b16 %v8884
        %v9018 = vunpack.c.l.b16 %v8885
        %v9019 = vunpack.c.h.b16 %v8885
        %v9020 = vunpack.c.l.b16 %v8886
        %v9021 = vunpack.c.h.b16 %v8886
        %v9022 = vunpack.c.l.b16 %v8887
        %v9023 = vunpack.c.h.b16 %v8887
        %v9024 = vunpack.c.l.b16 %v8888
        %v9025 = vunpack.c.h.b16 %v8888
        %v9026 = vunpack.c.l.b16 %v8889
        %v9027 = vunpack.c.h.b16 %v8889
        %v9028 = vunpack.c.l.b16 %v8890
        %v9029 = vunpack.c.h.b16 %v8890
        %v9030 = vunpack.c.l.b16 %v8891
        %v9031 = vunpack.c.h.b16 %v8891
        %v9032 = vunpack.c.l.b16 %v8892
        %v9033 = vunpack.c.h.b16 %v8892
        %v9034 = vunpack.c.l.b16 %v8893
        %v9035 = vunpack.c.h.b16 %v8893
        %v9036 = vunpack.c.l.b16 %v8894
        %v9037 = vunpack.c.h.b16 %v8894
        %v9038 = vunpack.c.l.b16 %v8895
        %v9039 = vunpack.c.h.b16 %v8895
        %v9040 = vunpack.c.l.b16 %v8896
        %v9041 = vunpack.c.h.b16 %v8896
        %v9042 = vunpack.c.l.b16 %v8897
        %v9043 = vunpack.c.h.b16 %v8897
        %v9044 = vunpack.c.l.b16 %v8898
        %v9045 = vunpack.c.h.b16 %v8898
        %v9046 = vunpack.c.l.b16 %v8899
        %v9047 = vunpack.c.h.b16 %v8899
        %v9048 = vunpack.c.l.b16 %v8900
        %v9049 = vunpack.c.h.b16 %v8900
        %v9050 = vunpack.c.l.b16 %v8901
        %v9051 = vunpack.c.h.b16 %v8901
        %v9052 = vunpack.c.l.b16 %v8902
        %v9053 = vunpack.c.h.b16 %v8902
        %v9054 = vunpack.c.l.b16 %v8903
        %v9055 = vunpack.c.h.b16 %v8903
        %v9056 = vunpack.c.l.b16 %v8904
        %v9057 = vunpack.c.h.b16 %v8904
        %v9058 = vunpack.c.l.b16 %v8905
        %v9059 = vunpack.c.h.b16 %v8905
        %v9060 = vunpack.c.l.b16 %v8906
        %v9061 = vunpack.c.h.b16 %v8906
        %v9062 = vunpack.c.l.b16 %v8907
        %v9063 = vunpack.c.h.b16 %v8907
        %v9064 = vunpack.c.l.b16 %v8908
        %v9065 = vunpack.c.h.b16 %v8908
        %v9066 = vunpack.c.l.b16 %v8909
        %v9067 = vunpack.c.h.b16 %v8909
        %v9068 = vunpack.c.l.b16 %v8910
        %v9069 = vunpack.c.h.b16 %v8910
        %v9070 = vunpack.c.l.b16 %v8911
        %v9071 = vunpack.c.h.b16 %v8911
        %v9072 = vunpack.c.l.b16 %v8912
        %v9073 = vunpack.c.h.b16 %v8912
        %v9074 = vunpack.c.l.b16 %v8913
        %v9075 = vunpack.c.h.b16 %v8913
        %v9076 = vunpack.c.l.b16 %v8914
        %v9077 = vunpack.c.h.b16 %v8914
        %v9078 = vunpack.c.l.b16 %v8915
        %v9079 = vunpack.c.h.b16 %v8915
        %v9080 = vunpack.c.l.b16 %v8916
        %v9081 = vunpack.c.h.b16 %v8916
        %v9082 = vunpack.c.l.b16 %v8917
        %v9083 = vunpack.c.h.b16 %v8917
        %v9084 = vunpack.c.l.b16 %v8918
        %v9085 = vunpack.c.h.b16 %v8918
        %v9086 = vunpack.c.l.b16 %v8919
        %v9087 = vunpack.c.h.b16 %v8919
        %v9088 = vunpack.c.l.b16 %v8920
        %v9089 = vunpack.c.h.b16 %v8920
        %v9090 = vunpack.c.l.b16 %v8921
        %v9091 = vunpack.c.h.b16 %v8921
        %v9092 = vunpack.c.l.b16 %v8922
        %v9093 = vunpack.c.h.b16 %v8922
        %v9094 = vunpack.c.l.b16 %v8923
        %v9095 = vunpack.c.h.b16 %v8923
        %v9096 = vunpack.c.l.b16 %v8924
        %v9097 = vunpack.c.h.b16 %v8924
        %v9098 = vunpack.c.l.b16 %v8925
        %v9099 = vunpack.c.h.b16 %v8925
        %v9100 = vunpack.c.l.b16 %v8926
        %v9101 = vunpack.c.h.b16 %v8926
        %v9102 = vunpack.c.l.b16 %v8927
        %v9103 = vunpack.c.h.b16 %v8927
        %v9104 = vunpack.c.l.b16 %v8928
        %v9105 = vunpack.c.h.b16 %v8928
        %v9106 = vunpack.c.l.b16 %v8929
        %v9107 = vunpack.c.h.b16 %v8929
        %v9108 = vunpack.c.l.b16 %v8930
        %v9109 = vunpack.c.h.b16 %v8930
        %v9110 = vunpack.c.l.b16 %v8931
        %v9111 = vunpack.c.h.b16 %v8931
        %v9112 = vunpack.c.l.b16 %v8932
        %v9113 = vunpack.c.h.b16 %v8932
        %v9114 = vunpack.c.l.b16 %v8933
        %v9115 = vunpack.c.h.b16 %v8933
        %v9116 = vunpack.c.l.b16 %v8934
        %v9117 = vunpack.c.h.b16 %v8934
        %v9118 = vunpack.c.l.b16 %v8935
        %v9119 = vunpack.c.h.b16 %v8935
        %v9120 = vunpack.c.l.b16 %v8936
        %v9121 = vunpack.c.h.b16 %v8936
        %v9122 = vunpack.c.l.b16 %v8937
        %v9123 = vunpack.c.h.b16 %v8937
        %v9124 = vunpack.c.l.b16 %v8938
        %v9125 = vunpack.c.h.b16 %v8938
        %v9126 = vunpack.c.l.b16 %v8939
        %v9127 = vunpack.c.h.b16 %v8939
        %v9128 = vunpack.c.l.b16 %v8940
        %v9129 = vunpack.c.h.b16 %v8940
        %v9130 = vunpack.c.l.b16 %v8941
        %v9131 = vunpack.c.h.b16 %v8941
        %v9132 = vunpack.c.l.b16 %v8942
        %v9133 = vunpack.c.h.b16 %v8942
        %v9134 = vunpack.c.l.b16 %v8943
        %v9135 = vunpack.c.h.b16 %v8943
        %v9136 = vpack.c.b16 %v9008, %v9008
        %v9137 = vpack.c.b16 %v9009, %v9009
        %v9138 = vpack.c.b16 %v9010, %v9010
        %v9139 = vpack.c.b16 %v9011, %v9011
        %v9140 = vpack.c.b16 %v9012, %v9012
        %v9141 = vpack.c.b16 %v9013, %v9013
        %v9142 = vpack.c.b16 %v9014, %v9014
        %v9143 = vpack.c.b16 %v9015, %v9015
        %v9144 = vpack.c.b16 %v9016, %v9016
        %v9145 = vpack.c.b16 %v9017, %v9017
        %v9146 = vpack.c.b16 %v9018, %v9018
        %v9147 = vpack.c.b16 %v9019, %v9019
        %v9148 = vpack.c.b16 %v9020, %v9020
        %v9149 = vpack.c.b16 %v9021, %v9021
        %v9150 = vpack.c.b16 %v9022, %v9022
        %v9151 = vpack.c.b16 %v9023, %v9023
        %v9152 = vpack.c.b16 %v9024, %v9024
        %v9153 = vpack.c.b16 %v9025, %v9025
        %v9154 = vpack.c.b16 %v9026, %v9026
        %v9155 = vpack.c.b16 %v9027, %v9027
        %v9156 = vpack.c.b16 %v9028, %v9028
        %v9157 = vpack.c.b16 %v9029, %v9029
        %v9158 = vpack.c.b16 %v9030, %v9030
        %v9159 = vpack.c.b16 %v9031, %v9031
        %v9160 = vpack.c.b16 %v9032, %v9032
        %v9161 = vpack.c.b16 %v9033, %v9033
        %v9162 = vpack.c.b16 %v9034, %v9034
        %v9163 = vpack.c.b16 %v9035, %v9035
        %v9164 = vpack.c.b16 %v9036, %v9036
        %v9165 = vpack.c.b16 %v9037, %v9037
        %v9166 = vpack.c.b16 %v9038, %v9038
        %v9167 = vpack.c.b16 %v9039, %v9039
        %v9168 = vpack.c.b16 %v9040, %v9040
        %v9169 = vpack.c.b16 %v9041, %v9041
        %v9170 = vpack.c.b16 %v9042, %v9042
        %v9171 = vpack.c.b16 %v9043, %v9043
        %v9172 = vpack.c.b16 %v9044, %v9044
        %v9173 = vpack.c.b16 %v9045, %v9045
        %v9174 = vpack.c.b16 %v9046, %v9046
        %v9175 = vpack.c.b16 %v9047, %v9047
        %v9176 = vpack.c.b16 %v9048, %v9048
        %v9177 = vpack.c.b16 %v9049, %v9049
        %v9178 = vpack.c.b16 %v9050, %v9050
        %v9179 = vpack.c.b16 %v9051, %v9051
        %v9180 = vpack.c.b16 %v9052, %v9052
        %v9181 = vpack.c.b16 %v9053, %v9053
        %v9182 = vpack.c.b16 %v9054, %v9054
        %v9183 = vpack.c.b16 %v9055, %v9055
        %v9184 = vpack.c.b16 %v9056, %v9056
        %v9185 = vpack.c.b16 %v9057, %v9057
        %v9186 = vpack.c.b16 %v9058, %v9058
        %v9187 = vpack.c.b16 %v9059, %v9059
        %v9188 = vpack.c.b16 %v9060, %v9060
        %v9189 = vpack.c.b16 %v9061, %v9061
        %v9190 = vpack.c.b16 %v9062, %v9062
        %v9191 = vpack.c.b16 %v9063, %v9063
        %v9192 = vpack.c.b16 %v9064, %v9064
        %v9193 = vpack.c.b16 %v9065, %v9065
        %v9194 = vpack.c.b16 %v9066, %v9066
        %v9195 = vpack.c.b16 %v9067, %v9067
        %v9196 = vpack.c.b16 %v9068, %v9068
        %v9197 = vpack.c.b16 %v9069, %v9069
        %v9198 = vpack.c.b16 %v9070, %v9070
        %v9199 = vpack.c.b16 %v9071, %v9071
        %v9200 = vpack.c.b16 %v9072, %v9072
        %v9201 = vpack.c.b16 %v9073, %v9073
        %v9202 = vpack.c.b16 %v9074, %v9074
        %v9203 = vpack.c.b16 %v9075, %v9075
        %v9204 = vpack.c.b16 %v9076, %v9076
        %v9205 = vpack.c.b16 %v9077, %v9077
        %v9206 = vpack.c.b16 %v9078, %v9078
        %v9207 = vpack.c.b16 %v9079, %v9079
        %v9208 = vpack.c.b16 %v9080, %v9080
        %v9209 = vpack.c.b16 %v9081, %v9081
        %v9210 = vpack.c.b16 %v9082, %v9082
        %v9211 = vpack.c.b16 %v9083, %v9083
        %v9212 = vpack.c.b16 %v9084, %v9084
        %v9213 = vpack.c.b16 %v9085, %v9085
        %v9214 = vpack.c.b16 %v9086, %v9086
        %v9215 = vpack.c.b16 %v9087, %v9087
        %v9216 = vpack.c.b16 %v9088, %v9088
        %v9217 = vpack.c.b16 %v9089, %v9089
        %v9218 = vpack.c.b16 %v9090, %v9090
        %v9219 = vpack.c.b16 %v9091, %v9091
        %v9220 = vpack.c.b16 %v9092, %v9092
        %v9221 = vpack.c.b16 %v9093, %v9093
        %v9222 = vpack.c.b16 %v9094, %v9094
        %v9223 = vpack.c.b16 %v9095, %v9095
        %v9224 = vpack.c.b16 %v9096, %v9096
        %v9225 = vpack.c.b16 %v9097, %v9097
        %v9226 = vpack.c.b16 %v9098, %v9098
        %v9227 = vpack.c.b16 %v9099, %v9099
        %v9228 = vpack.c.b16 %v9100, %v9100
        %v9229 = vpack.c.b16 %v9101, %v9101
        %v9230 = vpack.c.b16 %v9102, %v9102
        %v9231 = vpack.c.b16 %v9103, %v9103
        %v9232 = vpack.c.b16 %v9104, %v9104
        %v9233 = vpack.c.b16 %v9105, %v9105
        %v9234 = vpack.c.b16 %v9106, %v9106
        %v9235 = vpack.c.b16 %v9107, %v9107
        %v9236 = vpack.c.b16 %v9108, %v9108
        %v9237 = vpack.c.b16 %v9109, %v9109
        %v9238 = vpack.c.b16 %v9110, %v9110
        %v9239 = vpack.c.b16 %v9111, %v9111
        %v9240 = vpack.c.b16 %v9112, %v9112
        %v9241 = vpack.c.b16 %v9113, %v9113
        %v9242 = vpack.c.b16 %v9114, %v9114
        %v9243 = vpack.c.b16 %v9115, %v9115
        %v9244 = vpack.c.b16 %v9116, %v9116
        %v9245 = vpack.c.b16 %v9117, %v9117
        %v9246 = vpack.c.b16 %v9118, %v9118
        %v9247 = vpack.c.b16 %v9119, %v9119
        %v9248 = vpack.c.b16 %v9120, %v9120
        %v9249 = vpack.c.b16 %v9121, %v9121
        %v9250 = vpack.c.b16 %v9122, %v9122
        %v9251 = vpack.c.b16 %v9123, %v9123
        %v9252 = vpack.c.b16 %v9124, %v9124
        %v9253 = vpack.c.b16 %v9125, %v9125
        %v9254 = vpack.c.b16 %v9126, %v9126
        %v9255 = vpack.c.b16 %v9127, %v9127
        %v9256 = vpack.c.b16 %v9128, %v9128
        %v9257 = vpack.c.b16 %v9129, %v9129
        %v9258 = vpack.c.b16 %v9130, %v9130
        %v9259 = vpack.c.b16 %v9131, %v9131
        %v9260 = vpack.c.b16 %v9132, %v9132
        %v9261 = vpack.c.b16 %v9133, %v9133
        %v9262 = vpack.c.b16 %v9134, %v9134
        %v9263 = vpack.c.b16 %v9135, %v9135
        %9392 = vst [vmem:[%s355] sm:$0xf] %v9136
        %9393 = vst [vmem:[%s355 + $0x4] sm:$0xf] %v9137
        %9394 = vst [vmem:[%s355 + $0x8] sm:$0xf] %v9138
        %9395 = vst [vmem:[%s355 + $0xc] sm:$0xf] %v9139
        %9396 = vst [vmem:[%s355 + $0x10] sm:$0xf] %v9140
        %9397 = vst [vmem:[%s355 + $0x14] sm:$0xf] %v9141
        %9398 = vst [vmem:[%s355 + $0x18] sm:$0xf] %v9142
        %9399 = vst [vmem:[%s355 + $0x1c] sm:$0xf] %v9143
        %9400 = vst [vmem:[%s355 + $0x20] sm:$0xf] %v9144
        %9401 = vst [vmem:[%s355 + $0x24] sm:$0xf] %v9145
        %9402 = vst [vmem:[%s355 + $0x28] sm:$0xf] %v9146
        %9403 = vst [vmem:[%s355 + $0x2c] sm:$0xf] %v9147
        %9404 = vst [vmem:[%s355 + $0x30] sm:$0xf] %v9148
        %9405 = vst [vmem:[%s355 + $0x34] sm:$0xf] %v9149
        %9406 = vst [vmem:[%s355 + $0x38] sm:$0xf] %v9150
        %9407 = vst [vmem:[%s355 + $0x3c] sm:$0xf] %v9151
        %9408 = vst [vmem:[%s355 + $0x40] sm:$0xf] %v9152
        %9409 = vst [vmem:[%s355 + $0x44] sm:$0xf] %v9153
        %9410 = vst [vmem:[%s355 + $0x48] sm:$0xf] %v9154
        %9411 = vst [vmem:[%s355 + $0x4c] sm:$0xf] %v9155
        %9412 = vst [vmem:[%s355 + $0x50] sm:$0xf] %v9156
        %9413 = vst [vmem:[%s355 + $0x54] sm:$0xf] %v9157
        %9414 = vst [vmem:[%s355 + $0x58] sm:$0xf] %v9158
        %9415 = vst [vmem:[%s355 + $0x5c] sm:$0xf] %v9159
        %9416 = vst [vmem:[%s355 + $0x60] sm:$0xf] %v9160
        %9417 = vst [vmem:[%s355 + $0x64] sm:$0xf] %v9161
        %9418 = vst [vmem:[%s355 + $0x68] sm:$0xf] %v9162
        %9419 = vst [vmem:[%s355 + $0x6c] sm:$0xf] %v9163
        %9420 = vst [vmem:[%s355 + $0x70] sm:$0xf] %v9164
        %9421 = vst [vmem:[%s355 + $0x74] sm:$0xf] %v9165
        %9422 = vst [vmem:[%s355 + $0x78] sm:$0xf] %v9166
        %9423 = vst [vmem:[%s355 + $0x7c] sm:$0xf] %v9167
        %9424 = vst [vmem:[%s355 + $0x80] sm:$0xf] %v9168
        %9425 = vst [vmem:[%s355 + $0x84] sm:$0xf] %v9169
        %9426 = vst [vmem:[%s355 + $0x88] sm:$0xf] %v9170
        %9427 = vst [vmem:[%s355 + $0x8c] sm:$0xf] %v9171
        %9428 = vst [vmem:[%s355 + $0x90] sm:$0xf] %v9172
        %9429 = vst [vmem:[%s355 + $0x94] sm:$0xf] %v9173
        %9430 = vst [vmem:[%s355 + $0x98] sm:$0xf] %v9174
        %9431 = vst [vmem:[%s355 + $0x9c] sm:$0xf] %v9175
        %9432 = vst [vmem:[%s355 + $0xa0] sm:$0xf] %v9176
        %9433 = vst [vmem:[%s355 + $0xa4] sm:$0xf] %v9177
        %9434 = vst [vmem:[%s355 + $0xa8] sm:$0xf] %v9178
        %9435 = vst [vmem:[%s355 + $0xac] sm:$0xf] %v9179
        %9436 = vst [vmem:[%s355 + $0xb0] sm:$0xf] %v9180
        %9437 = vst [vmem:[%s355 + $0xb4] sm:$0xf] %v9181
        %9438 = vst [vmem:[%s355 + $0xb8] sm:$0xf] %v9182
        %9439 = vst [vmem:[%s355 + $0xbc] sm:$0xf] %v9183
        %9440 = vst [vmem:[%s355 + $0xc0] sm:$0xf] %v9184
        %9441 = vst [vmem:[%s355 + $0xc4] sm:$0xf] %v9185
        %9442 = vst [vmem:[%s355 + $0xc8] sm:$0xf] %v9186
        %9443 = vst [vmem:[%s355 + $0xcc] sm:$0xf] %v9187
        %9444 = vst [vmem:[%s355 + $0xd0] sm:$0xf] %v9188
        %9445 = vst [vmem:[%s355 + $0xd4] sm:$0xf] %v9189
        %9446 = vst [vmem:[%s355 + $0xd8] sm:$0xf] %v9190
        %9447 = vst [vmem:[%s355 + $0xdc] sm:$0xf] %v9191
        %9448 = vst [vmem:[%s355 + $0xe0] sm:$0xf] %v9192
        %9449 = vst [vmem:[%s355 + $0xe4] sm:$0xf] %v9193
        %9450 = vst [vmem:[%s355 + $0xe8] sm:$0xf] %v9194
        %9451 = vst [vmem:[%s355 + $0xec] sm:$0xf] %v9195
        %9452 = vst [vmem:[%s355 + $0xf0] sm:$0xf] %v9196
        %9453 = vst [vmem:[%s355 + $0xf4] sm:$0xf] %v9197
        %9454 = vst [vmem:[%s355 + $0xf8] sm:$0xf] %v9198
        %9455 = vst [vmem:[%s355 + $0xfc] sm:$0xf] %v9199
        %9456 = vst [vmem:[%s355 + $0x100] sm:$0xf] %v9200
        %9457 = vst [vmem:[%s355 + $0x104] sm:$0xf] %v9201
        %9458 = vst [vmem:[%s355 + $0x108] sm:$0xf] %v9202
        %9459 = vst [vmem:[%s355 + $0x10c] sm:$0xf] %v9203
        %9460 = vst [vmem:[%s355 + $0x110] sm:$0xf] %v9204
        %9461 = vst [vmem:[%s355 + $0x114] sm:$0xf] %v9205
        %9462 = vst [vmem:[%s355 + $0x118] sm:$0xf] %v9206
        %9463 = vst [vmem:[%s355 + $0x11c] sm:$0xf] %v9207
        %9464 = vst [vmem:[%s355 + $0x120] sm:$0xf] %v9208
        %9465 = vst [vmem:[%s355 + $0x124] sm:$0xf] %v9209
        %9466 = vst [vmem:[%s355 + $0x128] sm:$0xf] %v9210
        %9467 = vst [vmem:[%s355 + $0x12c] sm:$0xf] %v9211
        %9468 = vst [vmem:[%s355 + $0x130] sm:$0xf] %v9212
        %9469 = vst [vmem:[%s355 + $0x134] sm:$0xf] %v9213
        %9470 = vst [vmem:[%s355 + $0x138] sm:$0xf] %v9214
        %9471 = vst [vmem:[%s355 + $0x13c] sm:$0xf] %v9215
        %9472 = vst [vmem:[%s355 + $0x140] sm:$0xf] %v9216
        %9473 = vst [vmem:[%s355 + $0x144] sm:$0xf] %v9217
        %9474 = vst [vmem:[%s355 + $0x148] sm:$0xf] %v9218
        %9475 = vst [vmem:[%s355 + $0x14c] sm:$0xf] %v9219
        %9476 = vst [vmem:[%s355 + $0x150] sm:$0xf] %v9220
        %9477 = vst [vmem:[%s355 + $0x154] sm:$0xf] %v9221
        %9478 = vst [vmem:[%s355 + $0x158] sm:$0xf] %v9222
        %9479 = vst [vmem:[%s355 + $0x15c] sm:$0xf] %v9223
        %9480 = vst [vmem:[%s355 + $0x160] sm:$0xf] %v9224
        %9481 = vst [vmem:[%s355 + $0x164] sm:$0xf] %v9225
        %9482 = vst [vmem:[%s355 + $0x168] sm:$0xf] %v9226
        %9483 = vst [vmem:[%s355 + $0x16c] sm:$0xf] %v9227
        %9484 = vst [vmem:[%s355 + $0x170] sm:$0xf] %v9228
        %9485 = vst [vmem:[%s355 + $0x174] sm:$0xf] %v9229
        %9486 = vst [vmem:[%s355 + $0x178] sm:$0xf] %v9230
        %9487 = vst [vmem:[%s355 + $0x17c] sm:$0xf] %v9231
        %9488 = vst [vmem:[%s355 + $0x180] sm:$0xf] %v9232
        %9489 = vst [vmem:[%s355 + $0x184] sm:$0xf] %v9233
        %9490 = vst [vmem:[%s355 + $0x188] sm:$0xf] %v9234
        %9491 = vst [vmem:[%s355 + $0x18c] sm:$0xf] %v9235
        %9492 = vst [vmem:[%s355 + $0x190] sm:$0xf] %v9236
        %9493 = vst [vmem:[%s355 + $0x194] sm:$0xf] %v9237
        %9494 = vst [vmem:[%s355 + $0x198] sm:$0xf] %v9238
        %9495 = vst [vmem:[%s355 + $0x19c] sm:$0xf] %v9239
        %9496 = vst [vmem:[%s355 + $0x1a0] sm:$0xf] %v9240
        %9497 = vst [vmem:[%s355 + $0x1a4] sm:$0xf] %v9241
        %9498 = vst [vmem:[%s355 + $0x1a8] sm:$0xf] %v9242
        %9499 = vst [vmem:[%s355 + $0x1ac] sm:$0xf] %v9243
        %9500 = vst [vmem:[%s355 + $0x1b0] sm:$0xf] %v9244
        %9501 = vst [vmem:[%s355 + $0x1b4] sm:$0xf] %v9245
        %9502 = vst [vmem:[%s355 + $0x1b8] sm:$0xf] %v9246
        %9503 = vst [vmem:[%s355 + $0x1bc] sm:$0xf] %v9247
        %9504 = vst [vmem:[%s355 + $0x1c0] sm:$0xf] %v9248
        %9505 = vst [vmem:[%s355 + $0x1c4] sm:$0xf] %v9249
        %9506 = vst [vmem:[%s355 + $0x1c8] sm:$0xf] %v9250
        %9507 = vst [vmem:[%s355 + $0x1cc] sm:$0xf] %v9251
        %9508 = vst [vmem:[%s355 + $0x1d0] sm:$0xf] %v9252
        %9509 = vst [vmem:[%s355 + $0x1d4] sm:$0xf] %v9253
        %9510 = vst [vmem:[%s355 + $0x1d8] sm:$0xf] %v9254
        %9511 = vst [vmem:[%s355 + $0x1dc] sm:$0xf] %v9255
        %9512 = vst [vmem:[%s355 + $0x1e0] sm:$0xf] %v9256
        %9513 = vst [vmem:[%s355 + $0x1e4] sm:$0xf] %v9257
        %9514 = vst [vmem:[%s355 + $0x1e8] sm:$0xf] %v9258
        %9515 = vst [vmem:[%s355 + $0x1ec] sm:$0xf] %v9259
        %9516 = vst [vmem:[%s355 + $0x1f0] sm:$0xf] %v9260
        %9517 = vst [vmem:[%s355 + $0x1f4] sm:$0xf] %v9261
        %9518 = vst [vmem:[%s355 + $0x1f8] sm:$0xf] %v9262
        %9519 = vst [vmem:[%s355 + $0x1fc] sm:$0xf] %v9263
        %s9520 = sand.u32 %s171, 1
        %s9521 = scalar_lea.sflag [#allocation4], %s9520
        %s9522 = sand.u32 %s171, 1
        %s9523 = smul.addr %s9522, 512
        %s9524 = scalar_lea.vmem [#allocation11], %s9523
        %s9525 = sand.u32 %s199, 1
        %s9526 = scalar_lea.sflag [#allocation13], %s9525
        %s9527 = sand.u32 %s199, 1
        %s9528 = smul.addr %s9527, 2
        %s9529 = scalar_lea.vmem [#allocation12], %s9528
        // Predicated region
        $region61: #{tpu_custom_call.1} parent=39 // pred_check
          %p9530 = pneg %p181
        $region62: #{tpu_custom_call.1} parent=39 // pred_check_branch
          %9532 = sbr.rel (%p9530) target = $region64
        $region63: #{tpu_custom_call.1} parent=39 // pred_region
          %s9534 = ssub.s32 8192, 8192
          %9535 = vsyncadd %s9521, %s9534
          %s9536 = smul.addr %s33, 128
          %s9537 = sadd.s32 %s34, %s9536
          %s9538 = smul.addr %s9537, 64
          %s9539 = scalar_lea.hbm %s5, %s9538
          %s9540 = sshll.u32 %s9524, 4
          %s9541 = int_to_ptr.vmem [resolvable:$true] %s9540
          %9546 = dma.vmem_to_hbm [thread:$0]  %s9541, 8192, %s9539, %s9521, 64, 64, 4
        $region64: #{tpu_custom_call.1} parent=39 // pred_fallthru
          _
        // Predicated region
        $region65: #{tpu_custom_call.1} parent=39 // pred_check
          %p9547 = pneg %p209
        $region66: #{tpu_custom_call.1} parent=39 // pred_check_branch
          %9549 = sbr.rel (%p9547) target = $region68
        $region67: #{tpu_custom_call.1} parent=39 // pred_region
          %s9551 = ssub.s32 32, 32
          %9552 = vsyncadd %s9526, %s9551
          %s9553 = sadd.s32 %s34, %s33
          %s9554 = smul.addr %s9553, 32
          %s9555 = scalar_lea.hbm %s6, %s9554
          %s9557 = sshll.u32 %s9529, 4
          %s9558 = int_to_ptr.vmem [resolvable:$true] %s9557
          %9560 = dma.vmem_to_hbm [thread:$0]  %s9558, 32, %s9555, %s9526
        $region68: #{tpu_custom_call.1} parent=39 // pred_fallthru
          _
      $region40: #{tpu_custom_call.1} parent=5 // pred_fallthru
        _
      %p9561 = scmp.le.s32.totalorder 2, %s24
      // Predicated region
      $region69: #{tpu_custom_call.1} parent=5 // pred_check
        %p9562 = pneg %p9561
      $region70: #{tpu_custom_call.1} parent=5 // pred_check_branch
        %9564 = sbr.rel (%p9562) target = $region72
      $region71: #{tpu_custom_call.1} parent=5 // pred_region
        %s9565 = ssub.s32 %s24, 2
        // Predicated region
        $region73: #{tpu_custom_call.1} parent=71 // pred_check
          %p9566 = pneg %p187
        $region74: #{tpu_custom_call.1} parent=71 // pred_check_branch
          %9568 = sbr.rel (%p9566) target = $region76
        $region75: #{tpu_custom_call.1} parent=71 // pred_region
          %s9569 = sand.u32 %s172, 1
          %s9570 = scalar_lea.sflag [#allocation4], %s9569
          %s9571 = sand.u32 %s172, 1
          %s9572 = smul.addr %s9571, 512
          %s9573 = scalar_lea.vmem [#allocation11], %s9572
          %9574 = dma.done %s9570, 8192
        $region76: #{tpu_custom_call.1} parent=71 // pred_fallthru
          _
        // Predicated region
        $region77: #{tpu_custom_call.1} parent=71 // pred_check
          %p9575 = pneg %p215
        $region78: #{tpu_custom_call.1} parent=71 // pred_check_branch
          %9577 = sbr.rel (%p9575) target = $region80
        $region79: #{tpu_custom_call.1} parent=71 // pred_region
          %s9578 = sand.u32 %s200, 1
          %s9579 = scalar_lea.sflag [#allocation13], %s9578
          %s9580 = sand.u32 %s200, 1
          %s9581 = smul.addr %s9580, 2
          %s9582 = scalar_lea.vmem [#allocation12], %s9581
          %9583 = dma.done %s9579, 32
        $region80: #{tpu_custom_call.1} parent=71 // pred_fallthru
          _
      $region72: #{tpu_custom_call.1} parent=5 // pred_fallthru
        _
    $region6: #{tpu_custom_call.1} parent=1 // loop_footer
      %s28 = sadd.s32 1, %s24
    $region7: #{tpu_custom_call.1} parent=1 // loop_footer_branch
      %23 = sbr.rel target = $region3
    $region8: #{tpu_custom_call.1} parent=1 // loop_exit
      _
    %9584 = vsyncpa [#allocation3], 1
    %s9585 = scalar_lea.sflag [#allocation3], 1
    %9586 = vsyncpa %s9585, 1
    %9587 = vsyncpa [#allocation6], 1
    %9588 = vsyncpa [#allocation9], 1
    %9589 = vsyncpa [#allocation4], 1
    %s9590 = scalar_lea.sflag [#allocation4], 1
    %9591 = vsyncpa %s9590, 1
    %9592 = vsyncpa [#allocation13], 1
    %s9593 = scalar_lea.sflag [#allocation13], 1
    %9594 = vsyncpa %s9593, 1

</llo_original>
